<compile_context>
chip_gen: v7x
topology: tpu7x:2x2x1
jax: 0.10.0
libtpu: 0.0.40
codegen_flags: <defaults>
</compile_context>

<pallas_src>
import functools
import math

import jax
import jax.numpy as jnp
from jax.experimental import pallas as pl
from jax.experimental.pallas import tpu as pltpu

_VMEM_LIMIT = 64 * 1024 * 1024


def _pick_tile(n, mult, max_tile):
    """Largest t <= max_tile with t % mult == 0 and n % t == 0, else n (full)."""
    if n <= max_tile:
        return n
    t = (max_tile // mult) * mult
    while t >= mult:
        if n % t == 0:
            return t
        t -= mult
    return n


# --------------------- fused LayerNorm + stacked projections ---------------------

def _ln_multiproj_kernel(*refs, eps, apply_ln, n_out):
    if apply_ln:
        x_ref, g_ref, b_ref, w_ref, bias_ref = refs[:5]
        out_refs = refs[5:]
    else:
        x_ref, w_ref, bias_ref = refs[:3]
        out_refs = refs[3:]

    x = x_ref[0].astype(jnp.float32)                        # (ts, H)
    if apply_ln:
        mu = jnp.mean(x, axis=-1, keepdims=True)
        xc = x - mu
        var = jnp.mean(xc * xc, axis=-1, keepdims=True)
        x = xc * jax.lax.rsqrt(var + eps) * g_ref[...] + b_ref[...]

    xb = x.astype(jnp.bfloat16)                             # bf16 into the MXU
    for t in range(n_out):                                  # static unroll
        y = jnp.dot(xb, w_ref[t], preferred_element_type=jnp.float32)
        out_refs[t][0] = (y + bias_ref[t:t + 1, :]).astype(out_refs[t].dtype)


def pallas_ln_multiproj(x, w_stack_bf16, b_stack, gamma=None, beta=None,
                        eps=1e-6, out_dtype=jnp.bfloat16):
    """x: [B,S,H]; w_stack: [n,H,Dout] bf16; b_stack: [n,Dout] f32.
    Returns n arrays of [B,S,Dout] in `out_dtype` (bf16 for attention operands
    -> half the intermediate HBM traffic).  If gamma/beta are given, LayerNorm
    is applied in the kernel prologue (fused, no extra HBM round-trip)."""
    b, s, hdim = x.shape
    n_out, _, dout = w_stack_bf16.shape
    apply_ln = gamma is not None

    ts = _pick_tile(s, 8, 512)                              # row tiling for pipelining
    grid = (b, s // ts)

    x_spec = pl.BlockSpec((1, ts, hdim), lambda i, j: (i, j, 0))
    out_spec = pl.BlockSpec((1, ts, dout), lambda i, j: (i, j, 0))
    w_spec = pl.BlockSpec((n_out, hdim, dout), lambda i, j: (0, 0, 0))
    bias_spec = pl.BlockSpec((n_out, dout), lambda i, j: (0, 0))
    ln_spec = pl.BlockSpec((1, hdim), lambda i, j: (0, 0))

    if apply_ln:
        in_specs = [x_spec, ln_spec, ln_spec, w_spec, bias_spec]
        args = (x, gamma.reshape(1, hdim), beta.reshape(1, hdim),
                w_stack_bf16, b_stack)
    else:
        in_specs = [x_spec, w_spec, bias_spec]
        args = (x, w_stack_bf16, b_stack)

    out_shapes = tuple(jax.ShapeDtypeStruct((b, s, dout), out_dtype)
                       for _ in range(n_out))
    return pl.pallas_call(
        functools.partial(_ln_multiproj_kernel, eps=eps,
                          apply_ln=apply_ln, n_out=n_out),
        out_shape=out_shapes,
        grid=grid,
        in_specs=in_specs,
        out_specs=tuple(out_spec for _ in range(n_out)),
        compiler_params=pltpu.CompilerParams(
            dimension_semantics=("parallel", "parallel"),
            vmem_limit_bytes=_VMEM_LIMIT),
    )(*args)


# ---- flash-style attention (online softmax) + fused out-proj + residual ----

def _flash_attn_kernel(*refs, heads, dk, scale, use_rel, max_rel):
    if use_rel:
        (q_ref, k_ref, v_ref, mask_ref, wrel_ref,
         wo_ref, bo_ref, res_ref, o_ref, m_sc, l_sc, acc_sc) = refs
    else:
        (q_ref, k_ref, v_ref, mask_ref,
         wo_ref, bo_ref, res_ref, o_ref, m_sc, l_sc, acc_sc) = refs

    ki = pl.program_id(2)
    nk = pl.num_programs(2)

    @pl.when(ki == 0)
    def _init():
        m_sc[...] = jnp.full(m_sc.shape, -1e30, m_sc.dtype)
        l_sc[...] = jnp.zeros(l_sc.shape, l_sc.dtype)
        acc_sc[...] = jnp.zeros(acc_sc.shape, acc_sc.dtype)

    # ----- prologue shared by all heads (once per (b, qi, ki) step) -----
    q_full = (q_ref[0].astype(jnp.float32) * scale).astype(jnp.bfloat16)  # (tq,H)
    k_full = k_ref[0]                                       # (tk, H) bf16
    v_full = v_ref[0]                                       # (tk, H) bf16
    tq = q_full.shape[0]
    tk = k_full.shape[0]
    # additive mask bias: 0 where attend, -1e9 where masked (one pass per batch tile)
    mbias = (mask_ref[0].astype(jnp.float32) - 1.0) * 1e9   # (tq, tk)

    if use_rel:
        R = 2 * max_rel + 1
        # Shaw term for ALL heads in ONE full-depth matmul (block-diag W_rel).
        qr_all = jnp.dot(q_full, wrel_ref[...],
                         preferred_element_type=jnp.float32)  # (tq, heads*R)
        qi0 = pl.program_id(1) * tq
        ki0 = ki * tk
        i_idx = qi0 + jax.lax.broadcasted_iota(jnp.int32, (tq, tk), 0)
        j_idx = ki0 + jax.lax.broadcasted_iota(jnp.int32, (tq, tk), 1)
        ridx = jnp.clip(j_idx - i_idx, -max_rel, max_rel) + max_rel

    for h in range(heads):                                  # static unroll over heads
        lo, hi = h * dk, (h + 1) * dk
        qh = q_full[:, lo:hi]                               # (tq, dk) bf16 (pre-scaled)
        kh = k_full[:, lo:hi]                               # (tk, dk) bf16
        vh = v_full[:, lo:hi]                               # (tk, dk) bf16

        s = jax.lax.dot_general(qh, kh, (((1,), (1,)), ((), ())),
                                preferred_element_type=jnp.float32)  # (tq, tk)
        if use_rel:
            qr_h = qr_all[:, h * R:(h + 1) * R]
            for r in range(R):                              # diagonal-band scatter
                s = s + jnp.where(ridx == r, qr_h[:, r:r + 1], 0.0)
        s = s + mbias                                       # masked_fill(mask==0,-1e9)

        # online softmax update (per head)
        m_prev = m_sc[:, h:h + 1]
        l_prev = l_sc[:, h:h + 1]
        m_new = jnp.maximum(m_prev, jnp.max(s, axis=-1, keepdims=True))
        alpha = jnp.exp(m_prev - m_new)
        p = jnp.exp(s - m_new)
        l_new = alpha * l_prev + jnp.sum(p, axis=-1, keepdims=True)
        pv = jnp.dot(p.astype(jnp.bfloat16), vh,
                     preferred_element_type=jnp.float32)    # (tq, dk)
        acc_sc[:, lo:hi] = alpha * acc_sc[:, lo:hi] + pv
        m_sc[:, h:h + 1] = m_new
        l_sc[:, h:h + 1] = l_new

    @pl.when(ki == nk - 1)
    def _finalize():
        # normalize per head, then ONE full-depth (tq,H)@(H,H) output projection
        for h in range(heads):
            lo, hi = h * dk, (h + 1) * dk
            acc_sc[:, lo:hi] = acc_sc[:, lo:hi] / l_sc[:, h:h + 1]
        ctx = acc_sc[...].astype(jnp.bfloat16)              # (tq, H)
        o_ref[0] = (res_ref[0] + bo_ref[...]
                    + jnp.dot(ctx, wo_ref[...],
                              preferred_element_type=jnp.float32))


def pallas_attention_block(q, k, v, mask, wo_bf16, bo, residual, heads,
                           w_rel=None, max_rel=0):
    """q: [B,Sq,H] bf16; k,v: [B,Sk,H] bf16; mask: [B,Sq,Sk] (1=attend, 0=masked,
    any float dtype, bf16 recommended); residual: [B,Sq,H] f32.
    Returns residual + OutProj(MultiHeadAttention(q, k, v))  (f32)."""
    b, sq, hdim = q.shape
    sk = k.shape[1]
    dk = hdim // heads
    scale = 1.0 / math.sqrt(dk)
    use_rel = w_rel is not None

    tq = _pick_tile(sq, 8, 256)      # sublane-aligned query tiles
    tk = _pick_tile(sk, 128, 512)    # lane-aligned key tiles (mask lane dim)
    grid = (b, sq // tq, sk // tk)

    kernel = functools.partial(_flash_attn_kernel, heads=heads, dk=dk,
                               scale=scale, use_rel=use_rel, max_rel=max_rel)

    q_spec = pl.BlockSpec((1, tq, hdim), lambda i, j, l: (i, j, 0))
    kv_spec = pl.BlockSpec((1, tk, hdim), lambda i, j, l: (i, l, 0))
    mask_spec = pl.BlockSpec((1, tq, tk), lambda i, j, l: (i, j, l))
    wo_spec = pl.BlockSpec((hdim, hdim), lambda i, j, l: (0, 0))
    bo_spec = pl.BlockSpec((1, hdim), lambda i, j, l: (0, 0))
    res_spec = pl.BlockSpec((1, tq, hdim), lambda i, j, l: (i, j, 0))
    out_spec = pl.BlockSpec((1, tq, hdim), lambda i, j, l: (i, j, 0))

    if use_rel:
        nrel = w_rel.shape[1]
        in_specs = [q_spec, kv_spec, kv_spec, mask_spec,
                    pl.BlockSpec((hdim, nrel), lambda i, j, l: (0, 0)),
                    wo_spec, bo_spec, res_spec]
        args = (q, k, v, mask, w_rel, wo_bf16, bo.reshape(1, hdim), residual)
    else:
        in_specs = [q_spec, kv_spec, kv_spec, mask_spec,
                    wo_spec, bo_spec, res_spec]
        args = (q, k, v, mask, wo_bf16, bo.reshape(1, hdim), residual)

    return pl.pallas_call(
        kernel,
        out_shape=jax.ShapeDtypeStruct((b, sq, hdim), jnp.float32),
        grid=grid,
        in_specs=in_specs,
        out_specs=out_spec,
        scratch_shapes=[pltpu.VMEM((tq, heads), jnp.float32),   # m_i per head
                        pltpu.VMEM((tq, heads), jnp.float32),   # l_i per head
                        pltpu.VMEM((tq, hdim), jnp.float32)],   # ctx accumulator
        compiler_params=pltpu.CompilerParams(
            dimension_semantics=("parallel", "parallel", "arbitrary"),
            vmem_limit_bytes=_VMEM_LIMIT),
    )(*args)


# ------------- gated tree-conv: LN prologue + k=3 conv + gate + residual -------------

def _gcnn_kernel(*refs, eps, use_left):
    if use_left:
        x_ref, left_ref, par_ref, g_ref, b_ref, w_ref, bias_ref, o_ref = refs
    else:
        x_ref, par_ref, g_ref, b_ref, w_ref, bias_ref, o_ref = refs

    x = x_ref[0]                                            # (S, H) f32 residual/LN source
    mu = jnp.mean(x, axis=-1, keepdims=True)
    xc = x - mu
    var = jnp.mean(xc * xc, axis=-1, keepdims=True)
    xn = xc * jax.lax.rsqrt(var + eps) * g_ref[...] + b_ref[...]

    h = xn + par_ref[0]
    if use_left:
        h = h + left_ref[0]

    s, hdim = h.shape
    row = jax.lax.broadcasted_iota(jnp.int32, (s, hdim), 0)
    # k=3 'same' zero-padded taps via sublane roll (XLU) + one-row zero mask.
    h_prev = jnp.where(row == 0, 0.0, pltpu.roll(h, shift=1, axis=0))           # x[s-1]
    h_next = jnp.where(row == s - 1, 0.0, pltpu.roll(h, shift=s - 1, axis=0))   # x[s+1]

    # w_ref: (3, H, 2H) bf16 with output columns = [gate | value]
    acc = (jnp.dot(h_prev.astype(jnp.bfloat16), w_ref[0],
                   preferred_element_type=jnp.float32)
           + jnp.dot(h.astype(jnp.bfloat16), w_ref[1],
                     preferred_element_type=jnp.float32)
           + jnp.dot(h_next.astype(jnp.bfloat16), w_ref[2],
                     preferred_element_type=jnp.float32)
           + bias_ref[...])                                 # (S, 2H)

    gate = jax.nn.sigmoid(acc[:, :hdim])
    val = acc[:, hdim:]
    o_ref[0] = x + val * gate                               # residual fused


def pallas_gcnn_block(x, left, parent, ln_g, ln_b, gcnn_p, eps=1e-6):
    b, s, hdim = x.shape
    use_left = left is not None
    kernel = functools.partial(_gcnn_kernel, eps=eps, use_left=use_left)

    x_spec = pl.BlockSpec((1, s, hdim), lambda i: (i, 0, 0))
    ln_spec = pl.BlockSpec((1, hdim), lambda i: (0, 0))
    w_spec = pl.BlockSpec((3, hdim, 2 * hdim), lambda i: (0, 0, 0))
    bias_spec = pl.BlockSpec((1, 2 * hdim), lambda i: (0, 0))

    if use_left:
        in_specs = [x_spec, x_spec, x_spec, ln_spec, ln_spec, w_spec, bias_spec]
        args = (x, left, parent, ln_g.reshape(1, hdim), ln_b.reshape(1, hdim),
                gcnn_p["w"], gcnn_p["b"].reshape(1, 2 * hdim))
    else:
        in_specs = [x_spec, x_spec, ln_spec, ln_spec, w_spec, bias_spec]
        args = (x, parent, ln_g.reshape(1, hdim), ln_b.reshape(1, hdim),
                gcnn_p["w"], gcnn_p["b"].reshape(1, 2 * hdim))

    return pl.pallas_call(
        kernel,
        out_shape=jax.ShapeDtypeStruct((b, s, hdim), jnp.float32),
        grid=(b,),
        in_specs=in_specs,
        out_specs=x_spec,
        compiler_params=pltpu.CompilerParams(
            dimension_semantics=("parallel",),
            vmem_limit_bytes=_VMEM_LIMIT),
    )(*args)


# ----------------------------------- block glue -----------------------------------

def right_transformer_block(params, x, mask, inputleft, leftmask, inputParent,
                            lefttree, heads, max_rel):
    # sublayer1: relative self-attention, q = k = v = LayerNorm(x); residual fused.
    q1, k1, v1 = pallas_ln_multiproj(x, params["attn1"]["w_qkv"],
                                     params["attn1"]["b_qkv"],
                                     gamma=params["ln1_g"], beta=params["ln1_b"],
                                     out_dtype=jnp.bfloat16)
    x = pallas_attention_block(q1, k1, v1, mask, params["attn1"]["wo"],
                               params["attn1"]["bo"], x, heads,
                               w_rel=params["attn1"]["w_rel"], max_rel=max_rel)
    # fp16 inf-clamp branch: no-op in float32.

    # sublayer3: cross attention onto the left context (key/value NOT normalized).
    (q2,) = pallas_ln_multiproj(x, params["attn2"]["w_q"], params["attn2"]["b_q"],
                                gamma=params["ln3_g"], beta=params["ln3_b"],
                                out_dtype=jnp.bfloat16)
    k2, v2 = pallas_ln_multiproj(inputleft, params["attn2"]["w_kv"],
                                 params["attn2"]["b_kv"], out_dtype=jnp.bfloat16)
    x = pallas_attention_block(q2, k2, v2, leftmask, params["attn2"]["wo"],
                               params["attn2"]["bo"], x, heads)

    # sublayer4: gated tree-conv over parent (+ left) features; LN + residual fused.
    x = pallas_gcnn_block(x, inputleft if lefttree else None, inputParent,
                          params["ln4_g"], params["ln4_b"], params["gcnn"])
    # final nn.Dropout is identity at inference.
    return x


def init_params(key, hidden, heads, max_rel):
    dk = hidden // heads
    nrel = 2 * max_rel + 1
    ks = iter(jax.random.split(key, 32))

    def w(shape, scale, dtype=jnp.float32):
        return (jax.random.normal(next(ks), shape, jnp.float32) * scale).astype(dtype)

    sc = 1.0 / math.sqrt(hidden)

    # Shared Shaw table (dk, 2M+1), replicated block-diagonally so ONE matmul
    # produces the rel logits for all heads: W_rel[h*dk:(h+1)*dk, h*R:(h+1)*R] = E^T.
    rel_emb_t = w((dk, nrel), 0.1)
    w_rel = jnp.zeros((hidden, heads * nrel), jnp.float32)
    for h in range(heads):
        w_rel = w_rel.at[h * dk:(h + 1) * dk, h * nrel:(h + 1) * nrel].set(rel_emb_t)

    return {
        "attn1": {
            "w_qkv": w((3, hidden, hidden), sc, jnp.bfloat16),   # stacked Wq|Wk|Wv
            "b_qkv": w((3, hidden), 0.02),
            "wo": w((hidden, hidden), sc, jnp.bfloat16),
            "bo": w((hidden,), 0.02),
            "w_rel": w_rel.astype(jnp.bfloat16),                 # block-diag Shaw table^T
        },
        "attn2": {
            "w_q": w((1, hidden, hidden), sc, jnp.bfloat16),
            "b_q": w((1, hidden), 0.02),
            "w_kv": w((2, hidden, hidden), sc, jnp.bfloat16),    # stacked Wk|Wv
            "b_kv": w((2, hidden), 0.02),
            "wo": w((hidden, hidden), sc, jnp.bfloat16),
            "bo": w((hidden,), 0.02),
        },
        "gcnn": {
            # taps [prev, center, next]; output columns = [gate | value]
            "w": w((3, hidden, 2 * hidden), 1.0 / math.sqrt(3 * hidden), jnp.bfloat16),
            "b": w((2 * hidden,), 0.02),
        },
        "ln1_g": jnp.ones((hidden,), jnp.float32),
        "ln1_b": jnp.zeros((hidden,), jnp.float32),
        "ln3_g": jnp.ones((hidden,), jnp.float32),
        "ln3_b": jnp.zeros((hidden,), jnp.float32),
        "ln4_g": jnp.ones((hidden,), jnp.float32),
        "ln4_b": jnp.zeros((hidden,), jnp.float32),
    }


if __name__ == "__main__":
    B, S, HIDDEN, HEADS, MAX_REL = 2, 8, 32, 4, 4
    key = jax.random.PRNGKey(0)
    kp, kx, kl, kpar = jax.random.split(key, 4)

    params = init_params(kp, HIDDEN, HEADS, MAX_REL)
    x = jax.random.normal(kx, (B, S, HIDDEN), jnp.float32)
    inputleft = jax.random.normal(kl, (B, S, HIDDEN), jnp.float32)
    inputParent = jax.random.normal(kpar, (B, S, HIDDEN), jnp.float32)
    # mask semantics: 1 = attend, 0 = masked (-> -1e9 bias before softmax).
    # Built in bf16 so the O(S^2) mask DMA is halved vs f32.
    mask = jnp.broadcast_to(jnp.tril(jnp.ones((S, S), jnp.float32)),
                            (B, S, S)).astype(jnp.bfloat16)
    leftmask = (jnp.ones((B, S, S), jnp.float32)
                .at[:, :, -2:].set(0.0)).astype(jnp.bfloat16)

    fwd = jax.jit(functools.partial(right_transformer_block,
                                    lefttree=True, heads=HEADS, max_rel=MAX_REL))
    out = fwd(params, x, mask, inputleft, leftmask, inputParent)
    out = jax.block_until_ready(out)

    assert out.shape == (B, S, HIDDEN)
    assert bool(jnp.all(jnp.isfinite(out)))
    print("KERNEL_OK")
</pallas_src>

<mosaic_0001>
module attributes {stable_mosaic.version = 11 : i64} {
  func.func @_ln_multiproj_kernel(%arg0: i32, %arg1: i32, %arg2: memref<1x8x32xf32, #tpu.memory_space<vmem>>, %arg3: memref<2x32x32xbf16, #tpu.memory_space<vmem>>, %arg4: memref<2x32xf32, #tpu.memory_space<vmem>>, %arg5: memref<1x8x32xbf16, #tpu.memory_space<vmem>>, %arg6: memref<1x8x32xbf16, #tpu.memory_space<vmem>>) attributes {dimension_semantics = [#tpu.dimension_semantics<parallel>, #tpu.dimension_semantics<parallel>], iteration_bounds = array<i64: 2, 1>, scalar_prefetch = 0 : i64, scratch_operands = 0 : i64, tpu.core_type = #tpu.core_type<tc>, window_params = [{transform_indices = @transform_0, window_bounds = array<i64: 1, 8, 32>}, {pipeline_mode = #tpu.pipeline_mode<synchronous>, transform_indices = @transform_1, window_bounds = array<i64: 2, 32, 32>}, {pipeline_mode = #tpu.pipeline_mode<synchronous>, transform_indices = @transform_2, window_bounds = array<i64: 2, 32>}, {transform_indices = @transform_3, window_bounds = array<i64: 1, 8, 32>}, {transform_indices = @transform_4, window_bounds = array<i64: 1, 8, 32>}]} {
    %c0 = arith.constant 0 : index
    %c0_0 = arith.constant 0 : index
    %c0_1 = arith.constant 0 : index
    %0 = vector.load %arg2[%c0, %c0_0, %c0_1] : memref<1x8x32xf32, #tpu.memory_space<vmem>>, vector<1x8x32xf32>
    %1 = vector.shape_cast %0 : vector<1x8x32xf32> to vector<8x32xf32>
    %2 = arith.truncf %1 : vector<8x32xf32> to vector<8x32xbf16>
    %c0_2 = arith.constant 0 : index
    %c0_3 = arith.constant 0 : index
    %c0_4 = arith.constant 0 : index
    %3 = vector.load %arg3[%c0_2, %c0_3, %c0_4] : memref<2x32x32xbf16, #tpu.memory_space<vmem>>, vector<1x32x32xbf16>
    %4 = vector.shape_cast %3 : vector<1x32x32xbf16> to vector<32x32xbf16>
    %cst = arith.constant dense<0.000000e+00> : vector<8x32xf32>
    %5 = tpu.matmul %2, %4, %cst {dimension_numbers = #tpu.dot_dimension_numbers<[1], [0], [0], [1], [0, 0, 1, 1], [], []>} : vector<8x32xbf16>, vector<32x32xbf16>, vector<8x32xf32> -> vector<8x32xf32>
    %c0_5 = arith.constant 0 : index
    %c0_6 = arith.constant 0 : index
    %6 = vector.load %arg4[%c0_5, %c0_6] : memref<2x32xf32, #tpu.memory_space<vmem>>, vector<1x32xf32>
    %7 = vector.broadcast %6 : vector<1x32xf32> to vector<8x32xf32>
    %8 = arith.addf %5, %7 : vector<8x32xf32>
    %9 = arith.truncf %8 : vector<8x32xf32> to vector<8x32xbf16>
    %c0_7 = arith.constant 0 : index
    %c0_8 = arith.constant 0 : index
    %c0_9 = arith.constant 0 : index
    %10 = vector.load %arg5[%c0_7, %c0_8, %c0_9] : memref<1x8x32xbf16, #tpu.memory_space<vmem>>, vector<1x8x32xbf16>
    %11 = vector.shape_cast %10 : vector<1x8x32xbf16> to vector<8x32xbf16>
    %12 = vector.shape_cast %9 : vector<8x32xbf16> to vector<1x8x32xbf16>
    tpu.vector_store %arg5[%c0_7, %c0_8, %c0_9], %12 {strides = array<i32>} : memref<1x8x32xbf16, #tpu.memory_space<vmem>>, vector<1x8x32xbf16>,
    %c1 = arith.constant 1 : index
    %c0_10 = arith.constant 0 : index
    %c0_11 = arith.constant 0 : index
    %13 = vector.load %arg3[%c1, %c0_10, %c0_11] : memref<2x32x32xbf16, #tpu.memory_space<vmem>>, vector<1x32x32xbf16>
    %14 = vector.shape_cast %13 : vector<1x32x32xbf16> to vector<32x32xbf16>
    %cst_12 = arith.constant dense<0.000000e+00> : vector<8x32xf32>
    %15 = tpu.matmul %2, %14, %cst_12 {dimension_numbers = #tpu.dot_dimension_numbers<[1], [0], [0], [1], [0, 0, 1, 1], [], []>} : vector<8x32xbf16>, vector<32x32xbf16>, vector<8x32xf32> -> vector<8x32xf32>
    %c1_13 = arith.constant 1 : index
    %c0_14 = arith.constant 0 : index
    %16 = vector.load %arg4[%c1_13, %c0_14] : memref<2x32xf32, #tpu.memory_space<vmem>>, vector<1x32xf32>
    %17 = vector.broadcast %16 : vector<1x32xf32> to vector<8x32xf32>
    %18 = arith.addf %15, %17 : vector<8x32xf32>
    %19 = arith.truncf %18 : vector<8x32xf32> to vector<8x32xbf16>
    %c0_15 = arith.constant 0 : index
    %c0_16 = arith.constant 0 : index
    %c0_17 = arith.constant 0 : index
    %20 = vector.load %arg6[%c0_15, %c0_16, %c0_17] : memref<1x8x32xbf16, #tpu.memory_space<vmem>>, vector<1x8x32xbf16>
    %21 = vector.shape_cast %20 : vector<1x8x32xbf16> to vector<8x32xbf16>
    %22 = vector.shape_cast %19 : vector<8x32xbf16> to vector<1x8x32xbf16>
    tpu.vector_store %arg6[%c0_15, %c0_16, %c0_17], %22 {strides = array<i32>} : memref<1x8x32xbf16, #tpu.memory_space<vmem>>, vector<1x8x32xbf16>,
    return
  }
  func.func @transform_0(%arg0: i32, %arg1: i32) -> (i32, i32, i32) {
    %c0_i32 = arith.constant 0 : i32
    %c0_i32_0 = arith.constant 0 : i32
    return %arg0, %arg1, %c0_i32 : i32, i32, i32
  }
  func.func @transform_1(%arg0: i32, %arg1: i32) -> (i32, i32, i32) {
    %c0_i32 = arith.constant 0 : i32
    %c0_i32_0 = arith.constant 0 : i32
    %c0_i32_1 = arith.constant 0 : i32
    %c0_i32_2 = arith.constant 0 : i32
    return %c0_i32, %c0_i32_0, %c0_i32_1 : i32, i32, i32
  }
  func.func @transform_2(%arg0: i32, %arg1: i32) -> (i32, i32) {
    %c0_i32 = arith.constant 0 : i32
    %c0_i32_0 = arith.constant 0 : i32
    %c0_i32_1 = arith.constant 0 : i32
    return %c0_i32, %c0_i32_0 : i32, i32
  }
  func.func @transform_3(%arg0: i32, %arg1: i32) -> (i32, i32, i32) {
    %c0_i32 = arith.constant 0 : i32
    %c0_i32_0 = arith.constant 0 : i32
    return %arg0, %arg1, %c0_i32 : i32, i32, i32
  }
  func.func @transform_4(%arg0: i32, %arg1: i32) -> (i32, i32, i32) {
    %c0_i32 = arith.constant 0 : i32
    %c0_i32_0 = arith.constant 0 : i32
    return %arg0, %arg1, %c0_i32 : i32, i32, i32
  }
}

module attributes {stable_mosaic.version = 11 : i64} {
  func.func @_ln_multiproj_kernel(%arg0: i32, %arg1: i32, %arg2: memref<1x8x32xf32, #tpu.memory_space<vmem>>, %arg3: memref<1x32xf32, #tpu.memory_space<vmem>>, %arg4: memref<1x32xf32, #tpu.memory_space<vmem>>, %arg5: memref<3x32x32xbf16, #tpu.memory_space<vmem>>, %arg6: memref<3x32xf32, #tpu.memory_space<vmem>>, %arg7: memref<1x8x32xbf16, #tpu.memory_space<vmem>>, %arg8: memref<1x8x32xbf16, #tpu.memory_space<vmem>>, %arg9: memref<1x8x32xbf16, #tpu.memory_space<vmem>>) attributes {dimension_semantics = [#tpu.dimension_semantics<parallel>, #tpu.dimension_semantics<parallel>], iteration_bounds = array<i64: 2, 1>, scalar_prefetch = 0 : i64, scratch_operands = 0 : i64, tpu.core_type = #tpu.core_type<tc>, window_params = [{transform_indices = @transform_0, window_bounds = array<i64: 1, 8, 32>}, {pipeline_mode = #tpu.pipeline_mode<synchronous>, transform_indices = @transform_1, window_bounds = array<i64: 1, 32>}, {pipeline_mode = #tpu.pipeline_mode<synchronous>, transform_indices = @transform_2, window_bounds = array<i64: 1, 32>}, {pipeline_mode = #tpu.pipeline_mode<synchronous>, transform_indices = @transform_3, window_bounds = array<i64: 3, 32, 32>}, {pipeline_mode = #tpu.pipeline_mode<synchronous>, transform_indices = @transform_4, window_bounds = array<i64: 3, 32>}, {transform_indices = @transform_5, window_bounds = array<i64: 1, 8, 32>}, {transform_indices = @transform_6, window_bounds = array<i64: 1, 8, 32>}, {transform_indices = @transform_7, window_bounds = array<i64: 1, 8, 32>}]} {
    %c0 = arith.constant 0 : index
    %c0_0 = arith.constant 0 : index
    %c0_1 = arith.constant 0 : index
    %0 = vector.load %arg2[%c0, %c0_0, %c0_1] : memref<1x8x32xf32, #tpu.memory_space<vmem>>, vector<1x8x32xf32>
    %1 = vector.shape_cast %0 : vector<1x8x32xf32> to vector<8x32xf32>
    %cst = arith.constant dense<0.000000e+00> : vector<8xf32>
    %2 = vector.multi_reduction <add>, %1, %cst [1] : vector<8x32xf32> to vector<8xf32>
    %3 = vector.shape_cast %2 : vector<8xf32> to vector<8x1xf32>
    %cst_2 = arith.constant 3.200000e+01 : f32
    %4 = vector.broadcast %cst_2 : f32 to vector<8x1xf32>
    %5 = arith.divf %3, %4 : vector<8x1xf32>
    %6 = vector.broadcast %5 : vector<8x1xf32> to vector<8x32xf32>
    %7 = arith.subf %1, %6 : vector<8x32xf32>
    %8 = arith.mulf %7, %7 : vector<8x32xf32>
    %cst_3 = arith.constant dense<0.000000e+00> : vector<8xf32>
    %9 = vector.multi_reduction <add>, %8, %cst_3 [1] : vector<8x32xf32> to vector<8xf32>
    %10 = vector.shape_cast %9 : vector<8xf32> to vector<8x1xf32>
    %cst_4 = arith.constant 3.200000e+01 : f32
    %11 = vector.broadcast %cst_4 : f32 to vector<8x1xf32>
    %12 = arith.divf %10, %11 : vector<8x1xf32>
    %cst_5 = arith.constant 9.99999997E-7 : f32
    %13 = vector.broadcast %cst_5 : f32 to vector<8x1xf32>
    %14 = arith.addf %12, %13 : vector<8x1xf32>
    %15 = math.rsqrt %14 : vector<8x1xf32>
    %16 = vector.broadcast %15 : vector<8x1xf32> to vector<8x32xf32>
    %17 = arith.mulf %7, %16 : vector<8x32xf32>
    %c0_6 = arith.constant 0 : index
    %c0_7 = arith.constant 0 : index
    %18 = vector.load %arg3[%c0_6, %c0_7] : memref<1x32xf32, #tpu.memory_space<vmem>>, vector<1x32xf32>
    %19 = vector.broadcast %18 : vector<1x32xf32> to vector<8x32xf32>
    %20 = arith.mulf %17, %19 : vector<8x32xf32>
    %c0_8 = arith.constant 0 : index
    %c0_9 = arith.constant 0 : index
    %21 = vector.load %arg4[%c0_8, %c0_9] : memref<1x32xf32, #tpu.memory_space<vmem>>, vector<1x32xf32>
    %22 = vector.broadcast %21 : vector<1x32xf32> to vector<8x32xf32>
    %23 = arith.addf %20, %22 : vector<8x32xf32>
    %24 = arith.truncf %23 : vector<8x32xf32> to vector<8x32xbf16>
    %c0_10 = arith.constant 0 : index
    %c0_11 = arith.constant 0 : index
    %c0_12 = arith.constant 0 : index
    %25 = vector.load %arg5[%c0_10, %c0_11, %c0_12] : memref<3x32x32xbf16, #tpu.memory_space<vmem>>, vector<1x32x32xbf16>
    %26 = vector.shape_cast %25 : vector<1x32x32xbf16> to vector<32x32xbf16>
    %cst_13 = arith.constant dense<0.000000e+00> : vector<8x32xf32>
    %27 = tpu.matmul %24, %26, %cst_13 {dimension_numbers = #tpu.dot_dimension_numbers<[1], [0], [0], [1], [0, 0, 1, 1], [], []>} : vector<8x32xbf16>, vector<32x32xbf16>, vector<8x32xf32> -> vector<8x32xf32>
    %c0_14 = arith.constant 0 : index
    %c0_15 = arith.constant 0 : index
    %28 = vector.load %arg6[%c0_14, %c0_15] : memref<3x32xf32, #tpu.memory_space<vmem>>, vector<1x32xf32>
    %29 = vector.broadcast %28 : vector<1x32xf32> to vector<8x32xf32>
    %30 = arith.addf %27, %29 : vector<8x32xf32>
    %31 = arith.truncf %30 : vector<8x32xf32> to vector<8x32xbf16>
    %c0_16 = arith.constant 0 : index
    %c0_17 = arith.constant 0 : index
    %c0_18 = arith.constant 0 : index
    %32 = vector.load %arg7[%c0_16, %c0_17, %c0_18] : memref<1x8x32xbf16, #tpu.memory_space<vmem>>, vector<1x8x32xbf16>
    %33 = vector.shape_cast %32 : vector<1x8x32xbf16> to vector<8x32xbf16>
    %34 = vector.shape_cast %31 : vector<8x32xbf16> to vector<1x8x32xbf16>
    tpu.vector_store %arg7[%c0_16, %c0_17, %c0_18], %34 {strides = array<i32>} : memref<1x8x32xbf16, #tpu.memory_space<vmem>>, vector<1x8x32xbf16>,
    %c1 = arith.constant 1 : index
    %c0_19 = arith.constant 0 : index
    %c0_20 = arith.constant 0 : index
    %35 = vector.load %arg5[%c1, %c0_19, %c0_20] : memref<3x32x32xbf16, #tpu.memory_space<vmem>>, vector<1x32x32xbf16>
    %36 = vector.shape_cast %35 : vector<1x32x32xbf16> to vector<32x32xbf16>
    %cst_21 = arith.constant dense<0.000000e+00> : vector<8x32xf32>
    %37 = tpu.matmul %24, %36, %cst_21 {dimension_numbers = #tpu.dot_dimension_numbers<[1], [0], [0], [1], [0, 0, 1, 1], [], []>} : vector<8x32xbf16>, vector<32x32xbf16>, vector<8x32xf32> -> vector<8x32xf32>
    %c1_22 = arith.constant 1 : index
    %c0_23 = arith.constant 0 : index
    %38 = vector.load %arg6[%c1_22, %c0_23] : memref<3x32xf32, #tpu.memory_space<vmem>>, vector<1x32xf32>
    %39 = vector.broadcast %38 : vector<1x32xf32> to vector<8x32xf32>
    %40 = arith.addf %37, %39 : vector<8x32xf32>
    %41 = arith.truncf %40 : vector<8x32xf32> to vector<8x32xbf16>
    %c0_24 = arith.constant 0 : index
    %c0_25 = arith.constant 0 : index
    %c0_26 = arith.constant 0 : index
    %42 = vector.load %arg8[%c0_24, %c0_25, %c0_26] : memref<1x8x32xbf16, #tpu.memory_space<vmem>>, vector<1x8x32xbf16>
    %43 = vector.shape_cast %42 : vector<1x8x32xbf16> to vector<8x32xbf16>
    %44 = vector.shape_cast %41 : vector<8x32xbf16> to vector<1x8x32xbf16>
    tpu.vector_store %arg8[%c0_24, %c0_25, %c0_26], %44 {strides = array<i32>} : memref<1x8x32xbf16, #tpu.memory_space<vmem>>, vector<1x8x32xbf16>,
    %c2 = arith.constant 2 : index
    %c0_27 = arith.constant 0 : index
    %c0_28 = arith.constant 0 : index
    %45 = vector.load %arg5[%c2, %c0_27, %c0_28] : memref<3x32x32xbf16, #tpu.memory_space<vmem>>, vector<1x32x32xbf16>
    %46 = vector.shape_cast %45 : vector<1x32x32xbf16> to vector<32x32xbf16>
    %cst_29 = arith.constant dense<0.000000e+00> : vector<8x32xf32>
    %47 = tpu.matmul %24, %46, %cst_29 {dimension_numbers = #tpu.dot_dimension_numbers<[1], [0], [0], [1], [0, 0, 1, 1], [], []>} : vector<8x32xbf16>, vector<32x32xbf16>, vector<8x32xf32> -> vector<8x32xf32>
    %c2_30 = arith.constant 2 : index
    %c0_31 = arith.constant 0 : index
    %48 = vector.load %arg6[%c2_30, %c0_31] : memref<3x32xf32, #tpu.memory_space<vmem>>, vector<1x32xf32>
    %49 = vector.broadcast %48 : vector<1x32xf32> to vector<8x32xf32>
    %50 = arith.addf %47, %49 : vector<8x32xf32>
    %51 = arith.truncf %50 : vector<8x32xf32> to vector<8x32xbf16>
    %c0_32 = arith.constant 0 : index
    %c0_33 = arith.constant 0 : index
    %c0_34 = arith.constant 0 : index
    %52 = vector.load %arg9[%c0_32, %c0_33, %c0_34] : memref<1x8x32xbf16, #tpu.memory_space<vmem>>, vector<1x8x32xbf16>
    %53 = vector.shape_cast %52 : vector<1x8x32xbf16> to vector<8x32xbf16>
    %54 = vector.shape_cast %51 : vector<8x32xbf16> to vector<1x8x32xbf16>
    tpu.vector_store %arg9[%c0_32, %c0_33, %c0_34], %54 {strides = array<i32>} : memref<1x8x32xbf16, #tpu.memory_space<vmem>>, vector<1x8x32xbf16>,
    return
  }
  func.func @transform_0(%arg0: i32, %arg1: i32) -> (i32, i32, i32) {
    %c0_i32 = arith.constant 0 : i32
    %c0_i32_0 = arith.constant 0 : i32
    return %arg0, %arg1, %c0_i32 : i32, i32, i32
  }
  func.func @transform_1(%arg0: i32, %arg1: i32) -> (i32, i32) {
    %c0_i32 = arith.constant 0 : i32
    %c0_i32_0 = arith.constant 0 : i32
    %c0_i32_1 = arith.constant 0 : i32
    return %c0_i32, %c0_i32_0 : i32, i32
  }
  func.func @transform_2(%arg0: i32, %arg1: i32) -> (i32, i32) {
    %c0_i32 = arith.constant 0 : i32
    %c0_i32_0 = arith.constant 0 : i32
    %c0_i32_1 = arith.constant 0 : i32
    return %c0_i32, %c0_i32_0 : i32, i32
  }
  func.func @transform_3(%arg0: i32, %arg1: i32) -> (i32, i32, i32) {
    %c0_i32 = arith.constant 0 : i32
    %c0_i32_0 = arith.constant 0 : i32
    %c0_i32_1 = arith.constant 0 : i32
    %c0_i32_2 = arith.constant 0 : i32
    return %c0_i32, %c0_i32_0, %c0_i32_1 : i32, i32, i32
  }
  func.func @transform_4(%arg0: i32, %arg1: i32) -> (i32, i32) {
    %c0_i32 = arith.constant 0 : i32
    %c0_i32_0 = arith.constant 0 : i32
    %c0_i32_1 = arith.constant 0 : i32
    return %c0_i32, %c0_i32_0 : i32, i32
  }
  func.func @transform_5(%arg0: i32, %arg1: i32) -> (i32, i32, i32) {
    %c0_i32 = arith.constant 0 : i32
    %c0_i32_0 = arith.constant 0 : i32
    return %arg0, %arg1, %c0_i32 : i32, i32, i32
  }
  func.func @transform_6(%arg0: i32, %arg1: i32) -> (i32, i32, i32) {
    %c0_i32 = arith.constant 0 : i32
    %c0_i32_0 = arith.constant 0 : i32
    return %arg0, %arg1, %c0_i32 : i32, i32, i32
  }
  func.func @transform_7(%arg0: i32, %arg1: i32) -> (i32, i32, i32) {
    %c0_i32 = arith.constant 0 : i32
    %c0_i32_0 = arith.constant 0 : i32
    return %arg0, %arg1, %c0_i32 : i32, i32, i32
  }
}

module attributes {stable_mosaic.version = 11 : i64} {
  func.func @_ln_multiproj_kernel(%arg0: i32, %arg1: i32, %arg2: memref<1x8x32xf32, #tpu.memory_space<vmem>>, %arg3: memref<1x32xf32, #tpu.memory_space<vmem>>, %arg4: memref<1x32xf32, #tpu.memory_space<vmem>>, %arg5: memref<1x32x32xbf16, #tpu.memory_space<vmem>>, %arg6: memref<1x32xf32, #tpu.memory_space<vmem>>, %arg7: memref<1x8x32xbf16, #tpu.memory_space<vmem>>) attributes {dimension_semantics = [#tpu.dimension_semantics<parallel>, #tpu.dimension_semantics<parallel>], iteration_bounds = array<i64: 2, 1>, scalar_prefetch = 0 : i64, scratch_operands = 0 : i64, tpu.core_type = #tpu.core_type<tc>, window_params = [{transform_indices = @transform_0, window_bounds = array<i64: 1, 8, 32>}, {pipeline_mode = #tpu.pipeline_mode<synchronous>, transform_indices = @transform_1, window_bounds = array<i64: 1, 32>}, {pipeline_mode = #tpu.pipeline_mode<synchronous>, transform_indices = @transform_2, window_bounds = array<i64: 1, 32>}, {pipeline_mode = #tpu.pipeline_mode<synchronous>, transform_indices = @transform_3, window_bounds = array<i64: 1, 32, 32>}, {pipeline_mode = #tpu.pipeline_mode<synchronous>, transform_indices = @transform_4, window_bounds = array<i64: 1, 32>}, {transform_indices = @transform_5, window_bounds = array<i64: 1, 8, 32>}]} {
    %c0 = arith.constant 0 : index
    %c0_0 = arith.constant 0 : index
    %c0_1 = arith.constant 0 : index
    %0 = vector.load %arg2[%c0, %c0_0, %c0_1] : memref<1x8x32xf32, #tpu.memory_space<vmem>>, vector<1x8x32xf32>
    %1 = vector.shape_cast %0 : vector<1x8x32xf32> to vector<8x32xf32>
    %cst = arith.constant dense<0.000000e+00> : vector<8xf32>
    %2 = vector.multi_reduction <add>, %1, %cst [1] : vector<8x32xf32> to vector<8xf32>
    %3 = vector.shape_cast %2 : vector<8xf32> to vector<8x1xf32>
    %cst_2 = arith.constant 3.200000e+01 : f32
    %4 = vector.broadcast %cst_2 : f32 to vector<8x1xf32>
    %5 = arith.divf %3, %4 : vector<8x1xf32>
    %6 = vector.broadcast %5 : vector<8x1xf32> to vector<8x32xf32>
    %7 = arith.subf %1, %6 : vector<8x32xf32>
    %8 = arith.mulf %7, %7 : vector<8x32xf32>
    %cst_3 = arith.constant dense<0.000000e+00> : vector<8xf32>
    %9 = vector.multi_reduction <add>, %8, %cst_3 [1] : vector<8x32xf32> to vector<8xf32>
    %10 = vector.shape_cast %9 : vector<8xf32> to vector<8x1xf32>
    %cst_4 = arith.constant 3.200000e+01 : f32
    %11 = vector.broadcast %cst_4 : f32 to vector<8x1xf32>
    %12 = arith.divf %10, %11 : vector<8x1xf32>
    %cst_5 = arith.constant 9.99999997E-7 : f32
    %13 = vector.broadcast %cst_5 : f32 to vector<8x1xf32>
    %14 = arith.addf %12, %13 : vector<8x1xf32>
    %15 = math.rsqrt %14 : vector<8x1xf32>
    %16 = vector.broadcast %15 : vector<8x1xf32> to vector<8x32xf32>
    %17 = arith.mulf %7, %16 : vector<8x32xf32>
    %c0_6 = arith.constant 0 : index
    %c0_7 = arith.constant 0 : index
    %18 = vector.load %arg3[%c0_6, %c0_7] : memref<1x32xf32, #tpu.memory_space<vmem>>, vector<1x32xf32>
    %19 = vector.broadcast %18 : vector<1x32xf32> to vector<8x32xf32>
    %20 = arith.mulf %17, %19 : vector<8x32xf32>
    %c0_8 = arith.constant 0 : index
    %c0_9 = arith.constant 0 : index
    %21 = vector.load %arg4[%c0_8, %c0_9] : memref<1x32xf32, #tpu.memory_space<vmem>>, vector<1x32xf32>
    %22 = vector.broadcast %21 : vector<1x32xf32> to vector<8x32xf32>
    %23 = arith.addf %20, %22 : vector<8x32xf32>
    %24 = arith.truncf %23 : vector<8x32xf32> to vector<8x32xbf16>
    %c0_10 = arith.constant 0 : index
    %c0_11 = arith.constant 0 : index
    %c0_12 = arith.constant 0 : index
    %25 = vector.load %arg5[%c0_10, %c0_11, %c0_12] : memref<1x32x32xbf16, #tpu.memory_space<vmem>>, vector<1x32x32xbf16>
    %26 = vector.shape_cast %25 : vector<1x32x32xbf16> to vector<32x32xbf16>
    %cst_13 = arith.constant dense<0.000000e+00> : vector<8x32xf32>
    %27 = tpu.matmul %24, %26, %cst_13 {dimension_numbers = #tpu.dot_dimension_numbers<[1], [0], [0], [1], [0, 0, 1, 1], [], []>} : vector<8x32xbf16>, vector<32x32xbf16>, vector<8x32xf32> -> vector<8x32xf32>
    %c0_14 = arith.constant 0 : index
    %c0_15 = arith.constant 0 : index
    %28 = vector.load %arg6[%c0_14, %c0_15] : memref<1x32xf32, #tpu.memory_space<vmem>>, vector<1x32xf32>
    %29 = vector.broadcast %28 : vector<1x32xf32> to vector<8x32xf32>
    %30 = arith.addf %27, %29 : vector<8x32xf32>
    %31 = arith.truncf %30 : vector<8x32xf32> to vector<8x32xbf16>
    %c0_16 = arith.constant 0 : index
    %c0_17 = arith.constant 0 : index
    %c0_18 = arith.constant 0 : index
    %32 = vector.load %arg7[%c0_16, %c0_17, %c0_18] : memref<1x8x32xbf16, #tpu.memory_space<vmem>>, vector<1x8x32xbf16>
    %33 = vector.shape_cast %32 : vector<1x8x32xbf16> to vector<8x32xbf16>
    %34 = vector.shape_cast %31 : vector<8x32xbf16> to vector<1x8x32xbf16>
    tpu.vector_store %arg7[%c0_16, %c0_17, %c0_18], %34 {strides = array<i32>} : memref<1x8x32xbf16, #tpu.memory_space<vmem>>, vector<1x8x32xbf16>,
    return
  }
  func.func @transform_0(%arg0: i32, %arg1: i32) -> (i32, i32, i32) {
    %c0_i32 = arith.constant 0 : i32
    %c0_i32_0 = arith.constant 0 : i32
    return %arg0, %arg1, %c0_i32 : i32, i32, i32
  }
  func.func @transform_1(%arg0: i32, %arg1: i32) -> (i32, i32) {
    %c0_i32 = arith.constant 0 : i32
    %c0_i32_0 = arith.constant 0 : i32
    %c0_i32_1 = arith.constant 0 : i32
    return %c0_i32, %c0_i32_0 : i32, i32
  }
  func.func @transform_2(%arg0: i32, %arg1: i32) -> (i32, i32) {
    %c0_i32 = arith.constant 0 : i32
    %c0_i32_0 = arith.constant 0 : i32
    %c0_i32_1 = arith.constant 0 : i32
    return %c0_i32, %c0_i32_0 : i32, i32
  }
  func.func @transform_3(%arg0: i32, %arg1: i32) -> (i32, i32, i32) {
    %c0_i32 = arith.constant 0 : i32
    %c0_i32_0 = arith.constant 0 : i32
    %c0_i32_1 = arith.constant 0 : i32
    %c0_i32_2 = arith.constant 0 : i32
    return %c0_i32, %c0_i32_0, %c0_i32_1 : i32, i32, i32
  }
  func.func @transform_4(%arg0: i32, %arg1: i32) -> (i32, i32) {
    %c0_i32 = arith.constant 0 : i32
    %c0_i32_0 = arith.constant 0 : i32
    %c0_i32_1 = arith.constant 0 : i32
    return %c0_i32, %c0_i32_0 : i32, i32
  }
  func.func @transform_5(%arg0: i32, %arg1: i32) -> (i32, i32, i32) {
    %c0_i32 = arith.constant 0 : i32
    %c0_i32_0 = arith.constant 0 : i32
    return %arg0, %arg1, %c0_i32 : i32, i32, i32
  }
}

module attributes {stable_mosaic.version = 11 : i64} {
  func.func @_flash_attn_kernel(%arg0: i32, %arg1: i32, %arg2: i32, %arg3: memref<1x8x32xbf16, #tpu.memory_space<vmem>>, %arg4: memref<1x8x32xbf16, #tpu.memory_space<vmem>>, %arg5: memref<1x8x32xbf16, #tpu.memory_space<vmem>>, %arg6: memref<1x8x8xbf16, #tpu.memory_space<vmem>>, %arg7: memref<32x36xbf16, #tpu.memory_space<vmem>>, %arg8: memref<32x32xbf16, #tpu.memory_space<vmem>>, %arg9: memref<1x32xf32, #tpu.memory_space<vmem>>, %arg10: memref<1x8x32xf32, #tpu.memory_space<vmem>>, %arg11: memref<1x8x32xf32, #tpu.memory_space<vmem>>, %arg12: memref<8x4xf32, #tpu.memory_space<vmem>>, %arg13: memref<8x4xf32, #tpu.memory_space<vmem>>, %arg14: memref<8x32xf32, #tpu.memory_space<vmem>>) attributes {dimension_semantics = [#tpu.dimension_semantics<parallel>, #tpu.dimension_semantics<parallel>, #tpu.dimension_semantics<arbitrary>], iteration_bounds = array<i64: 2, 1, 1>, scalar_prefetch = 0 : i64, scratch_operands = 3 : i64, tpu.core_type = #tpu.core_type<tc>, window_params = [{transform_indices = @transform_0, window_bounds = array<i64: 1, 8, 32>}, {transform_indices = @transform_1, window_bounds = array<i64: 1, 8, 32>}, {transform_indices = @transform_2, window_bounds = array<i64: 1, 8, 32>}, {transform_indices = @transform_3, window_bounds = array<i64: 1, 8, 8>}, {pipeline_mode = #tpu.pipeline_mode<synchronous>, transform_indices = @transform_4, window_bounds = array<i64: 32, 36>}, {pipeline_mode = #tpu.pipeline_mode<synchronous>, transform_indices = @transform_5, window_bounds = array<i64: 32, 32>}, {pipeline_mode = #tpu.pipeline_mode<synchronous>, transform_indices = @transform_6, window_bounds = array<i64: 1, 32>}, {transform_indices = @transform_7, window_bounds = array<i64: 1, 8, 32>}, {transform_indices = @transform_8, window_bounds = array<i64: 1, 8, 32>}]} {
    %c0_i32 = arith.constant 0 : i32
    %0 = arith.cmpi eq, %arg2, %c0_i32 : i32
    %1 = arith.extui %0 : i1 to i32
    %c0_i32_0 = arith.constant 0 : i32
    %2 = arith.cmpi ne, %1, %c0_i32_0 : i32
    scf.if %2 {
      %cst_145 = arith.constant -1.000000e+30 : f32
      %444 = vector.broadcast %cst_145 : f32 to vector<8x4xf32>
      %c0_146 = arith.constant 0 : index
      %c0_147 = arith.constant 0 : index
      %445 = vector.load %arg12[%c0_146, %c0_147] : memref<8x4xf32, #tpu.memory_space<vmem>>, vector<8x4xf32>
      tpu.vector_store %arg12[%c0_146, %c0_147], %444 {strides = array<i32>} : memref<8x4xf32, #tpu.memory_space<vmem>>, vector<8x4xf32>,
      %cst_148 = arith.constant 0.000000e+00 : f32
      %446 = vector.broadcast %cst_148 : f32 to vector<8x4xf32>
      %c0_149 = arith.constant 0 : index
      %c0_150 = arith.constant 0 : index
      %447 = vector.load %arg13[%c0_149, %c0_150] : memref<8x4xf32, #tpu.memory_space<vmem>>, vector<8x4xf32>
      tpu.vector_store %arg13[%c0_149, %c0_150], %446 {strides = array<i32>} : memref<8x4xf32, #tpu.memory_space<vmem>>, vector<8x4xf32>,
      %cst_151 = arith.constant 0.000000e+00 : f32
      %448 = vector.broadcast %cst_151 : f32 to vector<8x32xf32>
      %c0_152 = arith.constant 0 : index
      %c0_153 = arith.constant 0 : index
      %449 = vector.load %arg14[%c0_152, %c0_153] : memref<8x32xf32, #tpu.memory_space<vmem>>, vector<8x32xf32>
      tpu.vector_store %arg14[%c0_152, %c0_153], %448 {strides = array<i32>} : memref<8x32xf32, #tpu.memory_space<vmem>>, vector<8x32xf32>,
    } else {
    }
    %c0 = arith.constant 0 : index
    %c0_1 = arith.constant 0 : index
    %c0_2 = arith.constant 0 : index
    %3 = vector.load %arg3[%c0, %c0_1, %c0_2] : memref<1x8x32xbf16, #tpu.memory_space<vmem>>, vector<1x8x32xbf16>
    %4 = vector.shape_cast %3 : vector<1x8x32xbf16> to vector<8x32xbf16>
    %5 = arith.extf %4 : vector<8x32xbf16> to vector<8x32xf32>
    %cst = arith.constant 0.353553385 : f32
    %6 = vector.broadcast %cst : f32 to vector<8x32xf32>
    %7 = arith.mulf %5, %6 : vector<8x32xf32>
    %8 = arith.truncf %7 : vector<8x32xf32> to vector<8x32xbf16>
    %c0_3 = arith.constant 0 : index
    %c0_4 = arith.constant 0 : index
    %c0_5 = arith.constant 0 : index
    %9 = vector.load %arg4[%c0_3, %c0_4, %c0_5] : memref<1x8x32xbf16, #tpu.memory_space<vmem>>, vector<1x8x32xbf16>
    %10 = vector.shape_cast %9 : vector<1x8x32xbf16> to vector<8x32xbf16>
    %c0_6 = arith.constant 0 : index
    %c0_7 = arith.constant 0 : index
    %c0_8 = arith.constant 0 : index
    %11 = vector.load %arg5[%c0_6, %c0_7, %c0_8] : memref<1x8x32xbf16, #tpu.memory_space<vmem>>, vector<1x8x32xbf16>
    %12 = vector.shape_cast %11 : vector<1x8x32xbf16> to vector<8x32xbf16>
    %c0_9 = arith.constant 0 : index
    %c0_10 = arith.constant 0 : index
    %c0_11 = arith.constant 0 : index
    %13 = vector.load %arg6[%c0_9, %c0_10, %c0_11] : memref<1x8x8xbf16, #tpu.memory_space<vmem>>, vector<1x8x8xbf16>
    %14 = vector.shape_cast %13 : vector<1x8x8xbf16> to vector<8x8xbf16>
    %15 = arith.extf %14 : vector<8x8xbf16> to vector<8x8xf32>
    %cst_12 = arith.constant 1.000000e+00 : f32
    %16 = vector.broadcast %cst_12 : f32 to vector<8x8xf32>
    %17 = arith.subf %15, %16 : vector<8x8xf32>
    %cst_13 = arith.constant 1.000000e+09 : f32
    %18 = vector.broadcast %cst_13 : f32 to vector<8x8xf32>
    %19 = arith.mulf %17, %18 : vector<8x8xf32>
    %c0_14 = arith.constant 0 : index
    %c0_15 = arith.constant 0 : index
    %20 = vector.load %arg7[%c0_14, %c0_15] : memref<32x36xbf16, #tpu.memory_space<vmem>>, vector<32x36xbf16>
    %cst_16 = arith.constant dense<0.000000e+00> : vector<8x36xf32>
    %21 = tpu.matmul %8, %20, %cst_16 {dimension_numbers = #tpu.dot_dimension_numbers<[1], [0], [0], [1], [0, 0, 1, 1], [], []>} : vector<8x32xbf16>, vector<32x36xbf16>, vector<8x36xf32> -> vector<8x36xf32>
    %c8_i32 = arith.constant 8 : i32
    %22 = arith.muli %arg1, %c8_i32 : i32
    %c8_i32_17 = arith.constant 8 : i32
    %23 = arith.muli %arg2, %c8_i32_17 : i32
    %24 = tpu.iota {dimensions = array<i32: 0>} : vector<8x8xi32>
    %25 = vector.broadcast %22 : i32 to vector<8x8xi32>
    %26 = arith.addi %25, %24 : vector<8x8xi32>
    %27 = tpu.iota {dimensions = array<i32: 1>} : vector<8x8xi32>
    %28 = vector.broadcast %23 : i32 to vector<8x8xi32>
    %29 = arith.addi %28, %27 : vector<8x8xi32>
    %30 = arith.subi %29, %26 : vector<8x8xi32>
    %c-4_i32 = arith.constant -4 : i32
    %c4_i32 = arith.constant 4 : i32
    %31 = vector.broadcast %c-4_i32 : i32 to vector<8x8xi32>
    %32 = arith.maxsi %31, %30 : vector<8x8xi32>
    %33 = vector.broadcast %c4_i32 : i32 to vector<8x8xi32>
    %34 = arith.minsi %33, %32 : vector<8x8xi32>
    %c4_i32_18 = arith.constant 4 : i32
    %35 = vector.broadcast %c4_i32_18 : i32 to vector<8x8xi32>
    %36 = arith.addi %34, %35 : vector<8x8xi32>
    %37 = vector.extract_strided_slice %8 {offsets = [0, 0], sizes = [8, 8], strides = [1, 1]} : vector<8x32xbf16> to vector<8x8xbf16>
    %38 = vector.extract_strided_slice %10 {offsets = [0, 0], sizes = [8, 8], strides = [1, 1]} : vector<8x32xbf16> to vector<8x8xbf16>
    %39 = vector.extract_strided_slice %12 {offsets = [0, 0], sizes = [8, 8], strides = [1, 1]} : vector<8x32xbf16> to vector<8x8xbf16>
    %cst_19 = arith.constant dense<0.000000e+00> : vector<8x8xf32>
    %40 = tpu.matmul %37, %38, %cst_19 {dimension_numbers = #tpu.dot_dimension_numbers<[1], [1], [0], [0], [0, 0, 1, 0], [], []>} : vector<8x8xbf16>, vector<8x8xbf16>, vector<8x8xf32> -> vector<8x8xf32>
    %41 = vector.extract_strided_slice %21 {offsets = [0, 0], sizes = [8, 9], strides = [1, 1]} : vector<8x36xf32> to vector<8x9xf32>
    %c0_i32_20 = arith.constant 0 : i32
    %42 = vector.broadcast %c0_i32_20 : i32 to vector<8x8xi32>
    %43 = arith.cmpi eq, %36, %42 : vector<8x8xi32>
    %44 = vector.extract_strided_slice %41 {offsets = [0, 0], sizes = [8, 1], strides = [1, 1]} : vector<8x9xf32> to vector<8x1xf32>
    %cst_21 = arith.constant 0.000000e+00 : f32
    %45 = vector.shape_cast %44 : vector<8x1xf32> to vector<8x1xf32>
    %46 = vector.broadcast %45 : vector<8x1xf32> to vector<8x8xf32>
    %47 = vector.broadcast %cst_21 : f32 to vector<8x8xf32>
    %48 = arith.select %43, %46, %47 : vector<8x8xi1>, vector<8x8xf32>
    %49 = arith.addf %40, %48 : vector<8x8xf32>
    %c1_i32 = arith.constant 1 : i32
    %50 = vector.broadcast %c1_i32 : i32 to vector<8x8xi32>
    %51 = arith.cmpi eq, %36, %50 : vector<8x8xi32>
    %52 = vector.extract_strided_slice %41 {offsets = [0, 1], sizes = [8, 1], strides = [1, 1]} : vector<8x9xf32> to vector<8x1xf32>
    %cst_22 = arith.constant 0.000000e+00 : f32
    %53 = vector.shape_cast %52 : vector<8x1xf32> to vector<8x1xf32>
    %54 = vector.broadcast %53 : vector<8x1xf32> to vector<8x8xf32>
    %55 = vector.broadcast %cst_22 : f32 to vector<8x8xf32>
    %56 = arith.select %51, %54, %55 : vector<8x8xi1>, vector<8x8xf32>
    %57 = arith.addf %49, %56 : vector<8x8xf32>
    %c2_i32 = arith.constant 2 : i32
    %58 = vector.broadcast %c2_i32 : i32 to vector<8x8xi32>
    %59 = arith.cmpi eq, %36, %58 : vector<8x8xi32>
    %60 = vector.extract_strided_slice %41 {offsets = [0, 2], sizes = [8, 1], strides = [1, 1]} : vector<8x9xf32> to vector<8x1xf32>
    %cst_23 = arith.constant 0.000000e+00 : f32
    %61 = vector.shape_cast %60 : vector<8x1xf32> to vector<8x1xf32>
    %62 = vector.broadcast %61 : vector<8x1xf32> to vector<8x8xf32>
    %63 = vector.broadcast %cst_23 : f32 to vector<8x8xf32>
    %64 = arith.select %59, %62, %63 : vector<8x8xi1>, vector<8x8xf32>
    %65 = arith.addf %57, %64 : vector<8x8xf32>
    %c3_i32 = arith.constant 3 : i32
    %66 = vector.broadcast %c3_i32 : i32 to vector<8x8xi32>
    %67 = arith.cmpi eq, %36, %66 : vector<8x8xi32>
    %68 = vector.extract_strided_slice %41 {offsets = [0, 3], sizes = [8, 1], strides = [1, 1]} : vector<8x9xf32> to vector<8x1xf32>
    %cst_24 = arith.constant 0.000000e+00 : f32
    %69 = vector.shape_cast %68 : vector<8x1xf32> to vector<8x1xf32>
    %70 = vector.broadcast %69 : vector<8x1xf32> to vector<8x8xf32>
    %71 = vector.broadcast %cst_24 : f32 to vector<8x8xf32>
    %72 = arith.select %67, %70, %71 : vector<8x8xi1>, vector<8x8xf32>
    %73 = arith.addf %65, %72 : vector<8x8xf32>
    %c4_i32_25 = arith.constant 4 : i32
    %74 = vector.broadcast %c4_i32_25 : i32 to vector<8x8xi32>
    %75 = arith.cmpi eq, %36, %74 : vector<8x8xi32>
    %76 = vector.extract_strided_slice %41 {offsets = [0, 4], sizes = [8, 1], strides = [1, 1]} : vector<8x9xf32> to vector<8x1xf32>
    %cst_26 = arith.constant 0.000000e+00 : f32
    %77 = vector.shape_cast %76 : vector<8x1xf32> to vector<8x1xf32>
    %78 = vector.broadcast %77 : vector<8x1xf32> to vector<8x8xf32>
    %79 = vector.broadcast %cst_26 : f32 to vector<8x8xf32>
    %80 = arith.select %75, %78, %79 : vector<8x8xi1>, vector<8x8xf32>
    %81 = arith.addf %73, %80 : vector<8x8xf32>
    %c5_i32 = arith.constant 5 : i32
    %82 = vector.broadcast %c5_i32 : i32 to vector<8x8xi32>
    %83 = arith.cmpi eq, %36, %82 : vector<8x8xi32>
    %84 = vector.extract_strided_slice %41 {offsets = [0, 5], sizes = [8, 1], strides = [1, 1]} : vector<8x9xf32> to vector<8x1xf32>
    %cst_27 = arith.constant 0.000000e+00 : f32
    %85 = vector.shape_cast %84 : vector<8x1xf32> to vector<8x1xf32>
    %86 = vector.broadcast %85 : vector<8x1xf32> to vector<8x8xf32>
    %87 = vector.broadcast %cst_27 : f32 to vector<8x8xf32>
    %88 = arith.select %83, %86, %87 : vector<8x8xi1>, vector<8x8xf32>
    %89 = arith.addf %81, %88 : vector<8x8xf32>
    %c6_i32 = arith.constant 6 : i32
    %90 = vector.broadcast %c6_i32 : i32 to vector<8x8xi32>
    %91 = arith.cmpi eq, %36, %90 : vector<8x8xi32>
    %92 = vector.extract_strided_slice %41 {offsets = [0, 6], sizes = [8, 1], strides = [1, 1]} : vector<8x9xf32> to vector<8x1xf32>
    %cst_28 = arith.constant 0.000000e+00 : f32
    %93 = vector.shape_cast %92 : vector<8x1xf32> to vector<8x1xf32>
    %94 = vector.broadcast %93 : vector<8x1xf32> to vector<8x8xf32>
    %95 = vector.broadcast %cst_28 : f32 to vector<8x8xf32>
    %96 = arith.select %91, %94, %95 : vector<8x8xi1>, vector<8x8xf32>
    %97 = arith.addf %89, %96 : vector<8x8xf32>
    %c7_i32 = arith.constant 7 : i32
    %98 = vector.broadcast %c7_i32 : i32 to vector<8x8xi32>
    %99 = arith.cmpi eq, %36, %98 : vector<8x8xi32>
    %100 = vector.extract_strided_slice %41 {offsets = [0, 7], sizes = [8, 1], strides = [1, 1]} : vector<8x9xf32> to vector<8x1xf32>
    %cst_29 = arith.constant 0.000000e+00 : f32
    %101 = vector.shape_cast %100 : vector<8x1xf32> to vector<8x1xf32>
    %102 = vector.broadcast %101 : vector<8x1xf32> to vector<8x8xf32>
    %103 = vector.broadcast %cst_29 : f32 to vector<8x8xf32>
    %104 = arith.select %99, %102, %103 : vector<8x8xi1>, vector<8x8xf32>
    %105 = arith.addf %97, %104 : vector<8x8xf32>
    %c8_i32_30 = arith.constant 8 : i32
    %106 = vector.broadcast %c8_i32_30 : i32 to vector<8x8xi32>
    %107 = arith.cmpi eq, %36, %106 : vector<8x8xi32>
    %108 = vector.extract_strided_slice %41 {offsets = [0, 8], sizes = [8, 1], strides = [1, 1]} : vector<8x9xf32> to vector<8x1xf32>
    %cst_31 = arith.constant 0.000000e+00 : f32
    %109 = vector.shape_cast %108 : vector<8x1xf32> to vector<8x1xf32>
    %110 = vector.broadcast %109 : vector<8x1xf32> to vector<8x8xf32>
    %111 = vector.broadcast %cst_31 : f32 to vector<8x8xf32>
    %112 = arith.select %107, %110, %111 : vector<8x8xi1>, vector<8x8xf32>
    %113 = arith.addf %105, %112 : vector<8x8xf32>
    %114 = arith.addf %113, %19 : vector<8x8xf32>
    %c0_32 = arith.constant 0 : index
    %c0_33 = arith.constant 0 : index
    %115 = vector.load %arg12[%c0_32, %c0_33] : memref<8x4xf32, #tpu.memory_space<vmem>>, vector<8x1xf32>
    %c0_34 = arith.constant 0 : index
    %c0_35 = arith.constant 0 : index
    %116 = vector.load %arg13[%c0_34, %c0_35] : memref<8x4xf32, #tpu.memory_space<vmem>>, vector<8x1xf32>
    %cst_36 = arith.constant dense<0xFF800000> : vector<8xf32>
    %117 = vector.multi_reduction <maximumf>, %114, %cst_36 [1] : vector<8x8xf32> to vector<8xf32>
    %118 = vector.shape_cast %117 : vector<8xf32> to vector<8x1xf32>
    %119 = arith.maximumf %115, %118 : vector<8x1xf32>
    %120 = arith.subf %115, %119 : vector<8x1xf32>
    %121 = math.exp %120 : vector<8x1xf32>
    %122 = vector.broadcast %119 : vector<8x1xf32> to vector<8x8xf32>
    %123 = arith.subf %114, %122 : vector<8x8xf32>
    %124 = math.exp %123 : vector<8x8xf32>
    %125 = arith.mulf %121, %116 : vector<8x1xf32>
    %cst_37 = arith.constant dense<0.000000e+00> : vector<8xf32>
    %126 = vector.multi_reduction <add>, %124, %cst_37 [1] : vector<8x8xf32> to vector<8xf32>
    %127 = vector.shape_cast %126 : vector<8xf32> to vector<8x1xf32>
    %128 = arith.addf %125, %127 : vector<8x1xf32>
    %129 = arith.truncf %124 : vector<8x8xf32> to vector<8x8xbf16>
    %cst_38 = arith.constant dense<0.000000e+00> : vector<8x8xf32>
    %130 = tpu.matmul %129, %39, %cst_38 {dimension_numbers = #tpu.dot_dimension_numbers<[1], [0], [0], [1], [0, 0, 1, 1], [], []>} : vector<8x8xbf16>, vector<8x8xbf16>, vector<8x8xf32> -> vector<8x8xf32>
    %c0_39 = arith.constant 0 : index
    %c0_40 = arith.constant 0 : index
    %131 = vector.load %arg14[%c0_39, %c0_40] : memref<8x32xf32, #tpu.memory_space<vmem>>, vector<8x8xf32>
    %132 = vector.broadcast %121 : vector<8x1xf32> to vector<8x8xf32>
    %133 = arith.mulf %132, %131 : vector<8x8xf32>
    %134 = arith.addf %133, %130 : vector<8x8xf32>
    %c0_41 = arith.constant 0 : index
    %c0_42 = arith.constant 0 : index
    %135 = vector.load %arg14[%c0_41, %c0_42] : memref<8x32xf32, #tpu.memory_space<vmem>>, vector<8x8xf32>
    tpu.vector_store %arg14[%c0_41, %c0_42], %134 {strides = array<i32>} : memref<8x32xf32, #tpu.memory_space<vmem>>, vector<8x8xf32>,
    %c0_43 = arith.constant 0 : index
    %c0_44 = arith.constant 0 : index
    %136 = vector.load %arg12[%c0_43, %c0_44] : memref<8x4xf32, #tpu.memory_space<vmem>>, vector<8x1xf32>
    tpu.vector_store %arg12[%c0_43, %c0_44], %119 {strides = array<i32>} : memref<8x4xf32, #tpu.memory_space<vmem>>, vector<8x1xf32>,
    %c0_45 = arith.constant 0 : index
    %c0_46 = arith.constant 0 : index
    %137 = vector.load %arg13[%c0_45, %c0_46] : memref<8x4xf32, #tpu.memory_space<vmem>>, vector<8x1xf32>
    tpu.vector_store %arg13[%c0_45, %c0_46], %128 {strides = array<i32>} : memref<8x4xf32, #tpu.memory_space<vmem>>, vector<8x1xf32>,
    %138 = vector.extract_strided_slice %8 {offsets = [0, 8], sizes = [8, 8], strides = [1, 1]} : vector<8x32xbf16> to vector<8x8xbf16>
    %139 = vector.extract_strided_slice %10 {offsets = [0, 8], sizes = [8, 8], strides = [1, 1]} : vector<8x32xbf16> to vector<8x8xbf16>
    %140 = vector.extract_strided_slice %12 {offsets = [0, 8], sizes = [8, 8], strides = [1, 1]} : vector<8x32xbf16> to vector<8x8xbf16>
    %cst_47 = arith.constant dense<0.000000e+00> : vector<8x8xf32>
    %141 = tpu.matmul %138, %139, %cst_47 {dimension_numbers = #tpu.dot_dimension_numbers<[1], [1], [0], [0], [0, 0, 1, 0], [], []>} : vector<8x8xbf16>, vector<8x8xbf16>, vector<8x8xf32> -> vector<8x8xf32>
    %142 = vector.extract_strided_slice %21 {offsets = [0, 9], sizes = [8, 9], strides = [1, 1]} : vector<8x36xf32> to vector<8x9xf32>
    %c0_i32_48 = arith.constant 0 : i32
    %143 = vector.broadcast %c0_i32_48 : i32 to vector<8x8xi32>
    %144 = arith.cmpi eq, %36, %143 : vector<8x8xi32>
    %145 = vector.extract_strided_slice %142 {offsets = [0, 0], sizes = [8, 1], strides = [1, 1]} : vector<8x9xf32> to vector<8x1xf32>
    %cst_49 = arith.constant 0.000000e+00 : f32
    %146 = vector.shape_cast %145 : vector<8x1xf32> to vector<8x1xf32>
    %147 = vector.broadcast %146 : vector<8x1xf32> to vector<8x8xf32>
    %148 = vector.broadcast %cst_49 : f32 to vector<8x8xf32>
    %149 = arith.select %144, %147, %148 : vector<8x8xi1>, vector<8x8xf32>
    %150 = arith.addf %141, %149 : vector<8x8xf32>
    %c1_i32_50 = arith.constant 1 : i32
    %151 = vector.broadcast %c1_i32_50 : i32 to vector<8x8xi32>
    %152 = arith.cmpi eq, %36, %151 : vector<8x8xi32>
    %153 = vector.extract_strided_slice %142 {offsets = [0, 1], sizes = [8, 1], strides = [1, 1]} : vector<8x9xf32> to vector<8x1xf32>
    %cst_51 = arith.constant 0.000000e+00 : f32
    %154 = vector.shape_cast %153 : vector<8x1xf32> to vector<8x1xf32>
    %155 = vector.broadcast %154 : vector<8x1xf32> to vector<8x8xf32>
    %156 = vector.broadcast %cst_51 : f32 to vector<8x8xf32>
    %157 = arith.select %152, %155, %156 : vector<8x8xi1>, vector<8x8xf32>
    %158 = arith.addf %150, %157 : vector<8x8xf32>
    %c2_i32_52 = arith.constant 2 : i32
    %159 = vector.broadcast %c2_i32_52 : i32 to vector<8x8xi32>
    %160 = arith.cmpi eq, %36, %159 : vector<8x8xi32>
    %161 = vector.extract_strided_slice %142 {offsets = [0, 2], sizes = [8, 1], strides = [1, 1]} : vector<8x9xf32> to vector<8x1xf32>
    %cst_53 = arith.constant 0.000000e+00 : f32
    %162 = vector.shape_cast %161 : vector<8x1xf32> to vector<8x1xf32>
    %163 = vector.broadcast %162 : vector<8x1xf32> to vector<8x8xf32>
    %164 = vector.broadcast %cst_53 : f32 to vector<8x8xf32>
    %165 = arith.select %160, %163, %164 : vector<8x8xi1>, vector<8x8xf32>
    %166 = arith.addf %158, %165 : vector<8x8xf32>
    %c3_i32_54 = arith.constant 3 : i32
    %167 = vector.broadcast %c3_i32_54 : i32 to vector<8x8xi32>
    %168 = arith.cmpi eq, %36, %167 : vector<8x8xi32>
    %169 = vector.extract_strided_slice %142 {offsets = [0, 3], sizes = [8, 1], strides = [1, 1]} : vector<8x9xf32> to vector<8x1xf32>
    %cst_55 = arith.constant 0.000000e+00 : f32
    %170 = vector.shape_cast %169 : vector<8x1xf32> to vector<8x1xf32>
    %171 = vector.broadcast %170 : vector<8x1xf32> to vector<8x8xf32>
    %172 = vector.broadcast %cst_55 : f32 to vector<8x8xf32>
    %173 = arith.select %168, %171, %172 : vector<8x8xi1>, vector<8x8xf32>
    %174 = arith.addf %166, %173 : vector<8x8xf32>
    %c4_i32_56 = arith.constant 4 : i32
    %175 = vector.broadcast %c4_i32_56 : i32 to vector<8x8xi32>
    %176 = arith.cmpi eq, %36, %175 : vector<8x8xi32>
    %177 = vector.extract_strided_slice %142 {offsets = [0, 4], sizes = [8, 1], strides = [1, 1]} : vector<8x9xf32> to vector<8x1xf32>
    %cst_57 = arith.constant 0.000000e+00 : f32
    %178 = vector.shape_cast %177 : vector<8x1xf32> to vector<8x1xf32>
    %179 = vector.broadcast %178 : vector<8x1xf32> to vector<8x8xf32>
    %180 = vector.broadcast %cst_57 : f32 to vector<8x8xf32>
    %181 = arith.select %176, %179, %180 : vector<8x8xi1>, vector<8x8xf32>
    %182 = arith.addf %174, %181 : vector<8x8xf32>
    %c5_i32_58 = arith.constant 5 : i32
    %183 = vector.broadcast %c5_i32_58 : i32 to vector<8x8xi32>
    %184 = arith.cmpi eq, %36, %183 : vector<8x8xi32>
    %185 = vector.extract_strided_slice %142 {offsets = [0, 5], sizes = [8, 1], strides = [1, 1]} : vector<8x9xf32> to vector<8x1xf32>
    %cst_59 = arith.constant 0.000000e+00 : f32
    %186 = vector.shape_cast %185 : vector<8x1xf32> to vector<8x1xf32>
    %187 = vector.broadcast %186 : vector<8x1xf32> to vector<8x8xf32>
    %188 = vector.broadcast %cst_59 : f32 to vector<8x8xf32>
    %189 = arith.select %184, %187, %188 : vector<8x8xi1>, vector<8x8xf32>
    %190 = arith.addf %182, %189 : vector<8x8xf32>
    %c6_i32_60 = arith.constant 6 : i32
    %191 = vector.broadcast %c6_i32_60 : i32 to vector<8x8xi32>
    %192 = arith.cmpi eq, %36, %191 : vector<8x8xi32>
    %193 = vector.extract_strided_slice %142 {offsets = [0, 6], sizes = [8, 1], strides = [1, 1]} : vector<8x9xf32> to vector<8x1xf32>
    %cst_61 = arith.constant 0.000000e+00 : f32
    %194 = vector.shape_cast %193 : vector<8x1xf32> to vector<8x1xf32>
    %195 = vector.broadcast %194 : vector<8x1xf32> to vector<8x8xf32>
    %196 = vector.broadcast %cst_61 : f32 to vector<8x8xf32>
    %197 = arith.select %192, %195, %196 : vector<8x8xi1>, vector<8x8xf32>
    %198 = arith.addf %190, %197 : vector<8x8xf32>
    %c7_i32_62 = arith.constant 7 : i32
    %199 = vector.broadcast %c7_i32_62 : i32 to vector<8x8xi32>
    %200 = arith.cmpi eq, %36, %199 : vector<8x8xi32>
    %201 = vector.extract_strided_slice %142 {offsets = [0, 7], sizes = [8, 1], strides = [1, 1]} : vector<8x9xf32> to vector<8x1xf32>
    %cst_63 = arith.constant 0.000000e+00 : f32
    %202 = vector.shape_cast %201 : vector<8x1xf32> to vector<8x1xf32>
    %203 = vector.broadcast %202 : vector<8x1xf32> to vector<8x8xf32>
    %204 = vector.broadcast %cst_63 : f32 to vector<8x8xf32>
    %205 = arith.select %200, %203, %204 : vector<8x8xi1>, vector<8x8xf32>
    %206 = arith.addf %198, %205 : vector<8x8xf32>
    %c8_i32_64 = arith.constant 8 : i32
    %207 = vector.broadcast %c8_i32_64 : i32 to vector<8x8xi32>
    %208 = arith.cmpi eq, %36, %207 : vector<8x8xi32>
    %209 = vector.extract_strided_slice %142 {offsets = [0, 8], sizes = [8, 1], strides = [1, 1]} : vector<8x9xf32> to vector<8x1xf32>
    %cst_65 = arith.constant 0.000000e+00 : f32
    %210 = vector.shape_cast %209 : vector<8x1xf32> to vector<8x1xf32>
    %211 = vector.broadcast %210 : vector<8x1xf32> to vector<8x8xf32>
    %212 = vector.broadcast %cst_65 : f32 to vector<8x8xf32>
    %213 = arith.select %208, %211, %212 : vector<8x8xi1>, vector<8x8xf32>
    %214 = arith.addf %206, %213 : vector<8x8xf32>
    %215 = arith.addf %214, %19 : vector<8x8xf32>
    %c0_66 = arith.constant 0 : index
    %c1 = arith.constant 1 : index
    %216 = vector.load %arg12[%c0_66, %c1] : memref<8x4xf32, #tpu.memory_space<vmem>>, vector<8x1xf32>
    %c0_67 = arith.constant 0 : index
    %c1_68 = arith.constant 1 : index
    %217 = vector.load %arg13[%c0_67, %c1_68] : memref<8x4xf32, #tpu.memory_space<vmem>>, vector<8x1xf32>
    %cst_69 = arith.constant dense<0xFF800000> : vector<8xf32>
    %218 = vector.multi_reduction <maximumf>, %215, %cst_69 [1] : vector<8x8xf32> to vector<8xf32>
    %219 = vector.shape_cast %218 : vector<8xf32> to vector<8x1xf32>
    %220 = arith.maximumf %216, %219 : vector<8x1xf32>
    %221 = arith.subf %216, %220 : vector<8x1xf32>
    %222 = math.exp %221 : vector<8x1xf32>
    %223 = vector.broadcast %220 : vector<8x1xf32> to vector<8x8xf32>
    %224 = arith.subf %215, %223 : vector<8x8xf32>
    %225 = math.exp %224 : vector<8x8xf32>
    %226 = arith.mulf %222, %217 : vector<8x1xf32>
    %cst_70 = arith.constant dense<0.000000e+00> : vector<8xf32>
    %227 = vector.multi_reduction <add>, %225, %cst_70 [1] : vector<8x8xf32> to vector<8xf32>
    %228 = vector.shape_cast %227 : vector<8xf32> to vector<8x1xf32>
    %229 = arith.addf %226, %228 : vector<8x1xf32>
    %230 = arith.truncf %225 : vector<8x8xf32> to vector<8x8xbf16>
    %cst_71 = arith.constant dense<0.000000e+00> : vector<8x8xf32>
    %231 = tpu.matmul %230, %140, %cst_71 {dimension_numbers = #tpu.dot_dimension_numbers<[1], [0], [0], [1], [0, 0, 1, 1], [], []>} : vector<8x8xbf16>, vector<8x8xbf16>, vector<8x8xf32> -> vector<8x8xf32>
    %c0_72 = arith.constant 0 : index
    %c8 = arith.constant 8 : index
    %232 = vector.load %arg14[%c0_72, %c8] : memref<8x32xf32, #tpu.memory_space<vmem>>, vector<8x8xf32>
    %233 = vector.broadcast %222 : vector<8x1xf32> to vector<8x8xf32>
    %234 = arith.mulf %233, %232 : vector<8x8xf32>
    %235 = arith.addf %234, %231 : vector<8x8xf32>
    %c0_73 = arith.constant 0 : index
    %c8_74 = arith.constant 8 : index
    %236 = vector.load %arg14[%c0_73, %c8_74] : memref<8x32xf32, #tpu.memory_space<vmem>>, vector<8x8xf32>
    tpu.vector_store %arg14[%c0_73, %c8_74], %235 {strides = array<i32>} : memref<8x32xf32, #tpu.memory_space<vmem>>, vector<8x8xf32>,
    %c0_75 = arith.constant 0 : index
    %c1_76 = arith.constant 1 : index
    %237 = vector.load %arg12[%c0_75, %c1_76] : memref<8x4xf32, #tpu.memory_space<vmem>>, vector<8x1xf32>
    tpu.vector_store %arg12[%c0_75, %c1_76], %220 {strides = array<i32>} : memref<8x4xf32, #tpu.memory_space<vmem>>, vector<8x1xf32>,
    %c0_77 = arith.constant 0 : index
    %c1_78 = arith.constant 1 : index
    %238 = vector.load %arg13[%c0_77, %c1_78] : memref<8x4xf32, #tpu.memory_space<vmem>>, vector<8x1xf32>
    tpu.vector_store %arg13[%c0_77, %c1_78], %229 {strides = array<i32>} : memref<8x4xf32, #tpu.memory_space<vmem>>, vector<8x1xf32>,
    %239 = vector.extract_strided_slice %8 {offsets = [0, 16], sizes = [8, 8], strides = [1, 1]} : vector<8x32xbf16> to vector<8x8xbf16>
    %240 = vector.extract_strided_slice %10 {offsets = [0, 16], sizes = [8, 8], strides = [1, 1]} : vector<8x32xbf16> to vector<8x8xbf16>
    %241 = vector.extract_strided_slice %12 {offsets = [0, 16], sizes = [8, 8], strides = [1, 1]} : vector<8x32xbf16> to vector<8x8xbf16>
    %cst_79 = arith.constant dense<0.000000e+00> : vector<8x8xf32>
    %242 = tpu.matmul %239, %240, %cst_79 {dimension_numbers = #tpu.dot_dimension_numbers<[1], [1], [0], [0], [0, 0, 1, 0], [], []>} : vector<8x8xbf16>, vector<8x8xbf16>, vector<8x8xf32> -> vector<8x8xf32>
    %243 = vector.extract_strided_slice %21 {offsets = [0, 18], sizes = [8, 9], strides = [1, 1]} : vector<8x36xf32> to vector<8x9xf32>
    %c0_i32_80 = arith.constant 0 : i32
    %244 = vector.broadcast %c0_i32_80 : i32 to vector<8x8xi32>
    %245 = arith.cmpi eq, %36, %244 : vector<8x8xi32>
    %246 = vector.extract_strided_slice %243 {offsets = [0, 0], sizes = [8, 1], strides = [1, 1]} : vector<8x9xf32> to vector<8x1xf32>
    %cst_81 = arith.constant 0.000000e+00 : f32
    %247 = vector.shape_cast %246 : vector<8x1xf32> to vector<8x1xf32>
    %248 = vector.broadcast %247 : vector<8x1xf32> to vector<8x8xf32>
    %249 = vector.broadcast %cst_81 : f32 to vector<8x8xf32>
    %250 = arith.select %245, %248, %249 : vector<8x8xi1>, vector<8x8xf32>
    %251 = arith.addf %242, %250 : vector<8x8xf32>
    %c1_i32_82 = arith.constant 1 : i32
    %252 = vector.broadcast %c1_i32_82 : i32 to vector<8x8xi32>
    %253 = arith.cmpi eq, %36, %252 : vector<8x8xi32>
    %254 = vector.extract_strided_slice %243 {offsets = [0, 1], sizes = [8, 1], strides = [1, 1]} : vector<8x9xf32> to vector<8x1xf32>
    %cst_83 = arith.constant 0.000000e+00 : f32
    %255 = vector.shape_cast %254 : vector<8x1xf32> to vector<8x1xf32>
    %256 = vector.broadcast %255 : vector<8x1xf32> to vector<8x8xf32>
    %257 = vector.broadcast %cst_83 : f32 to vector<8x8xf32>
    %258 = arith.select %253, %256, %257 : vector<8x8xi1>, vector<8x8xf32>
    %259 = arith.addf %251, %258 : vector<8x8xf32>
    %c2_i32_84 = arith.constant 2 : i32
    %260 = vector.broadcast %c2_i32_84 : i32 to vector<8x8xi32>
    %261 = arith.cmpi eq, %36, %260 : vector<8x8xi32>
    %262 = vector.extract_strided_slice %243 {offsets = [0, 2], sizes = [8, 1], strides = [1, 1]} : vector<8x9xf32> to vector<8x1xf32>
    %cst_85 = arith.constant 0.000000e+00 : f32
    %263 = vector.shape_cast %262 : vector<8x1xf32> to vector<8x1xf32>
    %264 = vector.broadcast %263 : vector<8x1xf32> to vector<8x8xf32>
    %265 = vector.broadcast %cst_85 : f32 to vector<8x8xf32>
    %266 = arith.select %261, %264, %265 : vector<8x8xi1>, vector<8x8xf32>
    %267 = arith.addf %259, %266 : vector<8x8xf32>
    %c3_i32_86 = arith.constant 3 : i32
    %268 = vector.broadcast %c3_i32_86 : i32 to vector<8x8xi32>
    %269 = arith.cmpi eq, %36, %268 : vector<8x8xi32>
    %270 = vector.extract_strided_slice %243 {offsets = [0, 3], sizes = [8, 1], strides = [1, 1]} : vector<8x9xf32> to vector<8x1xf32>
    %cst_87 = arith.constant 0.000000e+00 : f32
    %271 = vector.shape_cast %270 : vector<8x1xf32> to vector<8x1xf32>
    %272 = vector.broadcast %271 : vector<8x1xf32> to vector<8x8xf32>
    %273 = vector.broadcast %cst_87 : f32 to vector<8x8xf32>
    %274 = arith.select %269, %272, %273 : vector<8x8xi1>, vector<8x8xf32>
    %275 = arith.addf %267, %274 : vector<8x8xf32>
    %c4_i32_88 = arith.constant 4 : i32
    %276 = vector.broadcast %c4_i32_88 : i32 to vector<8x8xi32>
    %277 = arith.cmpi eq, %36, %276 : vector<8x8xi32>
    %278 = vector.extract_strided_slice %243 {offsets = [0, 4], sizes = [8, 1], strides = [1, 1]} : vector<8x9xf32> to vector<8x1xf32>
    %cst_89 = arith.constant 0.000000e+00 : f32
    %279 = vector.shape_cast %278 : vector<8x1xf32> to vector<8x1xf32>
    %280 = vector.broadcast %279 : vector<8x1xf32> to vector<8x8xf32>
    %281 = vector.broadcast %cst_89 : f32 to vector<8x8xf32>
    %282 = arith.select %277, %280, %281 : vector<8x8xi1>, vector<8x8xf32>
    %283 = arith.addf %275, %282 : vector<8x8xf32>
    %c5_i32_90 = arith.constant 5 : i32
    %284 = vector.broadcast %c5_i32_90 : i32 to vector<8x8xi32>
    %285 = arith.cmpi eq, %36, %284 : vector<8x8xi32>
    %286 = vector.extract_strided_slice %243 {offsets = [0, 5], sizes = [8, 1], strides = [1, 1]} : vector<8x9xf32> to vector<8x1xf32>
    %cst_91 = arith.constant 0.000000e+00 : f32
    %287 = vector.shape_cast %286 : vector<8x1xf32> to vector<8x1xf32>
    %288 = vector.broadcast %287 : vector<8x1xf32> to vector<8x8xf32>
    %289 = vector.broadcast %cst_91 : f32 to vector<8x8xf32>
    %290 = arith.select %285, %288, %289 : vector<8x8xi1>, vector<8x8xf32>
    %291 = arith.addf %283, %290 : vector<8x8xf32>
    %c6_i32_92 = arith.constant 6 : i32
    %292 = vector.broadcast %c6_i32_92 : i32 to vector<8x8xi32>
    %293 = arith.cmpi eq, %36, %292 : vector<8x8xi32>
    %294 = vector.extract_strided_slice %243 {offsets = [0, 6], sizes = [8, 1], strides = [1, 1]} : vector<8x9xf32> to vector<8x1xf32>
    %cst_93 = arith.constant 0.000000e+00 : f32
    %295 = vector.shape_cast %294 : vector<8x1xf32> to vector<8x1xf32>
    %296 = vector.broadcast %295 : vector<8x1xf32> to vector<8x8xf32>
    %297 = vector.broadcast %cst_93 : f32 to vector<8x8xf32>
    %298 = arith.select %293, %296, %297 : vector<8x8xi1>, vector<8x8xf32>
    %299 = arith.addf %291, %298 : vector<8x8xf32>
    %c7_i32_94 = arith.constant 7 : i32
    %300 = vector.broadcast %c7_i32_94 : i32 to vector<8x8xi32>
    %301 = arith.cmpi eq, %36, %300 : vector<8x8xi32>
    %302 = vector.extract_strided_slice %243 {offsets = [0, 7], sizes = [8, 1], strides = [1, 1]} : vector<8x9xf32> to vector<8x1xf32>
    %cst_95 = arith.constant 0.000000e+00 : f32
    %303 = vector.shape_cast %302 : vector<8x1xf32> to vector<8x1xf32>
    %304 = vector.broadcast %303 : vector<8x1xf32> to vector<8x8xf32>
    %305 = vector.broadcast %cst_95 : f32 to vector<8x8xf32>
    %306 = arith.select %301, %304, %305 : vector<8x8xi1>, vector<8x8xf32>
    %307 = arith.addf %299, %306 : vector<8x8xf32>
    %c8_i32_96 = arith.constant 8 : i32
    %308 = vector.broadcast %c8_i32_96 : i32 to vector<8x8xi32>
    %309 = arith.cmpi eq, %36, %308 : vector<8x8xi32>
    %310 = vector.extract_strided_slice %243 {offsets = [0, 8], sizes = [8, 1], strides = [1, 1]} : vector<8x9xf32> to vector<8x1xf32>
    %cst_97 = arith.constant 0.000000e+00 : f32
    %311 = vector.shape_cast %310 : vector<8x1xf32> to vector<8x1xf32>
    %312 = vector.broadcast %311 : vector<8x1xf32> to vector<8x8xf32>
    %313 = vector.broadcast %cst_97 : f32 to vector<8x8xf32>
    %314 = arith.select %309, %312, %313 : vector<8x8xi1>, vector<8x8xf32>
    %315 = arith.addf %307, %314 : vector<8x8xf32>
    %316 = arith.addf %315, %19 : vector<8x8xf32>
    %c0_98 = arith.constant 0 : index
    %c2 = arith.constant 2 : index
    %317 = vector.load %arg12[%c0_98, %c2] : memref<8x4xf32, #tpu.memory_space<vmem>>, vector<8x1xf32>
    %c0_99 = arith.constant 0 : index
    %c2_100 = arith.constant 2 : index
    %318 = vector.load %arg13[%c0_99, %c2_100] : memref<8x4xf32, #tpu.memory_space<vmem>>, vector<8x1xf32>
    %cst_101 = arith.constant dense<0xFF800000> : vector<8xf32>
    %319 = vector.multi_reduction <maximumf>, %316, %cst_101 [1] : vector<8x8xf32> to vector<8xf32>
    %320 = vector.shape_cast %319 : vector<8xf32> to vector<8x1xf32>
    %321 = arith.maximumf %317, %320 : vector<8x1xf32>
    %322 = arith.subf %317, %321 : vector<8x1xf32>
    %323 = math.exp %322 : vector<8x1xf32>
    %324 = vector.broadcast %321 : vector<8x1xf32> to vector<8x8xf32>
    %325 = arith.subf %316, %324 : vector<8x8xf32>
    %326 = math.exp %325 : vector<8x8xf32>
    %327 = arith.mulf %323, %318 : vector<8x1xf32>
    %cst_102 = arith.constant dense<0.000000e+00> : vector<8xf32>
    %328 = vector.multi_reduction <add>, %326, %cst_102 [1] : vector<8x8xf32> to vector<8xf32>
    %329 = vector.shape_cast %328 : vector<8xf32> to vector<8x1xf32>
    %330 = arith.addf %327, %329 : vector<8x1xf32>
    %331 = arith.truncf %326 : vector<8x8xf32> to vector<8x8xbf16>
    %cst_103 = arith.constant dense<0.000000e+00> : vector<8x8xf32>
    %332 = tpu.matmul %331, %241, %cst_103 {dimension_numbers = #tpu.dot_dimension_numbers<[1], [0], [0], [1], [0, 0, 1, 1], [], []>} : vector<8x8xbf16>, vector<8x8xbf16>, vector<8x8xf32> -> vector<8x8xf32>
    %c0_104 = arith.constant 0 : index
    %c16 = arith.constant 16 : index
    %333 = vector.load %arg14[%c0_104, %c16] : memref<8x32xf32, #tpu.memory_space<vmem>>, vector<8x8xf32>
    %334 = vector.broadcast %323 : vector<8x1xf32> to vector<8x8xf32>
    %335 = arith.mulf %334, %333 : vector<8x8xf32>
    %336 = arith.addf %335, %332 : vector<8x8xf32>
    %c0_105 = arith.constant 0 : index
    %c16_106 = arith.constant 16 : index
    %337 = vector.load %arg14[%c0_105, %c16_106] : memref<8x32xf32, #tpu.memory_space<vmem>>, vector<8x8xf32>
    tpu.vector_store %arg14[%c0_105, %c16_106], %336 {strides = array<i32>} : memref<8x32xf32, #tpu.memory_space<vmem>>, vector<8x8xf32>,
    %c0_107 = arith.constant 0 : index
    %c2_108 = arith.constant 2 : index
    %338 = vector.load %arg12[%c0_107, %c2_108] : memref<8x4xf32, #tpu.memory_space<vmem>>, vector<8x1xf32>
    tpu.vector_store %arg12[%c0_107, %c2_108], %321 {strides = array<i32>} : memref<8x4xf32, #tpu.memory_space<vmem>>, vector<8x1xf32>,
    %c0_109 = arith.constant 0 : index
    %c2_110 = arith.constant 2 : index
    %339 = vector.load %arg13[%c0_109, %c2_110] : memref<8x4xf32, #tpu.memory_space<vmem>>, vector<8x1xf32>
    tpu.vector_store %arg13[%c0_109, %c2_110], %330 {strides = array<i32>} : memref<8x4xf32, #tpu.memory_space<vmem>>, vector<8x1xf32>,
    %340 = vector.extract_strided_slice %8 {offsets = [0, 24], sizes = [8, 8], strides = [1, 1]} : vector<8x32xbf16> to vector<8x8xbf16>
    %341 = vector.extract_strided_slice %10 {offsets = [0, 24], sizes = [8, 8], strides = [1, 1]} : vector<8x32xbf16> to vector<8x8xbf16>
    %342 = vector.extract_strided_slice %12 {offsets = [0, 24], sizes = [8, 8], strides = [1, 1]} : vector<8x32xbf16> to vector<8x8xbf16>
    %cst_111 = arith.constant dense<0.000000e+00> : vector<8x8xf32>
    %343 = tpu.matmul %340, %341, %cst_111 {dimension_numbers = #tpu.dot_dimension_numbers<[1], [1], [0], [0], [0, 0, 1, 0], [], []>} : vector<8x8xbf16>, vector<8x8xbf16>, vector<8x8xf32> -> vector<8x8xf32>
    %344 = vector.extract_strided_slice %21 {offsets = [0, 27], sizes = [8, 9], strides = [1, 1]} : vector<8x36xf32> to vector<8x9xf32>
    %c0_i32_112 = arith.constant 0 : i32
    %345 = vector.broadcast %c0_i32_112 : i32 to vector<8x8xi32>
    %346 = arith.cmpi eq, %36, %345 : vector<8x8xi32>
    %347 = vector.extract_strided_slice %344 {offsets = [0, 0], sizes = [8, 1], strides = [1, 1]} : vector<8x9xf32> to vector<8x1xf32>
    %cst_113 = arith.constant 0.000000e+00 : f32
    %348 = vector.shape_cast %347 : vector<8x1xf32> to vector<8x1xf32>
    %349 = vector.broadcast %348 : vector<8x1xf32> to vector<8x8xf32>
    %350 = vector.broadcast %cst_113 : f32 to vector<8x8xf32>
    %351 = arith.select %346, %349, %350 : vector<8x8xi1>, vector<8x8xf32>
    %352 = arith.addf %343, %351 : vector<8x8xf32>
    %c1_i32_114 = arith.constant 1 : i32
    %353 = vector.broadcast %c1_i32_114 : i32 to vector<8x8xi32>
    %354 = arith.cmpi eq, %36, %353 : vector<8x8xi32>
    %355 = vector.extract_strided_slice %344 {offsets = [0, 1], sizes = [8, 1], strides = [1, 1]} : vector<8x9xf32> to vector<8x1xf32>
    %cst_115 = arith.constant 0.000000e+00 : f32
    %356 = vector.shape_cast %355 : vector<8x1xf32> to vector<8x1xf32>
    %357 = vector.broadcast %356 : vector<8x1xf32> to vector<8x8xf32>
    %358 = vector.broadcast %cst_115 : f32 to vector<8x8xf32>
    %359 = arith.select %354, %357, %358 : vector<8x8xi1>, vector<8x8xf32>
    %360 = arith.addf %352, %359 : vector<8x8xf32>
    %c2_i32_116 = arith.constant 2 : i32
    %361 = vector.broadcast %c2_i32_116 : i32 to vector<8x8xi32>
    %362 = arith.cmpi eq, %36, %361 : vector<8x8xi32>
    %363 = vector.extract_strided_slice %344 {offsets = [0, 2], sizes = [8, 1], strides = [1, 1]} : vector<8x9xf32> to vector<8x1xf32>
    %cst_117 = arith.constant 0.000000e+00 : f32
    %364 = vector.shape_cast %363 : vector<8x1xf32> to vector<8x1xf32>
    %365 = vector.broadcast %364 : vector<8x1xf32> to vector<8x8xf32>
    %366 = vector.broadcast %cst_117 : f32 to vector<8x8xf32>
    %367 = arith.select %362, %365, %366 : vector<8x8xi1>, vector<8x8xf32>
    %368 = arith.addf %360, %367 : vector<8x8xf32>
    %c3_i32_118 = arith.constant 3 : i32
    %369 = vector.broadcast %c3_i32_118 : i32 to vector<8x8xi32>
    %370 = arith.cmpi eq, %36, %369 : vector<8x8xi32>
    %371 = vector.extract_strided_slice %344 {offsets = [0, 3], sizes = [8, 1], strides = [1, 1]} : vector<8x9xf32> to vector<8x1xf32>
    %cst_119 = arith.constant 0.000000e+00 : f32
    %372 = vector.shape_cast %371 : vector<8x1xf32> to vector<8x1xf32>
    %373 = vector.broadcast %372 : vector<8x1xf32> to vector<8x8xf32>
    %374 = vector.broadcast %cst_119 : f32 to vector<8x8xf32>
    %375 = arith.select %370, %373, %374 : vector<8x8xi1>, vector<8x8xf32>
    %376 = arith.addf %368, %375 : vector<8x8xf32>
    %c4_i32_120 = arith.constant 4 : i32
    %377 = vector.broadcast %c4_i32_120 : i32 to vector<8x8xi32>
    %378 = arith.cmpi eq, %36, %377 : vector<8x8xi32>
    %379 = vector.extract_strided_slice %344 {offsets = [0, 4], sizes = [8, 1], strides = [1, 1]} : vector<8x9xf32> to vector<8x1xf32>
    %cst_121 = arith.constant 0.000000e+00 : f32
    %380 = vector.shape_cast %379 : vector<8x1xf32> to vector<8x1xf32>
    %381 = vector.broadcast %380 : vector<8x1xf32> to vector<8x8xf32>
    %382 = vector.broadcast %cst_121 : f32 to vector<8x8xf32>
    %383 = arith.select %378, %381, %382 : vector<8x8xi1>, vector<8x8xf32>
    %384 = arith.addf %376, %383 : vector<8x8xf32>
    %c5_i32_122 = arith.constant 5 : i32
    %385 = vector.broadcast %c5_i32_122 : i32 to vector<8x8xi32>
    %386 = arith.cmpi eq, %36, %385 : vector<8x8xi32>
    %387 = vector.extract_strided_slice %344 {offsets = [0, 5], sizes = [8, 1], strides = [1, 1]} : vector<8x9xf32> to vector<8x1xf32>
    %cst_123 = arith.constant 0.000000e+00 : f32
    %388 = vector.shape_cast %387 : vector<8x1xf32> to vector<8x1xf32>
    %389 = vector.broadcast %388 : vector<8x1xf32> to vector<8x8xf32>
    %390 = vector.broadcast %cst_123 : f32 to vector<8x8xf32>
    %391 = arith.select %386, %389, %390 : vector<8x8xi1>, vector<8x8xf32>
    %392 = arith.addf %384, %391 : vector<8x8xf32>
    %c6_i32_124 = arith.constant 6 : i32
    %393 = vector.broadcast %c6_i32_124 : i32 to vector<8x8xi32>
    %394 = arith.cmpi eq, %36, %393 : vector<8x8xi32>
    %395 = vector.extract_strided_slice %344 {offsets = [0, 6], sizes = [8, 1], strides = [1, 1]} : vector<8x9xf32> to vector<8x1xf32>
    %cst_125 = arith.constant 0.000000e+00 : f32
    %396 = vector.shape_cast %395 : vector<8x1xf32> to vector<8x1xf32>
    %397 = vector.broadcast %396 : vector<8x1xf32> to vector<8x8xf32>
    %398 = vector.broadcast %cst_125 : f32 to vector<8x8xf32>
    %399 = arith.select %394, %397, %398 : vector<8x8xi1>, vector<8x8xf32>
    %400 = arith.addf %392, %399 : vector<8x8xf32>
    %c7_i32_126 = arith.constant 7 : i32
    %401 = vector.broadcast %c7_i32_126 : i32 to vector<8x8xi32>
    %402 = arith.cmpi eq, %36, %401 : vector<8x8xi32>
    %403 = vector.extract_strided_slice %344 {offsets = [0, 7], sizes = [8, 1], strides = [1, 1]} : vector<8x9xf32> to vector<8x1xf32>
    %cst_127 = arith.constant 0.000000e+00 : f32
    %404 = vector.shape_cast %403 : vector<8x1xf32> to vector<8x1xf32>
    %405 = vector.broadcast %404 : vector<8x1xf32> to vector<8x8xf32>
    %406 = vector.broadcast %cst_127 : f32 to vector<8x8xf32>
    %407 = arith.select %402, %405, %406 : vector<8x8xi1>, vector<8x8xf32>
    %408 = arith.addf %400, %407 : vector<8x8xf32>
    %c8_i32_128 = arith.constant 8 : i32
    %409 = vector.broadcast %c8_i32_128 : i32 to vector<8x8xi32>
    %410 = arith.cmpi eq, %36, %409 : vector<8x8xi32>
    %411 = vector.extract_strided_slice %344 {offsets = [0, 8], sizes = [8, 1], strides = [1, 1]} : vector<8x9xf32> to vector<8x1xf32>
    %cst_129 = arith.constant 0.000000e+00 : f32
    %412 = vector.shape_cast %411 : vector<8x1xf32> to vector<8x1xf32>
    %413 = vector.broadcast %412 : vector<8x1xf32> to vector<8x8xf32>
    %414 = vector.broadcast %cst_129 : f32 to vector<8x8xf32>
    %415 = arith.select %410, %413, %414 : vector<8x8xi1>, vector<8x8xf32>
    %416 = arith.addf %408, %415 : vector<8x8xf32>
    %417 = arith.addf %416, %19 : vector<8x8xf32>
    %c0_130 = arith.constant 0 : index
    %c3 = arith.constant 3 : index
    %418 = vector.load %arg12[%c0_130, %c3] : memref<8x4xf32, #tpu.memory_space<vmem>>, vector<8x1xf32>
    %c0_131 = arith.constant 0 : index
    %c3_132 = arith.constant 3 : index
    %419 = vector.load %arg13[%c0_131, %c3_132] : memref<8x4xf32, #tpu.memory_space<vmem>>, vector<8x1xf32>
    %cst_133 = arith.constant dense<0xFF800000> : vector<8xf32>
    %420 = vector.multi_reduction <maximumf>, %417, %cst_133 [1] : vector<8x8xf32> to vector<8xf32>
    %421 = vector.shape_cast %420 : vector<8xf32> to vector<8x1xf32>
    %422 = arith.maximumf %418, %421 : vector<8x1xf32>
    %423 = arith.subf %418, %422 : vector<8x1xf32>
    %424 = math.exp %423 : vector<8x1xf32>
    %425 = vector.broadcast %422 : vector<8x1xf32> to vector<8x8xf32>
    %426 = arith.subf %417, %425 : vector<8x8xf32>
    %427 = math.exp %426 : vector<8x8xf32>
    %428 = arith.mulf %424, %419 : vector<8x1xf32>
    %cst_134 = arith.constant dense<0.000000e+00> : vector<8xf32>
    %429 = vector.multi_reduction <add>, %427, %cst_134 [1] : vector<8x8xf32> to vector<8xf32>
    %430 = vector.shape_cast %429 : vector<8xf32> to vector<8x1xf32>
    %431 = arith.addf %428, %430 : vector<8x1xf32>
    %432 = arith.truncf %427 : vector<8x8xf32> to vector<8x8xbf16>
    %cst_135 = arith.constant dense<0.000000e+00> : vector<8x8xf32>
    %433 = tpu.matmul %432, %342, %cst_135 {dimension_numbers = #tpu.dot_dimension_numbers<[1], [0], [0], [1], [0, 0, 1, 1], [], []>} : vector<8x8xbf16>, vector<8x8xbf16>, vector<8x8xf32> -> vector<8x8xf32>
    %c0_136 = arith.constant 0 : index
    %c24 = arith.constant 24 : index
    %434 = vector.load %arg14[%c0_136, %c24] : memref<8x32xf32, #tpu.memory_space<vmem>>, vector<8x8xf32>
    %435 = vector.broadcast %424 : vector<8x1xf32> to vector<8x8xf32>
    %436 = arith.mulf %435, %434 : vector<8x8xf32>
    %437 = arith.addf %436, %433 : vector<8x8xf32>
    %c0_137 = arith.constant 0 : index
    %c24_138 = arith.constant 24 : index
    %438 = vector.load %arg14[%c0_137, %c24_138] : memref<8x32xf32, #tpu.memory_space<vmem>>, vector<8x8xf32>
    tpu.vector_store %arg14[%c0_137, %c24_138], %437 {strides = array<i32>} : memref<8x32xf32, #tpu.memory_space<vmem>>, vector<8x8xf32>,
    %c0_139 = arith.constant 0 : index
    %c3_140 = arith.constant 3 : index
    %439 = vector.load %arg12[%c0_139, %c3_140] : memref<8x4xf32, #tpu.memory_space<vmem>>, vector<8x1xf32>
    tpu.vector_store %arg12[%c0_139, %c3_140], %422 {strides = array<i32>} : memref<8x4xf32, #tpu.memory_space<vmem>>, vector<8x1xf32>,
    %c0_141 = arith.constant 0 : index
    %c3_142 = arith.constant 3 : index
    %440 = vector.load %arg13[%c0_141, %c3_142] : memref<8x4xf32, #tpu.memory_space<vmem>>, vector<8x1xf32>
    tpu.vector_store %arg13[%c0_141, %c3_142], %431 {strides = array<i32>} : memref<8x4xf32, #tpu.memory_space<vmem>>, vector<8x1xf32>,
    %c0_i32_143 = arith.constant 0 : i32
    %441 = arith.cmpi eq, %arg2, %c0_i32_143 : i32
    %442 = arith.extui %441 : i1 to i32
    %c0_i32_144 = arith.constant 0 : i32
    %443 = arith.cmpi ne, %442, %c0_i32_144 : i32
    scf.if %443 {
      %c0_145 = arith.constant 0 : index
      %c0_146 = arith.constant 0 : index
      %444 = vector.load %arg14[%c0_145, %c0_146] : memref<8x32xf32, #tpu.memory_space<vmem>>, vector<8x8xf32>
      %c0_147 = arith.constant 0 : index
      %c0_148 = arith.constant 0 : index
      %445 = vector.load %arg13[%c0_147, %c0_148] : memref<8x4xf32, #tpu.memory_space<vmem>>, vector<8x1xf32>
      %446 = vector.broadcast %445 : vector<8x1xf32> to vector<8x8xf32>
      %447 = arith.divf %444, %446 : vector<8x8xf32>
      %c0_149 = arith.constant 0 : index
      %c0_150 = arith.constant 0 : index
      %448 = vector.load %arg14[%c0_149, %c0_150] : memref<8x32xf32, #tpu.memory_space<vmem>>, vector<8x8xf32>
      tpu.vector_store %arg14[%c0_149, %c0_150], %447 {strides = array<i32>} : memref<8x32xf32, #tpu.memory_space<vmem>>, vector<8x8xf32>,
      %c0_151 = arith.constant 0 : index
      %c8_152 = arith.constant 8 : index
      %449 = vector.load %arg14[%c0_151, %c8_152] : memref<8x32xf32, #tpu.memory_space<vmem>>, vector<8x8xf32>
      %c0_153 = arith.constant 0 : index
      %c1_154 = arith.constant 1 : index
      %450 = vector.load %arg13[%c0_153, %c1_154] : memref<8x4xf32, #tpu.memory_space<vmem>>, vector<8x1xf32>
      %451 = vector.broadcast %450 : vector<8x1xf32> to vector<8x8xf32>
      %452 = arith.divf %449, %451 : vector<8x8xf32>
      %c0_155 = arith.constant 0 : index
      %c8_156 = arith.constant 8 : index
      %453 = vector.load %arg14[%c0_155, %c8_156] : memref<8x32xf32, #tpu.memory_space<vmem>>, vector<8x8xf32>
      tpu.vector_store %arg14[%c0_155, %c8_156], %452 {strides = array<i32>} : memref<8x32xf32, #tpu.memory_space<vmem>>, vector<8x8xf32>,
      %c0_157 = arith.constant 0 : index
      %c16_158 = arith.constant 16 : index
      %454 = vector.load %arg14[%c0_157, %c16_158] : memref<8x32xf32, #tpu.memory_space<vmem>>, vector<8x8xf32>
      %c0_159 = arith.constant 0 : index
      %c2_160 = arith.constant 2 : index
      %455 = vector.load %arg13[%c0_159, %c2_160] : memref<8x4xf32, #tpu.memory_space<vmem>>, vector<8x1xf32>
      %456 = vector.broadcast %455 : vector<8x1xf32> to vector<8x8xf32>
      %457 = arith.divf %454, %456 : vector<8x8xf32>
      %c0_161 = arith.constant 0 : index
      %c16_162 = arith.constant 16 : index
      %458 = vector.load %arg14[%c0_161, %c16_162] : memref<8x32xf32, #tpu.memory_space<vmem>>, vector<8x8xf32>
      tpu.vector_store %arg14[%c0_161, %c16_162], %457 {strides = array<i32>} : memref<8x32xf32, #tpu.memory_space<vmem>>, vector<8x8xf32>,
      %c0_163 = arith.constant 0 : index
      %c24_164 = arith.constant 24 : index
      %459 = vector.load %arg14[%c0_163, %c24_164] : memref<8x32xf32, #tpu.memory_space<vmem>>, vector<8x8xf32>
      %c0_165 = arith.constant 0 : index
      %c3_166 = arith.constant 3 : index
      %460 = vector.load %arg13[%c0_165, %c3_166] : memref<8x4xf32, #tpu.memory_space<vmem>>, vector<8x1xf32>
      %461 = vector.broadcast %460 : vector<8x1xf32> to vector<8x8xf32>
      %462 = arith.divf %459, %461 : vector<8x8xf32>
      %c0_167 = arith.constant 0 : index
      %c24_168 = arith.constant 24 : index
      %463 = vector.load %arg14[%c0_167, %c24_168] : memref<8x32xf32, #tpu.memory_space<vmem>>, vector<8x8xf32>
      tpu.vector_store %arg14[%c0_167, %c24_168], %462 {strides = array<i32>} : memref<8x32xf32, #tpu.memory_space<vmem>>, vector<8x8xf32>,
      %c0_169 = arith.constant 0 : index
      %c0_170 = arith.constant 0 : index
      %464 = vector.load %arg14[%c0_169, %c0_170] : memref<8x32xf32, #tpu.memory_space<vmem>>, vector<8x32xf32>
      %465 = arith.truncf %464 : vector<8x32xf32> to vector<8x32xbf16>
      %c0_171 = arith.constant 0 : index
      %c0_172 = arith.constant 0 : index
      %c0_173 = arith.constant 0 : index
      %466 = vector.load %arg10[%c0_171, %c0_172, %c0_173] : memref<1x8x32xf32, #tpu.memory_space<vmem>>, vector<1x8x32xf32>
      %467 = vector.shape_cast %466 : vector<1x8x32xf32> to vector<8x32xf32>
      %c0_174 = arith.constant 0 : index
      %c0_175 = arith.constant 0 : index
      %468 = vector.load %arg9[%c0_174, %c0_175] : memref<1x32xf32, #tpu.memory_space<vmem>>, vector<1x32xf32>
      %469 = vector.broadcast %468 : vector<1x32xf32> to vector<8x32xf32>
      %470 = arith.addf %467, %469 : vector<8x32xf32>
      %c0_176 = arith.constant 0 : index
      %c0_177 = arith.constant 0 : index
      %471 = vector.load %arg8[%c0_176, %c0_177] : memref<32x32xbf16, #tpu.memory_space<vmem>>, vector<32x32xbf16>
      %cst_178 = arith.constant dense<0.000000e+00> : vector<8x32xf32>
      %472 = tpu.matmul %465, %471, %cst_178 {dimension_numbers = #tpu.dot_dimension_numbers<[1], [0], [0], [1], [0, 0, 1, 1], [], []>} : vector<8x32xbf16>, vector<32x32xbf16>, vector<8x32xf32> -> vector<8x32xf32>
      %473 = arith.addf %470, %472 : vector<8x32xf32>
      %c0_179 = arith.constant 0 : index
      %c0_180 = arith.constant 0 : index
      %c0_181 = arith.constant 0 : index
      %474 = vector.load %arg11[%c0_179, %c0_180, %c0_181] : memref<1x8x32xf32, #tpu.memory_space<vmem>>, vector<1x8x32xf32>
      %475 = vector.shape_cast %474 : vector<1x8x32xf32> to vector<8x32xf32>
      %476 = vector.shape_cast %473 : vector<8x32xf32> to vector<1x8x32xf32>
      tpu.vector_store %arg11[%c0_179, %c0_180, %c0_181], %476 {strides = array<i32>} : memref<1x8x32xf32, #tpu.memory_space<vmem>>, vector<1x8x32xf32>,
    } else {
    }
    return
  }
  func.func @transform_0(%arg0: i32, %arg1: i32, %arg2: i32) -> (i32, i32, i32) {
    %c0_i32 = arith.constant 0 : i32
    %c0_i32_0 = arith.constant 0 : i32
    return %arg0, %arg1, %c0_i32 : i32, i32, i32
  }
  func.func @transform_1(%arg0: i32, %arg1: i32, %arg2: i32) -> (i32, i32, i32) {
    %c0_i32 = arith.constant 0 : i32
    %c0_i32_0 = arith.constant 0 : i32
    return %arg0, %arg2, %c0_i32 : i32, i32, i32
  }
  func.func @transform_2(%arg0: i32, %arg1: i32, %arg2: i32) -> (i32, i32, i32) {
    %c0_i32 = arith.constant 0 : i32
    %c0_i32_0 = arith.constant 0 : i32
    return %arg0, %arg2, %c0_i32 : i32, i32, i32
  }
  func.func @transform_3(%arg0: i32, %arg1: i32, %arg2: i32) -> (i32, i32, i32) {
    %c0_i32 = arith.constant 0 : i32
    return %arg0, %arg1, %arg2 : i32, i32, i32
  }
  func.func @transform_4(%arg0: i32, %arg1: i32, %arg2: i32) -> (i32, i32) {
    %c0_i32 = arith.constant 0 : i32
    %c0_i32_0 = arith.constant 0 : i32
    %c0_i32_1 = arith.constant 0 : i32
    return %c0_i32, %c0_i32_0 : i32, i32
  }
  func.func @transform_5(%arg0: i32, %arg1: i32, %arg2: i32) -> (i32, i32) {
    %c0_i32 = arith.constant 0 : i32
    %c0_i32_0 = arith.constant 0 : i32
    %c0_i32_1 = arith.constant 0 : i32
    return %c0_i32, %c0_i32_0 : i32, i32
  }
  func.func @transform_6(%arg0: i32, %arg1: i32, %arg2: i32) -> (i32, i32) {
    %c0_i32 = arith.constant 0 : i32
    %c0_i32_0 = arith.constant 0 : i32
    %c0_i32_1 = arith.constant 0 : i32
    return %c0_i32, %c0_i32_0 : i32, i32
  }
  func.func @transform_7(%arg0: i32, %arg1: i32, %arg2: i32) -> (i32, i32, i32) {
    %c0_i32 = arith.constant 0 : i32
    %c0_i32_0 = arith.constant 0 : i32
    return %arg0, %arg1, %c0_i32 : i32, i32, i32
  }
  func.func @transform_8(%arg0: i32, %arg1: i32, %arg2: i32) -> (i32, i32, i32) {
    %c0_i32 = arith.constant 0 : i32
    %c0_i32_0 = arith.constant 0 : i32
    return %arg0, %arg1, %c0_i32 : i32, i32, i32
  }
}

module attributes {stable_mosaic.version = 11 : i64} {
  func.func @_gcnn_kernel(%arg0: i32, %arg1: memref<1x8x32xf32, #tpu.memory_space<vmem>>, %arg2: memref<1x8x32xf32, #tpu.memory_space<vmem>>, %arg3: memref<1x8x32xf32, #tpu.memory_space<vmem>>, %arg4: memref<1x32xf32, #tpu.memory_space<vmem>>, %arg5: memref<1x32xf32, #tpu.memory_space<vmem>>, %arg6: memref<3x32x64xbf16, #tpu.memory_space<vmem>>, %arg7: memref<1x64xf32, #tpu.memory_space<vmem>>, %arg8: memref<1x8x32xf32, #tpu.memory_space<vmem>>) attributes {dimension_semantics = [#tpu.dimension_semantics<parallel>], iteration_bounds = array<i64: 2>, scalar_prefetch = 0 : i64, scratch_operands = 0 : i64, tpu.core_type = #tpu.core_type<tc>, window_params = [{transform_indices = @transform_0, window_bounds = array<i64: 1, 8, 32>}, {transform_indices = @transform_1, window_bounds = array<i64: 1, 8, 32>}, {transform_indices = @transform_2, window_bounds = array<i64: 1, 8, 32>}, {pipeline_mode = #tpu.pipeline_mode<synchronous>, transform_indices = @transform_3, window_bounds = array<i64: 1, 32>}, {pipeline_mode = #tpu.pipeline_mode<synchronous>, transform_indices = @transform_4, window_bounds = array<i64: 1, 32>}, {pipeline_mode = #tpu.pipeline_mode<synchronous>, transform_indices = @transform_5, window_bounds = array<i64: 3, 32, 64>}, {pipeline_mode = #tpu.pipeline_mode<synchronous>, transform_indices = @transform_6, window_bounds = array<i64: 1, 64>}, {transform_indices = @transform_7, window_bounds = array<i64: 1, 8, 32>}]} {
    %c0 = arith.constant 0 : index
    %c0_0 = arith.constant 0 : index
    %c0_1 = arith.constant 0 : index
    %0 = vector.load %arg1[%c0, %c0_0, %c0_1] : memref<1x8x32xf32, #tpu.memory_space<vmem>>, vector<1x8x32xf32>
    %1 = vector.shape_cast %0 : vector<1x8x32xf32> to vector<8x32xf32>
    %cst = arith.constant dense<0.000000e+00> : vector<8xf32>
    %2 = vector.multi_reduction <add>, %1, %cst [1] : vector<8x32xf32> to vector<8xf32>
    %3 = vector.shape_cast %2 : vector<8xf32> to vector<8x1xf32>
    %cst_2 = arith.constant 3.200000e+01 : f32
    %4 = vector.broadcast %cst_2 : f32 to vector<8x1xf32>
    %5 = arith.divf %3, %4 : vector<8x1xf32>
    %6 = vector.broadcast %5 : vector<8x1xf32> to vector<8x32xf32>
    %7 = arith.subf %1, %6 : vector<8x32xf32>
    %8 = arith.mulf %7, %7 : vector<8x32xf32>
    %cst_3 = arith.constant dense<0.000000e+00> : vector<8xf32>
    %9 = vector.multi_reduction <add>, %8, %cst_3 [1] : vector<8x32xf32> to vector<8xf32>
    %10 = vector.shape_cast %9 : vector<8xf32> to vector<8x1xf32>
    %cst_4 = arith.constant 3.200000e+01 : f32
    %11 = vector.broadcast %cst_4 : f32 to vector<8x1xf32>
    %12 = arith.divf %10, %11 : vector<8x1xf32>
    %cst_5 = arith.constant 9.99999997E-7 : f32
    %13 = vector.broadcast %cst_5 : f32 to vector<8x1xf32>
    %14 = arith.addf %12, %13 : vector<8x1xf32>
    %15 = math.rsqrt %14 : vector<8x1xf32>
    %16 = vector.broadcast %15 : vector<8x1xf32> to vector<8x32xf32>
    %17 = arith.mulf %7, %16 : vector<8x32xf32>
    %c0_6 = arith.constant 0 : index
    %c0_7 = arith.constant 0 : index
    %18 = vector.load %arg4[%c0_6, %c0_7] : memref<1x32xf32, #tpu.memory_space<vmem>>, vector<1x32xf32>
    %19 = vector.broadcast %18 : vector<1x32xf32> to vector<8x32xf32>
    %20 = arith.mulf %17, %19 : vector<8x32xf32>
    %c0_8 = arith.constant 0 : index
    %c0_9 = arith.constant 0 : index
    %21 = vector.load %arg5[%c0_8, %c0_9] : memref<1x32xf32, #tpu.memory_space<vmem>>, vector<1x32xf32>
    %22 = vector.broadcast %21 : vector<1x32xf32> to vector<8x32xf32>
    %23 = arith.addf %20, %22 : vector<8x32xf32>
    %c0_10 = arith.constant 0 : index
    %c0_11 = arith.constant 0 : index
    %c0_12 = arith.constant 0 : index
    %24 = vector.load %arg3[%c0_10, %c0_11, %c0_12] : memref<1x8x32xf32, #tpu.memory_space<vmem>>, vector<1x8x32xf32>
    %25 = vector.shape_cast %24 : vector<1x8x32xf32> to vector<8x32xf32>
    %26 = arith.addf %23, %25 : vector<8x32xf32>
    %c0_13 = arith.constant 0 : index
    %c0_14 = arith.constant 0 : index
    %c0_15 = arith.constant 0 : index
    %27 = vector.load %arg2[%c0_13, %c0_14, %c0_15] : memref<1x8x32xf32, #tpu.memory_space<vmem>>, vector<1x8x32xf32>
    %28 = vector.shape_cast %27 : vector<1x8x32xf32> to vector<8x32xf32>
    %29 = arith.addf %26, %28 : vector<8x32xf32>
    %30 = tpu.iota {dimensions = array<i32: 0>} : vector<8x32xi32>
    %c0_i32 = arith.constant 0 : i32
    %31 = vector.broadcast %c0_i32 : i32 to vector<8x32xi32>
    %32 = arith.cmpi eq, %30, %31 : vector<8x32xi32>
    %c1_i32 = arith.constant 1 : i32
    %33 = tpu.dynamic_rotate %29 by %c1_i32 dim 0 : vector<8x32xf32>, i32 -> vector<8x32xf32>
    %cst_16 = arith.constant 0.000000e+00 : f32
    %34 = vector.broadcast %cst_16 : f32 to vector<8x32xf32>
    %35 = arith.select %32, %34, %33 : vector<8x32xi1>, vector<8x32xf32>
    %c7_i32 = arith.constant 7 : i32
    %36 = vector.broadcast %c7_i32 : i32 to vector<8x32xi32>
    %37 = arith.cmpi eq, %30, %36 : vector<8x32xi32>
    %c7_i32_17 = arith.constant 7 : i32
    %38 = tpu.dynamic_rotate %29 by %c7_i32_17 dim 0 : vector<8x32xf32>, i32 -> vector<8x32xf32>
    %cst_18 = arith.constant 0.000000e+00 : f32
    %39 = vector.broadcast %cst_18 : f32 to vector<8x32xf32>
    %40 = arith.select %37, %39, %38 : vector<8x32xi1>, vector<8x32xf32>
    %41 = arith.truncf %35 : vector<8x32xf32> to vector<8x32xbf16>
    %c0_19 = arith.constant 0 : index
    %c0_20 = arith.constant 0 : index
    %c0_21 = arith.constant 0 : index
    %42 = vector.load %arg6[%c0_19, %c0_20, %c0_21] : memref<3x32x64xbf16, #tpu.memory_space<vmem>>, vector<1x32x64xbf16>
    %43 = vector.shape_cast %42 : vector<1x32x64xbf16> to vector<32x64xbf16>
    %cst_22 = arith.constant dense<0.000000e+00> : vector<8x64xf32>
    %44 = tpu.matmul %41, %43, %cst_22 {dimension_numbers = #tpu.dot_dimension_numbers<[1], [0], [0], [1], [0, 0, 1, 1], [], []>} : vector<8x32xbf16>, vector<32x64xbf16>, vector<8x64xf32> -> vector<8x64xf32>
    %45 = arith.truncf %29 : vector<8x32xf32> to vector<8x32xbf16>
    %c1 = arith.constant 1 : index
    %c0_23 = arith.constant 0 : index
    %c0_24 = arith.constant 0 : index
    %46 = vector.load %arg6[%c1, %c0_23, %c0_24] : memref<3x32x64xbf16, #tpu.memory_space<vmem>>, vector<1x32x64xbf16>
    %47 = vector.shape_cast %46 : vector<1x32x64xbf16> to vector<32x64xbf16>
    %cst_25 = arith.constant dense<0.000000e+00> : vector<8x64xf32>
    %48 = tpu.matmul %45, %47, %cst_25 {dimension_numbers = #tpu.dot_dimension_numbers<[1], [0], [0], [1], [0, 0, 1, 1], [], []>} : vector<8x32xbf16>, vector<32x64xbf16>, vector<8x64xf32> -> vector<8x64xf32>
    %49 = arith.addf %44, %48 : vector<8x64xf32>
    %50 = arith.truncf %40 : vector<8x32xf32> to vector<8x32xbf16>
    %c2 = arith.constant 2 : index
    %c0_26 = arith.constant 0 : index
    %c0_27 = arith.constant 0 : index
    %51 = vector.load %arg6[%c2, %c0_26, %c0_27] : memref<3x32x64xbf16, #tpu.memory_space<vmem>>, vector<1x32x64xbf16>
    %52 = vector.shape_cast %51 : vector<1x32x64xbf16> to vector<32x64xbf16>
    %cst_28 = arith.constant dense<0.000000e+00> : vector<8x64xf32>
    %53 = tpu.matmul %50, %52, %cst_28 {dimension_numbers = #tpu.dot_dimension_numbers<[1], [0], [0], [1], [0, 0, 1, 1], [], []>} : vector<8x32xbf16>, vector<32x64xbf16>, vector<8x64xf32> -> vector<8x64xf32>
    %54 = arith.addf %49, %53 : vector<8x64xf32>
    %c0_29 = arith.constant 0 : index
    %c0_30 = arith.constant 0 : index
    %55 = vector.load %arg7[%c0_29, %c0_30] : memref<1x64xf32, #tpu.memory_space<vmem>>, vector<1x64xf32>
    %56 = vector.broadcast %55 : vector<1x64xf32> to vector<8x64xf32>
    %57 = arith.addf %54, %56 : vector<8x64xf32>
    %58 = vector.extract_strided_slice %57 {offsets = [0, 0], sizes = [8, 32], strides = [1, 1]} : vector<8x64xf32> to vector<8x32xf32>
    %59 = arith.negf %58 : vector<8x32xf32>
    %60 = math.exp %59 : vector<8x32xf32>
    %cst_31 = arith.constant 1.000000e+00 : f32
    %61 = vector.broadcast %cst_31 : f32 to vector<8x32xf32>
    %62 = arith.addf %61, %60 : vector<8x32xf32>
    %63 = arith.divf %61, %62 : vector<8x32xf32>
    %64 = vector.extract_strided_slice %57 {offsets = [0, 32], sizes = [8, 32], strides = [1, 1]} : vector<8x64xf32> to vector<8x32xf32>
    %65 = arith.mulf %64, %63 : vector<8x32xf32>
    %66 = arith.addf %1, %65 : vector<8x32xf32>
    %c0_32 = arith.constant 0 : index
    %c0_33 = arith.constant 0 : index
    %c0_34 = arith.constant 0 : index
    %67 = vector.load %arg8[%c0_32, %c0_33, %c0_34] : memref<1x8x32xf32, #tpu.memory_space<vmem>>, vector<1x8x32xf32>
    %68 = vector.shape_cast %67 : vector<1x8x32xf32> to vector<8x32xf32>
    %69 = vector.shape_cast %66 : vector<8x32xf32> to vector<1x8x32xf32>
    tpu.vector_store %arg8[%c0_32, %c0_33, %c0_34], %69 {strides = array<i32>} : memref<1x8x32xf32, #tpu.memory_space<vmem>>, vector<1x8x32xf32>,
    return
  }
  func.func @transform_0(%arg0: i32) -> (i32, i32, i32) {
    %c0_i32 = arith.constant 0 : i32
    %c0_i32_0 = arith.constant 0 : i32
    %c0_i32_1 = arith.constant 0 : i32
    return %arg0, %c0_i32, %c0_i32_0 : i32, i32, i32
  }
  func.func @transform_1(%arg0: i32) -> (i32, i32, i32) {
    %c0_i32 = arith.constant 0 : i32
    %c0_i32_0 = arith.constant 0 : i32
    %c0_i32_1 = arith.constant 0 : i32
    return %arg0, %c0_i32, %c0_i32_0 : i32, i32, i32
  }
  func.func @transform_2(%arg0: i32) -> (i32, i32, i32) {
    %c0_i32 = arith.constant 0 : i32
    %c0_i32_0 = arith.constant 0 : i32
    %c0_i32_1 = arith.constant 0 : i32
    return %arg0, %c0_i32, %c0_i32_0 : i32, i32, i32
  }
  func.func @transform_3(%arg0: i32) -> (i32, i32) {
    %c0_i32 = arith.constant 0 : i32
    %c0_i32_0 = arith.constant 0 : i32
    %c0_i32_1 = arith.constant 0 : i32
    return %c0_i32, %c0_i32_0 : i32, i32
  }
  func.func @transform_4(%arg0: i32) -> (i32, i32) {
    %c0_i32 = arith.constant 0 : i32
    %c0_i32_0 = arith.constant 0 : i32
    %c0_i32_1 = arith.constant 0 : i32
    return %c0_i32, %c0_i32_0 : i32, i32
  }
  func.func @transform_5(%arg0: i32) -> (i32, i32, i32) {
    %c0_i32 = arith.constant 0 : i32
    %c0_i32_0 = arith.constant 0 : i32
    %c0_i32_1 = arith.constant 0 : i32
    %c0_i32_2 = arith.constant 0 : i32
    return %c0_i32, %c0_i32_0, %c0_i32_1 : i32, i32, i32
  }
  func.func @transform_6(%arg0: i32) -> (i32, i32) {
    %c0_i32 = arith.constant 0 : i32
    %c0_i32_0 = arith.constant 0 : i32
    %c0_i32_1 = arith.constant 0 : i32
    return %c0_i32, %c0_i32_0 : i32, i32
  }
  func.func @transform_7(%arg0: i32) -> (i32, i32, i32) {
    %c0_i32 = arith.constant 0 : i32
    %c0_i32_0 = arith.constant 0 : i32
    %c0_i32_1 = arith.constant 0 : i32
    return %arg0, %c0_i32, %c0_i32_0 : i32, i32, i32
  }
}

module attributes {stable_mosaic.version = 11 : i64} {
  func.func @_flash_attn_kernel(%arg0: i32, %arg1: i32, %arg2: i32, %arg3: memref<1x8x32xbf16, #tpu.memory_space<vmem>>, %arg4: memref<1x8x32xbf16, #tpu.memory_space<vmem>>, %arg5: memref<1x8x32xbf16, #tpu.memory_space<vmem>>, %arg6: memref<1x8x8xbf16, #tpu.memory_space<vmem>>, %arg7: memref<32x32xbf16, #tpu.memory_space<vmem>>, %arg8: memref<1x32xf32, #tpu.memory_space<vmem>>, %arg9: memref<1x8x32xf32, #tpu.memory_space<vmem>>, %arg10: memref<1x8x32xf32, #tpu.memory_space<vmem>>, %arg11: memref<8x4xf32, #tpu.memory_space<vmem>>, %arg12: memref<8x4xf32, #tpu.memory_space<vmem>>, %arg13: memref<8x32xf32, #tpu.memory_space<vmem>>) attributes {dimension_semantics = [#tpu.dimension_semantics<parallel>, #tpu.dimension_semantics<parallel>, #tpu.dimension_semantics<arbitrary>], iteration_bounds = array<i64: 2, 1, 1>, scalar_prefetch = 0 : i64, scratch_operands = 3 : i64, tpu.core_type = #tpu.core_type<tc>, window_params = [{transform_indices = @transform_0, window_bounds = array<i64: 1, 8, 32>}, {transform_indices = @transform_1, window_bounds = array<i64: 1, 8, 32>}, {transform_indices = @transform_2, window_bounds = array<i64: 1, 8, 32>}, {transform_indices = @transform_3, window_bounds = array<i64: 1, 8, 8>}, {pipeline_mode = #tpu.pipeline_mode<synchronous>, transform_indices = @transform_4, window_bounds = array<i64: 32, 32>}, {pipeline_mode = #tpu.pipeline_mode<synchronous>, transform_indices = @transform_5, window_bounds = array<i64: 1, 32>}, {transform_indices = @transform_6, window_bounds = array<i64: 1, 8, 32>}, {transform_indices = @transform_7, window_bounds = array<i64: 1, 8, 32>}]} {
    %c0_i32 = arith.constant 0 : i32
    %0 = arith.cmpi eq, %arg2, %c0_i32 : i32
    %1 = arith.extui %0 : i1 to i32
    %c0_i32_0 = arith.constant 0 : i32
    %2 = arith.cmpi ne, %1, %c0_i32_0 : i32
    scf.if %2 {
      %cst_74 = arith.constant -1.000000e+30 : f32
      %135 = vector.broadcast %cst_74 : f32 to vector<8x4xf32>
      %c0_75 = arith.constant 0 : index
      %c0_76 = arith.constant 0 : index
      %136 = vector.load %arg11[%c0_75, %c0_76] : memref<8x4xf32, #tpu.memory_space<vmem>>, vector<8x4xf32>
      tpu.vector_store %arg11[%c0_75, %c0_76], %135 {strides = array<i32>} : memref<8x4xf32, #tpu.memory_space<vmem>>, vector<8x4xf32>,
      %cst_77 = arith.constant 0.000000e+00 : f32
      %137 = vector.broadcast %cst_77 : f32 to vector<8x4xf32>
      %c0_78 = arith.constant 0 : index
      %c0_79 = arith.constant 0 : index
      %138 = vector.load %arg12[%c0_78, %c0_79] : memref<8x4xf32, #tpu.memory_space<vmem>>, vector<8x4xf32>
      tpu.vector_store %arg12[%c0_78, %c0_79], %137 {strides = array<i32>} : memref<8x4xf32, #tpu.memory_space<vmem>>, vector<8x4xf32>,
      %cst_80 = arith.constant 0.000000e+00 : f32
      %139 = vector.broadcast %cst_80 : f32 to vector<8x32xf32>
      %c0_81 = arith.constant 0 : index
      %c0_82 = arith.constant 0 : index
      %140 = vector.load %arg13[%c0_81, %c0_82] : memref<8x32xf32, #tpu.memory_space<vmem>>, vector<8x32xf32>
      tpu.vector_store %arg13[%c0_81, %c0_82], %139 {strides = array<i32>} : memref<8x32xf32, #tpu.memory_space<vmem>>, vector<8x32xf32>,
    } else {
    }
    %c0 = arith.constant 0 : index
    %c0_1 = arith.constant 0 : index
    %c0_2 = arith.constant 0 : index
    %3 = vector.load %arg3[%c0, %c0_1, %c0_2] : memref<1x8x32xbf16, #tpu.memory_space<vmem>>, vector<1x8x32xbf16>
    %4 = vector.shape_cast %3 : vector<1x8x32xbf16> to vector<8x32xbf16>
    %5 = arith.extf %4 : vector<8x32xbf16> to vector<8x32xf32>
    %cst = arith.constant 0.353553385 : f32
    %6 = vector.broadcast %cst : f32 to vector<8x32xf32>
    %7 = arith.mulf %5, %6 : vector<8x32xf32>
    %8 = arith.truncf %7 : vector<8x32xf32> to vector<8x32xbf16>
    %c0_3 = arith.constant 0 : index
    %c0_4 = arith.constant 0 : index
    %c0_5 = arith.constant 0 : index
    %9 = vector.load %arg4[%c0_3, %c0_4, %c0_5] : memref<1x8x32xbf16, #tpu.memory_space<vmem>>, vector<1x8x32xbf16>
    %10 = vector.shape_cast %9 : vector<1x8x32xbf16> to vector<8x32xbf16>
    %c0_6 = arith.constant 0 : index
    %c0_7 = arith.constant 0 : index
    %c0_8 = arith.constant 0 : index
    %11 = vector.load %arg5[%c0_6, %c0_7, %c0_8] : memref<1x8x32xbf16, #tpu.memory_space<vmem>>, vector<1x8x32xbf16>
    %12 = vector.shape_cast %11 : vector<1x8x32xbf16> to vector<8x32xbf16>
    %c0_9 = arith.constant 0 : index
    %c0_10 = arith.constant 0 : index
    %c0_11 = arith.constant 0 : index
    %13 = vector.load %arg6[%c0_9, %c0_10, %c0_11] : memref<1x8x8xbf16, #tpu.memory_space<vmem>>, vector<1x8x8xbf16>
    %14 = vector.shape_cast %13 : vector<1x8x8xbf16> to vector<8x8xbf16>
    %15 = arith.extf %14 : vector<8x8xbf16> to vector<8x8xf32>
    %cst_12 = arith.constant 1.000000e+00 : f32
    %16 = vector.broadcast %cst_12 : f32 to vector<8x8xf32>
    %17 = arith.subf %15, %16 : vector<8x8xf32>
    %cst_13 = arith.constant 1.000000e+09 : f32
    %18 = vector.broadcast %cst_13 : f32 to vector<8x8xf32>
    %19 = arith.mulf %17, %18 : vector<8x8xf32>
    %20 = vector.extract_strided_slice %8 {offsets = [0, 0], sizes = [8, 8], strides = [1, 1]} : vector<8x32xbf16> to vector<8x8xbf16>
    %21 = vector.extract_strided_slice %10 {offsets = [0, 0], sizes = [8, 8], strides = [1, 1]} : vector<8x32xbf16> to vector<8x8xbf16>
    %22 = vector.extract_strided_slice %12 {offsets = [0, 0], sizes = [8, 8], strides = [1, 1]} : vector<8x32xbf16> to vector<8x8xbf16>
    %cst_14 = arith.constant dense<0.000000e+00> : vector<8x8xf32>
    %23 = tpu.matmul %20, %21, %cst_14 {dimension_numbers = #tpu.dot_dimension_numbers<[1], [1], [0], [0], [0, 0, 1, 0], [], []>} : vector<8x8xbf16>, vector<8x8xbf16>, vector<8x8xf32> -> vector<8x8xf32>
    %24 = arith.addf %23, %19 : vector<8x8xf32>
    %c0_15 = arith.constant 0 : index
    %c0_16 = arith.constant 0 : index
    %25 = vector.load %arg11[%c0_15, %c0_16] : memref<8x4xf32, #tpu.memory_space<vmem>>, vector<8x1xf32>
    %c0_17 = arith.constant 0 : index
    %c0_18 = arith.constant 0 : index
    %26 = vector.load %arg12[%c0_17, %c0_18] : memref<8x4xf32, #tpu.memory_space<vmem>>, vector<8x1xf32>
    %cst_19 = arith.constant dense<0xFF800000> : vector<8xf32>
    %27 = vector.multi_reduction <maximumf>, %24, %cst_19 [1] : vector<8x8xf32> to vector<8xf32>
    %28 = vector.shape_cast %27 : vector<8xf32> to vector<8x1xf32>
    %29 = arith.maximumf %25, %28 : vector<8x1xf32>
    %30 = arith.subf %25, %29 : vector<8x1xf32>
    %31 = math.exp %30 : vector<8x1xf32>
    %32 = vector.broadcast %29 : vector<8x1xf32> to vector<8x8xf32>
    %33 = arith.subf %24, %32 : vector<8x8xf32>
    %34 = math.exp %33 : vector<8x8xf32>
    %35 = arith.mulf %31, %26 : vector<8x1xf32>
    %cst_20 = arith.constant dense<0.000000e+00> : vector<8xf32>
    %36 = vector.multi_reduction <add>, %34, %cst_20 [1] : vector<8x8xf32> to vector<8xf32>
    %37 = vector.shape_cast %36 : vector<8xf32> to vector<8x1xf32>
    %38 = arith.addf %35, %37 : vector<8x1xf32>
    %39 = arith.truncf %34 : vector<8x8xf32> to vector<8x8xbf16>
    %cst_21 = arith.constant dense<0.000000e+00> : vector<8x8xf32>
    %40 = tpu.matmul %39, %22, %cst_21 {dimension_numbers = #tpu.dot_dimension_numbers<[1], [0], [0], [1], [0, 0, 1, 1], [], []>} : vector<8x8xbf16>, vector<8x8xbf16>, vector<8x8xf32> -> vector<8x8xf32>
    %c0_22 = arith.constant 0 : index
    %c0_23 = arith.constant 0 : index
    %41 = vector.load %arg13[%c0_22, %c0_23] : memref<8x32xf32, #tpu.memory_space<vmem>>, vector<8x8xf32>
    %42 = vector.broadcast %31 : vector<8x1xf32> to vector<8x8xf32>
    %43 = arith.mulf %42, %41 : vector<8x8xf32>
    %44 = arith.addf %43, %40 : vector<8x8xf32>
    %c0_24 = arith.constant 0 : index
    %c0_25 = arith.constant 0 : index
    %45 = vector.load %arg13[%c0_24, %c0_25] : memref<8x32xf32, #tpu.memory_space<vmem>>, vector<8x8xf32>
    tpu.vector_store %arg13[%c0_24, %c0_25], %44 {strides = array<i32>} : memref<8x32xf32, #tpu.memory_space<vmem>>, vector<8x8xf32>,
    %c0_26 = arith.constant 0 : index
    %c0_27 = arith.constant 0 : index
    %46 = vector.load %arg11[%c0_26, %c0_27] : memref<8x4xf32, #tpu.memory_space<vmem>>, vector<8x1xf32>
    tpu.vector_store %arg11[%c0_26, %c0_27], %29 {strides = array<i32>} : memref<8x4xf32, #tpu.memory_space<vmem>>, vector<8x1xf32>,
    %c0_28 = arith.constant 0 : index
    %c0_29 = arith.constant 0 : index
    %47 = vector.load %arg12[%c0_28, %c0_29] : memref<8x4xf32, #tpu.memory_space<vmem>>, vector<8x1xf32>
    tpu.vector_store %arg12[%c0_28, %c0_29], %38 {strides = array<i32>} : memref<8x4xf32, #tpu.memory_space<vmem>>, vector<8x1xf32>,
    %48 = vector.extract_strided_slice %8 {offsets = [0, 8], sizes = [8, 8], strides = [1, 1]} : vector<8x32xbf16> to vector<8x8xbf16>
    %49 = vector.extract_strided_slice %10 {offsets = [0, 8], sizes = [8, 8], strides = [1, 1]} : vector<8x32xbf16> to vector<8x8xbf16>
    %50 = vector.extract_strided_slice %12 {offsets = [0, 8], sizes = [8, 8], strides = [1, 1]} : vector<8x32xbf16> to vector<8x8xbf16>
    %cst_30 = arith.constant dense<0.000000e+00> : vector<8x8xf32>
    %51 = tpu.matmul %48, %49, %cst_30 {dimension_numbers = #tpu.dot_dimension_numbers<[1], [1], [0], [0], [0, 0, 1, 0], [], []>} : vector<8x8xbf16>, vector<8x8xbf16>, vector<8x8xf32> -> vector<8x8xf32>
    %52 = arith.addf %51, %19 : vector<8x8xf32>
    %c0_31 = arith.constant 0 : index
    %c1 = arith.constant 1 : index
    %53 = vector.load %arg11[%c0_31, %c1] : memref<8x4xf32, #tpu.memory_space<vmem>>, vector<8x1xf32>
    %c0_32 = arith.constant 0 : index
    %c1_33 = arith.constant 1 : index
    %54 = vector.load %arg12[%c0_32, %c1_33] : memref<8x4xf32, #tpu.memory_space<vmem>>, vector<8x1xf32>
    %cst_34 = arith.constant dense<0xFF800000> : vector<8xf32>
    %55 = vector.multi_reduction <maximumf>, %52, %cst_34 [1] : vector<8x8xf32> to vector<8xf32>
    %56 = vector.shape_cast %55 : vector<8xf32> to vector<8x1xf32>
    %57 = arith.maximumf %53, %56 : vector<8x1xf32>
    %58 = arith.subf %53, %57 : vector<8x1xf32>
    %59 = math.exp %58 : vector<8x1xf32>
    %60 = vector.broadcast %57 : vector<8x1xf32> to vector<8x8xf32>
    %61 = arith.subf %52, %60 : vector<8x8xf32>
    %62 = math.exp %61 : vector<8x8xf32>
    %63 = arith.mulf %59, %54 : vector<8x1xf32>
    %cst_35 = arith.constant dense<0.000000e+00> : vector<8xf32>
    %64 = vector.multi_reduction <add>, %62, %cst_35 [1] : vector<8x8xf32> to vector<8xf32>
    %65 = vector.shape_cast %64 : vector<8xf32> to vector<8x1xf32>
    %66 = arith.addf %63, %65 : vector<8x1xf32>
    %67 = arith.truncf %62 : vector<8x8xf32> to vector<8x8xbf16>
    %cst_36 = arith.constant dense<0.000000e+00> : vector<8x8xf32>
    %68 = tpu.matmul %67, %50, %cst_36 {dimension_numbers = #tpu.dot_dimension_numbers<[1], [0], [0], [1], [0, 0, 1, 1], [], []>} : vector<8x8xbf16>, vector<8x8xbf16>, vector<8x8xf32> -> vector<8x8xf32>
    %c0_37 = arith.constant 0 : index
    %c8 = arith.constant 8 : index
    %69 = vector.load %arg13[%c0_37, %c8] : memref<8x32xf32, #tpu.memory_space<vmem>>, vector<8x8xf32>
    %70 = vector.broadcast %59 : vector<8x1xf32> to vector<8x8xf32>
    %71 = arith.mulf %70, %69 : vector<8x8xf32>
    %72 = arith.addf %71, %68 : vector<8x8xf32>
    %c0_38 = arith.constant 0 : index
    %c8_39 = arith.constant 8 : index
    %73 = vector.load %arg13[%c0_38, %c8_39] : memref<8x32xf32, #tpu.memory_space<vmem>>, vector<8x8xf32>
    tpu.vector_store %arg13[%c0_38, %c8_39], %72 {strides = array<i32>} : memref<8x32xf32, #tpu.memory_space<vmem>>, vector<8x8xf32>,
    %c0_40 = arith.constant 0 : index
    %c1_41 = arith.constant 1 : index
    %74 = vector.load %arg11[%c0_40, %c1_41] : memref<8x4xf32, #tpu.memory_space<vmem>>, vector<8x1xf32>
    tpu.vector_store %arg11[%c0_40, %c1_41], %57 {strides = array<i32>} : memref<8x4xf32, #tpu.memory_space<vmem>>, vector<8x1xf32>,
    %c0_42 = arith.constant 0 : index
    %c1_43 = arith.constant 1 : index
    %75 = vector.load %arg12[%c0_42, %c1_43] : memref<8x4xf32, #tpu.memory_space<vmem>>, vector<8x1xf32>
    tpu.vector_store %arg12[%c0_42, %c1_43], %66 {strides = array<i32>} : memref<8x4xf32, #tpu.memory_space<vmem>>, vector<8x1xf32>,
    %76 = vector.extract_strided_slice %8 {offsets = [0, 16], sizes = [8, 8], strides = [1, 1]} : vector<8x32xbf16> to vector<8x8xbf16>
    %77 = vector.extract_strided_slice %10 {offsets = [0, 16], sizes = [8, 8], strides = [1, 1]} : vector<8x32xbf16> to vector<8x8xbf16>
    %78 = vector.extract_strided_slice %12 {offsets = [0, 16], sizes = [8, 8], strides = [1, 1]} : vector<8x32xbf16> to vector<8x8xbf16>
    %cst_44 = arith.constant dense<0.000000e+00> : vector<8x8xf32>
    %79 = tpu.matmul %76, %77, %cst_44 {dimension_numbers = #tpu.dot_dimension_numbers<[1], [1], [0], [0], [0, 0, 1, 0], [], []>} : vector<8x8xbf16>, vector<8x8xbf16>, vector<8x8xf32> -> vector<8x8xf32>
    %80 = arith.addf %79, %19 : vector<8x8xf32>
    %c0_45 = arith.constant 0 : index
    %c2 = arith.constant 2 : index
    %81 = vector.load %arg11[%c0_45, %c2] : memref<8x4xf32, #tpu.memory_space<vmem>>, vector<8x1xf32>
    %c0_46 = arith.constant 0 : index
    %c2_47 = arith.constant 2 : index
    %82 = vector.load %arg12[%c0_46, %c2_47] : memref<8x4xf32, #tpu.memory_space<vmem>>, vector<8x1xf32>
    %cst_48 = arith.constant dense<0xFF800000> : vector<8xf32>
    %83 = vector.multi_reduction <maximumf>, %80, %cst_48 [1] : vector<8x8xf32> to vector<8xf32>
    %84 = vector.shape_cast %83 : vector<8xf32> to vector<8x1xf32>
    %85 = arith.maximumf %81, %84 : vector<8x1xf32>
    %86 = arith.subf %81, %85 : vector<8x1xf32>
    %87 = math.exp %86 : vector<8x1xf32>
    %88 = vector.broadcast %85 : vector<8x1xf32> to vector<8x8xf32>
    %89 = arith.subf %80, %88 : vector<8x8xf32>
    %90 = math.exp %89 : vector<8x8xf32>
    %91 = arith.mulf %87, %82 : vector<8x1xf32>
    %cst_49 = arith.constant dense<0.000000e+00> : vector<8xf32>
    %92 = vector.multi_reduction <add>, %90, %cst_49 [1] : vector<8x8xf32> to vector<8xf32>
    %93 = vector.shape_cast %92 : vector<8xf32> to vector<8x1xf32>
    %94 = arith.addf %91, %93 : vector<8x1xf32>
    %95 = arith.truncf %90 : vector<8x8xf32> to vector<8x8xbf16>
    %cst_50 = arith.constant dense<0.000000e+00> : vector<8x8xf32>
    %96 = tpu.matmul %95, %78, %cst_50 {dimension_numbers = #tpu.dot_dimension_numbers<[1], [0], [0], [1], [0, 0, 1, 1], [], []>} : vector<8x8xbf16>, vector<8x8xbf16>, vector<8x8xf32> -> vector<8x8xf32>
    %c0_51 = arith.constant 0 : index
    %c16 = arith.constant 16 : index
    %97 = vector.load %arg13[%c0_51, %c16] : memref<8x32xf32, #tpu.memory_space<vmem>>, vector<8x8xf32>
    %98 = vector.broadcast %87 : vector<8x1xf32> to vector<8x8xf32>
    %99 = arith.mulf %98, %97 : vector<8x8xf32>
    %100 = arith.addf %99, %96 : vector<8x8xf32>
    %c0_52 = arith.constant 0 : index
    %c16_53 = arith.constant 16 : index
    %101 = vector.load %arg13[%c0_52, %c16_53] : memref<8x32xf32, #tpu.memory_space<vmem>>, vector<8x8xf32>
    tpu.vector_store %arg13[%c0_52, %c16_53], %100 {strides = array<i32>} : memref<8x32xf32, #tpu.memory_space<vmem>>, vector<8x8xf32>,
    %c0_54 = arith.constant 0 : index
    %c2_55 = arith.constant 2 : index
    %102 = vector.load %arg11[%c0_54, %c2_55] : memref<8x4xf32, #tpu.memory_space<vmem>>, vector<8x1xf32>
    tpu.vector_store %arg11[%c0_54, %c2_55], %85 {strides = array<i32>} : memref<8x4xf32, #tpu.memory_space<vmem>>, vector<8x1xf32>,
    %c0_56 = arith.constant 0 : index
    %c2_57 = arith.constant 2 : index
    %103 = vector.load %arg12[%c0_56, %c2_57] : memref<8x4xf32, #tpu.memory_space<vmem>>, vector<8x1xf32>
    tpu.vector_store %arg12[%c0_56, %c2_57], %94 {strides = array<i32>} : memref<8x4xf32, #tpu.memory_space<vmem>>, vector<8x1xf32>,
    %104 = vector.extract_strided_slice %8 {offsets = [0, 24], sizes = [8, 8], strides = [1, 1]} : vector<8x32xbf16> to vector<8x8xbf16>
    %105 = vector.extract_strided_slice %10 {offsets = [0, 24], sizes = [8, 8], strides = [1, 1]} : vector<8x32xbf16> to vector<8x8xbf16>
    %106 = vector.extract_strided_slice %12 {offsets = [0, 24], sizes = [8, 8], strides = [1, 1]} : vector<8x32xbf16> to vector<8x8xbf16>
    %cst_58 = arith.constant dense<0.000000e+00> : vector<8x8xf32>
    %107 = tpu.matmul %104, %105, %cst_58 {dimension_numbers = #tpu.dot_dimension_numbers<[1], [1], [0], [0], [0, 0, 1, 0], [], []>} : vector<8x8xbf16>, vector<8x8xbf16>, vector<8x8xf32> -> vector<8x8xf32>
    %108 = arith.addf %107, %19 : vector<8x8xf32>
    %c0_59 = arith.constant 0 : index
    %c3 = arith.constant 3 : index
    %109 = vector.load %arg11[%c0_59, %c3] : memref<8x4xf32, #tpu.memory_space<vmem>>, vector<8x1xf32>
    %c0_60 = arith.constant 0 : index
    %c3_61 = arith.constant 3 : index
    %110 = vector.load %arg12[%c0_60, %c3_61] : memref<8x4xf32, #tpu.memory_space<vmem>>, vector<8x1xf32>
    %cst_62 = arith.constant dense<0xFF800000> : vector<8xf32>
    %111 = vector.multi_reduction <maximumf>, %108, %cst_62 [1] : vector<8x8xf32> to vector<8xf32>
    %112 = vector.shape_cast %111 : vector<8xf32> to vector<8x1xf32>
    %113 = arith.maximumf %109, %112 : vector<8x1xf32>
    %114 = arith.subf %109, %113 : vector<8x1xf32>
    %115 = math.exp %114 : vector<8x1xf32>
    %116 = vector.broadcast %113 : vector<8x1xf32> to vector<8x8xf32>
    %117 = arith.subf %108, %116 : vector<8x8xf32>
    %118 = math.exp %117 : vector<8x8xf32>
    %119 = arith.mulf %115, %110 : vector<8x1xf32>
    %cst_63 = arith.constant dense<0.000000e+00> : vector<8xf32>
    %120 = vector.multi_reduction <add>, %118, %cst_63 [1] : vector<8x8xf32> to vector<8xf32>
    %121 = vector.shape_cast %120 : vector<8xf32> to vector<8x1xf32>
    %122 = arith.addf %119, %121 : vector<8x1xf32>
    %123 = arith.truncf %118 : vector<8x8xf32> to vector<8x8xbf16>
    %cst_64 = arith.constant dense<0.000000e+00> : vector<8x8xf32>
    %124 = tpu.matmul %123, %106, %cst_64 {dimension_numbers = #tpu.dot_dimension_numbers<[1], [0], [0], [1], [0, 0, 1, 1], [], []>} : vector<8x8xbf16>, vector<8x8xbf16>, vector<8x8xf32> -> vector<8x8xf32>
    %c0_65 = arith.constant 0 : index
    %c24 = arith.constant 24 : index
    %125 = vector.load %arg13[%c0_65, %c24] : memref<8x32xf32, #tpu.memory_space<vmem>>, vector<8x8xf32>
    %126 = vector.broadcast %115 : vector<8x1xf32> to vector<8x8xf32>
    %127 = arith.mulf %126, %125 : vector<8x8xf32>
    %128 = arith.addf %127, %124 : vector<8x8xf32>
    %c0_66 = arith.constant 0 : index
    %c24_67 = arith.constant 24 : index
    %129 = vector.load %arg13[%c0_66, %c24_67] : memref<8x32xf32, #tpu.memory_space<vmem>>, vector<8x8xf32>
    tpu.vector_store %arg13[%c0_66, %c24_67], %128 {strides = array<i32>} : memref<8x32xf32, #tpu.memory_space<vmem>>, vector<8x8xf32>,
    %c0_68 = arith.constant 0 : index
    %c3_69 = arith.constant 3 : index
    %130 = vector.load %arg11[%c0_68, %c3_69] : memref<8x4xf32, #tpu.memory_space<vmem>>, vector<8x1xf32>
    tpu.vector_store %arg11[%c0_68, %c3_69], %113 {strides = array<i32>} : memref<8x4xf32, #tpu.memory_space<vmem>>, vector<8x1xf32>,
    %c0_70 = arith.constant 0 : index
    %c3_71 = arith.constant 3 : index
    %131 = vector.load %arg12[%c0_70, %c3_71] : memref<8x4xf32, #tpu.memory_space<vmem>>, vector<8x1xf32>
    tpu.vector_store %arg12[%c0_70, %c3_71], %122 {strides = array<i32>} : memref<8x4xf32, #tpu.memory_space<vmem>>, vector<8x1xf32>,
    %c0_i32_72 = arith.constant 0 : i32
    %132 = arith.cmpi eq, %arg2, %c0_i32_72 : i32
    %133 = arith.extui %132 : i1 to i32
    %c0_i32_73 = arith.constant 0 : i32
    %134 = arith.cmpi ne, %133, %c0_i32_73 : i32
    scf.if %134 {
      %c0_74 = arith.constant 0 : index
      %c0_75 = arith.constant 0 : index
      %135 = vector.load %arg13[%c0_74, %c0_75] : memref<8x32xf32, #tpu.memory_space<vmem>>, vector<8x8xf32>
      %c0_76 = arith.constant 0 : index
      %c0_77 = arith.constant 0 : index
      %136 = vector.load %arg12[%c0_76, %c0_77] : memref<8x4xf32, #tpu.memory_space<vmem>>, vector<8x1xf32>
      %137 = vector.broadcast %136 : vector<8x1xf32> to vector<8x8xf32>
      %138 = arith.divf %135, %137 : vector<8x8xf32>
      %c0_78 = arith.constant 0 : index
      %c0_79 = arith.constant 0 : index
      %139 = vector.load %arg13[%c0_78, %c0_79] : memref<8x32xf32, #tpu.memory_space<vmem>>, vector<8x8xf32>
      tpu.vector_store %arg13[%c0_78, %c0_79], %138 {strides = array<i32>} : memref<8x32xf32, #tpu.memory_space<vmem>>, vector<8x8xf32>,
      %c0_80 = arith.constant 0 : index
      %c8_81 = arith.constant 8 : index
      %140 = vector.load %arg13[%c0_80, %c8_81] : memref<8x32xf32, #tpu.memory_space<vmem>>, vector<8x8xf32>
      %c0_82 = arith.constant 0 : index
      %c1_83 = arith.constant 1 : index
      %141 = vector.load %arg12[%c0_82, %c1_83] : memref<8x4xf32, #tpu.memory_space<vmem>>, vector<8x1xf32>
      %142 = vector.broadcast %141 : vector<8x1xf32> to vector<8x8xf32>
      %143 = arith.divf %140, %142 : vector<8x8xf32>
      %c0_84 = arith.constant 0 : index
      %c8_85 = arith.constant 8 : index
      %144 = vector.load %arg13[%c0_84, %c8_85] : memref<8x32xf32, #tpu.memory_space<vmem>>, vector<8x8xf32>
      tpu.vector_store %arg13[%c0_84, %c8_85], %143 {strides = array<i32>} : memref<8x32xf32, #tpu.memory_space<vmem>>, vector<8x8xf32>,
      %c0_86 = arith.constant 0 : index
      %c16_87 = arith.constant 16 : index
      %145 = vector.load %arg13[%c0_86, %c16_87] : memref<8x32xf32, #tpu.memory_space<vmem>>, vector<8x8xf32>
      %c0_88 = arith.constant 0 : index
      %c2_89 = arith.constant 2 : index
      %146 = vector.load %arg12[%c0_88, %c2_89] : memref<8x4xf32, #tpu.memory_space<vmem>>, vector<8x1xf32>
      %147 = vector.broadcast %146 : vector<8x1xf32> to vector<8x8xf32>
      %148 = arith.divf %145, %147 : vector<8x8xf32>
      %c0_90 = arith.constant 0 : index
      %c16_91 = arith.constant 16 : index
      %149 = vector.load %arg13[%c0_90, %c16_91] : memref<8x32xf32, #tpu.memory_space<vmem>>, vector<8x8xf32>
      tpu.vector_store %arg13[%c0_90, %c16_91], %148 {strides = array<i32>} : memref<8x32xf32, #tpu.memory_space<vmem>>, vector<8x8xf32>,
      %c0_92 = arith.constant 0 : index
      %c24_93 = arith.constant 24 : index
      %150 = vector.load %arg13[%c0_92, %c24_93] : memref<8x32xf32, #tpu.memory_space<vmem>>, vector<8x8xf32>
      %c0_94 = arith.constant 0 : index
      %c3_95 = arith.constant 3 : index
      %151 = vector.load %arg12[%c0_94, %c3_95] : memref<8x4xf32, #tpu.memory_space<vmem>>, vector<8x1xf32>
      %152 = vector.broadcast %151 : vector<8x1xf32> to vector<8x8xf32>
      %153 = arith.divf %150, %152 : vector<8x8xf32>
      %c0_96 = arith.constant 0 : index
      %c24_97 = arith.constant 24 : index
      %154 = vector.load %arg13[%c0_96, %c24_97] : memref<8x32xf32, #tpu.memory_space<vmem>>, vector<8x8xf32>
      tpu.vector_store %arg13[%c0_96, %c24_97], %153 {strides = array<i32>} : memref<8x32xf32, #tpu.memory_space<vmem>>, vector<8x8xf32>,
      %c0_98 = arith.constant 0 : index
      %c0_99 = arith.constant 0 : index
      %155 = vector.load %arg13[%c0_98, %c0_99] : memref<8x32xf32, #tpu.memory_space<vmem>>, vector<8x32xf32>
      %156 = arith.truncf %155 : vector<8x32xf32> to vector<8x32xbf16>
      %c0_100 = arith.constant 0 : index
      %c0_101 = arith.constant 0 : index
      %c0_102 = arith.constant 0 : index
      %157 = vector.load %arg9[%c0_100, %c0_101, %c0_102] : memref<1x8x32xf32, #tpu.memory_space<vmem>>, vector<1x8x32xf32>
      %158 = vector.shape_cast %157 : vector<1x8x32xf32> to vector<8x32xf32>
      %c0_103 = arith.constant 0 : index
      %c0_104 = arith.constant 0 : index
      %159 = vector.load %arg8[%c0_103, %c0_104] : memref<1x32xf32, #tpu.memory_space<vmem>>, vector<1x32xf32>
      %160 = vector.broadcast %159 : vector<1x32xf32> to vector<8x32xf32>
      %161 = arith.addf %158, %160 : vector<8x32xf32>
      %c0_105 = arith.constant 0 : index
      %c0_106 = arith.constant 0 : index
      %162 = vector.load %arg7[%c0_105, %c0_106] : memref<32x32xbf16, #tpu.memory_space<vmem>>, vector<32x32xbf16>
      %cst_107 = arith.constant dense<0.000000e+00> : vector<8x32xf32>
      %163 = tpu.matmul %156, %162, %cst_107 {dimension_numbers = #tpu.dot_dimension_numbers<[1], [0], [0], [1], [0, 0, 1, 1], [], []>} : vector<8x32xbf16>, vector<32x32xbf16>, vector<8x32xf32> -> vector<8x32xf32>
      %164 = arith.addf %161, %163 : vector<8x32xf32>
      %c0_108 = arith.constant 0 : index
      %c0_109 = arith.constant 0 : index
      %c0_110 = arith.constant 0 : index
      %165 = vector.load %arg10[%c0_108, %c0_109, %c0_110] : memref<1x8x32xf32, #tpu.memory_space<vmem>>, vector<1x8x32xf32>
      %166 = vector.shape_cast %165 : vector<1x8x32xf32> to vector<8x32xf32>
      %167 = vector.shape_cast %164 : vector<8x32xf32> to vector<1x8x32xf32>
      tpu.vector_store %arg10[%c0_108, %c0_109, %c0_110], %167 {strides = array<i32>} : memref<1x8x32xf32, #tpu.memory_space<vmem>>, vector<1x8x32xf32>,
    } else {
    }
    return
  }
  func.func @transform_0(%arg0: i32, %arg1: i32, %arg2: i32) -> (i32, i32, i32) {
    %c0_i32 = arith.constant 0 : i32
    %c0_i32_0 = arith.constant 0 : i32
    return %arg0, %arg1, %c0_i32 : i32, i32, i32
  }
  func.func @transform_1(%arg0: i32, %arg1: i32, %arg2: i32) -> (i32, i32, i32) {
    %c0_i32 = arith.constant 0 : i32
    %c0_i32_0 = arith.constant 0 : i32
    return %arg0, %arg2, %c0_i32 : i32, i32, i32
  }
  func.func @transform_2(%arg0: i32, %arg1: i32, %arg2: i32) -> (i32, i32, i32) {
    %c0_i32 = arith.constant 0 : i32
    %c0_i32_0 = arith.constant 0 : i32
    return %arg0, %arg2, %c0_i32 : i32, i32, i32
  }
  func.func @transform_3(%arg0: i32, %arg1: i32, %arg2: i32) -> (i32, i32, i32) {
    %c0_i32 = arith.constant 0 : i32
    return %arg0, %arg1, %arg2 : i32, i32, i32
  }
  func.func @transform_4(%arg0: i32, %arg1: i32, %arg2: i32) -> (i32, i32) {
    %c0_i32 = arith.constant 0 : i32
    %c0_i32_0 = arith.constant 0 : i32
    %c0_i32_1 = arith.constant 0 : i32
    return %c0_i32, %c0_i32_0 : i32, i32
  }
  func.func @transform_5(%arg0: i32, %arg1: i32, %arg2: i32) -> (i32, i32) {
    %c0_i32 = arith.constant 0 : i32
    %c0_i32_0 = arith.constant 0 : i32
    %c0_i32_1 = arith.constant 0 : i32
    return %c0_i32, %c0_i32_0 : i32, i32
  }
  func.func @transform_6(%arg0: i32, %arg1: i32, %arg2: i32) -> (i32, i32, i32) {
    %c0_i32 = arith.constant 0 : i32
    %c0_i32_0 = arith.constant 0 : i32
    return %arg0, %arg1, %c0_i32 : i32, i32, i32
  }
  func.func @transform_7(%arg0: i32, %arg1: i32, %arg2: i32) -> (i32, i32, i32) {
    %c0_i32 = arith.constant 0 : i32
    %c0_i32_0 = arith.constant 0 : i32
    return %arg0, %arg1, %c0_i32 : i32, i32, i32
  }
}

</mosaic_0001>

<llo_original>
// kernel: right_transformer_block.9
$region0: #{right_transformer_block.9}
  #allocation0 [shape = 'u32[]', space=smem, size = 0x4, offset = 0x4, fixed_abs, tag = 'smem constant byte address 0x4 - core index']
  #allocation1 [shape = 'u32[144,128]{1,0:T(1,128)}', space=vmem, size = 0x12000, scoped, tag = 'internal scratch']
  %s0 = inlined_call_operand.hbm [shape: f32[2,8,32], index: 0, kind: input, shape index: {}]
  %s1 = inlined_call_operand.hbm [shape: bf16[2,32,32], index: 1, kind: input, shape index: {}]
  %s2 = inlined_call_operand.hbm [shape: f32[2,32], index: 2, kind: input, shape index: {}]
  %s3 = inlined_call_operand.hbm [shape: bf16[2,8,32], index: 3, kind: output, shape index: {0}]
  %s4 = inlined_call_operand.hbm [shape: bf16[2,8,32], index: 4, kind: output, shape index: {1}]
  %5 = xla_tuple %s3, %s4
  %s6 = sld [smem:[#allocation0]]
  $region65: #{right_transformer_block.9} parent=0
    _
  %s8 = ssub.s32 1, %s6
  %s9 = scalar_select 0, %s8, %s6
  $region1: #{right_transformer_block.9} parent=0
    #allocation2 [shape = 'u8[8192]{0}', space=vmem, size = 0x2000, scoped, tag = 'input window, operand 0']
    #allocation3 [shape = 's32[2]{0}', space=sflag, size = 0x8, scoped, tag = 'scoped memory for right_transformer_block.9']
    #allocation4 [shape = 's32[2]{0}', space=sflag, size = 0x8, scoped, tag = 'scoped memory for right_transformer_block.9']
    #allocation5 [shape = 'u8[16384]{0}', space=vmem, size = 0x4000, scoped, tag = 'input window, operand 1, single buffered']
    #allocation6 [shape = 's32[1]{0}', space=sflag, size = 0x4, scoped, tag = 'scoped memory for right_transformer_block.9']
    #allocation7 [shape = 'u8[1024]{0}', space=vmem, size = 0x400, scoped, tag = 'input window, operand 2, single buffered']
    #allocation8 [shape = 'u8[4096]{0}', space=vmem, size = 0x1000, scoped, tag = 'output window, operand 0']
    #allocation9 [shape = 'u8[4096]{0}', space=vmem, size = 0x1000, scoped, tag = 'output window, operand 1']
    #allocation10 [shape = 's32[2]{0}', space=sflag, size = 0x8, scoped, tag = 'scoped memory for right_transformer_block.9']
    %10 = vsyncpa [#allocation3], 0
    %s11 = scalar_lea.sflag [#allocation3], 1
    %12 = vsyncpa %s11, 0
    %13 = vsyncpa [#allocation6], 0
    %14 = vsyncpa [#allocation4], 0
    %s15 = scalar_lea.sflag [#allocation4], 1
    %16 = vsyncpa %s15, 0
    %17 = vsyncpa [#allocation10], 0
    %s18 = scalar_lea.sflag [#allocation10], 1
    %19 = vsyncpa %s18, 0
    loop: start=0, step=1, limit=4
    $region2: #{right_transformer_block.9} parent=1 // loop_pre_header
      _
    $region3: #{right_transformer_block.9} parent=1 // loop_header
      %s21 = sphi 0, %s25
      %p22 = scmp.ge.s32.totalorder %s21, 4
      %s28 = sphi 0, %s40
      %s29 = sphi 0, %s36
      %s30 = sphi 0, %s28
      %s31 = sphi 0, %s29
      %s32 = sphi 0, %s30
      %s33 = sphi 0, %s31
      %s45 = sphi 0, %s47
      %s48 = sphi 0, %s45
      %s49 = sphi 0, %s48
      %s65 = sphi 0, %s49
      %s69 = sphi 0, %s69
      %s71 = sphi 0, %s69
      %s72 = sphi 0, %s71
      %s86 = sphi 0, %s72
      %s90 = sphi 0, %s90
      %s92 = sphi 0, %s90
      %s93 = sphi 0, %s92
      %s107 = sphi 0, %s93
      %s115 = sphi 0, %s117
      %s118 = sphi 0, %s115
      %s119 = sphi 0, %s118
      %s135 = sphi 0, %s119
      %s143 = sphi 0, %s145
      %s146 = sphi 0, %s143
      %s147 = sphi 0, %s146
      %s163 = sphi 0, %s147
    $region4: #{right_transformer_block.9} parent=1 // loop_header_branch
      %24 = sbr.rel (%p22) target = $region8
    $region5: #{right_transformer_block.9} parent=1 // loop_body
      %s26 = ssub.s32 %s21, 1
      %s27 = ssub.s32 %s21, 2
      %s34 = sadd.s32 1, %s29
      %p35 = scmp.ge.s32.totalorder %s34, 1
      %s36 = scalar_select %p35, 0, %s34
      %s37 = sadd.s32 1, %s28
      %s38 = scalar_select %p35, %s37, %s28
      %p39 = scmp.ge.s32.totalorder %s38, 2
      %s40 = scalar_select %p39, 0, %s38
      %s41 = ssub.s32 %s28, %s40
      %s42 = ssub.s32 %s29, %s36
      %s43 = sor.u32 %s41, %s42
      %p44 = scmp.eq.s32.totalorder %s43, 0
      %s46 = sadd.s32 %s45, 1
      %s47 = scalar_select %p44, %s45, %s46
      %p50 = pneg %p44
      %p51 = scmp.eq.s32.totalorder %s21, 1
      %p52 = por %p50, %p51
      %p53 = scmp.ne.s32.totalorder %s45, %s48
      %p54 = scmp.eq.s32.totalorder %s21, 0
      %p55 = por %p53, %p54
      %p56 = scmp.ne.s32.totalorder %s45, %s48
      %p57 = scmp.eq.s32.totalorder %s26, 1
      %p58 = por %p56, %p57
      %p59 = scmp.ne.s32.totalorder %s48, %s49
      %p60 = scmp.eq.s32.totalorder %s26, 0
      %p61 = por %p59, %p60
      %p62 = scmp.ne.s32.totalorder %s48, %s49
      %p63 = scmp.eq.s32.totalorder %s27, 1
      %p64 = por %p62, %p63
      %p66 = scmp.ne.s32.totalorder %s49, %s65
      %p67 = scmp.eq.s32.totalorder %s27, 0
      %p68 = por %p66, %p67
      %s70 = sadd.s32 %s69, 1
      %p73 = scmp.eq.s32.totalorder %s21, 1
      %p74 = scmp.ne.s32.totalorder %s69, %s71
      %p75 = scmp.eq.s32.totalorder %s21, 0
      %p76 = por %p74, %p75
      %p77 = scmp.ne.s32.totalorder %s69, %s71
      %p78 = scmp.eq.s32.totalorder %s26, 1
      %p79 = por %p77, %p78
      %p80 = scmp.ne.s32.totalorder %s71, %s72
      %p81 = scmp.eq.s32.totalorder %s26, 0
      %p82 = por %p80, %p81
      %p83 = scmp.ne.s32.totalorder %s71, %s72
      %p84 = scmp.eq.s32.totalorder %s27, 1
      %p85 = por %p83, %p84
      %p87 = scmp.ne.s32.totalorder %s72, %s86
      %p88 = scmp.eq.s32.totalorder %s27, 0
      %p89 = por %p87, %p88
      %s91 = sadd.s32 %s90, 1
      %p94 = scmp.eq.s32.totalorder %s21, 1
      %p95 = scmp.ne.s32.totalorder %s90, %s92
      %p96 = scmp.eq.s32.totalorder %s21, 0
      %p97 = por %p95, %p96
      %p98 = scmp.ne.s32.totalorder %s90, %s92
      %p99 = scmp.eq.s32.totalorder %s26, 1
      %p100 = por %p98, %p99
      %p101 = scmp.ne.s32.totalorder %s92, %s93
      %p102 = scmp.eq.s32.totalorder %s26, 0
      %p103 = por %p101, %p102
      %p104 = scmp.ne.s32.totalorder %s92, %s93
      %p105 = scmp.eq.s32.totalorder %s27, 1
      %p106 = por %p104, %p105
      %p108 = scmp.ne.s32.totalorder %s93, %s107
      %p109 = scmp.eq.s32.totalorder %s27, 0
      %p110 = por %p108, %p109
      %s111 = ssub.s32 %s28, %s40
      %s112 = ssub.s32 %s29, %s36
      %s113 = sor.u32 %s111, %s112
      %p114 = scmp.eq.s32.totalorder %s113, 0
      %s116 = sadd.s32 %s115, 1
      %s117 = scalar_select %p114, %s115, %s116
      %p120 = pneg %p114
      %p121 = scmp.eq.s32.totalorder %s21, 1
      %p122 = por %p120, %p121
      %p123 = scmp.ne.s32.totalorder %s115, %s118
      %p124 = scmp.eq.s32.totalorder %s21, 0
      %p125 = por %p123, %p124
      %p126 = scmp.ne.s32.totalorder %s115, %s118
      %p127 = scmp.eq.s32.totalorder %s26, 1
      %p128 = por %p126, %p127
      %p129 = scmp.ne.s32.totalorder %s118, %s119
      %p130 = scmp.eq.s32.totalorder %s26, 0
      %p131 = por %p129, %p130
      %p132 = scmp.ne.s32.totalorder %s118, %s119
      %p133 = scmp.eq.s32.totalorder %s27, 1
      %p134 = por %p132, %p133
      %p136 = scmp.ne.s32.totalorder %s119, %s135
      %p137 = scmp.eq.s32.totalorder %s27, 0
      %p138 = por %p136, %p137
      %s139 = ssub.s32 %s28, %s40
      %s140 = ssub.s32 %s29, %s36
      %s141 = sor.u32 %s139, %s140
      %p142 = scmp.eq.s32.totalorder %s141, 0
      %s144 = sadd.s32 %s143, 1
      %s145 = scalar_select %p142, %s143, %s144
      %p148 = pneg %p142
      %p149 = scmp.eq.s32.totalorder %s21, 1
      %p150 = por %p148, %p149
      %p151 = scmp.ne.s32.totalorder %s143, %s146
      %p152 = scmp.eq.s32.totalorder %s21, 0
      %p153 = por %p151, %p152
      %p154 = scmp.ne.s32.totalorder %s143, %s146
      %p155 = scmp.eq.s32.totalorder %s26, 1
      %p156 = por %p154, %p155
      %p157 = scmp.ne.s32.totalorder %s146, %s147
      %p158 = scmp.eq.s32.totalorder %s26, 0
      %p159 = por %p157, %p158
      %p160 = scmp.ne.s32.totalorder %s146, %s147
      %p161 = scmp.eq.s32.totalorder %s27, 1
      %p162 = por %p160, %p161
      %p164 = scmp.ne.s32.totalorder %s147, %s163
      %p165 = scmp.eq.s32.totalorder %s27, 0
      %p166 = por %p164, %p165
      %p167 = scmp.le.s32.totalorder 1, %s21
      %p168 = scmp.lt.s32.totalorder %s21, 3
      %p169 = pnand %p167, %p168
      %p170 = pneg %p169
      // Predicated region
      $region9: #{right_transformer_block.9} parent=5 // pred_check
        _
      $region10: #{right_transformer_block.9} parent=5 // pred_check_branch
        %172 = sbr.rel (%p169) target = $region12
      $region11: #{right_transformer_block.9} parent=5 // pred_region
        %s173 = ssub.s32 %s21, 1
        // Predicated region
        $region13: #{right_transformer_block.9} parent=11 // pred_check
          %p174 = pneg %p82
        $region14: #{right_transformer_block.9} parent=11 // pred_check_branch
          %176 = sbr.rel (%p174) target = $region16
        $region15: #{right_transformer_block.9} parent=11 // pred_region
          %s178 = ssub.s32 512, 512
          %179 = vsyncadd [#allocation6], %s178
          %s180 = sshll.u32 [#allocation5], 4
          %s181 = int_to_ptr.vmem [resolvable:$true] %s180
          %186 = dma.hbm_to_vmem [thread:$0]  %s1, 512, %s181, [#allocation6], 64, 64, 4
        $region16: #{right_transformer_block.9} parent=11 // pred_fallthru
          _
        // Predicated region
        $region17: #{right_transformer_block.9} parent=11 // pred_check
          %p187 = pneg %p103
        $region18: #{right_transformer_block.9} parent=11 // pred_check_branch
          %189 = sbr.rel (%p187) target = $region20
        $region19: #{right_transformer_block.9} parent=11 // pred_region
          %s191 = ssub.s32 32, 32
          %192 = vsyncadd [#allocation6], %s191
          %s194 = sshll.u32 [#allocation7], 4
          %s195 = int_to_ptr.vmem [resolvable:$true] %s194
          %197 = dma.hbm_to_vmem [thread:$0]  %s2, 32, %s195, [#allocation6]
        $region20: #{right_transformer_block.9} parent=11 // pred_fallthru
          _
      $region12: #{right_transformer_block.9} parent=5 // pred_fallthru
        _
      %p198 = scmp.lt.s32.totalorder %s21, 2
      // Predicated region
      $region21: #{right_transformer_block.9} parent=5 // pred_check
        %p199 = pneg %p198
      $region22: #{right_transformer_block.9} parent=5 // pred_check_branch
        %201 = sbr.rel (%p199) target = $region24
      $region23: #{right_transformer_block.9} parent=5 // pred_region
        // Predicated region
        $region25: #{right_transformer_block.9} parent=23 // pred_check
          %p202 = pneg %p55
        $region26: #{right_transformer_block.9} parent=23 // pred_check_branch
          %204 = sbr.rel (%p202) target = $region28
        $region27: #{right_transformer_block.9} parent=23 // pred_region
          %s205 = sand.u32 %s45, 1
          %s206 = scalar_lea.sflag [#allocation3], %s205
          %s207 = sand.u32 %s45, 1
          %s208 = smul.addr %s207, 8
          %s209 = scalar_lea.vmem [#allocation2], %s208
          %s211 = ssub.s32 128, 128
          %212 = vsyncadd %s206, %s211
          %s213 = sadd.s32 %s29, %s28
          %s214 = smul.addr %s213, 128
          %s215 = scalar_lea.hbm %s0, %s214
          %s217 = sshll.u32 %s209, 4
          %s218 = int_to_ptr.vmem [resolvable:$true] %s217
          %220 = dma.hbm_to_vmem [thread:$0]  %s215, 128, %s218, %s206
        $region28: #{right_transformer_block.9} parent=23 // pred_fallthru
          _
      $region24: #{right_transformer_block.9} parent=5 // pred_fallthru
        _
      %p221 = scmp.le.s32.totalorder 1, %s21
      %p222 = scmp.lt.s32.totalorder %s21, 3
      %p223 = pnand %p221, %p222
      %p224 = pneg %p223
      // Predicated region
      $region29: #{right_transformer_block.9} parent=5 // pred_check
        _
      $region30: #{right_transformer_block.9} parent=5 // pred_check_branch
        %226 = sbr.rel (%p223) target = $region32
      $region31: #{right_transformer_block.9} parent=5 // pred_region
        %s227 = ssub.s32 %s21, 1
        %s228 = sand.u32 %s48, 1
        %s229 = scalar_lea.sflag [#allocation3], %s228
        %s230 = sand.u32 %s48, 1
        %s231 = smul.addr %s230, 8
        %s232 = scalar_lea.vmem [#allocation2], %s231
        // Predicated region
        $region33: #{right_transformer_block.9} parent=31 // pred_check
          %p233 = pneg %p61
        $region34: #{right_transformer_block.9} parent=31 // pred_check_branch
          %235 = sbr.rel (%p233) target = $region36
        $region35: #{right_transformer_block.9} parent=31 // pred_region
          %236 = dma.done %s229, 128
        $region36: #{right_transformer_block.9} parent=31 // pred_fallthru
          _
        // Predicated region
        $region37: #{right_transformer_block.9} parent=31 // pred_check
          %p237 = pneg %p82
        $region38: #{right_transformer_block.9} parent=31 // pred_check_branch
          %239 = sbr.rel (%p237) target = $region40
        $region39: #{right_transformer_block.9} parent=31 // pred_region
          %240 = dma.done [#allocation6], 512
        $region40: #{right_transformer_block.9} parent=31 // pred_fallthru
          _
        // Predicated region
        $region41: #{right_transformer_block.9} parent=31 // pred_check
          %p241 = pneg %p103
        $region42: #{right_transformer_block.9} parent=31 // pred_check_branch
          %243 = sbr.rel (%p241) target = $region44
        $region43: #{right_transformer_block.9} parent=31 // pred_region
          %244 = dma.done [#allocation6], 32
        $region44: #{right_transformer_block.9} parent=31 // pred_fallthru
          _
        %s245 = sand.u32 %s48, 1
        %s246 = scalar_lea.sflag [#allocation3], %s245
        %s247 = sand.u32 %s48, 1
        %s248 = smul.addr %s247, 8
        %s249 = scalar_lea.vmem [#allocation2], %s248
        %p250 = pneg %p61
        %p251 = pneg %p58
        %p252 = pneg %p82
        %p253 = pneg %p79
        %p254 = pneg %p103
        %p255 = pneg %p100
        %p256 = pneg %p131
        %p257 = pneg %p128
        %s258 = sand.u32 %s118, 1
        %s259 = scalar_lea.sflag [#allocation4], %s258
        %s260 = sand.u32 %s118, 1
        %s261 = smul.addr %s260, 4
        %s262 = scalar_lea.vmem [#allocation8], %s261
        %p263 = pneg %p159
        %p264 = pneg %p156
        %s265 = sand.u32 %s146, 1
        %s266 = scalar_lea.sflag [#allocation10], %s265
        %s267 = sand.u32 %s146, 1
        %s268 = smul.addr %s267, 4
        %s269 = scalar_lea.vmem [#allocation9], %s268
        %v271 = vld [vmem:[%s232] sm:$0xff]
        %v272 = vpack.c.bf16 %v271, %v271
        %v273 = vld [vmem:[#allocation5] sm:$0xf]
        %v274 = vld [vmem:[#allocation5 + $0x4] sm:$0xf]
        %v275 = vld [vmem:[#allocation5 + $0x8] sm:$0xf]
        %v276 = vld [vmem:[#allocation5 + $0xc] sm:$0xf]
        %v277 = vld [vmem:[#allocation7] sm:$0x1]
        %v278 = vlaneseq
        %v279 = vshrl.u32 %v278, 7
        %v280 = vsub.s32 0, %v279
        %v281 = vrot.slane %v277, %v280
        %v286 = vunpack.c.l.b16 %v273
        %v287 = vunpack.c.l.b16 %v274
        %v288 = vunpack.c.l.b16 %v275
        %v289 = vunpack.c.l.b16 %v276
        %v290 = vpack.c.b16 %v287, %v286
        %v291 = vpack.c.b16 %v289, %v288
        %vm294 = vcmask 261120
        %v296 = vsel %vm294, %v272, 0
        %298 = vmatprep.subr.bf16.mxu0 0
        %299 = vmatpush1.bf16.msra.mxu0 %v290
        %300 = vmatprep.subr.bf16.mxu0 0
        %301 = vmatpush1.bf16.msra.mxu0 %v291
        %302 = vmatprep.subr.bf16.mxu0 0
        %303 = vmatpush1.bf16.msra.mxu0 0
        %304 = vmatprep.subr.bf16.mxu0 0
        %305 = vmatpush1.bf16.msra.mxu0 0
        %306 = vmatprep.subr.bf16.mxu0 0
        %307 = vmatpush1.bf16.msra.mxu0 0
        %308 = vmatprep.subr.bf16.mxu0 0
        %309 = vmatpush1.bf16.msra.mxu0 0
        %310 = vmatprep.subr.bf16.mxu0 0
        %311 = vmatpush1.bf16.msra.mxu0 0
        %312 = vmatprep.subr.bf16.mxu0 0
        %313 = vmatpush1.bf16.msra.mxu0 0
        %314 = vmatprep.subr.bf16.mxu0 0
        %315 = vmatpush1.bf16.msra.mxu0 0
        %316 = vmatprep.subr.bf16.mxu0 0
        %317 = vmatpush1.bf16.msra.mxu0 0
        %318 = vmatprep.subr.bf16.mxu0 0
        %319 = vmatpush1.bf16.msra.mxu0 0
        %320 = vmatprep.subr.bf16.mxu0 0
        %321 = vmatpush1.bf16.msra.mxu0 0
        %322 = vmatprep.subr.bf16.mxu0 0
        %323 = vmatpush1.bf16.msra.mxu0 0
        %324 = vmatprep.subr.bf16.mxu0 0
        %325 = vmatpush1.bf16.msra.mxu0 0
        %326 = vmatprep.subr.bf16.mxu0 0
        %327 = vmatpush1.bf16.msra.mxu0 0
        %328 = vmatprep.subr.bf16.mxu0 0
        %329 = vmatpush1.bf16.msra.mxu0 0
        %330 = vmatprep.mubr.bf16.mxu0 0
        %331 = vmatmul.mubr.bf16.gmra.mrb[0].mxu0 %v296
        %v332 = vpop.f32.mrb[0].mxu0
        %v333 = vadd.f32 %v281, %v332
        %v334 = vpop.f32.mrb[0].mxu0
        %v335 = vpop.f32.mrb[0].mxu0
        %v336 = vpop.f32.mrb[0].mxu0
        %337 = vdwg.mxu0
        %v338 = vpack.c.bf16 %v333, %v333
        %vm339 = vcmask 257024
        %340 = vst.msk [vmem:[%s262] sm:$0xf] %vm339, %v338
        %s341 = scalar_lea.vmem [#allocation5], 16
        %v342 = vld [vmem:[%s341] sm:$0xf]
        %v343 = vld [vmem:[%s341 + $0x4] sm:$0xf]
        %v344 = vld [vmem:[%s341 + $0x8] sm:$0xf]
        %v345 = vld [vmem:[%s341 + $0xc] sm:$0xf]
        %v346 = vld [vmem:[#allocation7 + $0x1] sm:$0x1]
        %v347 = vlaneseq
        %v348 = vshrl.u32 %v347, 7
        %v349 = vsub.s32 0, %v348
        %v350 = vrot.slane %v346, %v349
        %v355 = vunpack.c.l.b16 %v342
        %v356 = vunpack.c.l.b16 %v343
        %v357 = vunpack.c.l.b16 %v344
        %v358 = vunpack.c.l.b16 %v345
        %v359 = vpack.c.b16 %v356, %v355
        %v360 = vpack.c.b16 %v358, %v357
        %363 = vmatprep.subr.bf16.mxu0 0
        %364 = vmatpush1.bf16.msra.mxu0 %v359
        %365 = vmatprep.subr.bf16.mxu0 0
        %366 = vmatpush1.bf16.msra.mxu0 %v360
        %367 = vmatprep.subr.bf16.mxu0 0
        %368 = vmatpush1.bf16.msra.mxu0 0
        %369 = vmatprep.subr.bf16.mxu0 0
        %370 = vmatpush1.bf16.msra.mxu0 0
        %371 = vmatprep.subr.bf16.mxu0 0
        %372 = vmatpush1.bf16.msra.mxu0 0
        %373 = vmatprep.subr.bf16.mxu0 0
        %374 = vmatpush1.bf16.msra.mxu0 0
        %375 = vmatprep.subr.bf16.mxu0 0
        %376 = vmatpush1.bf16.msra.mxu0 0
        %377 = vmatprep.subr.bf16.mxu0 0
        %378 = vmatpush1.bf16.msra.mxu0 0
        %379 = vmatprep.subr.bf16.mxu0 0
        %380 = vmatpush1.bf16.msra.mxu0 0
        %381 = vmatprep.subr.bf16.mxu0 0
        %382 = vmatpush1.bf16.msra.mxu0 0
        %383 = vmatprep.subr.bf16.mxu0 0
        %384 = vmatpush1.bf16.msra.mxu0 0
        %385 = vmatprep.subr.bf16.mxu0 0
        %386 = vmatpush1.bf16.msra.mxu0 0
        %387 = vmatprep.subr.bf16.mxu0 0
        %388 = vmatpush1.bf16.msra.mxu0 0
        %389 = vmatprep.subr.bf16.mxu0 0
        %390 = vmatpush1.bf16.msra.mxu0 0
        %391 = vmatprep.subr.bf16.mxu0 0
        %392 = vmatpush1.bf16.msra.mxu0 0
        %393 = vmatprep.subr.bf16.mxu0 0
        %394 = vmatpush1.bf16.msra.mxu0 0
        %395 = vmatprep.mubr.bf16.mxu0 0
        %396 = vmatmul.mubr.bf16.gmra.mrb[0].mxu0 %v296
        %v397 = vpop.f32.mrb[0].mxu0
        %v398 = vadd.f32 %v350, %v397
        %v399 = vpop.f32.mrb[0].mxu0
        %v400 = vpop.f32.mrb[0].mxu0
        %v401 = vpop.f32.mrb[0].mxu0
        %402 = vdwg.mxu0
        %v403 = vpack.c.bf16 %v398, %v398
        %404 = vst.msk [vmem:[%s269] sm:$0xf] %vm339, %v403
        %s405 = sand.u32 %s118, 1
        %s406 = scalar_lea.sflag [#allocation4], %s405
        %s407 = sand.u32 %s118, 1
        %s408 = smul.addr %s407, 4
        %s409 = scalar_lea.vmem [#allocation8], %s408
        %s410 = sand.u32 %s146, 1
        %s411 = scalar_lea.sflag [#allocation10], %s410
        %s412 = sand.u32 %s146, 1
        %s413 = smul.addr %s412, 4
        %s414 = scalar_lea.vmem [#allocation9], %s413
        // Predicated region
        $region45: #{right_transformer_block.9} parent=31 // pred_check
          %p415 = pneg %p128
        $region46: #{right_transformer_block.9} parent=31 // pred_check_branch
          %417 = sbr.rel (%p415) target = $region48
        $region47: #{right_transformer_block.9} parent=31 // pred_region
          %s419 = ssub.s32 64, 64
          %420 = vsyncadd %s406, %s419
          %s421 = sadd.s32 %s31, %s30
          %s422 = smul.addr %s421, 64
          %s423 = scalar_lea.hbm %s3, %s422
          %s425 = sshll.u32 %s409, 4
          %s426 = int_to_ptr.vmem [resolvable:$true] %s425
          %428 = dma.vmem_to_hbm [thread:$0]  %s426, 64, %s423, %s406
        $region48: #{right_transformer_block.9} parent=31 // pred_fallthru
          _
        // Predicated region
        $region49: #{right_transformer_block.9} parent=31 // pred_check
          %p429 = pneg %p156
        $region50: #{right_transformer_block.9} parent=31 // pred_check_branch
          %431 = sbr.rel (%p429) target = $region52
        $region51: #{right_transformer_block.9} parent=31 // pred_region
          %s433 = ssub.s32 64, 64
          %434 = vsyncadd %s411, %s433
          %s435 = sadd.s32 %s31, %s30
          %s436 = smul.addr %s435, 64
          %s437 = scalar_lea.hbm %s4, %s436
          %s439 = sshll.u32 %s414, 4
          %s440 = int_to_ptr.vmem [resolvable:$true] %s439
          %442 = dma.vmem_to_hbm [thread:$0]  %s440, 64, %s437, %s411
        $region52: #{right_transformer_block.9} parent=31 // pred_fallthru
          _
      $region32: #{right_transformer_block.9} parent=5 // pred_fallthru
        _
      %p443 = scmp.le.s32.totalorder 2, %s21
      // Predicated region
      $region53: #{right_transformer_block.9} parent=5 // pred_check
        %p444 = pneg %p443
      $region54: #{right_transformer_block.9} parent=5 // pred_check_branch
        %446 = sbr.rel (%p444) target = $region56
      $region55: #{right_transformer_block.9} parent=5 // pred_region
        %s447 = ssub.s32 %s21, 2
        // Predicated region
        $region57: #{right_transformer_block.9} parent=55 // pred_check
          %p448 = pneg %p134
        $region58: #{right_transformer_block.9} parent=55 // pred_check_branch
          %450 = sbr.rel (%p448) target = $region60
        $region59: #{right_transformer_block.9} parent=55 // pred_region
          %s451 = sand.u32 %s119, 1
          %s452 = scalar_lea.sflag [#allocation4], %s451
          %s453 = sand.u32 %s119, 1
          %s454 = smul.addr %s453, 4
          %s455 = scalar_lea.vmem [#allocation8], %s454
          %456 = dma.done %s452, 64
        $region60: #{right_transformer_block.9} parent=55 // pred_fallthru
          _
        // Predicated region
        $region61: #{right_transformer_block.9} parent=55 // pred_check
          %p457 = pneg %p162
        $region62: #{right_transformer_block.9} parent=55 // pred_check_branch
          %459 = sbr.rel (%p457) target = $region64
        $region63: #{right_transformer_block.9} parent=55 // pred_region
          %s460 = sand.u32 %s147, 1
          %s461 = scalar_lea.sflag [#allocation10], %s460
          %s462 = sand.u32 %s147, 1
          %s463 = smul.addr %s462, 4
          %s464 = scalar_lea.vmem [#allocation9], %s463
          %465 = dma.done %s461, 64
        $region64: #{right_transformer_block.9} parent=55 // pred_fallthru
          _
      $region56: #{right_transformer_block.9} parent=5 // pred_fallthru
        _
    $region6: #{right_transformer_block.9} parent=1 // loop_footer
      %s25 = sadd.s32 1, %s21
    $region7: #{right_transformer_block.9} parent=1 // loop_footer_branch
      %20 = sbr.rel target = $region3
    $region8: #{right_transformer_block.9} parent=1 // loop_exit
      _
    %466 = vsyncpa [#allocation3], 1
    %s467 = scalar_lea.sflag [#allocation3], 1
    %468 = vsyncpa %s467, 1
    %469 = vsyncpa [#allocation6], 1
    %470 = vsyncpa [#allocation4], 1
    %s471 = scalar_lea.sflag [#allocation4], 1
    %472 = vsyncpa %s471, 1
    %473 = vsyncpa [#allocation10], 1
    %s474 = scalar_lea.sflag [#allocation10], 1
    %475 = vsyncpa %s474, 1

// kernel: right_transformer_block.6
$region0: #{right_transformer_block.6}
  #allocation0 [shape = 'u32[]', space=smem, size = 0x4, offset = 0x4, fixed_abs, tag = 'smem constant byte address 0x4 - core index']
  #allocation1 [shape = 'u32[144,128]{1,0:T(1,128)}', space=vmem, size = 0x12000, scoped, tag = 'internal scratch']
  %s0 = inlined_call_operand.hbm [shape: f32[2,8,32], index: 0, kind: input, shape index: {}]
  %s1 = inlined_call_operand.hbm [shape: f32[1,32], index: 1, kind: input, shape index: {}]
  %s2 = inlined_call_operand.hbm [shape: f32[1,32], index: 2, kind: input, shape index: {}]
  %s3 = inlined_call_operand.hbm [shape: bf16[3,32,32], index: 3, kind: input, shape index: {}]
  %s4 = inlined_call_operand.hbm [shape: f32[3,32], index: 4, kind: input, shape index: {}]
  %s5 = inlined_call_operand.hbm [shape: bf16[2,8,32], index: 5, kind: output, shape index: {0}]
  %s6 = inlined_call_operand.hbm [shape: bf16[2,8,32], index: 6, kind: output, shape index: {1}]
  %s7 = inlined_call_operand.hbm [shape: bf16[2,8,32], index: 7, kind: output, shape index: {2}]
  %8 = xla_tuple %s5, %s6, %s7
  %s9 = sld [smem:[#allocation0]]
  $region89: #{right_transformer_block.6} parent=0
    _
  %s11 = ssub.s32 1, %s9
  %s12 = scalar_select 0, %s11, %s9
  $region1: #{right_transformer_block.6} parent=0
    #allocation2 [shape = 'u8[8192]{0}', space=vmem, size = 0x2000, scoped, tag = 'input window, operand 0']
    #allocation3 [shape = 's32[2]{0}', space=sflag, size = 0x8, scoped, tag = 'scoped memory for right_transformer_block.6']
    #allocation4 [shape = 's32[2]{0}', space=sflag, size = 0x8, scoped, tag = 'scoped memory for right_transformer_block.6']
    #allocation5 [shape = 'u8[512]{0}', space=vmem, size = 0x400, scoped, tag = 'input window, operand 1, single buffered']
    #allocation6 [shape = 's32[1]{0}', space=sflag, size = 0x4, scoped, tag = 'scoped memory for right_transformer_block.6']
    #allocation7 [shape = 'u8[512]{0}', space=vmem, size = 0x400, scoped, tag = 'input window, operand 2, single buffered']
    #allocation8 [shape = 'u8[24576]{0}', space=vmem, size = 0x6000, scoped, tag = 'input window, operand 3, single buffered']
    #allocation9 [shape = 's32[1]{0}', space=sflag, size = 0x4, scoped, tag = 'scoped memory for right_transformer_block.6']
    #allocation10 [shape = 'u8[2048]{0}', space=vmem, size = 0x800, scoped, tag = 'input window, operand 4, single buffered']
    #allocation11 [shape = 'u8[4096]{0}', space=vmem, size = 0x1000, scoped, tag = 'output window, operand 0']
    #allocation12 [shape = 'u8[4096]{0}', space=vmem, size = 0x1000, scoped, tag = 'output window, operand 1']
    #allocation13 [shape = 's32[2]{0}', space=sflag, size = 0x8, scoped, tag = 'scoped memory for right_transformer_block.6']
    #allocation14 [shape = 'u8[4096]{0}', space=vmem, size = 0x1000, scoped, tag = 'output window, operand 2']
    %13 = vsyncpa [#allocation3], 0
    %s14 = scalar_lea.sflag [#allocation3], 1
    %15 = vsyncpa %s14, 0
    %16 = vsyncpa [#allocation6], 0
    %17 = vsyncpa [#allocation9], 0
    %18 = vsyncpa [#allocation4], 0
    %s19 = scalar_lea.sflag [#allocation4], 1
    %20 = vsyncpa %s19, 0
    %21 = vsyncpa [#allocation13], 0
    %s22 = scalar_lea.sflag [#allocation13], 1
    %23 = vsyncpa %s22, 0
    loop: start=0, step=1, limit=4
    $region2: #{right_transformer_block.6} parent=1 // loop_pre_header
      _
    $region3: #{right_transformer_block.6} parent=1 // loop_header
      %s25 = sphi 0, %s29
      %p26 = scmp.ge.s32.totalorder %s25, 4
      %s32 = sphi 0, %s44
      %s33 = sphi 0, %s40
      %s34 = sphi 0, %s32
      %s35 = sphi 0, %s33
      %s36 = sphi 0, %s34
      %s37 = sphi 0, %s35
      %s49 = sphi 0, %s51
      %s52 = sphi 0, %s49
      %s53 = sphi 0, %s52
      %s69 = sphi 0, %s53
      %s73 = sphi 0, %s73
      %s75 = sphi 0, %s73
      %s76 = sphi 0, %s75
      %s90 = sphi 0, %s76
      %s94 = sphi 0, %s94
      %s96 = sphi 0, %s94
      %s97 = sphi 0, %s96
      %s111 = sphi 0, %s97
      %s115 = sphi 0, %s115
      %s117 = sphi 0, %s115
      %s118 = sphi 0, %s117
      %s132 = sphi 0, %s118
      %s136 = sphi 0, %s136
      %s138 = sphi 0, %s136
      %s139 = sphi 0, %s138
      %s153 = sphi 0, %s139
      %s161 = sphi 0, %s163
      %s164 = sphi 0, %s161
      %s165 = sphi 0, %s164
      %s181 = sphi 0, %s165
      %s189 = sphi 0, %s191
      %s192 = sphi 0, %s189
      %s193 = sphi 0, %s192
      %s209 = sphi 0, %s193
      %s217 = sphi 0, %s219
      %s220 = sphi 0, %s217
      %s221 = sphi 0, %s220
      %s237 = sphi 0, %s221
    $region4: #{right_transformer_block.6} parent=1 // loop_header_branch
      %28 = sbr.rel (%p26) target = $region8
    $region5: #{right_transformer_block.6} parent=1 // loop_body
      %s30 = ssub.s32 %s25, 1
      %s31 = ssub.s32 %s25, 2
      %s38 = sadd.s32 1, %s33
      %p39 = scmp.ge.s32.totalorder %s38, 1
      %s40 = scalar_select %p39, 0, %s38
      %s41 = sadd.s32 1, %s32
      %s42 = scalar_select %p39, %s41, %s32
      %p43 = scmp.ge.s32.totalorder %s42, 2
      %s44 = scalar_select %p43, 0, %s42
      %s45 = ssub.s32 %s32, %s44
      %s46 = ssub.s32 %s33, %s40
      %s47 = sor.u32 %s45, %s46
      %p48 = scmp.eq.s32.totalorder %s47, 0
      %s50 = sadd.s32 %s49, 1
      %s51 = scalar_select %p48, %s49, %s50
      %p54 = pneg %p48
      %p55 = scmp.eq.s32.totalorder %s25, 1
      %p56 = por %p54, %p55
      %p57 = scmp.ne.s32.totalorder %s49, %s52
      %p58 = scmp.eq.s32.totalorder %s25, 0
      %p59 = por %p57, %p58
      %p60 = scmp.ne.s32.totalorder %s49, %s52
      %p61 = scmp.eq.s32.totalorder %s30, 1
      %p62 = por %p60, %p61
      %p63 = scmp.ne.s32.totalorder %s52, %s53
      %p64 = scmp.eq.s32.totalorder %s30, 0
      %p65 = por %p63, %p64
      %p66 = scmp.ne.s32.totalorder %s52, %s53
      %p67 = scmp.eq.s32.totalorder %s31, 1
      %p68 = por %p66, %p67
      %p70 = scmp.ne.s32.totalorder %s53, %s69
      %p71 = scmp.eq.s32.totalorder %s31, 0
      %p72 = por %p70, %p71
      %s74 = sadd.s32 %s73, 1
      %p77 = scmp.eq.s32.totalorder %s25, 1
      %p78 = scmp.ne.s32.totalorder %s73, %s75
      %p79 = scmp.eq.s32.totalorder %s25, 0
      %p80 = por %p78, %p79
      %p81 = scmp.ne.s32.totalorder %s73, %s75
      %p82 = scmp.eq.s32.totalorder %s30, 1
      %p83 = por %p81, %p82
      %p84 = scmp.ne.s32.totalorder %s75, %s76
      %p85 = scmp.eq.s32.totalorder %s30, 0
      %p86 = por %p84, %p85
      %p87 = scmp.ne.s32.totalorder %s75, %s76
      %p88 = scmp.eq.s32.totalorder %s31, 1
      %p89 = por %p87, %p88
      %p91 = scmp.ne.s32.totalorder %s76, %s90
      %p92 = scmp.eq.s32.totalorder %s31, 0
      %p93 = por %p91, %p92
      %s95 = sadd.s32 %s94, 1
      %p98 = scmp.eq.s32.totalorder %s25, 1
      %p99 = scmp.ne.s32.totalorder %s94, %s96
      %p100 = scmp.eq.s32.totalorder %s25, 0
      %p101 = por %p99, %p100
      %p102 = scmp.ne.s32.totalorder %s94, %s96
      %p103 = scmp.eq.s32.totalorder %s30, 1
      %p104 = por %p102, %p103
      %p105 = scmp.ne.s32.totalorder %s96, %s97
      %p106 = scmp.eq.s32.totalorder %s30, 0
      %p107 = por %p105, %p106
      %p108 = scmp.ne.s32.totalorder %s96, %s97
      %p109 = scmp.eq.s32.totalorder %s31, 1
      %p110 = por %p108, %p109
      %p112 = scmp.ne.s32.totalorder %s97, %s111
      %p113 = scmp.eq.s32.totalorder %s31, 0
      %p114 = por %p112, %p113
      %s116 = sadd.s32 %s115, 1
      %p119 = scmp.eq.s32.totalorder %s25, 1
      %p120 = scmp.ne.s32.totalorder %s115, %s117
      %p121 = scmp.eq.s32.totalorder %s25, 0
      %p122 = por %p120, %p121
      %p123 = scmp.ne.s32.totalorder %s115, %s117
      %p124 = scmp.eq.s32.totalorder %s30, 1
      %p125 = por %p123, %p124
      %p126 = scmp.ne.s32.totalorder %s117, %s118
      %p127 = scmp.eq.s32.totalorder %s30, 0
      %p128 = por %p126, %p127
      %p129 = scmp.ne.s32.totalorder %s117, %s118
      %p130 = scmp.eq.s32.totalorder %s31, 1
      %p131 = por %p129, %p130
      %p133 = scmp.ne.s32.totalorder %s118, %s132
      %p134 = scmp.eq.s32.totalorder %s31, 0
      %p135 = por %p133, %p134
      %s137 = sadd.s32 %s136, 1
      %p140 = scmp.eq.s32.totalorder %s25, 1
      %p141 = scmp.ne.s32.totalorder %s136, %s138
      %p142 = scmp.eq.s32.totalorder %s25, 0
      %p143 = por %p141, %p142
      %p144 = scmp.ne.s32.totalorder %s136, %s138
      %p145 = scmp.eq.s32.totalorder %s30, 1
      %p146 = por %p144, %p145
      %p147 = scmp.ne.s32.totalorder %s138, %s139
      %p148 = scmp.eq.s32.totalorder %s30, 0
      %p149 = por %p147, %p148
      %p150 = scmp.ne.s32.totalorder %s138, %s139
      %p151 = scmp.eq.s32.totalorder %s31, 1
      %p152 = por %p150, %p151
      %p154 = scmp.ne.s32.totalorder %s139, %s153
      %p155 = scmp.eq.s32.totalorder %s31, 0
      %p156 = por %p154, %p155
      %s157 = ssub.s32 %s32, %s44
      %s158 = ssub.s32 %s33, %s40
      %s159 = sor.u32 %s157, %s158
      %p160 = scmp.eq.s32.totalorder %s159, 0
      %s162 = sadd.s32 %s161, 1
      %s163 = scalar_select %p160, %s161, %s162
      %p166 = pneg %p160
      %p167 = scmp.eq.s32.totalorder %s25, 1
      %p168 = por %p166, %p167
      %p169 = scmp.ne.s32.totalorder %s161, %s164
      %p170 = scmp.eq.s32.totalorder %s25, 0
      %p171 = por %p169, %p170
      %p172 = scmp.ne.s32.totalorder %s161, %s164
      %p173 = scmp.eq.s32.totalorder %s30, 1
      %p174 = por %p172, %p173
      %p175 = scmp.ne.s32.totalorder %s164, %s165
      %p176 = scmp.eq.s32.totalorder %s30, 0
      %p177 = por %p175, %p176
      %p178 = scmp.ne.s32.totalorder %s164, %s165
      %p179 = scmp.eq.s32.totalorder %s31, 1
      %p180 = por %p178, %p179
      %p182 = scmp.ne.s32.totalorder %s165, %s181
      %p183 = scmp.eq.s32.totalorder %s31, 0
      %p184 = por %p182, %p183
      %s185 = ssub.s32 %s32, %s44
      %s186 = ssub.s32 %s33, %s40
      %s187 = sor.u32 %s185, %s186
      %p188 = scmp.eq.s32.totalorder %s187, 0
      %s190 = sadd.s32 %s189, 1
      %s191 = scalar_select %p188, %s189, %s190
      %p194 = pneg %p188
      %p195 = scmp.eq.s32.totalorder %s25, 1
      %p196 = por %p194, %p195
      %p197 = scmp.ne.s32.totalorder %s189, %s192
      %p198 = scmp.eq.s32.totalorder %s25, 0
      %p199 = por %p197, %p198
      %p200 = scmp.ne.s32.totalorder %s189, %s192
      %p201 = scmp.eq.s32.totalorder %s30, 1
      %p202 = por %p200, %p201
      %p203 = scmp.ne.s32.totalorder %s192, %s193
      %p204 = scmp.eq.s32.totalorder %s30, 0
      %p205 = por %p203, %p204
      %p206 = scmp.ne.s32.totalorder %s192, %s193
      %p207 = scmp.eq.s32.totalorder %s31, 1
      %p208 = por %p206, %p207
      %p210 = scmp.ne.s32.totalorder %s193, %s209
      %p211 = scmp.eq.s32.totalorder %s31, 0
      %p212 = por %p210, %p211
      %s213 = ssub.s32 %s32, %s44
      %s214 = ssub.s32 %s33, %s40
      %s215 = sor.u32 %s213, %s214
      %p216 = scmp.eq.s32.totalorder %s215, 0
      %s218 = sadd.s32 %s217, 1
      %s219 = scalar_select %p216, %s217, %s218
      %p222 = pneg %p216
      %p223 = scmp.eq.s32.totalorder %s25, 1
      %p224 = por %p222, %p223
      %p225 = scmp.ne.s32.totalorder %s217, %s220
      %p226 = scmp.eq.s32.totalorder %s25, 0
      %p227 = por %p225, %p226
      %p228 = scmp.ne.s32.totalorder %s217, %s220
      %p229 = scmp.eq.s32.totalorder %s30, 1
      %p230 = por %p228, %p229
      %p231 = scmp.ne.s32.totalorder %s220, %s221
      %p232 = scmp.eq.s32.totalorder %s30, 0
      %p233 = por %p231, %p232
      %p234 = scmp.ne.s32.totalorder %s220, %s221
      %p235 = scmp.eq.s32.totalorder %s31, 1
      %p236 = por %p234, %p235
      %p238 = scmp.ne.s32.totalorder %s221, %s237
      %p239 = scmp.eq.s32.totalorder %s31, 0
      %p240 = por %p238, %p239
      %p241 = scmp.le.s32.totalorder 1, %s25
      %p242 = scmp.lt.s32.totalorder %s25, 3
      %p243 = pnand %p241, %p242
      %p244 = pneg %p243
      // Predicated region
      $region9: #{right_transformer_block.6} parent=5 // pred_check
        _
      $region10: #{right_transformer_block.6} parent=5 // pred_check_branch
        %246 = sbr.rel (%p243) target = $region12
      $region11: #{right_transformer_block.6} parent=5 // pred_region
        %s247 = ssub.s32 %s25, 1
        // Predicated region
        $region13: #{right_transformer_block.6} parent=11 // pred_check
          %p248 = pneg %p86
        $region14: #{right_transformer_block.6} parent=11 // pred_check_branch
          %250 = sbr.rel (%p248) target = $region16
        $region15: #{right_transformer_block.6} parent=11 // pred_region
          %s252 = ssub.s32 16, 16
          %253 = vsyncadd [#allocation6], %s252
          %s255 = sshll.u32 [#allocation5], 4
          %s256 = int_to_ptr.vmem [resolvable:$true] %s255
          %258 = dma.hbm_to_vmem [thread:$0]  %s1, 16, %s256, [#allocation6]
        $region16: #{right_transformer_block.6} parent=11 // pred_fallthru
          _
        // Predicated region
        $region17: #{right_transformer_block.6} parent=11 // pred_check
          %p259 = pneg %p107
        $region18: #{right_transformer_block.6} parent=11 // pred_check_branch
          %261 = sbr.rel (%p259) target = $region20
        $region19: #{right_transformer_block.6} parent=11 // pred_region
          %s263 = ssub.s32 16, 16
          %264 = vsyncadd [#allocation6], %s263
          %s266 = sshll.u32 [#allocation7], 4
          %s267 = int_to_ptr.vmem [resolvable:$true] %s266
          %269 = dma.hbm_to_vmem [thread:$0]  %s2, 16, %s267, [#allocation6]
        $region20: #{right_transformer_block.6} parent=11 // pred_fallthru
          _
        // Predicated region
        $region21: #{right_transformer_block.6} parent=11 // pred_check
          %p270 = pneg %p128
        $region22: #{right_transformer_block.6} parent=11 // pred_check_branch
          %272 = sbr.rel (%p270) target = $region24
        $region23: #{right_transformer_block.6} parent=11 // pred_region
          %s274 = ssub.s32 768, 768
          %275 = vsyncadd [#allocation9], %s274
          %s276 = sshll.u32 [#allocation8], 4
          %s277 = int_to_ptr.vmem [resolvable:$true] %s276
          %282 = dma.hbm_to_vmem [thread:$0]  %s3, 768, %s277, [#allocation9], 64, 64, 4
        $region24: #{right_transformer_block.6} parent=11 // pred_fallthru
          _
        // Predicated region
        $region25: #{right_transformer_block.6} parent=11 // pred_check
          %p283 = pneg %p149
        $region26: #{right_transformer_block.6} parent=11 // pred_check_branch
          %285 = sbr.rel (%p283) target = $region28
        $region27: #{right_transformer_block.6} parent=11 // pred_region
          %s287 = ssub.s32 64, 64
          %288 = vsyncadd [#allocation9], %s287
          %s290 = sshll.u32 [#allocation10], 4
          %s291 = int_to_ptr.vmem [resolvable:$true] %s290
          %293 = dma.hbm_to_vmem [thread:$0]  %s4, 64, %s291, [#allocation9]
        $region28: #{right_transformer_block.6} parent=11 // pred_fallthru
          _
      $region12: #{right_transformer_block.6} parent=5 // pred_fallthru
        _
      %p294 = scmp.lt.s32.totalorder %s25, 2
      // Predicated region
      $region29: #{right_transformer_block.6} parent=5 // pred_check
        %p295 = pneg %p294
      $region30: #{right_transformer_block.6} parent=5 // pred_check_branch
        %297 = sbr.rel (%p295) target = $region32
      $region31: #{right_transformer_block.6} parent=5 // pred_region
        // Predicated region
        $region33: #{right_transformer_block.6} parent=31 // pred_check
          %p298 = pneg %p59
        $region34: #{right_transformer_block.6} parent=31 // pred_check_branch
          %300 = sbr.rel (%p298) target = $region36
        $region35: #{right_transformer_block.6} parent=31 // pred_region
          %s301 = sand.u32 %s49, 1
          %s302 = scalar_lea.sflag [#allocation3], %s301
          %s303 = sand.u32 %s49, 1
          %s304 = smul.addr %s303, 8
          %s305 = scalar_lea.vmem [#allocation2], %s304
          %s307 = ssub.s32 128, 128
          %308 = vsyncadd %s302, %s307
          %s309 = sadd.s32 %s33, %s32
          %s310 = smul.addr %s309, 128
          %s311 = scalar_lea.hbm %s0, %s310
          %s313 = sshll.u32 %s305, 4
          %s314 = int_to_ptr.vmem [resolvable:$true] %s313
          %316 = dma.hbm_to_vmem [thread:$0]  %s311, 128, %s314, %s302
        $region36: #{right_transformer_block.6} parent=31 // pred_fallthru
          _
      $region32: #{right_transformer_block.6} parent=5 // pred_fallthru
        _
      %p317 = scmp.le.s32.totalorder 1, %s25
      %p318 = scmp.lt.s32.totalorder %s25, 3
      %p319 = pnand %p317, %p318
      %p320 = pneg %p319
      // Predicated region
      $region37: #{right_transformer_block.6} parent=5 // pred_check
        _
      $region38: #{right_transformer_block.6} parent=5 // pred_check_branch
        %322 = sbr.rel (%p319) target = $region40
      $region39: #{right_transformer_block.6} parent=5 // pred_region
        %s323 = ssub.s32 %s25, 1
        %s324 = sand.u32 %s52, 1
        %s325 = scalar_lea.sflag [#allocation3], %s324
        %s326 = sand.u32 %s52, 1
        %s327 = smul.addr %s326, 8
        %s328 = scalar_lea.vmem [#allocation2], %s327
        // Predicated region
        $region41: #{right_transformer_block.6} parent=39 // pred_check
          %p329 = pneg %p65
        $region42: #{right_transformer_block.6} parent=39 // pred_check_branch
          %331 = sbr.rel (%p329) target = $region44
        $region43: #{right_transformer_block.6} parent=39 // pred_region
          %332 = dma.done %s325, 128
        $region44: #{right_transformer_block.6} parent=39 // pred_fallthru
          _
        // Predicated region
        $region45: #{right_transformer_block.6} parent=39 // pred_check
          %p333 = pneg %p86
        $region46: #{right_transformer_block.6} parent=39 // pred_check_branch
          %335 = sbr.rel (%p333) target = $region48
        $region47: #{right_transformer_block.6} parent=39 // pred_region
          %336 = dma.done [#allocation6], 16
        $region48: #{right_transformer_block.6} parent=39 // pred_fallthru
          _
        // Predicated region
        $region49: #{right_transformer_block.6} parent=39 // pred_check
          %p337 = pneg %p107
        $region50: #{right_transformer_block.6} parent=39 // pred_check_branch
          %339 = sbr.rel (%p337) target = $region52
        $region51: #{right_transformer_block.6} parent=39 // pred_region
          %340 = dma.done [#allocation6], 16
        $region52: #{right_transformer_block.6} parent=39 // pred_fallthru
          _
        // Predicated region
        $region53: #{right_transformer_block.6} parent=39 // pred_check
          %p341 = pneg %p128
        $region54: #{right_transformer_block.6} parent=39 // pred_check_branch
          %343 = sbr.rel (%p341) target = $region56
        $region55: #{right_transformer_block.6} parent=39 // pred_region
          %344 = dma.done [#allocation9], 768
        $region56: #{right_transformer_block.6} parent=39 // pred_fallthru
          _
        // Predicated region
        $region57: #{right_transformer_block.6} parent=39 // pred_check
          %p345 = pneg %p149
        $region58: #{right_transformer_block.6} parent=39 // pred_check_branch
          %347 = sbr.rel (%p345) target = $region60
        $region59: #{right_transformer_block.6} parent=39 // pred_region
          %348 = dma.done [#allocation9], 64
        $region60: #{right_transformer_block.6} parent=39 // pred_fallthru
          _
        %s349 = sand.u32 %s52, 1
        %s350 = scalar_lea.sflag [#allocation3], %s349
        %s351 = sand.u32 %s52, 1
        %s352 = smul.addr %s351, 8
        %s353 = scalar_lea.vmem [#allocation2], %s352
        %p354 = pneg %p65
        %p355 = pneg %p62
        %p356 = pneg %p86
        %p357 = pneg %p83
        %p358 = pneg %p107
        %p359 = pneg %p104
        %p360 = pneg %p128
        %p361 = pneg %p125
        %p362 = pneg %p149
        %p363 = pneg %p146
        %p364 = pneg %p177
        %p365 = pneg %p174
        %s366 = sand.u32 %s164, 1
        %s367 = scalar_lea.sflag [#allocation4], %s366
        %s368 = sand.u32 %s164, 1
        %s369 = smul.addr %s368, 4
        %s370 = scalar_lea.vmem [#allocation11], %s369
        %p371 = pneg %p205
        %p372 = pneg %p202
        %s373 = sand.u32 %s30, 1
        %s374 = scalar_lea.sflag [#allocation13], %s373
        %s375 = sand.u32 %s192, 1
        %s376 = smul.addr %s375, 4
        %s377 = scalar_lea.vmem [#allocation12], %s376
        %p378 = pneg %p233
        %p379 = pneg %p230
        %s380 = sand.u32 %s30, 1
        %s381 = scalar_lea.sflag [#allocation13], %s380
        %s382 = sand.u32 %s220, 1
        %s383 = smul.addr %s382, 4
        %s384 = scalar_lea.vmem [#allocation14], %s383
        %v386 = vld [vmem:[%s328] sm:$0xff]
        %vm387 = vcmask 261120
        %v388 = vsel %vm387, %v386, 0.0
        %389 = vadd.xlane.f32.xlu0 %v388
        %v390 = vpop.xlane.xlu0 %389
        %v391 = vrcp.pop 32.0
        %v392 = vmul.f32 %v390, %v391
        %v393 = vsub.f32 %v386, %v392
        %v394 = vmul.f32 %v393, %v393
        %v395 = vsel %vm387, %v394, 0.0
        %396 = vadd.xlane.f32.xlu0 %v395
        %v397 = vpop.xlane.xlu0 %396
        %v398 = vmul.f32 %v397, %v391
        %v399 = vadd.f32 %v398, 1e-06
        %v400 = vrsqrt.pop %v399
        %v401 = vmul.f32 %v393, %v400
        %v402 = vld [vmem:[#allocation5] sm:$0x1]
        %v404 = vlaneseq
        %v405 = vshrl.u32 %v404, 7
        %v406 = vsub.s32 0, %v405
        %v407 = vrot.slane %v402, %v406
        %v409 = vmul.f32 %v401, %v407
        %v410 = vld [vmem:[#allocation7] sm:$0x1]
        %v412 = vlaneseq
        %v413 = vshrl.u32 %v412, 7
        %v414 = vsub.s32 0, %v413
        %v415 = vrot.slane %v410, %v414
        %v417 = vadd.f32 %v409, %v415
        %v418 = vpack.c.bf16 %v417, %v417
        %v419 = vld [vmem:[#allocation8] sm:$0xf]
        %v420 = vld [vmem:[#allocation8 + $0x4] sm:$0xf]
        %v421 = vld [vmem:[#allocation8 + $0x8] sm:$0xf]
        %v422 = vld [vmem:[#allocation8 + $0xc] sm:$0xf]
        %v423 = vld [vmem:[#allocation10] sm:$0x1]
        %v424 = vlaneseq
        %v425 = vshrl.u32 %v424, 7
        %v426 = vsub.s32 0, %v425
        %v427 = vrot.slane %v423, %v426
        %v432 = vunpack.c.l.b16 %v419
        %v433 = vunpack.c.l.b16 %v420
        %v434 = vunpack.c.l.b16 %v421
        %v435 = vunpack.c.l.b16 %v422
        %v436 = vpack.c.b16 %v433, %v432
        %v437 = vpack.c.b16 %v435, %v434
        %v441 = vsel %vm387, %v418, 0
        %443 = vmatprep.subr.bf16.mxu0 0
        %444 = vmatpush1.bf16.msra.mxu0 %v436
        %445 = vmatprep.subr.bf16.mxu0 0
        %446 = vmatpush1.bf16.msra.mxu0 %v437
        %447 = vmatprep.subr.bf16.mxu0 0
        %448 = vmatpush1.bf16.msra.mxu0 0
        %449 = vmatprep.subr.bf16.mxu0 0
        %450 = vmatpush1.bf16.msra.mxu0 0
        %451 = vmatprep.subr.bf16.mxu0 0
        %452 = vmatpush1.bf16.msra.mxu0 0
        %453 = vmatprep.subr.bf16.mxu0 0
        %454 = vmatpush1.bf16.msra.mxu0 0
        %455 = vmatprep.subr.bf16.mxu0 0
        %456 = vmatpush1.bf16.msra.mxu0 0
        %457 = vmatprep.subr.bf16.mxu0 0
        %458 = vmatpush1.bf16.msra.mxu0 0
        %459 = vmatprep.subr.bf16.mxu0 0
        %460 = vmatpush1.bf16.msra.mxu0 0
        %461 = vmatprep.subr.bf16.mxu0 0
        %462 = vmatpush1.bf16.msra.mxu0 0
        %463 = vmatprep.subr.bf16.mxu0 0
        %464 = vmatpush1.bf16.msra.mxu0 0
        %465 = vmatprep.subr.bf16.mxu0 0
        %466 = vmatpush1.bf16.msra.mxu0 0
        %467 = vmatprep.subr.bf16.mxu0 0
        %468 = vmatpush1.bf16.msra.mxu0 0
        %469 = vmatprep.subr.bf16.mxu0 0
        %470 = vmatpush1.bf16.msra.mxu0 0
        %471 = vmatprep.subr.bf16.mxu0 0
        %472 = vmatpush1.bf16.msra.mxu0 0
        %473 = vmatprep.subr.bf16.mxu0 0
        %474 = vmatpush1.bf16.msra.mxu0 0
        %475 = vmatprep.mubr.bf16.mxu0 0
        %476 = vmatmul.mubr.bf16.gmra.mrb[0].mxu0 %v441
        %v477 = vpop.f32.mrb[0].mxu0
        %v478 = vadd.f32 %v427, %v477
        %v479 = vpop.f32.mrb[0].mxu0
        %v480 = vpop.f32.mrb[0].mxu0
        %v481 = vpop.f32.mrb[0].mxu0
        %482 = vdwg.mxu0
        %v483 = vpack.c.bf16 %v478, %v478
        %vm484 = vcmask 257024
        %485 = vst.msk [vmem:[%s370] sm:$0xf] %vm484, %v483
        %s486 = scalar_lea.vmem [#allocation8], 16
        %v487 = vld [vmem:[%s486] sm:$0xf]
        %v488 = vld [vmem:[%s486 + $0x4] sm:$0xf]
        %v489 = vld [vmem:[%s486 + $0x8] sm:$0xf]
        %v490 = vld [vmem:[%s486 + $0xc] sm:$0xf]
        %v491 = vld [vmem:[#allocation10 + $0x1] sm:$0x1]
        %v492 = vlaneseq
        %v493 = vshrl.u32 %v492, 7
        %v494 = vsub.s32 0, %v493
        %v495 = vrot.slane %v491, %v494
        %v500 = vunpack.c.l.b16 %v487
        %v501 = vunpack.c.l.b16 %v488
        %v502 = vunpack.c.l.b16 %v489
        %v503 = vunpack.c.l.b16 %v490
        %v504 = vpack.c.b16 %v501, %v500
        %v505 = vpack.c.b16 %v503, %v502
        %508 = vmatprep.subr.bf16.mxu0 0
        %509 = vmatpush1.bf16.msra.mxu0 %v504
        %510 = vmatprep.subr.bf16.mxu0 0
        %511 = vmatpush1.bf16.msra.mxu0 %v505
        %512 = vmatprep.subr.bf16.mxu0 0
        %513 = vmatpush1.bf16.msra.mxu0 0
        %514 = vmatprep.subr.bf16.mxu0 0
        %515 = vmatpush1.bf16.msra.mxu0 0
        %516 = vmatprep.subr.bf16.mxu0 0
        %517 = vmatpush1.bf16.msra.mxu0 0
        %518 = vmatprep.subr.bf16.mxu0 0
        %519 = vmatpush1.bf16.msra.mxu0 0
        %520 = vmatprep.subr.bf16.mxu0 0
        %521 = vmatpush1.bf16.msra.mxu0 0
        %522 = vmatprep.subr.bf16.mxu0 0
        %523 = vmatpush1.bf16.msra.mxu0 0
        %524 = vmatprep.subr.bf16.mxu0 0
        %525 = vmatpush1.bf16.msra.mxu0 0
        %526 = vmatprep.subr.bf16.mxu0 0
        %527 = vmatpush1.bf16.msra.mxu0 0
        %528 = vmatprep.subr.bf16.mxu0 0
        %529 = vmatpush1.bf16.msra.mxu0 0
        %530 = vmatprep.subr.bf16.mxu0 0
        %531 = vmatpush1.bf16.msra.mxu0 0
        %532 = vmatprep.subr.bf16.mxu0 0
        %533 = vmatpush1.bf16.msra.mxu0 0
        %534 = vmatprep.subr.bf16.mxu0 0
        %535 = vmatpush1.bf16.msra.mxu0 0
        %536 = vmatprep.subr.bf16.mxu0 0
        %537 = vmatpush1.bf16.msra.mxu0 0
        %538 = vmatprep.subr.bf16.mxu0 0
        %539 = vmatpush1.bf16.msra.mxu0 0
        %540 = vmatprep.mubr.bf16.mxu0 0
        %541 = vmatmul.mubr.bf16.gmra.mrb[0].mxu0 %v441
        %v542 = vpop.f32.mrb[0].mxu0
        %v543 = vadd.f32 %v495, %v542
        %v544 = vpop.f32.mrb[0].mxu0
        %v545 = vpop.f32.mrb[0].mxu0
        %v546 = vpop.f32.mrb[0].mxu0
        %547 = vdwg.mxu0
        %v548 = vpack.c.bf16 %v543, %v543
        %549 = vst.msk [vmem:[%s377] sm:$0xf] %vm484, %v548
        %s550 = scalar_lea.vmem [#allocation8], 32
        %v551 = vld [vmem:[%s550] sm:$0xf]
        %v552 = vld [vmem:[%s550 + $0x4] sm:$0xf]
        %v553 = vld [vmem:[%s550 + $0x8] sm:$0xf]
        %v554 = vld [vmem:[%s550 + $0xc] sm:$0xf]
        %v555 = vld [vmem:[#allocation10 + $0x2] sm:$0x1]
        %v556 = vlaneseq
        %v557 = vshrl.u32 %v556, 7
        %v558 = vsub.s32 0, %v557
        %v559 = vrot.slane %v555, %v558
        %v564 = vunpack.c.l.b16 %v551
        %v565 = vunpack.c.l.b16 %v552
        %v566 = vunpack.c.l.b16 %v553
        %v567 = vunpack.c.l.b16 %v554
        %v568 = vpack.c.b16 %v565, %v564
        %v569 = vpack.c.b16 %v567, %v566
        %572 = vmatprep.subr.bf16.mxu0 0
        %573 = vmatpush1.bf16.msra.mxu0 %v568
        %574 = vmatprep.subr.bf16.mxu0 0
        %575 = vmatpush1.bf16.msra.mxu0 %v569
        %576 = vmatprep.subr.bf16.mxu0 0
        %577 = vmatpush1.bf16.msra.mxu0 0
        %578 = vmatprep.subr.bf16.mxu0 0
        %579 = vmatpush1.bf16.msra.mxu0 0
        %580 = vmatprep.subr.bf16.mxu0 0
        %581 = vmatpush1.bf16.msra.mxu0 0
        %582 = vmatprep.subr.bf16.mxu0 0
        %583 = vmatpush1.bf16.msra.mxu0 0
        %584 = vmatprep.subr.bf16.mxu0 0
        %585 = vmatpush1.bf16.msra.mxu0 0
        %586 = vmatprep.subr.bf16.mxu0 0
        %587 = vmatpush1.bf16.msra.mxu0 0
        %588 = vmatprep.subr.bf16.mxu0 0
        %589 = vmatpush1.bf16.msra.mxu0 0
        %590 = vmatprep.subr.bf16.mxu0 0
        %591 = vmatpush1.bf16.msra.mxu0 0
        %592 = vmatprep.subr.bf16.mxu0 0
        %593 = vmatpush1.bf16.msra.mxu0 0
        %594 = vmatprep.subr.bf16.mxu0 0
        %595 = vmatpush1.bf16.msra.mxu0 0
        %596 = vmatprep.subr.bf16.mxu0 0
        %597 = vmatpush1.bf16.msra.mxu0 0
        %598 = vmatprep.subr.bf16.mxu0 0
        %599 = vmatpush1.bf16.msra.mxu0 0
        %600 = vmatprep.subr.bf16.mxu0 0
        %601 = vmatpush1.bf16.msra.mxu0 0
        %602 = vmatprep.subr.bf16.mxu0 0
        %603 = vmatpush1.bf16.msra.mxu0 0
        %604 = vmatprep.mubr.bf16.mxu0 0
        %605 = vmatmul.mubr.bf16.gmra.mrb[0].mxu0 %v441
        %v606 = vpop.f32.mrb[0].mxu0
        %v607 = vadd.f32 %v559, %v606
        %v608 = vpop.f32.mrb[0].mxu0
        %v609 = vpop.f32.mrb[0].mxu0
        %v610 = vpop.f32.mrb[0].mxu0
        %611 = vdwg.mxu0
        %v612 = vpack.c.bf16 %v607, %v607
        %613 = vst.msk [vmem:[%s384] sm:$0xf] %vm484, %v612
        %s614 = sand.u32 %s164, 1
        %s615 = scalar_lea.sflag [#allocation4], %s614
        %s616 = sand.u32 %s164, 1
        %s617 = smul.addr %s616, 4
        %s618 = scalar_lea.vmem [#allocation11], %s617
        %s619 = sand.u32 %s30, 1
        %s620 = scalar_lea.sflag [#allocation13], %s619
        %s621 = sand.u32 %s192, 1
        %s622 = smul.addr %s621, 4
        %s623 = scalar_lea.vmem [#allocation12], %s622
        %s624 = sand.u32 %s30, 1
        %s625 = scalar_lea.sflag [#allocation13], %s624
        %s626 = sand.u32 %s220, 1
        %s627 = smul.addr %s626, 4
        %s628 = scalar_lea.vmem [#allocation14], %s627
        // Predicated region
        $region61: #{right_transformer_block.6} parent=39 // pred_check
          %p629 = pneg %p174
        $region62: #{right_transformer_block.6} parent=39 // pred_check_branch
          %631 = sbr.rel (%p629) target = $region64
        $region63: #{right_transformer_block.6} parent=39 // pred_region
          %s633 = ssub.s32 64, 64
          %634 = vsyncadd %s615, %s633
          %s635 = sadd.s32 %s35, %s34
          %s636 = smul.addr %s635, 64
          %s637 = scalar_lea.hbm %s5, %s636
          %s639 = sshll.u32 %s618, 4
          %s640 = int_to_ptr.vmem [resolvable:$true] %s639
          %642 = dma.vmem_to_hbm [thread:$0]  %s640, 64, %s637, %s615
        $region64: #{right_transformer_block.6} parent=39 // pred_fallthru
          _
        // Predicated region
        $region65: #{right_transformer_block.6} parent=39 // pred_check
          %p643 = pneg %p202
        $region66: #{right_transformer_block.6} parent=39 // pred_check_branch
          %645 = sbr.rel (%p643) target = $region68
        $region67: #{right_transformer_block.6} parent=39 // pred_region
          %s647 = ssub.s32 64, 64
          %648 = vsyncadd %s620, %s647
          %s649 = sadd.s32 %s35, %s34
          %s650 = smul.addr %s649, 64
          %s651 = scalar_lea.hbm %s6, %s650
          %s653 = sshll.u32 %s623, 4
          %s654 = int_to_ptr.vmem [resolvable:$true] %s653
          %656 = dma.vmem_to_hbm [thread:$0]  %s654, 64, %s651, %s620
        $region68: #{right_transformer_block.6} parent=39 // pred_fallthru
          _
        // Predicated region
        $region69: #{right_transformer_block.6} parent=39 // pred_check
          %p657 = pneg %p230
        $region70: #{right_transformer_block.6} parent=39 // pred_check_branch
          %659 = sbr.rel (%p657) target = $region72
        $region71: #{right_transformer_block.6} parent=39 // pred_region
          %s661 = ssub.s32 64, 64
          %662 = vsyncadd %s625, %s661
          %s663 = sadd.s32 %s35, %s34
          %s664 = smul.addr %s663, 64
          %s665 = scalar_lea.hbm %s7, %s664
          %s667 = sshll.u32 %s628, 4
          %s668 = int_to_ptr.vmem [resolvable:$true] %s667
          %670 = dma.vmem_to_hbm [thread:$0]  %s668, 64, %s665, %s625
        $region72: #{right_transformer_block.6} parent=39 // pred_fallthru
          _
      $region40: #{right_transformer_block.6} parent=5 // pred_fallthru
        _
      %p671 = scmp.le.s32.totalorder 2, %s25
      // Predicated region
      $region73: #{right_transformer_block.6} parent=5 // pred_check
        %p672 = pneg %p671
      $region74: #{right_transformer_block.6} parent=5 // pred_check_branch
        %674 = sbr.rel (%p672) target = $region76
      $region75: #{right_transformer_block.6} parent=5 // pred_region
        %s675 = ssub.s32 %s25, 2
        // Predicated region
        $region77: #{right_transformer_block.6} parent=75 // pred_check
          %p676 = pneg %p180
        $region78: #{right_transformer_block.6} parent=75 // pred_check_branch
          %678 = sbr.rel (%p676) target = $region80
        $region79: #{right_transformer_block.6} parent=75 // pred_region
          %s679 = sand.u32 %s165, 1
          %s680 = scalar_lea.sflag [#allocation4], %s679
          %s681 = sand.u32 %s165, 1
          %s682 = smul.addr %s681, 4
          %s683 = scalar_lea.vmem [#allocation11], %s682
          %684 = dma.done %s680, 64
        $region80: #{right_transformer_block.6} parent=75 // pred_fallthru
          _
        // Predicated region
        $region81: #{right_transformer_block.6} parent=75 // pred_check
          %p685 = pneg %p208
        $region82: #{right_transformer_block.6} parent=75 // pred_check_branch
          %687 = sbr.rel (%p685) target = $region84
        $region83: #{right_transformer_block.6} parent=75 // pred_region
          %s688 = sand.u32 %s31, 1
          %s689 = scalar_lea.sflag [#allocation13], %s688
          %s690 = sand.u32 %s193, 1
          %s691 = smul.addr %s690, 4
          %s692 = scalar_lea.vmem [#allocation12], %s691
          %693 = dma.done %s689, 64
        $region84: #{right_transformer_block.6} parent=75 // pred_fallthru
          _
        // Predicated region
        $region85: #{right_transformer_block.6} parent=75 // pred_check
          %p694 = pneg %p236
        $region86: #{right_transformer_block.6} parent=75 // pred_check_branch
          %696 = sbr.rel (%p694) target = $region88
        $region87: #{right_transformer_block.6} parent=75 // pred_region
          %s697 = sand.u32 %s31, 1
          %s698 = scalar_lea.sflag [#allocation13], %s697
          %s699 = sand.u32 %s221, 1
          %s700 = smul.addr %s699, 4
          %s701 = scalar_lea.vmem [#allocation14], %s700
          %702 = dma.done %s698, 64
        $region88: #{right_transformer_block.6} parent=75 // pred_fallthru
          _
      $region76: #{right_transformer_block.6} parent=5 // pred_fallthru
        _
    $region6: #{right_transformer_block.6} parent=1 // loop_footer
      %s29 = sadd.s32 1, %s25
    $region7: #{right_transformer_block.6} parent=1 // loop_footer_branch
      %24 = sbr.rel target = $region3
    $region8: #{right_transformer_block.6} parent=1 // loop_exit
      _
    %703 = vsyncpa [#allocation3], 1
    %s704 = scalar_lea.sflag [#allocation3], 1
    %705 = vsyncpa %s704, 1
    %706 = vsyncpa [#allocation6], 1
    %707 = vsyncpa [#allocation9], 1
    %708 = vsyncpa [#allocation4], 1
    %s709 = scalar_lea.sflag [#allocation4], 1
    %710 = vsyncpa %s709, 1
    %711 = vsyncpa [#allocation13], 1
    %s712 = scalar_lea.sflag [#allocation13], 1
    %713 = vsyncpa %s712, 1

// kernel: right_transformer_block.8
$region0: #{right_transformer_block.8}
  #allocation0 [shape = 'u32[]', space=smem, size = 0x4, offset = 0x4, fixed_abs, tag = 'smem constant byte address 0x4 - core index']
  #allocation1 [shape = 'u32[144,128]{1,0:T(1,128)}', space=vmem, size = 0x12000, scoped, tag = 'internal scratch']
  %s0 = inlined_call_operand.hbm [shape: f32[2,8,32], index: 0, kind: input, shape index: {}]
  %s1 = inlined_call_operand.hbm [shape: f32[1,32], index: 1, kind: input, shape index: {}]
  %s2 = inlined_call_operand.hbm [shape: f32[1,32], index: 2, kind: input, shape index: {}]
  %s3 = inlined_call_operand.hbm [shape: bf16[1,32,32], index: 3, kind: input, shape index: {}]
  %s4 = inlined_call_operand.hbm [shape: f32[1,32], index: 4, kind: input, shape index: {}]
  %s5 = inlined_call_operand.hbm [shape: bf16[2,8,32], index: 5, kind: output, shape index: {}]
  %s6 = sld [smem:[#allocation0]]
  $region73: #{right_transformer_block.8} parent=0
    _
  %s8 = ssub.s32 1, %s6
  %s9 = scalar_select 0, %s8, %s6
  $region1: #{right_transformer_block.8} parent=0
    #allocation2 [shape = 'u8[8192]{0}', space=vmem, size = 0x2000, scoped, tag = 'input window, operand 0']
    #allocation3 [shape = 's32[2]{0}', space=sflag, size = 0x8, scoped, tag = 'scoped memory for right_transformer_block.8']
    #allocation4 [shape = 's32[2]{0}', space=sflag, size = 0x8, scoped, tag = 'scoped memory for right_transformer_block.8']
    #allocation5 [shape = 'u8[512]{0}', space=vmem, size = 0x400, scoped, tag = 'input window, operand 1, single buffered']
    #allocation6 [shape = 's32[1]{0}', space=sflag, size = 0x4, scoped, tag = 'scoped memory for right_transformer_block.8']
    #allocation7 [shape = 'u8[512]{0}', space=vmem, size = 0x400, scoped, tag = 'input window, operand 2, single buffered']
    #allocation8 [shape = 'u8[8192]{0}', space=vmem, size = 0x2000, scoped, tag = 'input window, operand 3, single buffered']
    #allocation9 [shape = 's32[1]{0}', space=sflag, size = 0x4, scoped, tag = 'scoped memory for right_transformer_block.8']
    #allocation10 [shape = 'u8[512]{0}', space=vmem, size = 0x400, scoped, tag = 'input window, operand 4, single buffered']
    #allocation11 [shape = 'u8[4096]{0}', space=vmem, size = 0x1000, scoped, tag = 'output window, operand 0']
    %10 = vsyncpa [#allocation3], 0
    %s11 = scalar_lea.sflag [#allocation3], 1
    %12 = vsyncpa %s11, 0
    %13 = vsyncpa [#allocation6], 0
    %14 = vsyncpa [#allocation9], 0
    %15 = vsyncpa [#allocation4], 0
    %s16 = scalar_lea.sflag [#allocation4], 1
    %17 = vsyncpa %s16, 0
    loop: start=0, step=1, limit=4
    $region2: #{right_transformer_block.8} parent=1 // loop_pre_header
      _
    $region3: #{right_transformer_block.8} parent=1 // loop_header
      %s19 = sphi 0, %s23
      %p20 = scmp.ge.s32.totalorder %s19, 4
      %s26 = sphi 0, %s38
      %s27 = sphi 0, %s34
      %s28 = sphi 0, %s26
      %s29 = sphi 0, %s27
      %s30 = sphi 0, %s28
      %s31 = sphi 0, %s29
      %s43 = sphi 0, %s45
      %s46 = sphi 0, %s43
      %s47 = sphi 0, %s46
      %s63 = sphi 0, %s47
      %s67 = sphi 0, %s67
      %s69 = sphi 0, %s67
      %s70 = sphi 0, %s69
      %s84 = sphi 0, %s70
      %s88 = sphi 0, %s88
      %s90 = sphi 0, %s88
      %s91 = sphi 0, %s90
      %s105 = sphi 0, %s91
      %s109 = sphi 0, %s109
      %s111 = sphi 0, %s109
      %s112 = sphi 0, %s111
      %s126 = sphi 0, %s112
      %s130 = sphi 0, %s130
      %s132 = sphi 0, %s130
      %s133 = sphi 0, %s132
      %s147 = sphi 0, %s133
      %s155 = sphi 0, %s157
      %s158 = sphi 0, %s155
      %s159 = sphi 0, %s158
      %s175 = sphi 0, %s159
    $region4: #{right_transformer_block.8} parent=1 // loop_header_branch
      %22 = sbr.rel (%p20) target = $region8
    $region5: #{right_transformer_block.8} parent=1 // loop_body
      %s24 = ssub.s32 %s19, 1
      %s25 = ssub.s32 %s19, 2
      %s32 = sadd.s32 1, %s27
      %p33 = scmp.ge.s32.totalorder %s32, 1
      %s34 = scalar_select %p33, 0, %s32
      %s35 = sadd.s32 1, %s26
      %s36 = scalar_select %p33, %s35, %s26
      %p37 = scmp.ge.s32.totalorder %s36, 2
      %s38 = scalar_select %p37, 0, %s36
      %s39 = ssub.s32 %s26, %s38
      %s40 = ssub.s32 %s27, %s34
      %s41 = sor.u32 %s39, %s40
      %p42 = scmp.eq.s32.totalorder %s41, 0
      %s44 = sadd.s32 %s43, 1
      %s45 = scalar_select %p42, %s43, %s44
      %p48 = pneg %p42
      %p49 = scmp.eq.s32.totalorder %s19, 1
      %p50 = por %p48, %p49
      %p51 = scmp.ne.s32.totalorder %s43, %s46
      %p52 = scmp.eq.s32.totalorder %s19, 0
      %p53 = por %p51, %p52
      %p54 = scmp.ne.s32.totalorder %s43, %s46
      %p55 = scmp.eq.s32.totalorder %s24, 1
      %p56 = por %p54, %p55
      %p57 = scmp.ne.s32.totalorder %s46, %s47
      %p58 = scmp.eq.s32.totalorder %s24, 0
      %p59 = por %p57, %p58
      %p60 = scmp.ne.s32.totalorder %s46, %s47
      %p61 = scmp.eq.s32.totalorder %s25, 1
      %p62 = por %p60, %p61
      %p64 = scmp.ne.s32.totalorder %s47, %s63
      %p65 = scmp.eq.s32.totalorder %s25, 0
      %p66 = por %p64, %p65
      %s68 = sadd.s32 %s67, 1
      %p71 = scmp.eq.s32.totalorder %s19, 1
      %p72 = scmp.ne.s32.totalorder %s67, %s69
      %p73 = scmp.eq.s32.totalorder %s19, 0
      %p74 = por %p72, %p73
      %p75 = scmp.ne.s32.totalorder %s67, %s69
      %p76 = scmp.eq.s32.totalorder %s24, 1
      %p77 = por %p75, %p76
      %p78 = scmp.ne.s32.totalorder %s69, %s70
      %p79 = scmp.eq.s32.totalorder %s24, 0
      %p80 = por %p78, %p79
      %p81 = scmp.ne.s32.totalorder %s69, %s70
      %p82 = scmp.eq.s32.totalorder %s25, 1
      %p83 = por %p81, %p82
      %p85 = scmp.ne.s32.totalorder %s70, %s84
      %p86 = scmp.eq.s32.totalorder %s25, 0
      %p87 = por %p85, %p86
      %s89 = sadd.s32 %s88, 1
      %p92 = scmp.eq.s32.totalorder %s19, 1
      %p93 = scmp.ne.s32.totalorder %s88, %s90
      %p94 = scmp.eq.s32.totalorder %s19, 0
      %p95 = por %p93, %p94
      %p96 = scmp.ne.s32.totalorder %s88, %s90
      %p97 = scmp.eq.s32.totalorder %s24, 1
      %p98 = por %p96, %p97
      %p99 = scmp.ne.s32.totalorder %s90, %s91
      %p100 = scmp.eq.s32.totalorder %s24, 0
      %p101 = por %p99, %p100
      %p102 = scmp.ne.s32.totalorder %s90, %s91
      %p103 = scmp.eq.s32.totalorder %s25, 1
      %p104 = por %p102, %p103
      %p106 = scmp.ne.s32.totalorder %s91, %s105
      %p107 = scmp.eq.s32.totalorder %s25, 0
      %p108 = por %p106, %p107
      %s110 = sadd.s32 %s109, 1
      %p113 = scmp.eq.s32.totalorder %s19, 1
      %p114 = scmp.ne.s32.totalorder %s109, %s111
      %p115 = scmp.eq.s32.totalorder %s19, 0
      %p116 = por %p114, %p115
      %p117 = scmp.ne.s32.totalorder %s109, %s111
      %p118 = scmp.eq.s32.totalorder %s24, 1
      %p119 = por %p117, %p118
      %p120 = scmp.ne.s32.totalorder %s111, %s112
      %p121 = scmp.eq.s32.totalorder %s24, 0
      %p122 = por %p120, %p121
      %p123 = scmp.ne.s32.totalorder %s111, %s112
      %p124 = scmp.eq.s32.totalorder %s25, 1
      %p125 = por %p123, %p124
      %p127 = scmp.ne.s32.totalorder %s112, %s126
      %p128 = scmp.eq.s32.totalorder %s25, 0
      %p129 = por %p127, %p128
      %s131 = sadd.s32 %s130, 1
      %p134 = scmp.eq.s32.totalorder %s19, 1
      %p135 = scmp.ne.s32.totalorder %s130, %s132
      %p136 = scmp.eq.s32.totalorder %s19, 0
      %p137 = por %p135, %p136
      %p138 = scmp.ne.s32.totalorder %s130, %s132
      %p139 = scmp.eq.s32.totalorder %s24, 1
      %p140 = por %p138, %p139
      %p141 = scmp.ne.s32.totalorder %s132, %s133
      %p142 = scmp.eq.s32.totalorder %s24, 0
      %p143 = por %p141, %p142
      %p144 = scmp.ne.s32.totalorder %s132, %s133
      %p145 = scmp.eq.s32.totalorder %s25, 1
      %p146 = por %p144, %p145
      %p148 = scmp.ne.s32.totalorder %s133, %s147
      %p149 = scmp.eq.s32.totalorder %s25, 0
      %p150 = por %p148, %p149
      %s151 = ssub.s32 %s26, %s38
      %s152 = ssub.s32 %s27, %s34
      %s153 = sor.u32 %s151, %s152
      %p154 = scmp.eq.s32.totalorder %s153, 0
      %s156 = sadd.s32 %s155, 1
      %s157 = scalar_select %p154, %s155, %s156
      %p160 = pneg %p154
      %p161 = scmp.eq.s32.totalorder %s19, 1
      %p162 = por %p160, %p161
      %p163 = scmp.ne.s32.totalorder %s155, %s158
      %p164 = scmp.eq.s32.totalorder %s19, 0
      %p165 = por %p163, %p164
      %p166 = scmp.ne.s32.totalorder %s155, %s158
      %p167 = scmp.eq.s32.totalorder %s24, 1
      %p168 = por %p166, %p167
      %p169 = scmp.ne.s32.totalorder %s158, %s159
      %p170 = scmp.eq.s32.totalorder %s24, 0
      %p171 = por %p169, %p170
      %p172 = scmp.ne.s32.totalorder %s158, %s159
      %p173 = scmp.eq.s32.totalorder %s25, 1
      %p174 = por %p172, %p173
      %p176 = scmp.ne.s32.totalorder %s159, %s175
      %p177 = scmp.eq.s32.totalorder %s25, 0
      %p178 = por %p176, %p177
      %p179 = scmp.le.s32.totalorder 1, %s19
      %p180 = scmp.lt.s32.totalorder %s19, 3
      %p181 = pnand %p179, %p180
      %p182 = pneg %p181
      // Predicated region
      $region9: #{right_transformer_block.8} parent=5 // pred_check
        _
      $region10: #{right_transformer_block.8} parent=5 // pred_check_branch
        %184 = sbr.rel (%p181) target = $region12
      $region11: #{right_transformer_block.8} parent=5 // pred_region
        %s185 = ssub.s32 %s19, 1
        // Predicated region
        $region13: #{right_transformer_block.8} parent=11 // pred_check
          %p186 = pneg %p80
        $region14: #{right_transformer_block.8} parent=11 // pred_check_branch
          %188 = sbr.rel (%p186) target = $region16
        $region15: #{right_transformer_block.8} parent=11 // pred_region
          %s190 = ssub.s32 16, 16
          %191 = vsyncadd [#allocation6], %s190
          %s193 = sshll.u32 [#allocation5], 4
          %s194 = int_to_ptr.vmem [resolvable:$true] %s193
          %196 = dma.hbm_to_vmem [thread:$0]  %s1, 16, %s194, [#allocation6]
        $region16: #{right_transformer_block.8} parent=11 // pred_fallthru
          _
        // Predicated region
        $region17: #{right_transformer_block.8} parent=11 // pred_check
          %p197 = pneg %p101
        $region18: #{right_transformer_block.8} parent=11 // pred_check_branch
          %199 = sbr.rel (%p197) target = $region20
        $region19: #{right_transformer_block.8} parent=11 // pred_region
          %s201 = ssub.s32 16, 16
          %202 = vsyncadd [#allocation6], %s201
          %s204 = sshll.u32 [#allocation7], 4
          %s205 = int_to_ptr.vmem [resolvable:$true] %s204
          %207 = dma.hbm_to_vmem [thread:$0]  %s2, 16, %s205, [#allocation6]
        $region20: #{right_transformer_block.8} parent=11 // pred_fallthru
          _
        // Predicated region
        $region21: #{right_transformer_block.8} parent=11 // pred_check
          %p208 = pneg %p122
        $region22: #{right_transformer_block.8} parent=11 // pred_check_branch
          %210 = sbr.rel (%p208) target = $region24
        $region23: #{right_transformer_block.8} parent=11 // pred_region
          %s212 = ssub.s32 256, 256
          %213 = vsyncadd [#allocation9], %s212
          %s214 = sshll.u32 [#allocation8], 4
          %s215 = int_to_ptr.vmem [resolvable:$true] %s214
          %220 = dma.hbm_to_vmem [thread:$0]  %s3, 256, %s215, [#allocation9], 64, 64, 4
        $region24: #{right_transformer_block.8} parent=11 // pred_fallthru
          _
        // Predicated region
        $region25: #{right_transformer_block.8} parent=11 // pred_check
          %p221 = pneg %p143
        $region26: #{right_transformer_block.8} parent=11 // pred_check_branch
          %223 = sbr.rel (%p221) target = $region28
        $region27: #{right_transformer_block.8} parent=11 // pred_region
          %s225 = ssub.s32 16, 16
          %226 = vsyncadd [#allocation9], %s225
          %s228 = sshll.u32 [#allocation10], 4
          %s229 = int_to_ptr.vmem [resolvable:$true] %s228
          %231 = dma.hbm_to_vmem [thread:$0]  %s4, 16, %s229, [#allocation9]
        $region28: #{right_transformer_block.8} parent=11 // pred_fallthru
          _
      $region12: #{right_transformer_block.8} parent=5 // pred_fallthru
        _
      %p232 = scmp.lt.s32.totalorder %s19, 2
      // Predicated region
      $region29: #{right_transformer_block.8} parent=5 // pred_check
        %p233 = pneg %p232
      $region30: #{right_transformer_block.8} parent=5 // pred_check_branch
        %235 = sbr.rel (%p233) target = $region32
      $region31: #{right_transformer_block.8} parent=5 // pred_region
        // Predicated region
        $region33: #{right_transformer_block.8} parent=31 // pred_check
          %p236 = pneg %p53
        $region34: #{right_transformer_block.8} parent=31 // pred_check_branch
          %238 = sbr.rel (%p236) target = $region36
        $region35: #{right_transformer_block.8} parent=31 // pred_region
          %s239 = sand.u32 %s43, 1
          %s240 = scalar_lea.sflag [#allocation3], %s239
          %s241 = sand.u32 %s43, 1
          %s242 = smul.addr %s241, 8
          %s243 = scalar_lea.vmem [#allocation2], %s242
          %s245 = ssub.s32 128, 128
          %246 = vsyncadd %s240, %s245
          %s247 = sadd.s32 %s27, %s26
          %s248 = smul.addr %s247, 128
          %s249 = scalar_lea.hbm %s0, %s248
          %s251 = sshll.u32 %s243, 4
          %s252 = int_to_ptr.vmem [resolvable:$true] %s251
          %254 = dma.hbm_to_vmem [thread:$0]  %s249, 128, %s252, %s240
        $region36: #{right_transformer_block.8} parent=31 // pred_fallthru
          _
      $region32: #{right_transformer_block.8} parent=5 // pred_fallthru
        _
      %p255 = scmp.le.s32.totalorder 1, %s19
      %p256 = scmp.lt.s32.totalorder %s19, 3
      %p257 = pnand %p255, %p256
      %p258 = pneg %p257
      // Predicated region
      $region37: #{right_transformer_block.8} parent=5 // pred_check
        _
      $region38: #{right_transformer_block.8} parent=5 // pred_check_branch
        %260 = sbr.rel (%p257) target = $region40
      $region39: #{right_transformer_block.8} parent=5 // pred_region
        %s261 = ssub.s32 %s19, 1
        %s262 = sand.u32 %s46, 1
        %s263 = scalar_lea.sflag [#allocation3], %s262
        %s264 = sand.u32 %s46, 1
        %s265 = smul.addr %s264, 8
        %s266 = scalar_lea.vmem [#allocation2], %s265
        // Predicated region
        $region41: #{right_transformer_block.8} parent=39 // pred_check
          %p267 = pneg %p59
        $region42: #{right_transformer_block.8} parent=39 // pred_check_branch
          %269 = sbr.rel (%p267) target = $region44
        $region43: #{right_transformer_block.8} parent=39 // pred_region
          %270 = dma.done %s263, 128
        $region44: #{right_transformer_block.8} parent=39 // pred_fallthru
          _
        // Predicated region
        $region45: #{right_transformer_block.8} parent=39 // pred_check
          %p271 = pneg %p80
        $region46: #{right_transformer_block.8} parent=39 // pred_check_branch
          %273 = sbr.rel (%p271) target = $region48
        $region47: #{right_transformer_block.8} parent=39 // pred_region
          %274 = dma.done [#allocation6], 16
        $region48: #{right_transformer_block.8} parent=39 // pred_fallthru
          _
        // Predicated region
        $region49: #{right_transformer_block.8} parent=39 // pred_check
          %p275 = pneg %p101
        $region50: #{right_transformer_block.8} parent=39 // pred_check_branch
          %277 = sbr.rel (%p275) target = $region52
        $region51: #{right_transformer_block.8} parent=39 // pred_region
          %278 = dma.done [#allocation6], 16
        $region52: #{right_transformer_block.8} parent=39 // pred_fallthru
          _
        // Predicated region
        $region53: #{right_transformer_block.8} parent=39 // pred_check
          %p279 = pneg %p122
        $region54: #{right_transformer_block.8} parent=39 // pred_check_branch
          %281 = sbr.rel (%p279) target = $region56
        $region55: #{right_transformer_block.8} parent=39 // pred_region
          %282 = dma.done [#allocation9], 256
        $region56: #{right_transformer_block.8} parent=39 // pred_fallthru
          _
        // Predicated region
        $region57: #{right_transformer_block.8} parent=39 // pred_check
          %p283 = pneg %p143
        $region58: #{right_transformer_block.8} parent=39 // pred_check_branch
          %285 = sbr.rel (%p283) target = $region60
        $region59: #{right_transformer_block.8} parent=39 // pred_region
          %286 = dma.done [#allocation9], 16
        $region60: #{right_transformer_block.8} parent=39 // pred_fallthru
          _
        %s287 = sand.u32 %s46, 1
        %s288 = scalar_lea.sflag [#allocation3], %s287
        %s289 = sand.u32 %s46, 1
        %s290 = smul.addr %s289, 8
        %s291 = scalar_lea.vmem [#allocation2], %s290
        %p292 = pneg %p59
        %p293 = pneg %p56
        %p294 = pneg %p80
        %p295 = pneg %p77
        %p296 = pneg %p101
        %p297 = pneg %p98
        %p298 = pneg %p122
        %p299 = pneg %p119
        %p300 = pneg %p143
        %p301 = pneg %p140
        %p302 = pneg %p171
        %p303 = pneg %p168
        %s304 = sand.u32 %s158, 1
        %s305 = scalar_lea.sflag [#allocation4], %s304
        %s306 = sand.u32 %s158, 1
        %s307 = smul.addr %s306, 4
        %s308 = scalar_lea.vmem [#allocation11], %s307
        %v310 = vld [vmem:[%s266] sm:$0xff]
        %vm311 = vcmask 261120
        %v312 = vsel %vm311, %v310, 0.0
        %313 = vadd.xlane.f32.xlu0 %v312
        %v314 = vpop.xlane.xlu0 %313
        %v315 = vrcp.pop 32.0
        %v316 = vmul.f32 %v314, %v315
        %v317 = vsub.f32 %v310, %v316
        %v318 = vmul.f32 %v317, %v317
        %v319 = vsel %vm311, %v318, 0.0
        %320 = vadd.xlane.f32.xlu0 %v319
        %v321 = vpop.xlane.xlu0 %320
        %v322 = vmul.f32 %v321, %v315
        %v323 = vadd.f32 %v322, 1e-06
        %v324 = vrsqrt.pop %v323
        %v325 = vmul.f32 %v317, %v324
        %v326 = vld [vmem:[#allocation5] sm:$0x1]
        %v328 = vlaneseq
        %v329 = vshrl.u32 %v328, 7
        %v330 = vsub.s32 0, %v329
        %v331 = vrot.slane %v326, %v330
        %v333 = vmul.f32 %v325, %v331
        %v334 = vld [vmem:[#allocation7] sm:$0x1]
        %v336 = vlaneseq
        %v337 = vshrl.u32 %v336, 7
        %v338 = vsub.s32 0, %v337
        %v339 = vrot.slane %v334, %v338
        %v341 = vadd.f32 %v333, %v339
        %v342 = vpack.c.bf16 %v341, %v341
        %v343 = vld [vmem:[#allocation8] sm:$0xf]
        %v344 = vld [vmem:[#allocation8 + $0x4] sm:$0xf]
        %v345 = vld [vmem:[#allocation8 + $0x8] sm:$0xf]
        %v346 = vld [vmem:[#allocation8 + $0xc] sm:$0xf]
        %v347 = vld [vmem:[#allocation10] sm:$0x1]
        %v349 = vlaneseq
        %v350 = vshrl.u32 %v349, 7
        %v351 = vsub.s32 0, %v350
        %v352 = vrot.slane %v347, %v351
        %v358 = vunpack.c.l.b16 %v343
        %v359 = vunpack.c.l.b16 %v344
        %v360 = vunpack.c.l.b16 %v345
        %v361 = vunpack.c.l.b16 %v346
        %v362 = vpack.c.b16 %v359, %v358
        %v363 = vpack.c.b16 %v361, %v360
        %v367 = vsel %vm311, %v342, 0
        %369 = vmatprep.subr.bf16.mxu0 0
        %370 = vmatpush1.bf16.msra.mxu0 %v362
        %371 = vmatprep.subr.bf16.mxu0 0
        %372 = vmatpush1.bf16.msra.mxu0 %v363
        %373 = vmatprep.subr.bf16.mxu0 0
        %374 = vmatpush1.bf16.msra.mxu0 0
        %375 = vmatprep.subr.bf16.mxu0 0
        %376 = vmatpush1.bf16.msra.mxu0 0
        %377 = vmatprep.subr.bf16.mxu0 0
        %378 = vmatpush1.bf16.msra.mxu0 0
        %379 = vmatprep.subr.bf16.mxu0 0
        %380 = vmatpush1.bf16.msra.mxu0 0
        %381 = vmatprep.subr.bf16.mxu0 0
        %382 = vmatpush1.bf16.msra.mxu0 0
        %383 = vmatprep.subr.bf16.mxu0 0
        %384 = vmatpush1.bf16.msra.mxu0 0
        %385 = vmatprep.subr.bf16.mxu0 0
        %386 = vmatpush1.bf16.msra.mxu0 0
        %387 = vmatprep.subr.bf16.mxu0 0
        %388 = vmatpush1.bf16.msra.mxu0 0
        %389 = vmatprep.subr.bf16.mxu0 0
        %390 = vmatpush1.bf16.msra.mxu0 0
        %391 = vmatprep.subr.bf16.mxu0 0
        %392 = vmatpush1.bf16.msra.mxu0 0
        %393 = vmatprep.subr.bf16.mxu0 0
        %394 = vmatpush1.bf16.msra.mxu0 0
        %395 = vmatprep.subr.bf16.mxu0 0
        %396 = vmatpush1.bf16.msra.mxu0 0
        %397 = vmatprep.subr.bf16.mxu0 0
        %398 = vmatpush1.bf16.msra.mxu0 0
        %399 = vmatprep.subr.bf16.mxu0 0
        %400 = vmatpush1.bf16.msra.mxu0 0
        %401 = vmatprep.mubr.bf16.mxu0 0
        %402 = vmatmul.mubr.bf16.gmra.mrb[0].mxu0 %v367
        %v403 = vpop.f32.mrb[0].mxu0
        %v404 = vadd.f32 %v352, %v403
        %v405 = vpop.f32.mrb[0].mxu0
        %v406 = vpop.f32.mrb[0].mxu0
        %v407 = vpop.f32.mrb[0].mxu0
        %408 = vdwg.mxu0
        %v409 = vpack.c.bf16 %v404, %v404
        %vm410 = vcmask 257024
        %411 = vst.msk [vmem:[%s308] sm:$0xf] %vm410, %v409
        %s412 = sand.u32 %s158, 1
        %s413 = scalar_lea.sflag [#allocation4], %s412
        %s414 = sand.u32 %s158, 1
        %s415 = smul.addr %s414, 4
        %s416 = scalar_lea.vmem [#allocation11], %s415
        // Predicated region
        $region61: #{right_transformer_block.8} parent=39 // pred_check
          %p417 = pneg %p168
        $region62: #{right_transformer_block.8} parent=39 // pred_check_branch
          %419 = sbr.rel (%p417) target = $region64
        $region63: #{right_transformer_block.8} parent=39 // pred_region
          %s421 = ssub.s32 64, 64
          %422 = vsyncadd %s413, %s421
          %s423 = sadd.s32 %s29, %s28
          %s424 = smul.addr %s423, 64
          %s425 = scalar_lea.hbm %s5, %s424
          %s427 = sshll.u32 %s416, 4
          %s428 = int_to_ptr.vmem [resolvable:$true] %s427
          %430 = dma.vmem_to_hbm [thread:$0]  %s428, 64, %s425, %s413
        $region64: #{right_transformer_block.8} parent=39 // pred_fallthru
          _
      $region40: #{right_transformer_block.8} parent=5 // pred_fallthru
        _
      %p431 = scmp.le.s32.totalorder 2, %s19
      // Predicated region
      $region65: #{right_transformer_block.8} parent=5 // pred_check
        %p432 = pneg %p431
      $region66: #{right_transformer_block.8} parent=5 // pred_check_branch
        %434 = sbr.rel (%p432) target = $region68
      $region67: #{right_transformer_block.8} parent=5 // pred_region
        %s435 = ssub.s32 %s19, 2
        // Predicated region
        $region69: #{right_transformer_block.8} parent=67 // pred_check
          %p436 = pneg %p174
        $region70: #{right_transformer_block.8} parent=67 // pred_check_branch
          %438 = sbr.rel (%p436) target = $region72
        $region71: #{right_transformer_block.8} parent=67 // pred_region
          %s439 = sand.u32 %s159, 1
          %s440 = scalar_lea.sflag [#allocation4], %s439
          %s441 = sand.u32 %s159, 1
          %s442 = smul.addr %s441, 4
          %s443 = scalar_lea.vmem [#allocation11], %s442
          %444 = dma.done %s440, 64
        $region72: #{right_transformer_block.8} parent=67 // pred_fallthru
          _
      $region68: #{right_transformer_block.8} parent=5 // pred_fallthru
        _
    $region6: #{right_transformer_block.8} parent=1 // loop_footer
      %s23 = sadd.s32 1, %s19
    $region7: #{right_transformer_block.8} parent=1 // loop_footer_branch
      %18 = sbr.rel target = $region3
    $region8: #{right_transformer_block.8} parent=1 // loop_exit
      _
    %445 = vsyncpa [#allocation3], 1
    %s446 = scalar_lea.sflag [#allocation3], 1
    %447 = vsyncpa %s446, 1
    %448 = vsyncpa [#allocation6], 1
    %449 = vsyncpa [#allocation9], 1
    %450 = vsyncpa [#allocation4], 1
    %s451 = scalar_lea.sflag [#allocation4], 1
    %452 = vsyncpa %s451, 1

// kernel: right_transformer_block.7
$region0: #{right_transformer_block.7}
  #allocation0 [shape = 'u32[]', space=smem, size = 0x4, offset = 0x4, fixed_abs, tag = 'smem constant byte address 0x4 - core index']
  #allocation1 [shape = 'u32[144,128]{1,0:T(1,128)}', space=vmem, size = 0x12000, scoped, tag = 'internal scratch']
  #allocation2 [shape = 'f32[8,4]{1,0:T(8,128)}', space=vmem, size = 0x1000, scoped, tag = 'scratch operand']
  #allocation3 [shape = 'f32[8,4]{1,0:T(8,128)}', space=vmem, size = 0x1000, scoped, tag = 'scratch operand']
  #allocation4 [shape = 'f32[8,32]{1,0:T(8,128)}', space=vmem, size = 0x1000, scoped, tag = 'scratch operand']
  %s0 = inlined_call_operand.hbm [shape: bf16[2,8,32], index: 0, kind: input, shape index: {}]
  %s1 = inlined_call_operand.hbm [shape: bf16[2,8,32], index: 1, kind: input, shape index: {}]
  %s2 = inlined_call_operand.hbm [shape: bf16[2,8,32], index: 2, kind: input, shape index: {}]
  %s3 = inlined_call_operand.hbm [shape: bf16[2,8,8], index: 3, kind: input, shape index: {}]
  %s4 = inlined_call_operand.hbm [shape: bf16[32,36], index: 4, kind: input, shape index: {}]
  %s5 = inlined_call_operand.hbm [shape: bf16[32,32], index: 5, kind: input, shape index: {}]
  %s6 = inlined_call_operand.hbm [shape: f32[1,32], index: 6, kind: input, shape index: {}]
  %s7 = inlined_call_operand.hbm [shape: f32[2,8,32], index: 7, kind: input, shape index: {}]
  %s8 = inlined_call_operand.hbm [shape: f32[2,8,32], index: 8, kind: output, shape index: {}]
  %s9 = sld [smem:[#allocation0]]
  $region105: #{right_transformer_block.7} parent=0
    _
  %s11 = ssub.s32 1, %s9
  %s12 = scalar_select 0, %s11, %s9
  $region1: #{right_transformer_block.7} parent=0
    #allocation5 [shape = 'u8[4096]{0}', space=vmem, size = 0x1000, scoped, tag = 'input window, operand 0']
    #allocation6 [shape = 's32[2]{0}', space=sflag, size = 0x8, scoped, tag = 'scoped memory for right_transformer_block.7']
    #allocation7 [shape = 's32[2]{0}', space=sflag, size = 0x8, scoped, tag = 'scoped memory for right_transformer_block.7']
    #allocation8 [shape = 'u8[4096]{0}', space=vmem, size = 0x1000, scoped, tag = 'input window, operand 1']
    #allocation9 [shape = 's32[2]{0}', space=sflag, size = 0x8, scoped, tag = 'scoped memory for right_transformer_block.7']
    #allocation10 [shape = 'u8[4096]{0}', space=vmem, size = 0x1000, scoped, tag = 'input window, operand 2']
    #allocation11 [shape = 'u8[4096]{0}', space=vmem, size = 0x1000, scoped, tag = 'input window, operand 3']
    #allocation12 [shape = 's32[2]{0}', space=sflag, size = 0x8, scoped, tag = 'scoped memory for right_transformer_block.7']
    #allocation13 [shape = 'u8[8192]{0}', space=vmem, size = 0x2000, scoped, tag = 'input window, operand 4, single buffered']
    #allocation14 [shape = 'u8[8192]{0}', space=vmem, size = 0x2000, scoped, tag = 'input window, operand 5, single buffered']
    #allocation15 [shape = 's32[1]{0}', space=sflag, size = 0x4, scoped, tag = 'scoped memory for right_transformer_block.7']
    #allocation16 [shape = 'u8[512]{0}', space=vmem, size = 0x400, scoped, tag = 'input window, operand 6, single buffered']
    #allocation17 [shape = 'u8[8192]{0}', space=vmem, size = 0x2000, scoped, tag = 'input window, operand 7']
    #allocation18 [shape = 's32[2]{0}', space=sflag, size = 0x8, scoped, tag = 'scoped memory for right_transformer_block.7']
    #allocation19 [shape = 'u8[8192]{0}', space=vmem, size = 0x2000, scoped, tag = 'output window, operand 0']
    %13 = vsyncpa [#allocation6], 0
    %s14 = scalar_lea.sflag [#allocation6], 1
    %15 = vsyncpa %s14, 0
    %16 = vsyncpa [#allocation9], 0
    %s17 = scalar_lea.sflag [#allocation9], 1
    %18 = vsyncpa %s17, 0
    %19 = vsyncpa [#allocation12], 0
    %s20 = scalar_lea.sflag [#allocation12], 1
    %21 = vsyncpa %s20, 0
    %22 = vsyncpa [#allocation15], 0
    %23 = vsyncpa [#allocation18], 0
    %s24 = scalar_lea.sflag [#allocation18], 1
    %25 = vsyncpa %s24, 0
    %26 = vsyncpa [#allocation7], 0
    %s27 = scalar_lea.sflag [#allocation7], 1
    %28 = vsyncpa %s27, 0
    loop: start=0, step=1, limit=4
    $region2: #{right_transformer_block.7} parent=1 // loop_pre_header
      _
    $region3: #{right_transformer_block.7} parent=1 // loop_header
      %s30 = sphi 0, %s34
      %p31 = scmp.ge.s32.totalorder %s30, 4
      %s37 = sphi 0, %s56
      %s38 = sphi 0, %s52
      %s39 = sphi 0, %s48
      %s40 = sphi 0, %s37
      %s41 = sphi 0, %s38
      %s42 = sphi 0, %s39
      %s43 = sphi 0, %s40
      %s44 = sphi 0, %s41
      %s45 = sphi 0, %s42
      %s61 = sphi 0, %s63
      %s64 = sphi 0, %s61
      %s65 = sphi 0, %s64
      %s81 = sphi 0, %s65
      %s89 = sphi 0, %s91
      %s92 = sphi 0, %s89
      %s93 = sphi 0, %s92
      %s109 = sphi 0, %s93
      %s117 = sphi 0, %s119
      %s120 = sphi 0, %s117
      %s121 = sphi 0, %s120
      %s137 = sphi 0, %s121
      %s147 = sphi 0, %s149
      %s150 = sphi 0, %s147
      %s151 = sphi 0, %s150
      %s167 = sphi 0, %s151
      %s171 = sphi 0, %s171
      %s173 = sphi 0, %s171
      %s174 = sphi 0, %s173
      %s188 = sphi 0, %s174
      %s192 = sphi 0, %s192
      %s194 = sphi 0, %s192
      %s195 = sphi 0, %s194
      %s209 = sphi 0, %s195
      %s213 = sphi 0, %s213
      %s215 = sphi 0, %s213
      %s216 = sphi 0, %s215
      %s230 = sphi 0, %s216
      %s238 = sphi 0, %s240
      %s241 = sphi 0, %s238
      %s242 = sphi 0, %s241
      %s258 = sphi 0, %s242
      %s266 = sphi 0, %s268
      %s269 = sphi 0, %s266
      %s270 = sphi 0, %s269
      %s286 = sphi 0, %s270
    $region4: #{right_transformer_block.7} parent=1 // loop_header_branch
      %33 = sbr.rel (%p31) target = $region8
    $region5: #{right_transformer_block.7} parent=1 // loop_body
      %s35 = ssub.s32 %s30, 1
      %s36 = ssub.s32 %s30, 2
      %s46 = sadd.s32 1, %s39
      %p47 = scmp.ge.s32.totalorder %s46, 1
      %s48 = scalar_select %p47, 0, %s46
      %s49 = sadd.s32 1, %s38
      %s50 = scalar_select %p47, %s49, %s38
      %p51 = scmp.ge.s32.totalorder %s50, 1
      %s52 = scalar_select %p51, 0, %s50
      %s53 = sadd.s32 1, %s37
      %s54 = scalar_select %p51, %s53, %s37
      %p55 = scmp.ge.s32.totalorder %s54, 2
      %s56 = scalar_select %p55, 0, %s54
      %s57 = ssub.s32 %s37, %s56
      %s58 = ssub.s32 %s38, %s52
      %s59 = sor.u32 %s57, %s58
      %p60 = scmp.eq.s32.totalorder %s59, 0
      %s62 = sadd.s32 %s61, 1
      %s63 = scalar_select %p60, %s61, %s62
      %p66 = pneg %p60
      %p67 = scmp.eq.s32.totalorder %s30, 1
      %p68 = por %p66, %p67
      %p69 = scmp.ne.s32.totalorder %s61, %s64
      %p70 = scmp.eq.s32.totalorder %s30, 0
      %p71 = por %p69, %p70
      %p72 = scmp.ne.s32.totalorder %s61, %s64
      %p73 = scmp.eq.s32.totalorder %s35, 1
      %p74 = por %p72, %p73
      %p75 = scmp.ne.s32.totalorder %s64, %s65
      %p76 = scmp.eq.s32.totalorder %s35, 0
      %p77 = por %p75, %p76
      %p78 = scmp.ne.s32.totalorder %s64, %s65
      %p79 = scmp.eq.s32.totalorder %s36, 1
      %p80 = por %p78, %p79
      %p82 = scmp.ne.s32.totalorder %s65, %s81
      %p83 = scmp.eq.s32.totalorder %s36, 0
      %p84 = por %p82, %p83
      %s85 = ssub.s32 %s37, %s56
      %s86 = ssub.s32 %s39, %s48
      %s87 = sor.u32 %s85, %s86
      %p88 = scmp.eq.s32.totalorder %s87, 0
      %s90 = sadd.s32 %s89, 1
      %s91 = scalar_select %p88, %s89, %s90
      %p94 = pneg %p88
      %p95 = scmp.eq.s32.totalorder %s30, 1
      %p96 = por %p94, %p95
      %p97 = scmp.ne.s32.totalorder %s89, %s92
      %p98 = scmp.eq.s32.totalorder %s30, 0
      %p99 = por %p97, %p98
      %p100 = scmp.ne.s32.totalorder %s89, %s92
      %p101 = scmp.eq.s32.totalorder %s35, 1
      %p102 = por %p100, %p101
      %p103 = scmp.ne.s32.totalorder %s92, %s93
      %p104 = scmp.eq.s32.totalorder %s35, 0
      %p105 = por %p103, %p104
      %p106 = scmp.ne.s32.totalorder %s92, %s93
      %p107 = scmp.eq.s32.totalorder %s36, 1
      %p108 = por %p106, %p107
      %p110 = scmp.ne.s32.totalorder %s93, %s109
      %p111 = scmp.eq.s32.totalorder %s36, 0
      %p112 = por %p110, %p111
      %s113 = ssub.s32 %s37, %s56
      %s114 = ssub.s32 %s39, %s48
      %s115 = sor.u32 %s113, %s114
      %p116 = scmp.eq.s32.totalorder %s115, 0
      %s118 = sadd.s32 %s117, 1
      %s119 = scalar_select %p116, %s117, %s118
      %p122 = pneg %p116
      %p123 = scmp.eq.s32.totalorder %s30, 1
      %p124 = por %p122, %p123
      %p125 = scmp.ne.s32.totalorder %s117, %s120
      %p126 = scmp.eq.s32.totalorder %s30, 0
      %p127 = por %p125, %p126
      %p128 = scmp.ne.s32.totalorder %s117, %s120
      %p129 = scmp.eq.s32.totalorder %s35, 1
      %p130 = por %p128, %p129
      %p131 = scmp.ne.s32.totalorder %s120, %s121
      %p132 = scmp.eq.s32.totalorder %s35, 0
      %p133 = por %p131, %p132
      %p134 = scmp.ne.s32.totalorder %s120, %s121
      %p135 = scmp.eq.s32.totalorder %s36, 1
      %p136 = por %p134, %p135
      %p138 = scmp.ne.s32.totalorder %s121, %s137
      %p139 = scmp.eq.s32.totalorder %s36, 0
      %p140 = por %p138, %p139
      %s141 = ssub.s32 %s37, %s56
      %s142 = ssub.s32 %s38, %s52
      %s143 = sor.u32 %s141, %s142
      %s144 = ssub.s32 %s39, %s48
      %s145 = sor.u32 %s143, %s144
      %p146 = scmp.eq.s32.totalorder %s145, 0
      %s148 = sadd.s32 %s147, 1
      %s149 = scalar_select %p146, %s147, %s148
      %p152 = pneg %p146
      %p153 = scmp.eq.s32.totalorder %s30, 1
      %p154 = por %p152, %p153
      %p155 = scmp.ne.s32.totalorder %s147, %s150
      %p156 = scmp.eq.s32.totalorder %s30, 0
      %p157 = por %p155, %p156
      %p158 = scmp.ne.s32.totalorder %s147, %s150
      %p159 = scmp.eq.s32.totalorder %s35, 1
      %p160 = por %p158, %p159
      %p161 = scmp.ne.s32.totalorder %s150, %s151
      %p162 = scmp.eq.s32.totalorder %s35, 0
      %p163 = por %p161, %p162
      %p164 = scmp.ne.s32.totalorder %s150, %s151
      %p165 = scmp.eq.s32.totalorder %s36, 1
      %p166 = por %p164, %p165
      %p168 = scmp.ne.s32.totalorder %s151, %s167
      %p169 = scmp.eq.s32.totalorder %s36, 0
      %p170 = por %p168, %p169
      %s172 = sadd.s32 %s171, 1
      %p175 = scmp.eq.s32.totalorder %s30, 1
      %p176 = scmp.ne.s32.totalorder %s171, %s173
      %p177 = scmp.eq.s32.totalorder %s30, 0
      %p178 = por %p176, %p177
      %p179 = scmp.ne.s32.totalorder %s171, %s173
      %p180 = scmp.eq.s32.totalorder %s35, 1
      %p181 = por %p179, %p180
      %p182 = scmp.ne.s32.totalorder %s173, %s174
      %p183 = scmp.eq.s32.totalorder %s35, 0
      %p184 = por %p182, %p183
      %p185 = scmp.ne.s32.totalorder %s173, %s174
      %p186 = scmp.eq.s32.totalorder %s36, 1
      %p187 = por %p185, %p186
      %p189 = scmp.ne.s32.totalorder %s174, %s188
      %p190 = scmp.eq.s32.totalorder %s36, 0
      %p191 = por %p189, %p190
      %s193 = sadd.s32 %s192, 1
      %p196 = scmp.eq.s32.totalorder %s30, 1
      %p197 = scmp.ne.s32.totalorder %s192, %s194
      %p198 = scmp.eq.s32.totalorder %s30, 0
      %p199 = por %p197, %p198
      %p200 = scmp.ne.s32.totalorder %s192, %s194
      %p201 = scmp.eq.s32.totalorder %s35, 1
      %p202 = por %p200, %p201
      %p203 = scmp.ne.s32.totalorder %s194, %s195
      %p204 = scmp.eq.s32.totalorder %s35, 0
      %p205 = por %p203, %p204
      %p206 = scmp.ne.s32.totalorder %s194, %s195
      %p207 = scmp.eq.s32.totalorder %s36, 1
      %p208 = por %p206, %p207
      %p210 = scmp.ne.s32.totalorder %s195, %s209
      %p211 = scmp.eq.s32.totalorder %s36, 0
      %p212 = por %p210, %p211
      %s214 = sadd.s32 %s213, 1
      %p217 = scmp.eq.s32.totalorder %s30, 1
      %p218 = scmp.ne.s32.totalorder %s213, %s215
      %p219 = scmp.eq.s32.totalorder %s30, 0
      %p220 = por %p218, %p219
      %p221 = scmp.ne.s32.totalorder %s213, %s215
      %p222 = scmp.eq.s32.totalorder %s35, 1
      %p223 = por %p221, %p222
      %p224 = scmp.ne.s32.totalorder %s215, %s216
      %p225 = scmp.eq.s32.totalorder %s35, 0
      %p226 = por %p224, %p225
      %p227 = scmp.ne.s32.totalorder %s215, %s216
      %p228 = scmp.eq.s32.totalorder %s36, 1
      %p229 = por %p227, %p228
      %p231 = scmp.ne.s32.totalorder %s216, %s230
      %p232 = scmp.eq.s32.totalorder %s36, 0
      %p233 = por %p231, %p232
      %s234 = ssub.s32 %s37, %s56
      %s235 = ssub.s32 %s38, %s52
      %s236 = sor.u32 %s234, %s235
      %p237 = scmp.eq.s32.totalorder %s236, 0
      %s239 = sadd.s32 %s238, 1
      %s240 = scalar_select %p237, %s238, %s239
      %p243 = pneg %p237
      %p244 = scmp.eq.s32.totalorder %s30, 1
      %p245 = por %p243, %p244
      %p246 = scmp.ne.s32.totalorder %s238, %s241
      %p247 = scmp.eq.s32.totalorder %s30, 0
      %p248 = por %p246, %p247
      %p249 = scmp.ne.s32.totalorder %s238, %s241
      %p250 = scmp.eq.s32.totalorder %s35, 1
      %p251 = por %p249, %p250
      %p252 = scmp.ne.s32.totalorder %s241, %s242
      %p253 = scmp.eq.s32.totalorder %s35, 0
      %p254 = por %p252, %p253
      %p255 = scmp.ne.s32.totalorder %s241, %s242
      %p256 = scmp.eq.s32.totalorder %s36, 1
      %p257 = por %p255, %p256
      %p259 = scmp.ne.s32.totalorder %s242, %s258
      %p260 = scmp.eq.s32.totalorder %s36, 0
      %p261 = por %p259, %p260
      %s262 = ssub.s32 %s37, %s56
      %s263 = ssub.s32 %s38, %s52
      %s264 = sor.u32 %s262, %s263
      %p265 = scmp.eq.s32.totalorder %s264, 0
      %s267 = sadd.s32 %s266, 1
      %s268 = scalar_select %p265, %s266, %s267
      %p271 = pneg %p265
      %p272 = scmp.eq.s32.totalorder %s30, 1
      %p273 = por %p271, %p272
      %p274 = scmp.ne.s32.totalorder %s266, %s269
      %p275 = scmp.eq.s32.totalorder %s30, 0
      %p276 = por %p274, %p275
      %p277 = scmp.ne.s32.totalorder %s266, %s269
      %p278 = scmp.eq.s32.totalorder %s35, 1
      %p279 = por %p277, %p278
      %p280 = scmp.ne.s32.totalorder %s269, %s270
      %p281 = scmp.eq.s32.totalorder %s35, 0
      %p282 = por %p280, %p281
      %p283 = scmp.ne.s32.totalorder %s269, %s270
      %p284 = scmp.eq.s32.totalorder %s36, 1
      %p285 = por %p283, %p284
      %p287 = scmp.ne.s32.totalorder %s270, %s286
      %p288 = scmp.eq.s32.totalorder %s36, 0
      %p289 = por %p287, %p288
      %p290 = scmp.le.s32.totalorder 1, %s30
      %p291 = scmp.lt.s32.totalorder %s30, 3
      %p292 = pnand %p290, %p291
      %p293 = pneg %p292
      // Predicated region
      $region9: #{right_transformer_block.7} parent=5 // pred_check
        _
      $region10: #{right_transformer_block.7} parent=5 // pred_check_branch
        %295 = sbr.rel (%p292) target = $region12
      $region11: #{right_transformer_block.7} parent=5 // pred_region
        %s296 = ssub.s32 %s30, 1
        // Predicated region
        $region13: #{right_transformer_block.7} parent=11 // pred_check
          %p297 = pneg %p184
        $region14: #{right_transformer_block.7} parent=11 // pred_check_branch
          %299 = sbr.rel (%p297) target = $region16
        $region15: #{right_transformer_block.7} parent=11 // pred_region
          %s301 = ssub.s32 256, 256
          %302 = vsyncadd [#allocation12], %s301
          %s303 = sshll.u32 [#allocation13], 4
          %s304 = int_to_ptr.vmem [resolvable:$true] %s303
          %309 = dma.hbm_to_vmem [thread:$0]  %s4, 256, %s304, [#allocation12], 64, 64, 4
        $region16: #{right_transformer_block.7} parent=11 // pred_fallthru
          _
        // Predicated region
        $region17: #{right_transformer_block.7} parent=11 // pred_check
          %p310 = pneg %p205
        $region18: #{right_transformer_block.7} parent=11 // pred_check_branch
          %312 = sbr.rel (%p310) target = $region20
        $region19: #{right_transformer_block.7} parent=11 // pred_region
          %s314 = ssub.s32 256, 256
          %315 = vsyncadd [#allocation15], %s314
          %s316 = sshll.u32 [#allocation14], 4
          %s317 = int_to_ptr.vmem [resolvable:$true] %s316
          %322 = dma.hbm_to_vmem [thread:$0]  %s5, 256, %s317, [#allocation15], 64, 64, 4
        $region20: #{right_transformer_block.7} parent=11 // pred_fallthru
          _
        // Predicated region
        $region21: #{right_transformer_block.7} parent=11 // pred_check
          %p323 = pneg %p226
        $region22: #{right_transformer_block.7} parent=11 // pred_check_branch
          %325 = sbr.rel (%p323) target = $region24
        $region23: #{right_transformer_block.7} parent=11 // pred_region
          %s327 = ssub.s32 16, 16
          %328 = vsyncadd [#allocation15], %s327
          %s330 = sshll.u32 [#allocation16], 4
          %s331 = int_to_ptr.vmem [resolvable:$true] %s330
          %333 = dma.hbm_to_vmem [thread:$0]  %s6, 16, %s331, [#allocation15]
        $region24: #{right_transformer_block.7} parent=11 // pred_fallthru
          _
      $region12: #{right_transformer_block.7} parent=5 // pred_fallthru
        _
      %p334 = scmp.lt.s32.totalorder %s30, 2
      // Predicated region
      $region25: #{right_transformer_block.7} parent=5 // pred_check
        %p335 = pneg %p334
      $region26: #{right_transformer_block.7} parent=5 // pred_check_branch
        %337 = sbr.rel (%p335) target = $region28
      $region27: #{right_transformer_block.7} parent=5 // pred_region
        // Predicated region
        $region29: #{right_transformer_block.7} parent=27 // pred_check
          %p338 = pneg %p71
        $region30: #{right_transformer_block.7} parent=27 // pred_check_branch
          %340 = sbr.rel (%p338) target = $region32
        $region31: #{right_transformer_block.7} parent=27 // pred_region
          %s341 = sand.u32 %s61, 1
          %s342 = scalar_lea.sflag [#allocation6], %s341
          %s343 = sand.u32 %s61, 1
          %s344 = smul.addr %s343, 4
          %s345 = scalar_lea.vmem [#allocation5], %s344
          %s347 = ssub.s32 64, 64
          %348 = vsyncadd %s342, %s347
          %s349 = sadd.s32 %s38, %s37
          %s350 = smul.addr %s349, 64
          %s351 = scalar_lea.hbm %s0, %s350
          %s353 = sshll.u32 %s345, 4
          %s354 = int_to_ptr.vmem [resolvable:$true] %s353
          %356 = dma.hbm_to_vmem [thread:$0]  %s351, 64, %s354, %s342
        $region32: #{right_transformer_block.7} parent=27 // pred_fallthru
          _
        // Predicated region
        $region33: #{right_transformer_block.7} parent=27 // pred_check
          %p357 = pneg %p99
        $region34: #{right_transformer_block.7} parent=27 // pred_check_branch
          %359 = sbr.rel (%p357) target = $region36
        $region35: #{right_transformer_block.7} parent=27 // pred_region
          %s360 = sand.u32 %s30, 1
          %s361 = scalar_lea.sflag [#allocation9], %s360
          %s362 = sand.u32 %s89, 1
          %s363 = smul.addr %s362, 4
          %s364 = scalar_lea.vmem [#allocation8], %s363
          %s366 = ssub.s32 64, 64
          %367 = vsyncadd %s361, %s366
          %s368 = sadd.s32 %s39, %s37
          %s369 = smul.addr %s368, 64
          %s370 = scalar_lea.hbm %s1, %s369
          %s372 = sshll.u32 %s364, 4
          %s373 = int_to_ptr.vmem [resolvable:$true] %s372
          %375 = dma.hbm_to_vmem [thread:$0]  %s370, 64, %s373, %s361
        $region36: #{right_transformer_block.7} parent=27 // pred_fallthru
          _
        // Predicated region
        $region37: #{right_transformer_block.7} parent=27 // pred_check
          %p376 = pneg %p127
        $region38: #{right_transformer_block.7} parent=27 // pred_check_branch
          %378 = sbr.rel (%p376) target = $region40
        $region39: #{right_transformer_block.7} parent=27 // pred_region
          %s379 = sand.u32 %s30, 1
          %s380 = scalar_lea.sflag [#allocation9], %s379
          %s381 = sand.u32 %s117, 1
          %s382 = smul.addr %s381, 4
          %s383 = scalar_lea.vmem [#allocation10], %s382
          %s385 = ssub.s32 64, 64
          %386 = vsyncadd %s380, %s385
          %s387 = sadd.s32 %s39, %s37
          %s388 = smul.addr %s387, 64
          %s389 = scalar_lea.hbm %s2, %s388
          %s391 = sshll.u32 %s383, 4
          %s392 = int_to_ptr.vmem [resolvable:$true] %s391
          %394 = dma.hbm_to_vmem [thread:$0]  %s389, 64, %s392, %s380
        $region40: #{right_transformer_block.7} parent=27 // pred_fallthru
          _
        // Predicated region
        $region41: #{right_transformer_block.7} parent=27 // pred_check
          %p395 = pneg %p157
        $region42: #{right_transformer_block.7} parent=27 // pred_check_branch
          %397 = sbr.rel (%p395) target = $region44
        $region43: #{right_transformer_block.7} parent=27 // pred_region
          %s398 = sand.u32 %s30, 1
          %s399 = scalar_lea.sflag [#allocation12], %s398
          %s400 = sand.u32 %s147, 1
          %s401 = smul.addr %s400, 4
          %s402 = scalar_lea.vmem [#allocation11], %s401
          %s404 = ssub.s32 64, 64
          %405 = vsyncadd %s399, %s404
          %s406 = sadd.s32 %s39, %s38
          %s407 = sadd.s32 %s406, %s37
          %s408 = smul.addr %s407, 64
          %s409 = scalar_lea.hbm %s3, %s408
          %s411 = sshll.u32 %s402, 4
          %s412 = int_to_ptr.vmem [resolvable:$true] %s411
          %414 = dma.hbm_to_vmem [thread:$0]  %s409, 64, %s412, %s399
        $region44: #{right_transformer_block.7} parent=27 // pred_fallthru
          _
        // Predicated region
        $region45: #{right_transformer_block.7} parent=27 // pred_check
          %p415 = pneg %p248
        $region46: #{right_transformer_block.7} parent=27 // pred_check_branch
          %417 = sbr.rel (%p415) target = $region48
        $region47: #{right_transformer_block.7} parent=27 // pred_region
          %s418 = sand.u32 %s238, 1
          %s419 = scalar_lea.sflag [#allocation18], %s418
          %s420 = sand.u32 %s238, 1
          %s421 = smul.addr %s420, 8
          %s422 = scalar_lea.vmem [#allocation17], %s421
          %s424 = ssub.s32 128, 128
          %425 = vsyncadd %s419, %s424
          %s426 = sadd.s32 %s38, %s37
          %s427 = smul.addr %s426, 128
          %s428 = scalar_lea.hbm %s7, %s427
          %s430 = sshll.u32 %s422, 4
          %s431 = int_to_ptr.vmem [resolvable:$true] %s430
          %433 = dma.hbm_to_vmem [thread:$0]  %s428, 128, %s431, %s419
        $region48: #{right_transformer_block.7} parent=27 // pred_fallthru
          _
      $region28: #{right_transformer_block.7} parent=5 // pred_fallthru
        _
      %p434 = scmp.le.s32.totalorder 1, %s30
      %p435 = scmp.lt.s32.totalorder %s30, 3
      %p436 = pnand %p434, %p435
      %p437 = pneg %p436
      // Predicated region
      $region49: #{right_transformer_block.7} parent=5 // pred_check
        _
      $region50: #{right_transformer_block.7} parent=5 // pred_check_branch
        %439 = sbr.rel (%p436) target = $region52
      $region51: #{right_transformer_block.7} parent=5 // pred_region
        %s440 = ssub.s32 %s30, 1
        %s441 = sand.u32 %s64, 1
        %s442 = scalar_lea.sflag [#allocation6], %s441
        %s443 = sand.u32 %s64, 1
        %s444 = smul.addr %s443, 4
        %s445 = scalar_lea.vmem [#allocation5], %s444
        // Predicated region
        $region53: #{right_transformer_block.7} parent=51 // pred_check
          %p446 = pneg %p77
        $region54: #{right_transformer_block.7} parent=51 // pred_check_branch
          %448 = sbr.rel (%p446) target = $region56
        $region55: #{right_transformer_block.7} parent=51 // pred_region
          %449 = dma.done %s442, 64
        $region56: #{right_transformer_block.7} parent=51 // pred_fallthru
          _
        %s450 = sand.u32 %s35, 1
        %s451 = scalar_lea.sflag [#allocation9], %s450
        %s452 = sand.u32 %s92, 1
        %s453 = smul.addr %s452, 4
        %s454 = scalar_lea.vmem [#allocation8], %s453
        // Predicated region
        $region57: #{right_transformer_block.7} parent=51 // pred_check
          %p455 = pneg %p105
        $region58: #{right_transformer_block.7} parent=51 // pred_check_branch
          %457 = sbr.rel (%p455) target = $region60
        $region59: #{right_transformer_block.7} parent=51 // pred_region
          %458 = dma.done %s451, 64
        $region60: #{right_transformer_block.7} parent=51 // pred_fallthru
          _
        %s459 = sand.u32 %s35, 1
        %s460 = scalar_lea.sflag [#allocation9], %s459
        %s461 = sand.u32 %s120, 1
        %s462 = smul.addr %s461, 4
        %s463 = scalar_lea.vmem [#allocation10], %s462
        // Predicated region
        $region61: #{right_transformer_block.7} parent=51 // pred_check
          %p464 = pneg %p133
        $region62: #{right_transformer_block.7} parent=51 // pred_check_branch
          %466 = sbr.rel (%p464) target = $region64
        $region63: #{right_transformer_block.7} parent=51 // pred_region
          %467 = dma.done %s460, 64
        $region64: #{right_transformer_block.7} parent=51 // pred_fallthru
          _
        %s468 = sand.u32 %s35, 1
        %s469 = scalar_lea.sflag [#allocation12], %s468
        %s470 = sand.u32 %s150, 1
        %s471 = smul.addr %s470, 4
        %s472 = scalar_lea.vmem [#allocation11], %s471
        // Predicated region
        $region65: #{right_transformer_block.7} parent=51 // pred_check
          %p473 = pneg %p163
        $region66: #{right_transformer_block.7} parent=51 // pred_check_branch
          %475 = sbr.rel (%p473) target = $region68
        $region67: #{right_transformer_block.7} parent=51 // pred_region
          %476 = dma.done %s469, 64
        $region68: #{right_transformer_block.7} parent=51 // pred_fallthru
          _
        // Predicated region
        $region69: #{right_transformer_block.7} parent=51 // pred_check
          %p477 = pneg %p184
        $region70: #{right_transformer_block.7} parent=51 // pred_check_branch
          %479 = sbr.rel (%p477) target = $region72
        $region71: #{right_transformer_block.7} parent=51 // pred_region
          %480 = dma.done [#allocation12], 256
        $region72: #{right_transformer_block.7} parent=51 // pred_fallthru
          _
        // Predicated region
        $region73: #{right_transformer_block.7} parent=51 // pred_check
          %p481 = pneg %p205
        $region74: #{right_transformer_block.7} parent=51 // pred_check_branch
          %483 = sbr.rel (%p481) target = $region76
        $region75: #{right_transformer_block.7} parent=51 // pred_region
          %484 = dma.done [#allocation15], 256
        $region76: #{right_transformer_block.7} parent=51 // pred_fallthru
          _
        // Predicated region
        $region77: #{right_transformer_block.7} parent=51 // pred_check
          %p485 = pneg %p226
        $region78: #{right_transformer_block.7} parent=51 // pred_check_branch
          %487 = sbr.rel (%p485) target = $region80
        $region79: #{right_transformer_block.7} parent=51 // pred_region
          %488 = dma.done [#allocation15], 16
        $region80: #{right_transformer_block.7} parent=51 // pred_fallthru
          _
        %s489 = sand.u32 %s241, 1
        %s490 = scalar_lea.sflag [#allocation18], %s489
        %s491 = sand.u32 %s241, 1
        %s492 = smul.addr %s491, 8
        %s493 = scalar_lea.vmem [#allocation17], %s492
        // Predicated region
        $region81: #{right_transformer_block.7} parent=51 // pred_check
          %p494 = pneg %p254
        $region82: #{right_transformer_block.7} parent=51 // pred_check_branch
          %496 = sbr.rel (%p494) target = $region84
        $region83: #{right_transformer_block.7} parent=51 // pred_region
          %497 = dma.done %s490, 128
        $region84: #{right_transformer_block.7} parent=51 // pred_fallthru
          _
        %s498 = sand.u32 %s64, 1
        %s499 = scalar_lea.sflag [#allocation6], %s498
        %s500 = sand.u32 %s64, 1
        %s501 = smul.addr %s500, 4
        %s502 = scalar_lea.vmem [#allocation5], %s501
        %p503 = pneg %p77
        %p504 = pneg %p74
        %s505 = sand.u32 %s35, 1
        %s506 = scalar_lea.sflag [#allocation9], %s505
        %s507 = sand.u32 %s92, 1
        %s508 = smul.addr %s507, 4
        %s509 = scalar_lea.vmem [#allocation8], %s508
        %p510 = pneg %p105
        %p511 = pneg %p102
        %s512 = sand.u32 %s35, 1
        %s513 = scalar_lea.sflag [#allocation9], %s512
        %s514 = sand.u32 %s120, 1
        %s515 = smul.addr %s514, 4
        %s516 = scalar_lea.vmem [#allocation10], %s515
        %p517 = pneg %p133
        %p518 = pneg %p130
        %s519 = sand.u32 %s35, 1
        %s520 = scalar_lea.sflag [#allocation12], %s519
        %s521 = sand.u32 %s150, 1
        %s522 = smul.addr %s521, 4
        %s523 = scalar_lea.vmem [#allocation11], %s522
        %p524 = pneg %p163
        %p525 = pneg %p160
        %p526 = pneg %p184
        %p527 = pneg %p181
        %p528 = pneg %p205
        %p529 = pneg %p202
        %p530 = pneg %p226
        %p531 = pneg %p223
        %s532 = sand.u32 %s241, 1
        %s533 = scalar_lea.sflag [#allocation18], %s532
        %s534 = sand.u32 %s241, 1
        %s535 = smul.addr %s534, 8
        %s536 = scalar_lea.vmem [#allocation17], %s535
        %p537 = pneg %p254
        %p538 = pneg %p251
        %p539 = pneg %p282
        %p540 = pneg %p279
        %s541 = sand.u32 %s269, 1
        %s542 = scalar_lea.sflag [#allocation7], %s541
        %s543 = sand.u32 %s269, 1
        %s544 = smul.addr %s543, 8
        %s545 = scalar_lea.vmem [#allocation19], %s544
        %p547 = scmp.eq.s32.totalorder %s42, 0
        // Predicated region
        $region85: #{right_transformer_block.7} parent=51 // pred_check
          %p548 = pneg %p547
        $region86: #{right_transformer_block.7} parent=51 // pred_check_branch
          %550 = sbr.rel (%p548) target = $region88
        $region87: #{right_transformer_block.7} parent=51 // pred_region
          %vm551 = vcmask 31744
          %552 = vst.msk [vmem:[#allocation2] sm:$0xff] %vm551, -1e+30
          %553 = vst.msk [vmem:[#allocation3] sm:$0xff] %vm551, 0.0
          %vm554 = vcmask 261120
          %555 = vst.msk [vmem:[#allocation4] sm:$0xff] %vm554, 0.0
        $region88: #{right_transformer_block.7} parent=51 // pred_fallthru
          _
        %v556 = vld [vmem:[%s445] sm:$0xf]
        %v557 = vunpack.c.l.bf16 %v556
        %v558 = vmul.f32 %v557, 0.35355338
        %v559 = vpack.c.bf16 %v558, %v558
        %v560 = vld [vmem:[%s454] sm:$0xf]
        %v561 = vld [vmem:[%s463] sm:$0xf]
        %v562 = vld [vmem:[%s472] sm:$0xf]
        %v563 = vunpack.c.l.bf16 %v562
        %v564 = vsub.f32 %v563, 1.0
        %v565 = vmul.f32 %v564, 1e+09
        %v566 = vld [vmem:[#allocation13] sm:$0xf]
        %v567 = vld [vmem:[#allocation13 + $0x4] sm:$0xf]
        %v568 = vld [vmem:[#allocation13 + $0x8] sm:$0xf]
        %v569 = vld [vmem:[#allocation13 + $0xc] sm:$0xf]
        %v574 = vunpack.c.l.b16 %v566
        %v575 = vunpack.c.l.b16 %v567
        %v576 = vunpack.c.l.b16 %v568
        %v577 = vunpack.c.l.b16 %v569
        %v578 = vpack.c.b16 %v575, %v574
        %v579 = vpack.c.b16 %v577, %v576
        %vm582 = vcmask 261120
        %v584 = vsel %vm582, %v559, 0
        %586 = vmatprep.subr.bf16.mxu0 0
        %587 = vmatpush1.bf16.msra.mxu0 %v578
        %588 = vmatprep.subr.bf16.mxu0 0
        %589 = vmatpush1.bf16.msra.mxu0 %v579
        %590 = vmatprep.subr.bf16.mxu0 0
        %591 = vmatpush1.bf16.msra.mxu0 0
        %592 = vmatprep.subr.bf16.mxu0 0
        %593 = vmatpush1.bf16.msra.mxu0 0
        %594 = vmatprep.subr.bf16.mxu0 0
        %595 = vmatpush1.bf16.msra.mxu0 0
        %596 = vmatprep.subr.bf16.mxu0 0
        %597 = vmatpush1.bf16.msra.mxu0 0
        %598 = vmatprep.subr.bf16.mxu0 0
        %599 = vmatpush1.bf16.msra.mxu0 0
        %600 = vmatprep.subr.bf16.mxu0 0
        %601 = vmatpush1.bf16.msra.mxu0 0
        %602 = vmatprep.subr.bf16.mxu0 0
        %603 = vmatpush1.bf16.msra.mxu0 0
        %604 = vmatprep.subr.bf16.mxu0 0
        %605 = vmatpush1.bf16.msra.mxu0 0
        %606 = vmatprep.subr.bf16.mxu0 0
        %607 = vmatpush1.bf16.msra.mxu0 0
        %608 = vmatprep.subr.bf16.mxu0 0
        %609 = vmatpush1.bf16.msra.mxu0 0
        %610 = vmatprep.subr.bf16.mxu0 0
        %611 = vmatpush1.bf16.msra.mxu0 0
        %612 = vmatprep.subr.bf16.mxu0 0
        %613 = vmatpush1.bf16.msra.mxu0 0
        %614 = vmatprep.subr.bf16.mxu0 0
        %615 = vmatpush1.bf16.msra.mxu0 0
        %616 = vmatprep.subr.bf16.mxu0 0
        %617 = vmatpush1.bf16.msra.mxu0 0
        %618 = vmatprep.mubr.bf16.mxu0 0
        %619 = vmatmul.mubr.bf16.gmra.mrb[0].mxu0 %v584
        %v620 = vpop.f32.mrb[0].mxu0
        %v621 = vadd.f32 0.0, %v620
        %v622 = vpop.f32.mrb[0].mxu0
        %v623 = vpop.f32.mrb[0].mxu0
        %v624 = vpop.f32.mrb[0].mxu0
        %625 = vdwg.mxu0
        %s626 = smul.u32 %s41, 8
        %s627 = smul.u32 %s42, 8
        %v628 = vlaneseq
        %v629 = vshrl.u32 %v628, 7
        %v630 = vstv %s626
        %v631 = vadd.s32 %v630, %v629
        %v632 = vlaneseq
        %v633 = vand.u32 %v632, 127
        %v634 = vstv %s627
        %v635 = vadd.s32 %v634, %v633
        %v636 = vsub.s32 %v635, %v631
        %vm637 = vcmp.gt.s32.totalorder %v636, 4294967292
        %v638 = vsel %vm637, %v636, 4294967292
        %vm639 = vcmp.lt.s32.totalorder %v638, 4
        %v640 = vsel %vm639, %v638, 4
        %v641 = vadd.s32 %v640, 4
        %vm642 = vcmp.eq.s32.totalorder %v641, 0
        %644 = vset.pattern.permute.xlu0 0
        %645 = vperm.xlu0 %644, %v621
        %v646 = vpop.permute.xlu0 %645
        %v648 = vsel %vm642, %v646, 0.0
        %vm649 = vcmask 64512
        %v650 = vsel %vm649, %v559, 0
        %v653 = vsel %vm649, %v560, 0
        %655 = vmatprep.subr.bf16.mxu0 0
        %656 = vmatpush1.bf16.xpose.msra.mxu0 %v653
        %657 = vmatprep.subr.bf16.mxu0 0
        %658 = vmatpush1.bf16.xpose.msra.mxu0 0
        %659 = vmatprep.subr.bf16.mxu0 0
        %660 = vmatpush1.bf16.xpose.msra.mxu0 0
        %661 = vmatprep.subr.bf16.mxu0 0
        %662 = vmatpush1.bf16.xpose.msra.mxu0 0
        %663 = vmatprep.subr.bf16.mxu0 0
        %664 = vmatpush1.bf16.xpose.msra.mxu0 0
        %665 = vmatprep.subr.bf16.mxu0 0
        %666 = vmatpush1.bf16.xpose.msra.mxu0 0
        %667 = vmatprep.subr.bf16.mxu0 0
        %668 = vmatpush1.bf16.xpose.msra.mxu0 0
        %669 = vmatprep.subr.bf16.mxu0 0
        %670 = vmatpush1.bf16.xpose.msra.mxu0 0
        %671 = vmatprep.subr.bf16.mxu0 0
        %672 = vmatpush1.bf16.xpose.msra.mxu0 0
        %673 = vmatprep.subr.bf16.mxu0 0
        %674 = vmatpush1.bf16.xpose.msra.mxu0 0
        %675 = vmatprep.subr.bf16.mxu0 0
        %676 = vmatpush1.bf16.xpose.msra.mxu0 0
        %677 = vmatprep.subr.bf16.mxu0 0
        %678 = vmatpush1.bf16.xpose.msra.mxu0 0
        %679 = vmatprep.subr.bf16.mxu0 0
        %680 = vmatpush1.bf16.xpose.msra.mxu0 0
        %681 = vmatprep.subr.bf16.mxu0 0
        %682 = vmatpush1.bf16.xpose.msra.mxu0 0
        %683 = vmatprep.subr.bf16.mxu0 0
        %684 = vmatpush1.bf16.xpose.msra.mxu0 0
        %685 = vmatprep.subr.bf16.mxu0 0
        %686 = vmatpush1.bf16.xpose.msra.mxu0 0
        %687 = vmatprep.mubr.bf16.mxu0 0
        %688 = vmatmul.mubr.bf16.gmra.mrb[0].mxu0 %v650
        %v689 = vpop.f32.mrb[0].mxu0
        %v690 = vadd.f32 %v648, %v689
        %v691 = vpop.f32.mrb[0].mxu0
        %v692 = vpop.f32.mrb[0].mxu0
        %v693 = vpop.f32.mrb[0].mxu0
        %694 = vdwg.mxu0
        %vm695 = vcmp.eq.s32.totalorder %v641, 1
        %696 = vset.pattern.permute.xlu0 1
        %697 = vperm.xlu0 %696, %v621
        %v698 = vpop.permute.xlu0 %697
        %v700 = vsel %vm695, %v698, 0.0
        %v701 = vadd.f32 %v690, %v700
        %vm702 = vcmp.eq.s32.totalorder %v641, 2
        %703 = vset.pattern.permute.xlu0 2
        %704 = vperm.xlu0 %703, %v621
        %v705 = vpop.permute.xlu0 %704
        %v707 = vsel %vm702, %v705, 0.0
        %v708 = vadd.f32 %v701, %v707
        %vm709 = vcmp.eq.s32.totalorder %v641, 3
        %710 = vset.pattern.permute.xlu0 3
        %711 = vperm.xlu0 %710, %v621
        %v712 = vpop.permute.xlu0 %711
        %v714 = vsel %vm709, %v712, 0.0
        %v715 = vadd.f32 %v708, %v714
        %vm716 = vcmp.eq.s32.totalorder %v641, 4
        %717 = vset.pattern.permute.xlu0 4
        %718 = vperm.xlu0 %717, %v621
        %v719 = vpop.permute.xlu0 %718
        %v721 = vsel %vm716, %v719, 0.0
        %v722 = vadd.f32 %v715, %v721
        %vm723 = vcmp.eq.s32.totalorder %v641, 5
        %724 = vset.pattern.permute.xlu0 5
        %725 = vperm.xlu0 %724, %v621
        %v726 = vpop.permute.xlu0 %725
        %v728 = vsel %vm723, %v726, 0.0
        %v729 = vadd.f32 %v722, %v728
        %vm730 = vcmp.eq.s32.totalorder %v641, 6
        %731 = vset.pattern.permute.xlu0 6
        %732 = vperm.xlu0 %731, %v621
        %v733 = vpop.permute.xlu0 %732
        %v735 = vsel %vm730, %v733, 0.0
        %v736 = vadd.f32 %v729, %v735
        %vm737 = vcmp.eq.s32.totalorder %v641, 7
        %738 = vset.pattern.permute.xlu0 7
        %739 = vperm.xlu0 %738, %v621
        %v740 = vpop.permute.xlu0 %739
        %v742 = vsel %vm737, %v740, 0.0
        %v743 = vadd.f32 %v736, %v742
        %vm744 = vcmp.eq.s32.totalorder %v641, 8
        %745 = vset.pattern.permute.xlu0 8
        %746 = vperm.xlu0 %745, %v621
        %v747 = vpop.permute.xlu0 %746
        %v749 = vsel %vm744, %v747, 0.0
        %v750 = vadd.f32 %v743, %v749
        %v751 = vadd.f32 %v750, %v565
        %v752 = vld [vmem:[#allocation2] sm:$0xff]
        %v753 = vld [vmem:[#allocation3] sm:$0xff]
        %v754 = vsel %vm649, %v751, -inf
        %755 = vmax.xlane.f32.xlu0 %v754
        %v756 = vpop.xlane.xlu0 %755
        %v757 = vmax.f32 %v752, %v756
        %v758 = vsub.f32 %v752, %v757
        %v759 = vmul.f32 %v758, 1.442695
        %v760 = vpow.pop %v759
        %762 = vset.pattern.permute.xlu0 0
        %763 = vperm.xlu0 %762, %v757
        %v764 = vpop.permute.xlu0 %763
        %v766 = vsub.f32 %v751, %v764
        %v767 = vmul.f32 %v766, 1.442695
        %v768 = vpow.pop %v767
        %v769 = vmul.f32 %v760, %v753
        %v770 = vsel %vm649, %v768, 0.0
        %771 = vadd.xlane.f32.xlu0 %v770
        %v772 = vpop.xlane.xlu0 %771
        %v773 = vadd.f32 %v769, %v772
        %v774 = vpack.c.bf16 %v768, %v768
        %v776 = vsel %vm649, %v774, 0
        %vm778 = vcmask 1043456
        %v780 = vsel %vm778, %v561, 0
        %782 = vmatprep.subr.bf16.mxu0 0
        %783 = vmatpush1.bf16.msra.mxu0 %v780
        %784 = vmatprep.subr.bf16.mxu0 0
        %785 = vmatpush1.bf16.msra.mxu0 0
        %786 = vmatprep.subr.bf16.mxu0 0
        %787 = vmatpush1.bf16.msra.mxu0 0
        %788 = vmatprep.subr.bf16.mxu0 0
        %789 = vmatpush1.bf16.msra.mxu0 0
        %790 = vmatprep.subr.bf16.mxu0 0
        %791 = vmatpush1.bf16.msra.mxu0 0
        %792 = vmatprep.subr.bf16.mxu0 0
        %793 = vmatpush1.bf16.msra.mxu0 0
        %794 = vmatprep.subr.bf16.mxu0 0
        %795 = vmatpush1.bf16.msra.mxu0 0
        %796 = vmatprep.subr.bf16.mxu0 0
        %797 = vmatpush1.bf16.msra.mxu0 0
        %798 = vmatprep.subr.bf16.mxu0 0
        %799 = vmatpush1.bf16.msra.mxu0 0
        %800 = vmatprep.subr.bf16.mxu0 0
        %801 = vmatpush1.bf16.msra.mxu0 0
        %802 = vmatprep.subr.bf16.mxu0 0
        %803 = vmatpush1.bf16.msra.mxu0 0
        %804 = vmatprep.subr.bf16.mxu0 0
        %805 = vmatpush1.bf16.msra.mxu0 0
        %806 = vmatprep.subr.bf16.mxu0 0
        %807 = vmatpush1.bf16.msra.mxu0 0
        %808 = vmatprep.subr.bf16.mxu0 0
        %809 = vmatpush1.bf16.msra.mxu0 0
        %810 = vmatprep.subr.bf16.mxu0 0
        %811 = vmatpush1.bf16.msra.mxu0 0
        %812 = vmatprep.subr.bf16.mxu0 0
        %813 = vmatpush1.bf16.msra.mxu0 0
        %814 = vmatprep.mubr.bf16.mxu0 0
        %815 = vmatmul.mubr.bf16.gmra.mrb[0].mxu0 %v776
        %v816 = vpop.f32.mrb[0].mxu0
        %v817 = vadd.f32 0.0, %v816
        %v818 = vpop.f32.mrb[0].mxu0
        %v819 = vpop.f32.mrb[0].mxu0
        %v820 = vpop.f32.mrb[0].mxu0
        %821 = vdwg.mxu0
        %v822 = vld [vmem:[#allocation4] sm:$0xff]
        %824 = vset.pattern.permute.xlu0 0
        %825 = vperm.xlu0 %824, %v760
        %v826 = vpop.permute.xlu0 %825
        %v828 = vmul.f32 %v826, %v822
        %v829 = vadd.f32 %v828, %v817
        %830 = vst.msk [vmem:[#allocation4] sm:$0xff] %vm649, %v829
        %vm831 = vcmask 7168
        %832 = vst.msk [vmem:[#allocation2] sm:$0xff] %vm831, %v757
        %833 = vst.msk [vmem:[#allocation3] sm:$0xff] %vm831, %v773
        %834 = vset.pattern.permute.xlu0 9
        %835 = vperm.xlu0 %834, %v621
        %v836 = vpop.permute.xlu0 %835
        %v838 = vsel %vm642, %v836, 0.0
        %840 = vrot.lane.b32.xlu0 %v559, 120
        %v841 = vpop.permute.xlu0 %840
        %v843 = vunpack.c.l.b16 %v560
        %v844 = vpack.c.b16 %v843, %v843
        %845 = vrot.lane.b32.xlu0 %v844, 120
        %v846 = vpop.permute.xlu0 %845
        %v848 = vsel %vm649, %v841, 0
        %v851 = vsel %vm649, %v846, 0
        %853 = vmatprep.subr.bf16.mxu0 0
        %854 = vmatpush1.bf16.xpose.msra.mxu0 %v851
        %855 = vmatprep.subr.bf16.mxu0 0
        %856 = vmatpush1.bf16.xpose.msra.mxu0 0
        %857 = vmatprep.subr.bf16.mxu0 0
        %858 = vmatpush1.bf16.xpose.msra.mxu0 0
        %859 = vmatprep.subr.bf16.mxu0 0
        %860 = vmatpush1.bf16.xpose.msra.mxu0 0
        %861 = vmatprep.subr.bf16.mxu0 0
        %862 = vmatpush1.bf16.xpose.msra.mxu0 0
        %863 = vmatprep.subr.bf16.mxu0 0
        %864 = vmatpush1.bf16.xpose.msra.mxu0 0
        %865 = vmatprep.subr.bf16.mxu0 0
        %866 = vmatpush1.bf16.xpose.msra.mxu0 0
        %867 = vmatprep.subr.bf16.mxu0 0
        %868 = vmatpush1.bf16.xpose.msra.mxu0 0
        %869 = vmatprep.subr.bf16.mxu0 0
        %870 = vmatpush1.bf16.xpose.msra.mxu0 0
        %871 = vmatprep.subr.bf16.mxu0 0
        %872 = vmatpush1.bf16.xpose.msra.mxu0 0
        %873 = vmatprep.subr.bf16.mxu0 0
        %874 = vmatpush1.bf16.xpose.msra.mxu0 0
        %875 = vmatprep.subr.bf16.mxu0 0
        %876 = vmatpush1.bf16.xpose.msra.mxu0 0
        %877 = vmatprep.subr.bf16.mxu0 0
        %878 = vmatpush1.bf16.xpose.msra.mxu0 0
        %879 = vmatprep.subr.bf16.mxu0 0
        %880 = vmatpush1.bf16.xpose.msra.mxu0 0
        %881 = vmatprep.subr.bf16.mxu0 0
        %882 = vmatpush1.bf16.xpose.msra.mxu0 0
        %883 = vmatprep.subr.bf16.mxu0 0
        %884 = vmatpush1.bf16.xpose.msra.mxu0 0
        %885 = vmatprep.mubr.bf16.mxu0 0
        %886 = vmatmul.mubr.bf16.gmra.mrb[0].mxu0 %v848
        %v887 = vpop.f32.mrb[0].mxu0
        %v888 = vadd.f32 %v838, %v887
        %v889 = vpop.f32.mrb[0].mxu0
        %v890 = vpop.f32.mrb[0].mxu0
        %v891 = vpop.f32.mrb[0].mxu0
        %892 = vdwg.mxu0
        %893 = vset.pattern.permute.xlu0 10
        %894 = vperm.xlu0 %893, %v621
        %v895 = vpop.permute.xlu0 %894
        %v897 = vsel %vm695, %v895, 0.0
        %v898 = vadd.f32 %v888, %v897
        %899 = vset.pattern.permute.xlu0 11
        %900 = vperm.xlu0 %899, %v621
        %v901 = vpop.permute.xlu0 %900
        %v903 = vsel %vm702, %v901, 0.0
        %v904 = vadd.f32 %v898, %v903
        %905 = vset.pattern.permute.xlu0 12
        %906 = vperm.xlu0 %905, %v621
        %v907 = vpop.permute.xlu0 %906
        %v909 = vsel %vm709, %v907, 0.0
        %v910 = vadd.f32 %v904, %v909
        %911 = vset.pattern.permute.xlu0 13
        %912 = vperm.xlu0 %911, %v621
        %v913 = vpop.permute.xlu0 %912
        %v915 = vsel %vm716, %v913, 0.0
        %v916 = vadd.f32 %v910, %v915
        %917 = vset.pattern.permute.xlu0 14
        %918 = vperm.xlu0 %917, %v621
        %v919 = vpop.permute.xlu0 %918
        %v921 = vsel %vm723, %v919, 0.0
        %v922 = vadd.f32 %v916, %v921
        %923 = vset.pattern.permute.xlu0 15
        %924 = vperm.xlu0 %923, %v621
        %v925 = vpop.permute.xlu0 %924
        %v927 = vsel %vm730, %v925, 0.0
        %v928 = vadd.f32 %v922, %v927
        %929 = vset.pattern.permute.xlu0 16
        %930 = vperm.xlu0 %929, %v621
        %v931 = vpop.permute.xlu0 %930
        %v933 = vsel %vm737, %v931, 0.0
        %v934 = vadd.f32 %v928, %v933
        %935 = vset.pattern.permute.xlu0 17
        %936 = vperm.xlu0 %935, %v621
        %v937 = vpop.permute.xlu0 %936
        %v939 = vsel %vm744, %v937, 0.0
        %v940 = vadd.f32 %v934, %v939
        %v941 = vadd.f32 %v940, %v565
        %v942 = vld [vmem:[#allocation2] sm:$0xff]
        %v943 = vld [vmem:[#allocation3] sm:$0xff]
        %v944 = vsel %vm649, %v941, -inf
        %945 = vmax.xlane.f32.xlu0 %v944
        %v946 = vpop.xlane.xlu0 %945
        %v947 = vmax.f32 %v942, %v946
        %v948 = vsub.f32 %v942, %v947
        %v949 = vmul.f32 %v948, 1.442695
        %v950 = vpow.pop %v949
        %952 = vset.pattern.permute.xlu0 1
        %953 = vperm.xlu0 %952, %v947
        %v954 = vpop.permute.xlu0 %953
        %v956 = vsub.f32 %v941, %v954
        %v957 = vmul.f32 %v956, 1.442695
        %v958 = vpow.pop %v957
        %v959 = vmul.f32 %v950, %v943
        %v960 = vsel %vm649, %v958, 0.0
        %961 = vadd.xlane.f32.xlu0 %v960
        %v962 = vpop.xlane.xlu0 %961
        %v963 = vadd.f32 %v959, %v962
        %v964 = vpack.c.bf16 %v958, %v958
        %v966 = vunpack.c.l.b16 %v561
        %v967 = vpack.c.b16 %v966, %v966
        %968 = vrot.lane.b32.xlu0 %v967, 120
        %v969 = vpop.permute.xlu0 %968
        %v971 = vsel %vm649, %v964, 0
        %v974 = vsel %vm778, %v969, 0
        %976 = vmatprep.subr.bf16.mxu0 0
        %977 = vmatpush1.bf16.msra.mxu0 %v974
        %978 = vmatprep.subr.bf16.mxu0 0
        %979 = vmatpush1.bf16.msra.mxu0 0
        %980 = vmatprep.subr.bf16.mxu0 0
        %981 = vmatpush1.bf16.msra.mxu0 0
        %982 = vmatprep.subr.bf16.mxu0 0
        %983 = vmatpush1.bf16.msra.mxu0 0
        %984 = vmatprep.subr.bf16.mxu0 0
        %985 = vmatpush1.bf16.msra.mxu0 0
        %986 = vmatprep.subr.bf16.mxu0 0
        %987 = vmatpush1.bf16.msra.mxu0 0
        %988 = vmatprep.subr.bf16.mxu0 0
        %989 = vmatpush1.bf16.msra.mxu0 0
        %990 = vmatprep.subr.bf16.mxu0 0
        %991 = vmatpush1.bf16.msra.mxu0 0
        %992 = vmatprep.subr.bf16.mxu0 0
        %993 = vmatpush1.bf16.msra.mxu0 0
        %994 = vmatprep.subr.bf16.mxu0 0
        %995 = vmatpush1.bf16.msra.mxu0 0
        %996 = vmatprep.subr.bf16.mxu0 0
        %997 = vmatpush1.bf16.msra.mxu0 0
        %998 = vmatprep.subr.bf16.mxu0 0
        %999 = vmatpush1.bf16.msra.mxu0 0
        %1000 = vmatprep.subr.bf16.mxu0 0
        %1001 = vmatpush1.bf16.msra.mxu0 0
        %1002 = vmatprep.subr.bf16.mxu0 0
        %1003 = vmatpush1.bf16.msra.mxu0 0
        %1004 = vmatprep.subr.bf16.mxu0 0
        %1005 = vmatpush1.bf16.msra.mxu0 0
        %1006 = vmatprep.subr.bf16.mxu0 0
        %1007 = vmatpush1.bf16.msra.mxu0 0
        %1008 = vmatprep.mubr.bf16.mxu0 0
        %1009 = vmatmul.mubr.bf16.gmra.mrb[0].mxu0 %v971
        %v1010 = vpop.f32.mrb[0].mxu0
        %v1011 = vadd.f32 0.0, %v1010
        %v1012 = vpop.f32.mrb[0].mxu0
        %v1013 = vpop.f32.mrb[0].mxu0
        %v1014 = vpop.f32.mrb[0].mxu0
        %1015 = vdwg.mxu0
        %v1016 = vld [vmem:[#allocation4] sm:$0xff]
        %1018 = vset.pattern.permute.xlu0 1
        %1019 = vperm.xlu0 %1018, %v950
        %v1020 = vpop.permute.xlu0 %1019
        %v1022 = vmul.f32 %v1020, %v1016
        %1024 = vrot.lane.b32.xlu0 %v1011, 8
        %v1025 = vpop.permute.xlu0 %1024
        %v1027 = vadd.f32 %v1022, %v1025
        %vm1028 = vcmask 130112
        %1029 = vst.msk [vmem:[#allocation4] sm:$0xff] %vm1028, %v1027
        %vm1030 = vcmask 15368
        %1031 = vst.msk [vmem:[#allocation2] sm:$0xff] %vm1030, %v947
        %1032 = vst.msk [vmem:[#allocation3] sm:$0xff] %vm1030, %v963
        %1033 = vset.pattern.permute.xlu0 18
        %1034 = vperm.xlu0 %1033, %v621
        %v1035 = vpop.permute.xlu0 %1034
        %v1037 = vsel %vm642, %v1035, 0.0
        %1038 = vrot.lane.b32.xlu0 %v559, 112
        %v1039 = vpop.permute.xlu0 %1038
        %1040 = vrot.lane.b32.xlu0 %v844, 112
        %v1041 = vpop.permute.xlu0 %1040
        %v1043 = vsel %vm649, %v1039, 0
        %v1046 = vsel %vm649, %v1041, 0
        %1048 = vmatprep.subr.bf16.mxu0 0
        %1049 = vmatpush1.bf16.xpose.msra.mxu0 %v1046
        %1050 = vmatprep.subr.bf16.mxu0 0
        %1051 = vmatpush1.bf16.xpose.msra.mxu0 0
        %1052 = vmatprep.subr.bf16.mxu0 0
        %1053 = vmatpush1.bf16.xpose.msra.mxu0 0
        %1054 = vmatprep.subr.bf16.mxu0 0
        %1055 = vmatpush1.bf16.xpose.msra.mxu0 0
        %1056 = vmatprep.subr.bf16.mxu0 0
        %1057 = vmatpush1.bf16.xpose.msra.mxu0 0
        %1058 = vmatprep.subr.bf16.mxu0 0
        %1059 = vmatpush1.bf16.xpose.msra.mxu0 0
        %1060 = vmatprep.subr.bf16.mxu0 0
        %1061 = vmatpush1.bf16.xpose.msra.mxu0 0
        %1062 = vmatprep.subr.bf16.mxu0 0
        %1063 = vmatpush1.bf16.xpose.msra.mxu0 0
        %1064 = vmatprep.subr.bf16.mxu0 0
        %1065 = vmatpush1.bf16.xpose.msra.mxu0 0
        %1066 = vmatprep.subr.bf16.mxu0 0
        %1067 = vmatpush1.bf16.xpose.msra.mxu0 0
        %1068 = vmatprep.subr.bf16.mxu0 0
        %1069 = vmatpush1.bf16.xpose.msra.mxu0 0
        %1070 = vmatprep.subr.bf16.mxu0 0
        %1071 = vmatpush1.bf16.xpose.msra.mxu0 0
        %1072 = vmatprep.subr.bf16.mxu0 0
        %1073 = vmatpush1.bf16.xpose.msra.mxu0 0
        %1074 = vmatprep.subr.bf16.mxu0 0
        %1075 = vmatpush1.bf16.xpose.msra.mxu0 0
        %1076 = vmatprep.subr.bf16.mxu0 0
        %1077 = vmatpush1.bf16.xpose.msra.mxu0 0
        %1078 = vmatprep.subr.bf16.mxu0 0
        %1079 = vmatpush1.bf16.xpose.msra.mxu0 0
        %1080 = vmatprep.mubr.bf16.mxu0 0
        %1081 = vmatmul.mubr.bf16.gmra.mrb[0].mxu0 %v1043
        %v1082 = vpop.f32.mrb[0].mxu0
        %v1083 = vadd.f32 %v1037, %v1082
        %v1084 = vpop.f32.mrb[0].mxu0
        %v1085 = vpop.f32.mrb[0].mxu0
        %v1086 = vpop.f32.mrb[0].mxu0
        %1087 = vdwg.mxu0
        %1088 = vset.pattern.permute.xlu0 19
        %1089 = vperm.xlu0 %1088, %v621
        %v1090 = vpop.permute.xlu0 %1089
        %v1092 = vsel %vm695, %v1090, 0.0
        %v1093 = vadd.f32 %v1083, %v1092
        %1094 = vset.pattern.permute.xlu0 20
        %1095 = vperm.xlu0 %1094, %v621
        %v1096 = vpop.permute.xlu0 %1095
        %v1098 = vsel %vm702, %v1096, 0.0
        %v1099 = vadd.f32 %v1093, %v1098
        %1100 = vset.pattern.permute.xlu0 21
        %1101 = vperm.xlu0 %1100, %v621
        %v1102 = vpop.permute.xlu0 %1101
        %v1104 = vsel %vm709, %v1102, 0.0
        %v1105 = vadd.f32 %v1099, %v1104
        %1106 = vset.pattern.permute.xlu0 22
        %1107 = vperm.xlu0 %1106, %v621
        %v1108 = vpop.permute.xlu0 %1107
        %v1110 = vsel %vm716, %v1108, 0.0
        %v1111 = vadd.f32 %v1105, %v1110
        %1112 = vset.pattern.permute.xlu0 23
        %1113 = vperm.xlu0 %1112, %v621
        %v1114 = vpop.permute.xlu0 %1113
        %v1116 = vsel %vm723, %v1114, 0.0
        %v1117 = vadd.f32 %v1111, %v1116
        %1118 = vset.pattern.permute.xlu0 24
        %1119 = vperm.xlu0 %1118, %v621
        %v1120 = vpop.permute.xlu0 %1119
        %v1122 = vsel %vm730, %v1120, 0.0
        %v1123 = vadd.f32 %v1117, %v1122
        %1124 = vset.pattern.permute.xlu0 25
        %1125 = vperm.xlu0 %1124, %v621
        %v1126 = vpop.permute.xlu0 %1125
        %v1128 = vsel %vm737, %v1126, 0.0
        %v1129 = vadd.f32 %v1123, %v1128
        %1130 = vset.pattern.permute.xlu0 26
        %1131 = vperm.xlu0 %1130, %v621
        %v1132 = vpop.permute.xlu0 %1131
        %v1134 = vsel %vm744, %v1132, 0.0
        %v1135 = vadd.f32 %v1129, %v1134
        %v1136 = vadd.f32 %v1135, %v565
        %v1137 = vld [vmem:[#allocation2] sm:$0xff]
        %v1138 = vld [vmem:[#allocation3] sm:$0xff]
        %v1139 = vsel %vm649, %v1136, -inf
        %1140 = vmax.xlane.f32.xlu0 %v1139
        %v1141 = vpop.xlane.xlu0 %1140
        %v1142 = vmax.f32 %v1137, %v1141
        %v1143 = vsub.f32 %v1137, %v1142
        %v1144 = vmul.f32 %v1143, 1.442695
        %v1145 = vpow.pop %v1144
        %1147 = vset.pattern.permute.xlu0 2
        %1148 = vperm.xlu0 %1147, %v1142
        %v1149 = vpop.permute.xlu0 %1148
        %v1151 = vsub.f32 %v1136, %v1149
        %v1152 = vmul.f32 %v1151, 1.442695
        %v1153 = vpow.pop %v1152
        %v1154 = vmul.f32 %v1145, %v1138
        %v1155 = vsel %vm649, %v1153, 0.0
        %1156 = vadd.xlane.f32.xlu0 %v1155
        %v1157 = vpop.xlane.xlu0 %1156
        %v1158 = vadd.f32 %v1154, %v1157
        %v1159 = vpack.c.bf16 %v1153, %v1153
        %1160 = vrot.lane.b32.xlu0 %v967, 112
        %v1161 = vpop.permute.xlu0 %1160
        %v1163 = vsel %vm649, %v1159, 0
        %v1166 = vsel %vm778, %v1161, 0
        %1168 = vmatprep.subr.bf16.mxu0 0
        %1169 = vmatpush1.bf16.msra.mxu0 %v1166
        %1170 = vmatprep.subr.bf16.mxu0 0
        %1171 = vmatpush1.bf16.msra.mxu0 0
        %1172 = vmatprep.subr.bf16.mxu0 0
        %1173 = vmatpush1.bf16.msra.mxu0 0
        %1174 = vmatprep.subr.bf16.mxu0 0
        %1175 = vmatpush1.bf16.msra.mxu0 0
        %1176 = vmatprep.subr.bf16.mxu0 0
        %1177 = vmatpush1.bf16.msra.mxu0 0
        %1178 = vmatprep.subr.bf16.mxu0 0
        %1179 = vmatpush1.bf16.msra.mxu0 0
        %1180 = vmatprep.subr.bf16.mxu0 0
        %1181 = vmatpush1.bf16.msra.mxu0 0
        %1182 = vmatprep.subr.bf16.mxu0 0
        %1183 = vmatpush1.bf16.msra.mxu0 0
        %1184 = vmatprep.subr.bf16.mxu0 0
        %1185 = vmatpush1.bf16.msra.mxu0 0
        %1186 = vmatprep.subr.bf16.mxu0 0
        %1187 = vmatpush1.bf16.msra.mxu0 0
        %1188 = vmatprep.subr.bf16.mxu0 0
        %1189 = vmatpush1.bf16.msra.mxu0 0
        %1190 = vmatprep.subr.bf16.mxu0 0
        %1191 = vmatpush1.bf16.msra.mxu0 0
        %1192 = vmatprep.subr.bf16.mxu0 0
        %1193 = vmatpush1.bf16.msra.mxu0 0
        %1194 = vmatprep.subr.bf16.mxu0 0
        %1195 = vmatpush1.bf16.msra.mxu0 0
        %1196 = vmatprep.subr.bf16.mxu0 0
        %1197 = vmatpush1.bf16.msra.mxu0 0
        %1198 = vmatprep.subr.bf16.mxu0 0
        %1199 = vmatpush1.bf16.msra.mxu0 0
        %1200 = vmatprep.mubr.bf16.mxu0 0
        %1201 = vmatmul.mubr.bf16.gmra.mrb[0].mxu0 %v1163
        %v1202 = vpop.f32.mrb[0].mxu0
        %v1203 = vadd.f32 0.0, %v1202
        %v1204 = vpop.f32.mrb[0].mxu0
        %v1205 = vpop.f32.mrb[0].mxu0
        %v1206 = vpop.f32.mrb[0].mxu0
        %1207 = vdwg.mxu0
        %v1208 = vld [vmem:[#allocation4] sm:$0xff]
        %1210 = vset.pattern.permute.xlu0 2
        %1211 = vperm.xlu0 %1210, %v1145
        %v1212 = vpop.permute.xlu0 %1211
        %v1214 = vmul.f32 %v1212, %v1208
        %1216 = vrot.lane.b32.xlu0 %v1203, 16
        %v1217 = vpop.permute.xlu0 %1216
        %v1219 = vadd.f32 %v1214, %v1217
        %vm1220 = vcmask 195712
        %1221 = vst.msk [vmem:[#allocation4] sm:$0xff] %vm1220, %v1219
        %vm1222 = vcmask 23568
        %1223 = vst.msk [vmem:[#allocation2] sm:$0xff] %vm1222, %v1142
        %1224 = vst.msk [vmem:[#allocation3] sm:$0xff] %vm1222, %v1158
        %1225 = vset.pattern.permute.xlu0 27
        %1226 = vperm.xlu0 %1225, %v621
        %v1227 = vpop.permute.xlu0 %1226
        %v1229 = vsel %vm642, %v1227, 0.0
        %1230 = vrot.lane.b32.xlu0 %v559, 104
        %v1231 = vpop.permute.xlu0 %1230
        %1232 = vrot.lane.b32.xlu0 %v844, 104
        %v1233 = vpop.permute.xlu0 %1232
        %v1235 = vsel %vm649, %v1231, 0
        %v1238 = vsel %vm649, %v1233, 0
        %1240 = vmatprep.subr.bf16.mxu0 0
        %1241 = vmatpush1.bf16.xpose.msra.mxu0 %v1238
        %1242 = vmatprep.subr.bf16.mxu0 0
        %1243 = vmatpush1.bf16.xpose.msra.mxu0 0
        %1244 = vmatprep.subr.bf16.mxu0 0
        %1245 = vmatpush1.bf16.xpose.msra.mxu0 0
        %1246 = vmatprep.subr.bf16.mxu0 0
        %1247 = vmatpush1.bf16.xpose.msra.mxu0 0
        %1248 = vmatprep.subr.bf16.mxu0 0
        %1249 = vmatpush1.bf16.xpose.msra.mxu0 0
        %1250 = vmatprep.subr.bf16.mxu0 0
        %1251 = vmatpush1.bf16.xpose.msra.mxu0 0
        %1252 = vmatprep.subr.bf16.mxu0 0
        %1253 = vmatpush1.bf16.xpose.msra.mxu0 0
        %1254 = vmatprep.subr.bf16.mxu0 0
        %1255 = vmatpush1.bf16.xpose.msra.mxu0 0
        %1256 = vmatprep.subr.bf16.mxu0 0
        %1257 = vmatpush1.bf16.xpose.msra.mxu0 0
        %1258 = vmatprep.subr.bf16.mxu0 0
        %1259 = vmatpush1.bf16.xpose.msra.mxu0 0
        %1260 = vmatprep.subr.bf16.mxu0 0
        %1261 = vmatpush1.bf16.xpose.msra.mxu0 0
        %1262 = vmatprep.subr.bf16.mxu0 0
        %1263 = vmatpush1.bf16.xpose.msra.mxu0 0
        %1264 = vmatprep.subr.bf16.mxu0 0
        %1265 = vmatpush1.bf16.xpose.msra.mxu0 0
        %1266 = vmatprep.subr.bf16.mxu0 0
        %1267 = vmatpush1.bf16.xpose.msra.mxu0 0
        %1268 = vmatprep.subr.bf16.mxu0 0
        %1269 = vmatpush1.bf16.xpose.msra.mxu0 0
        %1270 = vmatprep.subr.bf16.mxu0 0
        %1271 = vmatpush1.bf16.xpose.msra.mxu0 0
        %1272 = vmatprep.mubr.bf16.mxu0 0
        %1273 = vmatmul.mubr.bf16.gmra.mrb[0].mxu0 %v1235
        %v1274 = vpop.f32.mrb[0].mxu0
        %v1275 = vadd.f32 %v1229, %v1274
        %v1276 = vpop.f32.mrb[0].mxu0
        %v1277 = vpop.f32.mrb[0].mxu0
        %v1278 = vpop.f32.mrb[0].mxu0
        %1279 = vdwg.mxu0
        %1280 = vset.pattern.permute.xlu0 28
        %1281 = vperm.xlu0 %1280, %v621
        %v1282 = vpop.permute.xlu0 %1281
        %v1284 = vsel %vm695, %v1282, 0.0
        %v1285 = vadd.f32 %v1275, %v1284
        %1286 = vset.pattern.permute.xlu0 29
        %1287 = vperm.xlu0 %1286, %v621
        %v1288 = vpop.permute.xlu0 %1287
        %v1290 = vsel %vm702, %v1288, 0.0
        %v1291 = vadd.f32 %v1285, %v1290
        %1292 = vset.pattern.permute.xlu0 30
        %1293 = vperm.xlu0 %1292, %v621
        %v1294 = vpop.permute.xlu0 %1293
        %v1296 = vsel %vm709, %v1294, 0.0
        %v1297 = vadd.f32 %v1291, %v1296
        %1298 = vset.pattern.permute.xlu0 31
        %1299 = vperm.xlu0 %1298, %v621
        %v1300 = vpop.permute.xlu0 %1299
        %v1302 = vsel %vm716, %v1300, 0.0
        %v1303 = vadd.f32 %v1297, %v1302
        %1304 = vset.pattern.permute.xlu0 32
        %1305 = vperm.xlu0 %1304, %v621
        %v1306 = vpop.permute.xlu0 %1305
        %v1308 = vsel %vm723, %v1306, 0.0
        %v1309 = vadd.f32 %v1303, %v1308
        %1310 = vset.pattern.permute.xlu0 33
        %1311 = vperm.xlu0 %1310, %v621
        %v1312 = vpop.permute.xlu0 %1311
        %v1314 = vsel %vm730, %v1312, 0.0
        %v1315 = vadd.f32 %v1309, %v1314
        %1316 = vset.pattern.permute.xlu0 34
        %1317 = vperm.xlu0 %1316, %v621
        %v1318 = vpop.permute.xlu0 %1317
        %v1320 = vsel %vm737, %v1318, 0.0
        %v1321 = vadd.f32 %v1315, %v1320
        %1322 = vset.pattern.permute.xlu0 35
        %1323 = vperm.xlu0 %1322, %v621
        %v1324 = vpop.permute.xlu0 %1323
        %v1326 = vsel %vm744, %v1324, 0.0
        %v1327 = vadd.f32 %v1321, %v1326
        %v1328 = vadd.f32 %v1327, %v565
        %v1329 = vld [vmem:[#allocation2] sm:$0xff]
        %v1330 = vld [vmem:[#allocation3] sm:$0xff]
        %v1331 = vsel %vm649, %v1328, -inf
        %1332 = vmax.xlane.f32.xlu0 %v1331
        %v1333 = vpop.xlane.xlu0 %1332
        %v1334 = vmax.f32 %v1329, %v1333
        %v1335 = vsub.f32 %v1329, %v1334
        %v1336 = vmul.f32 %v1335, 1.442695
        %v1337 = vpow.pop %v1336
        %1339 = vset.pattern.permute.xlu0 3
        %1340 = vperm.xlu0 %1339, %v1334
        %v1341 = vpop.permute.xlu0 %1340
        %v1343 = vsub.f32 %v1328, %v1341
        %v1344 = vmul.f32 %v1343, 1.442695
        %v1345 = vpow.pop %v1344
        %v1346 = vmul.f32 %v1337, %v1330
        %v1347 = vsel %vm649, %v1345, 0.0
        %1348 = vadd.xlane.f32.xlu0 %v1347
        %v1349 = vpop.xlane.xlu0 %1348
        %v1350 = vadd.f32 %v1346, %v1349
        %v1351 = vpack.c.bf16 %v1345, %v1345
        %1352 = vrot.lane.b32.xlu0 %v967, 104
        %v1353 = vpop.permute.xlu0 %1352
        %v1355 = vsel %vm649, %v1351, 0
        %v1358 = vsel %vm778, %v1353, 0
        %1360 = vmatprep.subr.bf16.mxu0 0
        %1361 = vmatpush1.bf16.msra.mxu0 %v1358
        %1362 = vmatprep.subr.bf16.mxu0 0
        %1363 = vmatpush1.bf16.msra.mxu0 0
        %1364 = vmatprep.subr.bf16.mxu0 0
        %1365 = vmatpush1.bf16.msra.mxu0 0
        %1366 = vmatprep.subr.bf16.mxu0 0
        %1367 = vmatpush1.bf16.msra.mxu0 0
        %1368 = vmatprep.subr.bf16.mxu0 0
        %1369 = vmatpush1.bf16.msra.mxu0 0
        %1370 = vmatprep.subr.bf16.mxu0 0
        %1371 = vmatpush1.bf16.msra.mxu0 0
        %1372 = vmatprep.subr.bf16.mxu0 0
        %1373 = vmatpush1.bf16.msra.mxu0 0
        %1374 = vmatprep.subr.bf16.mxu0 0
        %1375 = vmatpush1.bf16.msra.mxu0 0
        %1376 = vmatprep.subr.bf16.mxu0 0
        %1377 = vmatpush1.bf16.msra.mxu0 0
        %1378 = vmatprep.subr.bf16.mxu0 0
        %1379 = vmatpush1.bf16.msra.mxu0 0
        %1380 = vmatprep.subr.bf16.mxu0 0
        %1381 = vmatpush1.bf16.msra.mxu0 0
        %1382 = vmatprep.subr.bf16.mxu0 0
        %1383 = vmatpush1.bf16.msra.mxu0 0
        %1384 = vmatprep.subr.bf16.mxu0 0
        %1385 = vmatpush1.bf16.msra.mxu0 0
        %1386 = vmatprep.subr.bf16.mxu0 0
        %1387 = vmatpush1.bf16.msra.mxu0 0
        %1388 = vmatprep.subr.bf16.mxu0 0
        %1389 = vmatpush1.bf16.msra.mxu0 0
        %1390 = vmatprep.subr.bf16.mxu0 0
        %1391 = vmatpush1.bf16.msra.mxu0 0
        %1392 = vmatprep.mubr.bf16.mxu0 0
        %1393 = vmatmul.mubr.bf16.gmra.mrb[0].mxu0 %v1355
        %v1394 = vpop.f32.mrb[0].mxu0
        %v1395 = vadd.f32 0.0, %v1394
        %v1396 = vpop.f32.mrb[0].mxu0
        %v1397 = vpop.f32.mrb[0].mxu0
        %v1398 = vpop.f32.mrb[0].mxu0
        %1399 = vdwg.mxu0
        %v1400 = vld [vmem:[#allocation4] sm:$0xff]
        %1402 = vset.pattern.permute.xlu0 3
        %1403 = vperm.xlu0 %1402, %v1337
        %v1404 = vpop.permute.xlu0 %1403
        %v1406 = vmul.f32 %v1404, %v1400
        %1408 = vrot.lane.b32.xlu0 %v1395, 24
        %v1409 = vpop.permute.xlu0 %1408
        %v1411 = vadd.f32 %v1406, %v1409
        %vm1412 = vcmask 261312
        %1413 = vst.msk [vmem:[#allocation4] sm:$0xff] %vm1412, %v1411
        %vm1414 = vcmask 31768
        %1415 = vst.msk [vmem:[#allocation2] sm:$0xff] %vm1414, %v1334
        %1416 = vst.msk [vmem:[#allocation3] sm:$0xff] %vm1414, %v1350
        // Predicated region
        $region89: #{right_transformer_block.7} parent=51 // pred_check
          %p1417 = pneg %p547
        $region90: #{right_transformer_block.7} parent=51 // pred_check_branch
          %1419 = sbr.rel (%p1417) target = $region92
        $region91: #{right_transformer_block.7} parent=51 // pred_region
          %v1420 = vld [vmem:[#allocation4] sm:$0xff]
          %v1421 = vld [vmem:[#allocation3] sm:$0xff]
          %1423 = vset.pattern.permute.xlu0 0
          %1424 = vperm.xlu0 %1423, %v1421
          %v1425 = vpop.permute.xlu0 %1424
          %v1427 = vrcp.pop %v1425
          %v1428 = vmul.f32 %v1420, %v1427
          %1429 = vst.msk [vmem:[#allocation4] sm:$0xff] %vm649, %v1428
          %v1430 = vld [vmem:[#allocation4] sm:$0xff]
          %v1431 = vld [vmem:[#allocation3] sm:$0xff]
          %1433 = vset.pattern.permute.xlu0 1
          %1434 = vperm.xlu0 %1433, %v1431
          %v1435 = vpop.permute.xlu0 %1434
          %v1437 = vrcp.pop %v1435
          %v1438 = vmul.f32 %v1430, %v1437
          %1439 = vst.msk [vmem:[#allocation4] sm:$0xff] %vm1028, %v1438
          %v1440 = vld [vmem:[#allocation4] sm:$0xff]
          %v1441 = vld [vmem:[#allocation3] sm:$0xff]
          %1443 = vset.pattern.permute.xlu0 2
          %1444 = vperm.xlu0 %1443, %v1441
          %v1445 = vpop.permute.xlu0 %1444
          %v1447 = vrcp.pop %v1445
          %v1448 = vmul.f32 %v1440, %v1447
          %1449 = vst.msk [vmem:[#allocation4] sm:$0xff] %vm1220, %v1448
          %v1450 = vld [vmem:[#allocation4] sm:$0xff]
          %v1451 = vld [vmem:[#allocation3] sm:$0xff]
          %1453 = vset.pattern.permute.xlu0 3
          %1454 = vperm.xlu0 %1453, %v1451
          %v1455 = vpop.permute.xlu0 %1454
          %v1457 = vrcp.pop %v1455
          %v1458 = vmul.f32 %v1450, %v1457
          %1459 = vst.msk [vmem:[#allocation4] sm:$0xff] %vm1412, %v1458
          %v1460 = vld [vmem:[#allocation4] sm:$0xff]
          %v1461 = vpack.c.bf16 %v1460, %v1460
          %v1462 = vld [vmem:[%s493] sm:$0xff]
          %v1463 = vld [vmem:[#allocation16] sm:$0x1]
          %v1465 = vlaneseq
          %v1466 = vshrl.u32 %v1465, 7
          %v1467 = vsub.s32 0, %v1466
          %v1468 = vrot.slane %v1463, %v1467
          %v1470 = vadd.f32 %v1462, %v1468
          %v1471 = vld [vmem:[#allocation14] sm:$0xf]
          %v1472 = vld [vmem:[#allocation14 + $0x4] sm:$0xf]
          %v1473 = vld [vmem:[#allocation14 + $0x8] sm:$0xf]
          %v1474 = vld [vmem:[#allocation14 + $0xc] sm:$0xf]
          %v1479 = vunpack.c.l.b16 %v1471
          %v1480 = vunpack.c.l.b16 %v1472
          %v1481 = vunpack.c.l.b16 %v1473
          %v1482 = vunpack.c.l.b16 %v1474
          %v1483 = vpack.c.b16 %v1480, %v1479
          %v1484 = vpack.c.b16 %v1482, %v1481
          %v1488 = vsel %vm582, %v1461, 0
          %1490 = vmatprep.subr.bf16.mxu0 0
          %1491 = vmatpush1.bf16.msra.mxu0 %v1483
          %1492 = vmatprep.subr.bf16.mxu0 0
          %1493 = vmatpush1.bf16.msra.mxu0 %v1484
          %1494 = vmatprep.subr.bf16.mxu0 0
          %1495 = vmatpush1.bf16.msra.mxu0 0
          %1496 = vmatprep.subr.bf16.mxu0 0
          %1497 = vmatpush1.bf16.msra.mxu0 0
          %1498 = vmatprep.subr.bf16.mxu0 0
          %1499 = vmatpush1.bf16.msra.mxu0 0
          %1500 = vmatprep.subr.bf16.mxu0 0
          %1501 = vmatpush1.bf16.msra.mxu0 0
          %1502 = vmatprep.subr.bf16.mxu0 0
          %1503 = vmatpush1.bf16.msra.mxu0 0
          %1504 = vmatprep.subr.bf16.mxu0 0
          %1505 = vmatpush1.bf16.msra.mxu0 0
          %1506 = vmatprep.subr.bf16.mxu0 0
          %1507 = vmatpush1.bf16.msra.mxu0 0
          %1508 = vmatprep.subr.bf16.mxu0 0
          %1509 = vmatpush1.bf16.msra.mxu0 0
          %1510 = vmatprep.subr.bf16.mxu0 0
          %1511 = vmatpush1.bf16.msra.mxu0 0
          %1512 = vmatprep.subr.bf16.mxu0 0
          %1513 = vmatpush1.bf16.msra.mxu0 0
          %1514 = vmatprep.subr.bf16.mxu0 0
          %1515 = vmatpush1.bf16.msra.mxu0 0
          %1516 = vmatprep.subr.bf16.mxu0 0
          %1517 = vmatpush1.bf16.msra.mxu0 0
          %1518 = vmatprep.subr.bf16.mxu0 0
          %1519 = vmatpush1.bf16.msra.mxu0 0
          %1520 = vmatprep.subr.bf16.mxu0 0
          %1521 = vmatpush1.bf16.msra.mxu0 0
          %1522 = vmatprep.mubr.bf16.mxu0 0
          %1523 = vmatmul.mubr.bf16.gmra.mrb[0].mxu0 %v1488
          %v1524 = vpop.f32.mrb[0].mxu0
          %v1525 = vadd.f32 0.0, %v1524
          %v1526 = vpop.f32.mrb[0].mxu0
          %v1527 = vpop.f32.mrb[0].mxu0
          %v1528 = vpop.f32.mrb[0].mxu0
          %1529 = vdwg.mxu0
          %v1530 = vadd.f32 %v1470, %v1525
          %1531 = vst.msk [vmem:[%s545] sm:$0xff] %vm582, %v1530
        $region92: #{right_transformer_block.7} parent=51 // pred_fallthru
          _
        %s1532 = sand.u32 %s269, 1
        %s1533 = scalar_lea.sflag [#allocation7], %s1532
        %s1534 = sand.u32 %s269, 1
        %s1535 = smul.addr %s1534, 8
        %s1536 = scalar_lea.vmem [#allocation19], %s1535
        // Predicated region
        $region93: #{right_transformer_block.7} parent=51 // pred_check
          %p1537 = pneg %p279
        $region94: #{right_transformer_block.7} parent=51 // pred_check_branch
          %1539 = sbr.rel (%p1537) target = $region96
        $region95: #{right_transformer_block.7} parent=51 // pred_region
          %s1541 = ssub.s32 128, 128
          %1542 = vsyncadd %s1533, %s1541
          %s1543 = sadd.s32 %s41, %s40
          %s1544 = smul.addr %s1543, 128
          %s1545 = scalar_lea.hbm %s8, %s1544
          %s1547 = sshll.u32 %s1536, 4
          %s1548 = int_to_ptr.vmem [resolvable:$true] %s1547
          %1550 = dma.vmem_to_hbm [thread:$0]  %s1548, 128, %s1545, %s1533
        $region96: #{right_transformer_block.7} parent=51 // pred_fallthru
          _
      $region52: #{right_transformer_block.7} parent=5 // pred_fallthru
        _
      %p1551 = scmp.le.s32.totalorder 2, %s30
      // Predicated region
      $region97: #{right_transformer_block.7} parent=5 // pred_check
        %p1552 = pneg %p1551
      $region98: #{right_transformer_block.7} parent=5 // pred_check_branch
        %1554 = sbr.rel (%p1552) target = $region100
      $region99: #{right_transformer_block.7} parent=5 // pred_region
        %s1555 = ssub.s32 %s30, 2
        // Predicated region
        $region101: #{right_transformer_block.7} parent=99 // pred_check
          %p1556 = pneg %p285
        $region102: #{right_transformer_block.7} parent=99 // pred_check_branch
          %1558 = sbr.rel (%p1556) target = $region104
        $region103: #{right_transformer_block.7} parent=99 // pred_region
          %s1559 = sand.u32 %s270, 1
          %s1560 = scalar_lea.sflag [#allocation7], %s1559
          %s1561 = sand.u32 %s270, 1
          %s1562 = smul.addr %s1561, 8
          %s1563 = scalar_lea.vmem [#allocation19], %s1562
          %1564 = dma.done %s1560, 128
        $region104: #{right_transformer_block.7} parent=99 // pred_fallthru
          _
      $region100: #{right_transformer_block.7} parent=5 // pred_fallthru
        _
    $region6: #{right_transformer_block.7} parent=1 // loop_footer
      %s34 = sadd.s32 1, %s30
    $region7: #{right_transformer_block.7} parent=1 // loop_footer_branch
      %29 = sbr.rel target = $region3
    $region8: #{right_transformer_block.7} parent=1 // loop_exit
      _
    %1565 = vsyncpa [#allocation6], 1
    %s1566 = scalar_lea.sflag [#allocation6], 1
    %1567 = vsyncpa %s1566, 1
    %1568 = vsyncpa [#allocation9], 1
    %s1569 = scalar_lea.sflag [#allocation9], 1
    %1570 = vsyncpa %s1569, 1
    %1571 = vsyncpa [#allocation12], 1
    %s1572 = scalar_lea.sflag [#allocation12], 1
    %1573 = vsyncpa %s1572, 1
    %1574 = vsyncpa [#allocation15], 1
    %1575 = vsyncpa [#allocation18], 1
    %s1576 = scalar_lea.sflag [#allocation18], 1
    %1577 = vsyncpa %s1576, 1
    %1578 = vsyncpa [#allocation7], 1
    %s1579 = scalar_lea.sflag [#allocation7], 1
    %1580 = vsyncpa %s1579, 1

// kernel: right_transformer_block.11
$region0: #{right_transformer_block.11}
  #allocation0 [shape = 'u32[]', space=smem, size = 0x4, offset = 0x4, fixed_abs, tag = 'smem constant byte address 0x4 - core index']
  #allocation1 [shape = 'u32[144,128]{1,0:T(1,128)}', space=vmem, size = 0x12000, scoped, tag = 'internal scratch']
  %s0 = inlined_call_operand.hbm [shape: f32[2,8,32], index: 0, kind: input, shape index: {}]
  %s1 = inlined_call_operand.hbm [shape: f32[2,8,32], index: 1, kind: input, shape index: {}]
  %s2 = inlined_call_operand.hbm [shape: f32[2,8,32], index: 2, kind: input, shape index: {}]
  %s3 = inlined_call_operand.hbm [shape: f32[1,32], index: 3, kind: input, shape index: {}]
  %s4 = inlined_call_operand.hbm [shape: f32[1,32], index: 4, kind: input, shape index: {}]
  %s5 = inlined_call_operand.hbm [shape: bf16[3,32,64], index: 5, kind: input, shape index: {}]
  %s6 = inlined_call_operand.hbm [shape: f32[1,64], index: 6, kind: input, shape index: {}]
  %s7 = inlined_call_operand.hbm [shape: f32[2,8,32], index: 7, kind: output, shape index: {}]
  %s8 = sld [smem:[#allocation0]]
  $region89: #{right_transformer_block.11} parent=0
    _
  %s10 = ssub.s32 1, %s8
  %s11 = scalar_select 0, %s10, %s8
  $region1: #{right_transformer_block.11} parent=0
    #allocation2 [shape = 'u8[8192]{0}', space=vmem, size = 0x2000, scoped, tag = 'input window, operand 0']
    #allocation3 [shape = 's32[2]{0}', space=sflag, size = 0x8, scoped, tag = 'scoped memory for right_transformer_block.11']
    #allocation4 [shape = 's32[2]{0}', space=sflag, size = 0x8, scoped, tag = 'scoped memory for right_transformer_block.11']
    #allocation5 [shape = 'u8[8192]{0}', space=vmem, size = 0x2000, scoped, tag = 'input window, operand 1']
    #allocation6 [shape = 's32[2]{0}', space=sflag, size = 0x8, scoped, tag = 'scoped memory for right_transformer_block.11']
    #allocation7 [shape = 'u8[8192]{0}', space=vmem, size = 0x2000, scoped, tag = 'input window, operand 2']
    #allocation8 [shape = 'u8[512]{0}', space=vmem, size = 0x400, scoped, tag = 'input window, operand 3, single buffered']
    #allocation9 [shape = 's32[1]{0}', space=sflag, size = 0x4, scoped, tag = 'scoped memory for right_transformer_block.11']
    #allocation10 [shape = 'u8[512]{0}', space=vmem, size = 0x400, scoped, tag = 'input window, operand 4, single buffered']
    #allocation11 [shape = 'u8[24576]{0}', space=vmem, size = 0x6000, scoped, tag = 'input window, operand 5, single buffered']
    #allocation12 [shape = 's32[1]{0}', space=sflag, size = 0x4, scoped, tag = 'scoped memory for right_transformer_block.11']
    #allocation13 [shape = 'u8[512]{0}', space=vmem, size = 0x400, scoped, tag = 'input window, operand 6, single buffered']
    #allocation14 [shape = 'u8[8192]{0}', space=vmem, size = 0x2000, scoped, tag = 'output window, operand 0']
    %12 = vsyncpa [#allocation3], 0
    %s13 = scalar_lea.sflag [#allocation3], 1
    %14 = vsyncpa %s13, 0
    %15 = vsyncpa [#allocation6], 0
    %s16 = scalar_lea.sflag [#allocation6], 1
    %17 = vsyncpa %s16, 0
    %18 = vsyncpa [#allocation9], 0
    %19 = vsyncpa [#allocation12], 0
    %20 = vsyncpa [#allocation4], 0
    %s21 = scalar_lea.sflag [#allocation4], 1
    %22 = vsyncpa %s21, 0
    loop: start=0, step=1, limit=4
    $region2: #{right_transformer_block.11} parent=1 // loop_pre_header
      _
    $region3: #{right_transformer_block.11} parent=1 // loop_header
      %s24 = sphi 0, %s28
      %p25 = scmp.ge.s32.totalorder %s24, 4
      %s34 = sphi 0, %s36
      %s37 = sphi 0, %s34
      %s38 = sphi 0, %s37
      %s54 = sphi 0, %s38
      %s60 = sphi 0, %s62
      %s63 = sphi 0, %s60
      %s64 = sphi 0, %s63
      %s80 = sphi 0, %s64
      %s86 = sphi 0, %s88
      %s89 = sphi 0, %s86
      %s90 = sphi 0, %s89
      %s106 = sphi 0, %s90
      %s110 = sphi 0, %s110
      %s112 = sphi 0, %s110
      %s113 = sphi 0, %s112
      %s127 = sphi 0, %s113
      %s131 = sphi 0, %s131
      %s133 = sphi 0, %s131
      %s134 = sphi 0, %s133
      %s148 = sphi 0, %s134
      %s152 = sphi 0, %s152
      %s154 = sphi 0, %s152
      %s155 = sphi 0, %s154
      %s169 = sphi 0, %s155
      %s173 = sphi 0, %s173
      %s175 = sphi 0, %s173
      %s176 = sphi 0, %s175
      %s190 = sphi 0, %s176
      %s196 = sphi 0, %s198
      %s199 = sphi 0, %s196
      %s200 = sphi 0, %s199
      %s216 = sphi 0, %s200
    $region4: #{right_transformer_block.11} parent=1 // loop_header_branch
      %27 = sbr.rel (%p25) target = $region8
    $region5: #{right_transformer_block.11} parent=1 // loop_body
      %s29 = ssub.s32 %s24, 1
      %s30 = ssub.s32 %s24, 2
      %s31 = sadd.s32 %s24, 1
      %s32 = ssub.s32 %s24, %s31
      %p33 = scmp.eq.s32.totalorder %s32, 0
      %s35 = sadd.s32 %s34, 1
      %s36 = scalar_select %p33, %s34, %s35
      %p39 = pneg %p33
      %p40 = scmp.eq.s32.totalorder %s24, 1
      %p41 = por %p39, %p40
      %p42 = scmp.ne.s32.totalorder %s34, %s37
      %p43 = scmp.eq.s32.totalorder %s24, 0
      %p44 = por %p42, %p43
      %p45 = scmp.ne.s32.totalorder %s34, %s37
      %p46 = scmp.eq.s32.totalorder %s29, 1
      %p47 = por %p45, %p46
      %p48 = scmp.ne.s32.totalorder %s37, %s38
      %p49 = scmp.eq.s32.totalorder %s29, 0
      %p50 = por %p48, %p49
      %p51 = scmp.ne.s32.totalorder %s37, %s38
      %p52 = scmp.eq.s32.totalorder %s30, 1
      %p53 = por %p51, %p52
      %p55 = scmp.ne.s32.totalorder %s38, %s54
      %p56 = scmp.eq.s32.totalorder %s30, 0
      %p57 = por %p55, %p56
      %s58 = ssub.s32 %s24, %s31
      %p59 = scmp.eq.s32.totalorder %s58, 0
      %s61 = sadd.s32 %s60, 1
      %s62 = scalar_select %p59, %s60, %s61
      %p65 = pneg %p59
      %p66 = scmp.eq.s32.totalorder %s24, 1
      %p67 = por %p65, %p66
      %p68 = scmp.ne.s32.totalorder %s60, %s63
      %p69 = scmp.eq.s32.totalorder %s24, 0
      %p70 = por %p68, %p69
      %p71 = scmp.ne.s32.totalorder %s60, %s63
      %p72 = scmp.eq.s32.totalorder %s29, 1
      %p73 = por %p71, %p72
      %p74 = scmp.ne.s32.totalorder %s63, %s64
      %p75 = scmp.eq.s32.totalorder %s29, 0
      %p76 = por %p74, %p75
      %p77 = scmp.ne.s32.totalorder %s63, %s64
      %p78 = scmp.eq.s32.totalorder %s30, 1
      %p79 = por %p77, %p78
      %p81 = scmp.ne.s32.totalorder %s64, %s80
      %p82 = scmp.eq.s32.totalorder %s30, 0
      %p83 = por %p81, %p82
      %s84 = ssub.s32 %s24, %s31
      %p85 = scmp.eq.s32.totalorder %s84, 0
      %s87 = sadd.s32 %s86, 1
      %s88 = scalar_select %p85, %s86, %s87
      %p91 = pneg %p85
      %p92 = scmp.eq.s32.totalorder %s24, 1
      %p93 = por %p91, %p92
      %p94 = scmp.ne.s32.totalorder %s86, %s89
      %p95 = scmp.eq.s32.totalorder %s24, 0
      %p96 = por %p94, %p95
      %p97 = scmp.ne.s32.totalorder %s86, %s89
      %p98 = scmp.eq.s32.totalorder %s29, 1
      %p99 = por %p97, %p98
      %p100 = scmp.ne.s32.totalorder %s89, %s90
      %p101 = scmp.eq.s32.totalorder %s29, 0
      %p102 = por %p100, %p101
      %p103 = scmp.ne.s32.totalorder %s89, %s90
      %p104 = scmp.eq.s32.totalorder %s30, 1
      %p105 = por %p103, %p104
      %p107 = scmp.ne.s32.totalorder %s90, %s106
      %p108 = scmp.eq.s32.totalorder %s30, 0
      %p109 = por %p107, %p108
      %s111 = sadd.s32 %s110, 1
      %p114 = scmp.eq.s32.totalorder %s24, 1
      %p115 = scmp.ne.s32.totalorder %s110, %s112
      %p116 = scmp.eq.s32.totalorder %s24, 0
      %p117 = por %p115, %p116
      %p118 = scmp.ne.s32.totalorder %s110, %s112
      %p119 = scmp.eq.s32.totalorder %s29, 1
      %p120 = por %p118, %p119
      %p121 = scmp.ne.s32.totalorder %s112, %s113
      %p122 = scmp.eq.s32.totalorder %s29, 0
      %p123 = por %p121, %p122
      %p124 = scmp.ne.s32.totalorder %s112, %s113
      %p125 = scmp.eq.s32.totalorder %s30, 1
      %p126 = por %p124, %p125
      %p128 = scmp.ne.s32.totalorder %s113, %s127
      %p129 = scmp.eq.s32.totalorder %s30, 0
      %p130 = por %p128, %p129
      %s132 = sadd.s32 %s131, 1
      %p135 = scmp.eq.s32.totalorder %s24, 1
      %p136 = scmp.ne.s32.totalorder %s131, %s133
      %p137 = scmp.eq.s32.totalorder %s24, 0
      %p138 = por %p136, %p137
      %p139 = scmp.ne.s32.totalorder %s131, %s133
      %p140 = scmp.eq.s32.totalorder %s29, 1
      %p141 = por %p139, %p140
      %p142 = scmp.ne.s32.totalorder %s133, %s134
      %p143 = scmp.eq.s32.totalorder %s29, 0
      %p144 = por %p142, %p143
      %p145 = scmp.ne.s32.totalorder %s133, %s134
      %p146 = scmp.eq.s32.totalorder %s30, 1
      %p147 = por %p145, %p146
      %p149 = scmp.ne.s32.totalorder %s134, %s148
      %p150 = scmp.eq.s32.totalorder %s30, 0
      %p151 = por %p149, %p150
      %s153 = sadd.s32 %s152, 1
      %p156 = scmp.eq.s32.totalorder %s24, 1
      %p157 = scmp.ne.s32.totalorder %s152, %s154
      %p158 = scmp.eq.s32.totalorder %s24, 0
      %p159 = por %p157, %p158
      %p160 = scmp.ne.s32.totalorder %s152, %s154
      %p161 = scmp.eq.s32.totalorder %s29, 1
      %p162 = por %p160, %p161
      %p163 = scmp.ne.s32.totalorder %s154, %s155
      %p164 = scmp.eq.s32.totalorder %s29, 0
      %p165 = por %p163, %p164
      %p166 = scmp.ne.s32.totalorder %s154, %s155
      %p167 = scmp.eq.s32.totalorder %s30, 1
      %p168 = por %p166, %p167
      %p170 = scmp.ne.s32.totalorder %s155, %s169
      %p171 = scmp.eq.s32.totalorder %s30, 0
      %p172 = por %p170, %p171
      %s174 = sadd.s32 %s173, 1
      %p177 = scmp.eq.s32.totalorder %s24, 1
      %p178 = scmp.ne.s32.totalorder %s173, %s175
      %p179 = scmp.eq.s32.totalorder %s24, 0
      %p180 = por %p178, %p179
      %p181 = scmp.ne.s32.totalorder %s173, %s175
      %p182 = scmp.eq.s32.totalorder %s29, 1
      %p183 = por %p181, %p182
      %p184 = scmp.ne.s32.totalorder %s175, %s176
      %p185 = scmp.eq.s32.totalorder %s29, 0
      %p186 = por %p184, %p185
      %p187 = scmp.ne.s32.totalorder %s175, %s176
      %p188 = scmp.eq.s32.totalorder %s30, 1
      %p189 = por %p187, %p188
      %p191 = scmp.ne.s32.totalorder %s176, %s190
      %p192 = scmp.eq.s32.totalorder %s30, 0
      %p193 = por %p191, %p192
      %s194 = ssub.s32 %s24, %s31
      %p195 = scmp.eq.s32.totalorder %s194, 0
      %s197 = sadd.s32 %s196, 1
      %s198 = scalar_select %p195, %s196, %s197
      %p201 = pneg %p195
      %p202 = scmp.eq.s32.totalorder %s24, 1
      %p203 = por %p201, %p202
      %p204 = scmp.ne.s32.totalorder %s196, %s199
      %p205 = scmp.eq.s32.totalorder %s24, 0
      %p206 = por %p204, %p205
      %p207 = scmp.ne.s32.totalorder %s196, %s199
      %p208 = scmp.eq.s32.totalorder %s29, 1
      %p209 = por %p207, %p208
      %p210 = scmp.ne.s32.totalorder %s199, %s200
      %p211 = scmp.eq.s32.totalorder %s29, 0
      %p212 = por %p210, %p211
      %p213 = scmp.ne.s32.totalorder %s199, %s200
      %p214 = scmp.eq.s32.totalorder %s30, 1
      %p215 = por %p213, %p214
      %p217 = scmp.ne.s32.totalorder %s200, %s216
      %p218 = scmp.eq.s32.totalorder %s30, 0
      %p219 = por %p217, %p218
      %p220 = scmp.le.s32.totalorder 1, %s24
      %p221 = scmp.lt.s32.totalorder %s24, 3
      %p222 = pnand %p220, %p221
      %p223 = pneg %p222
      // Predicated region
      $region9: #{right_transformer_block.11} parent=5 // pred_check
        _
      $region10: #{right_transformer_block.11} parent=5 // pred_check_branch
        %225 = sbr.rel (%p222) target = $region12
      $region11: #{right_transformer_block.11} parent=5 // pred_region
        %s226 = ssub.s32 %s24, 1
        // Predicated region
        $region13: #{right_transformer_block.11} parent=11 // pred_check
          %p227 = pneg %p123
        $region14: #{right_transformer_block.11} parent=11 // pred_check_branch
          %229 = sbr.rel (%p227) target = $region16
        $region15: #{right_transformer_block.11} parent=11 // pred_region
          %s231 = ssub.s32 16, 16
          %232 = vsyncadd [#allocation9], %s231
          %s234 = sshll.u32 [#allocation8], 4
          %s235 = int_to_ptr.vmem [resolvable:$true] %s234
          %237 = dma.hbm_to_vmem [thread:$0]  %s3, 16, %s235, [#allocation9]
        $region16: #{right_transformer_block.11} parent=11 // pred_fallthru
          _
        // Predicated region
        $region17: #{right_transformer_block.11} parent=11 // pred_check
          %p238 = pneg %p144
        $region18: #{right_transformer_block.11} parent=11 // pred_check_branch
          %240 = sbr.rel (%p238) target = $region20
        $region19: #{right_transformer_block.11} parent=11 // pred_region
          %s242 = ssub.s32 16, 16
          %243 = vsyncadd [#allocation9], %s242
          %s245 = sshll.u32 [#allocation10], 4
          %s246 = int_to_ptr.vmem [resolvable:$true] %s245
          %248 = dma.hbm_to_vmem [thread:$0]  %s4, 16, %s246, [#allocation9]
        $region20: #{right_transformer_block.11} parent=11 // pred_fallthru
          _
        // Predicated region
        $region21: #{right_transformer_block.11} parent=11 // pred_check
          %p249 = pneg %p165
        $region22: #{right_transformer_block.11} parent=11 // pred_check_branch
          %251 = sbr.rel (%p249) target = $region24
        $region23: #{right_transformer_block.11} parent=11 // pred_region
          %s253 = ssub.s32 768, 768
          %254 = vsyncadd [#allocation12], %s253
          %s255 = sshll.u32 [#allocation11], 4
          %s256 = int_to_ptr.vmem [resolvable:$true] %s255
          %261 = dma.hbm_to_vmem [thread:$0]  %s5, 768, %s256, [#allocation12], 64, 64, 4
        $region24: #{right_transformer_block.11} parent=11 // pred_fallthru
          _
        // Predicated region
        $region25: #{right_transformer_block.11} parent=11 // pred_check
          %p262 = pneg %p186
        $region26: #{right_transformer_block.11} parent=11 // pred_check_branch
          %264 = sbr.rel (%p262) target = $region28
        $region27: #{right_transformer_block.11} parent=11 // pred_region
          %s266 = ssub.s32 16, 16
          %267 = vsyncadd [#allocation12], %s266
          %s269 = sshll.u32 [#allocation13], 4
          %s270 = int_to_ptr.vmem [resolvable:$true] %s269
          %272 = dma.hbm_to_vmem [thread:$0]  %s6, 16, %s270, [#allocation12]
        $region28: #{right_transformer_block.11} parent=11 // pred_fallthru
          _
      $region12: #{right_transformer_block.11} parent=5 // pred_fallthru
        _
      %p273 = scmp.lt.s32.totalorder %s24, 2
      // Predicated region
      $region29: #{right_transformer_block.11} parent=5 // pred_check
        %p274 = pneg %p273
      $region30: #{right_transformer_block.11} parent=5 // pred_check_branch
        %276 = sbr.rel (%p274) target = $region32
      $region31: #{right_transformer_block.11} parent=5 // pred_region
        // Predicated region
        $region33: #{right_transformer_block.11} parent=31 // pred_check
          %p277 = pneg %p44
        $region34: #{right_transformer_block.11} parent=31 // pred_check_branch
          %279 = sbr.rel (%p277) target = $region36
        $region35: #{right_transformer_block.11} parent=31 // pred_region
          %s280 = sand.u32 %s34, 1
          %s281 = scalar_lea.sflag [#allocation3], %s280
          %s282 = sand.u32 %s34, 1
          %s283 = smul.addr %s282, 8
          %s284 = scalar_lea.vmem [#allocation2], %s283
          %s286 = ssub.s32 128, 128
          %287 = vsyncadd %s281, %s286
          %s288 = smul.addr %s24, 128
          %s289 = scalar_lea.hbm %s0, %s288
          %s291 = sshll.u32 %s284, 4
          %s292 = int_to_ptr.vmem [resolvable:$true] %s291
          %294 = dma.hbm_to_vmem [thread:$0]  %s289, 128, %s292, %s281
        $region36: #{right_transformer_block.11} parent=31 // pred_fallthru
          _
        // Predicated region
        $region37: #{right_transformer_block.11} parent=31 // pred_check
          %p295 = pneg %p70
        $region38: #{right_transformer_block.11} parent=31 // pred_check_branch
          %297 = sbr.rel (%p295) target = $region40
        $region39: #{right_transformer_block.11} parent=31 // pred_region
          %s298 = sand.u32 %s24, 1
          %s299 = scalar_lea.sflag [#allocation6], %s298
          %s300 = sand.u32 %s60, 1
          %s301 = smul.addr %s300, 8
          %s302 = scalar_lea.vmem [#allocation5], %s301
          %s304 = ssub.s32 128, 128
          %305 = vsyncadd %s299, %s304
          %s306 = smul.addr %s24, 128
          %s307 = scalar_lea.hbm %s1, %s306
          %s309 = sshll.u32 %s302, 4
          %s310 = int_to_ptr.vmem [resolvable:$true] %s309
          %312 = dma.hbm_to_vmem [thread:$0]  %s307, 128, %s310, %s299
        $region40: #{right_transformer_block.11} parent=31 // pred_fallthru
          _
        // Predicated region
        $region41: #{right_transformer_block.11} parent=31 // pred_check
          %p313 = pneg %p96
        $region42: #{right_transformer_block.11} parent=31 // pred_check_branch
          %315 = sbr.rel (%p313) target = $region44
        $region43: #{right_transformer_block.11} parent=31 // pred_region
          %s316 = sand.u32 %s24, 1
          %s317 = scalar_lea.sflag [#allocation6], %s316
          %s318 = sand.u32 %s86, 1
          %s319 = smul.addr %s318, 8
          %s320 = scalar_lea.vmem [#allocation7], %s319
          %s322 = ssub.s32 128, 128
          %323 = vsyncadd %s317, %s322
          %s324 = smul.addr %s24, 128
          %s325 = scalar_lea.hbm %s2, %s324
          %s327 = sshll.u32 %s320, 4
          %s328 = int_to_ptr.vmem [resolvable:$true] %s327
          %330 = dma.hbm_to_vmem [thread:$0]  %s325, 128, %s328, %s317
        $region44: #{right_transformer_block.11} parent=31 // pred_fallthru
          _
      $region32: #{right_transformer_block.11} parent=5 // pred_fallthru
        _
      %p331 = scmp.le.s32.totalorder 1, %s24
      %p332 = scmp.lt.s32.totalorder %s24, 3
      %p333 = pnand %p331, %p332
      %p334 = pneg %p333
      // Predicated region
      $region45: #{right_transformer_block.11} parent=5 // pred_check
        _
      $region46: #{right_transformer_block.11} parent=5 // pred_check_branch
        %336 = sbr.rel (%p333) target = $region48
      $region47: #{right_transformer_block.11} parent=5 // pred_region
        %s337 = ssub.s32 %s24, 1
        %s338 = sand.u32 %s37, 1
        %s339 = scalar_lea.sflag [#allocation3], %s338
        %s340 = sand.u32 %s37, 1
        %s341 = smul.addr %s340, 8
        %s342 = scalar_lea.vmem [#allocation2], %s341
        // Predicated region
        $region49: #{right_transformer_block.11} parent=47 // pred_check
          %p343 = pneg %p50
        $region50: #{right_transformer_block.11} parent=47 // pred_check_branch
          %345 = sbr.rel (%p343) target = $region52
        $region51: #{right_transformer_block.11} parent=47 // pred_region
          %346 = dma.done %s339, 128
        $region52: #{right_transformer_block.11} parent=47 // pred_fallthru
          _
        %s347 = sand.u32 %s29, 1
        %s348 = scalar_lea.sflag [#allocation6], %s347
        %s349 = sand.u32 %s63, 1
        %s350 = smul.addr %s349, 8
        %s351 = scalar_lea.vmem [#allocation5], %s350
        // Predicated region
        $region53: #{right_transformer_block.11} parent=47 // pred_check
          %p352 = pneg %p76
        $region54: #{right_transformer_block.11} parent=47 // pred_check_branch
          %354 = sbr.rel (%p352) target = $region56
        $region55: #{right_transformer_block.11} parent=47 // pred_region
          %355 = dma.done %s348, 128
        $region56: #{right_transformer_block.11} parent=47 // pred_fallthru
          _
        %s356 = sand.u32 %s29, 1
        %s357 = scalar_lea.sflag [#allocation6], %s356
        %s358 = sand.u32 %s89, 1
        %s359 = smul.addr %s358, 8
        %s360 = scalar_lea.vmem [#allocation7], %s359
        // Predicated region
        $region57: #{right_transformer_block.11} parent=47 // pred_check
          %p361 = pneg %p102
        $region58: #{right_transformer_block.11} parent=47 // pred_check_branch
          %363 = sbr.rel (%p361) target = $region60
        $region59: #{right_transformer_block.11} parent=47 // pred_region
          %364 = dma.done %s357, 128
        $region60: #{right_transformer_block.11} parent=47 // pred_fallthru
          _
        // Predicated region
        $region61: #{right_transformer_block.11} parent=47 // pred_check
          %p365 = pneg %p123
        $region62: #{right_transformer_block.11} parent=47 // pred_check_branch
          %367 = sbr.rel (%p365) target = $region64
        $region63: #{right_transformer_block.11} parent=47 // pred_region
          %368 = dma.done [#allocation9], 16
        $region64: #{right_transformer_block.11} parent=47 // pred_fallthru
          _
        // Predicated region
        $region65: #{right_transformer_block.11} parent=47 // pred_check
          %p369 = pneg %p144
        $region66: #{right_transformer_block.11} parent=47 // pred_check_branch
          %371 = sbr.rel (%p369) target = $region68
        $region67: #{right_transformer_block.11} parent=47 // pred_region
          %372 = dma.done [#allocation9], 16
        $region68: #{right_transformer_block.11} parent=47 // pred_fallthru
          _
        // Predicated region
        $region69: #{right_transformer_block.11} parent=47 // pred_check
          %p373 = pneg %p165
        $region70: #{right_transformer_block.11} parent=47 // pred_check_branch
          %375 = sbr.rel (%p373) target = $region72
        $region71: #{right_transformer_block.11} parent=47 // pred_region
          %376 = dma.done [#allocation12], 768
        $region72: #{right_transformer_block.11} parent=47 // pred_fallthru
          _
        // Predicated region
        $region73: #{right_transformer_block.11} parent=47 // pred_check
          %p377 = pneg %p186
        $region74: #{right_transformer_block.11} parent=47 // pred_check_branch
          %379 = sbr.rel (%p377) target = $region76
        $region75: #{right_transformer_block.11} parent=47 // pred_region
          %380 = dma.done [#allocation12], 16
        $region76: #{right_transformer_block.11} parent=47 // pred_fallthru
          _
        %s381 = sand.u32 %s37, 1
        %s382 = scalar_lea.sflag [#allocation3], %s381
        %s383 = sand.u32 %s37, 1
        %s384 = smul.addr %s383, 8
        %s385 = scalar_lea.vmem [#allocation2], %s384
        %p386 = pneg %p50
        %p387 = pneg %p47
        %s388 = sand.u32 %s29, 1
        %s389 = scalar_lea.sflag [#allocation6], %s388
        %s390 = sand.u32 %s63, 1
        %s391 = smul.addr %s390, 8
        %s392 = scalar_lea.vmem [#allocation5], %s391
        %p393 = pneg %p76
        %p394 = pneg %p73
        %s395 = sand.u32 %s29, 1
        %s396 = scalar_lea.sflag [#allocation6], %s395
        %s397 = sand.u32 %s89, 1
        %s398 = smul.addr %s397, 8
        %s399 = scalar_lea.vmem [#allocation7], %s398
        %p400 = pneg %p102
        %p401 = pneg %p99
        %p402 = pneg %p123
        %p403 = pneg %p120
        %p404 = pneg %p144
        %p405 = pneg %p141
        %p406 = pneg %p165
        %p407 = pneg %p162
        %p408 = pneg %p186
        %p409 = pneg %p183
        %p410 = pneg %p212
        %p411 = pneg %p209
        %s412 = sand.u32 %s199, 1
        %s413 = scalar_lea.sflag [#allocation4], %s412
        %s414 = sand.u32 %s199, 1
        %s415 = smul.addr %s414, 8
        %s416 = scalar_lea.vmem [#allocation14], %s415
        %v418 = vld [vmem:[%s342] sm:$0xff]
        %vm419 = vcmask 261120
        %v420 = vsel %vm419, %v418, 0.0
        %421 = vadd.xlane.f32.xlu0 %v420
        %v422 = vpop.xlane.xlu0 %421
        %v423 = vrcp.pop 32.0
        %v424 = vmul.f32 %v422, %v423
        %v425 = vsub.f32 %v418, %v424
        %v426 = vmul.f32 %v425, %v425
        %v427 = vsel %vm419, %v426, 0.0
        %428 = vadd.xlane.f32.xlu0 %v427
        %v429 = vpop.xlane.xlu0 %428
        %v430 = vmul.f32 %v429, %v423
        %v431 = vadd.f32 %v430, 1e-06
        %v432 = vrsqrt.pop %v431
        %v433 = vmul.f32 %v425, %v432
        %v434 = vld [vmem:[#allocation8] sm:$0x1]
        %v436 = vlaneseq
        %v437 = vshrl.u32 %v436, 7
        %v438 = vsub.s32 0, %v437
        %v439 = vrot.slane %v434, %v438
        %v441 = vmul.f32 %v433, %v439
        %v442 = vld [vmem:[#allocation10] sm:$0x1]
        %v444 = vlaneseq
        %v445 = vshrl.u32 %v444, 7
        %v446 = vsub.s32 0, %v445
        %v447 = vrot.slane %v442, %v446
        %v449 = vadd.f32 %v441, %v447
        %v450 = vld [vmem:[%s360] sm:$0xff]
        %v451 = vadd.f32 %v449, %v450
        %v452 = vld [vmem:[%s351] sm:$0xff]
        %v453 = vadd.f32 %v451, %v452
        %v454 = vlaneseq
        %v455 = vshrl.u32 %v454, 7
        %vm456 = vcmp.eq.s32.totalorder %v455, 0
        %v457 = vrot.slane %v453, 7
        %v458 = vsel %vm456, 0.0, %v457
        %vm459 = vcmp.eq.s32.totalorder %v455, 7
        %v460 = vrot.slane %v453, 1
        %v461 = vsel %vm459, 0.0, %v460
        %v462 = vpack.c.bf16 %v458, %v458
        %v463 = vld [vmem:[#allocation11] sm:$0xf]
        %v464 = vld [vmem:[#allocation11 + $0x4] sm:$0xf]
        %v465 = vld [vmem:[#allocation11 + $0x8] sm:$0xf]
        %v466 = vld [vmem:[#allocation11 + $0xc] sm:$0xf]
        %v467 = vpack.c.bf16 %v453, %v453
        %s468 = scalar_lea.vmem [#allocation11], 16
        %v469 = vld [vmem:[%s468] sm:$0xf]
        %v470 = vld [vmem:[%s468 + $0x4] sm:$0xf]
        %v471 = vld [vmem:[%s468 + $0x8] sm:$0xf]
        %v472 = vld [vmem:[%s468 + $0xc] sm:$0xf]
        %v477 = vunpack.c.l.b16 %v469
        %v478 = vunpack.c.l.b16 %v470
        %v479 = vunpack.c.l.b16 %v471
        %v480 = vunpack.c.l.b16 %v472
        %v481 = vpack.c.b16 %v478, %v477
        %v482 = vpack.c.b16 %v480, %v479
        %v486 = vsel %vm419, %v467, 0
        %488 = vmatprep.subr.bf16.mxu0 0
        %489 = vmatpush1.bf16.msra.mxu0 %v481
        %490 = vmatprep.subr.bf16.mxu0 0
        %491 = vmatpush1.bf16.msra.mxu0 %v482
        %492 = vmatprep.subr.bf16.mxu0 0
        %493 = vmatpush1.bf16.msra.mxu0 0
        %494 = vmatprep.subr.bf16.mxu0 0
        %495 = vmatpush1.bf16.msra.mxu0 0
        %496 = vmatprep.subr.bf16.mxu0 0
        %497 = vmatpush1.bf16.msra.mxu0 0
        %498 = vmatprep.subr.bf16.mxu0 0
        %499 = vmatpush1.bf16.msra.mxu0 0
        %500 = vmatprep.subr.bf16.mxu0 0
        %501 = vmatpush1.bf16.msra.mxu0 0
        %502 = vmatprep.subr.bf16.mxu0 0
        %503 = vmatpush1.bf16.msra.mxu0 0
        %504 = vmatprep.subr.bf16.mxu0 0
        %505 = vmatpush1.bf16.msra.mxu0 0
        %506 = vmatprep.subr.bf16.mxu0 0
        %507 = vmatpush1.bf16.msra.mxu0 0
        %508 = vmatprep.subr.bf16.mxu0 0
        %509 = vmatpush1.bf16.msra.mxu0 0
        %510 = vmatprep.subr.bf16.mxu0 0
        %511 = vmatpush1.bf16.msra.mxu0 0
        %512 = vmatprep.subr.bf16.mxu0 0
        %513 = vmatpush1.bf16.msra.mxu0 0
        %514 = vmatprep.subr.bf16.mxu0 0
        %515 = vmatpush1.bf16.msra.mxu0 0
        %516 = vmatprep.subr.bf16.mxu0 0
        %517 = vmatpush1.bf16.msra.mxu0 0
        %518 = vmatprep.subr.bf16.mxu0 0
        %519 = vmatpush1.bf16.msra.mxu0 0
        %520 = vmatprep.mubr.bf16.mxu0 0
        %521 = vmatmul.mubr.bf16.gmra.mrb[0].mxu0 %v486
        %v522 = vpop.f32.mrb[0].mxu0
        %v523 = vadd.f32 0.0, %v522
        %v524 = vpop.f32.mrb[0].mxu0
        %v525 = vpop.f32.mrb[0].mxu0
        %v526 = vpop.f32.mrb[0].mxu0
        %527 = vdwg.mxu0
        %v532 = vunpack.c.l.b16 %v463
        %v533 = vunpack.c.l.b16 %v464
        %v534 = vunpack.c.l.b16 %v465
        %v535 = vunpack.c.l.b16 %v466
        %v536 = vpack.c.b16 %v533, %v532
        %v537 = vpack.c.b16 %v535, %v534
        %v541 = vsel %vm419, %v462, 0
        %543 = vmatprep.subr.bf16.mxu0 0
        %544 = vmatpush1.bf16.msra.mxu0 %v536
        %545 = vmatprep.subr.bf16.mxu0 0
        %546 = vmatpush1.bf16.msra.mxu0 %v537
        %547 = vmatprep.subr.bf16.mxu0 0
        %548 = vmatpush1.bf16.msra.mxu0 0
        %549 = vmatprep.subr.bf16.mxu0 0
        %550 = vmatpush1.bf16.msra.mxu0 0
        %551 = vmatprep.subr.bf16.mxu0 0
        %552 = vmatpush1.bf16.msra.mxu0 0
        %553 = vmatprep.subr.bf16.mxu0 0
        %554 = vmatpush1.bf16.msra.mxu0 0
        %555 = vmatprep.subr.bf16.mxu0 0
        %556 = vmatpush1.bf16.msra.mxu0 0
        %557 = vmatprep.subr.bf16.mxu0 0
        %558 = vmatpush1.bf16.msra.mxu0 0
        %559 = vmatprep.subr.bf16.mxu0 0
        %560 = vmatpush1.bf16.msra.mxu0 0
        %561 = vmatprep.subr.bf16.mxu0 0
        %562 = vmatpush1.bf16.msra.mxu0 0
        %563 = vmatprep.subr.bf16.mxu0 0
        %564 = vmatpush1.bf16.msra.mxu0 0
        %565 = vmatprep.subr.bf16.mxu0 0
        %566 = vmatpush1.bf16.msra.mxu0 0
        %567 = vmatprep.subr.bf16.mxu0 0
        %568 = vmatpush1.bf16.msra.mxu0 0
        %569 = vmatprep.subr.bf16.mxu0 0
        %570 = vmatpush1.bf16.msra.mxu0 0
        %571 = vmatprep.subr.bf16.mxu0 0
        %572 = vmatpush1.bf16.msra.mxu0 0
        %573 = vmatprep.subr.bf16.mxu0 0
        %574 = vmatpush1.bf16.msra.mxu0 0
        %575 = vmatprep.mubr.bf16.mxu0 0
        %576 = vmatmul.mubr.bf16.gmra.mrb[0].mxu0 %v541
        %v577 = vpop.f32.mrb[0].mxu0
        %v578 = vadd.f32 %v523, %v577
        %v579 = vpop.f32.mrb[0].mxu0
        %v580 = vpop.f32.mrb[0].mxu0
        %v581 = vpop.f32.mrb[0].mxu0
        %582 = vdwg.mxu0
        %v583 = vpack.c.bf16 %v461, %v461
        %s584 = scalar_lea.vmem [#allocation11], 32
        %v585 = vld [vmem:[%s584] sm:$0xf]
        %v586 = vld [vmem:[%s584 + $0x4] sm:$0xf]
        %v587 = vld [vmem:[%s584 + $0x8] sm:$0xf]
        %v588 = vld [vmem:[%s584 + $0xc] sm:$0xf]
        %v593 = vunpack.c.l.b16 %v585
        %v594 = vunpack.c.l.b16 %v586
        %v595 = vunpack.c.l.b16 %v587
        %v596 = vunpack.c.l.b16 %v588
        %v597 = vpack.c.b16 %v594, %v593
        %v598 = vpack.c.b16 %v596, %v595
        %v602 = vsel %vm419, %v583, 0
        %604 = vmatprep.subr.bf16.mxu0 0
        %605 = vmatpush1.bf16.msra.mxu0 %v597
        %606 = vmatprep.subr.bf16.mxu0 0
        %607 = vmatpush1.bf16.msra.mxu0 %v598
        %608 = vmatprep.subr.bf16.mxu0 0
        %609 = vmatpush1.bf16.msra.mxu0 0
        %610 = vmatprep.subr.bf16.mxu0 0
        %611 = vmatpush1.bf16.msra.mxu0 0
        %612 = vmatprep.subr.bf16.mxu0 0
        %613 = vmatpush1.bf16.msra.mxu0 0
        %614 = vmatprep.subr.bf16.mxu0 0
        %615 = vmatpush1.bf16.msra.mxu0 0
        %616 = vmatprep.subr.bf16.mxu0 0
        %617 = vmatpush1.bf16.msra.mxu0 0
        %618 = vmatprep.subr.bf16.mxu0 0
        %619 = vmatpush1.bf16.msra.mxu0 0
        %620 = vmatprep.subr.bf16.mxu0 0
        %621 = vmatpush1.bf16.msra.mxu0 0
        %622 = vmatprep.subr.bf16.mxu0 0
        %623 = vmatpush1.bf16.msra.mxu0 0
        %624 = vmatprep.subr.bf16.mxu0 0
        %625 = vmatpush1.bf16.msra.mxu0 0
        %626 = vmatprep.subr.bf16.mxu0 0
        %627 = vmatpush1.bf16.msra.mxu0 0
        %628 = vmatprep.subr.bf16.mxu0 0
        %629 = vmatpush1.bf16.msra.mxu0 0
        %630 = vmatprep.subr.bf16.mxu0 0
        %631 = vmatpush1.bf16.msra.mxu0 0
        %632 = vmatprep.subr.bf16.mxu0 0
        %633 = vmatpush1.bf16.msra.mxu0 0
        %634 = vmatprep.subr.bf16.mxu0 0
        %635 = vmatpush1.bf16.msra.mxu0 0
        %636 = vmatprep.mubr.bf16.mxu0 0
        %637 = vmatmul.mubr.bf16.gmra.mrb[0].mxu0 %v602
        %v638 = vpop.f32.mrb[0].mxu0
        %v639 = vadd.f32 0.0, %v638
        %v640 = vpop.f32.mrb[0].mxu0
        %v641 = vpop.f32.mrb[0].mxu0
        %v642 = vpop.f32.mrb[0].mxu0
        %643 = vdwg.mxu0
        %v644 = vadd.f32 %v578, %v639
        %v645 = vld [vmem:[#allocation13] sm:$0x1]
        %v647 = vlaneseq
        %v648 = vshrl.u32 %v647, 7
        %v649 = vsub.s32 0, %v648
        %v650 = vrot.slane %v645, %v649
        %v652 = vadd.f32 %v644, %v650
        %v653 = vxor.u32 %v652, 2147483648
        %v654 = vmul.f32 %v653, 1.442695
        %v655 = vpow.pop %v654
        %v656 = vadd.f32 %v655, 1.0
        %v657 = vrcp.pop %v656
        %v658 = vmul.f32 1.0, %v657
        %660 = vrot.lane.b32.xlu0 %v658, 32
        %v661 = vpop.permute.xlu0 %660
        %v663 = vmul.f32 %v652, %v661
        %665 = vrot.lane.b32.xlu0 %v663, 96
        %v666 = vpop.permute.xlu0 %665
        %v668 = vadd.f32 %v418, %v666
        %669 = vst.msk [vmem:[%s416] sm:$0xff] %vm419, %v668
        %s670 = sand.u32 %s199, 1
        %s671 = scalar_lea.sflag [#allocation4], %s670
        %s672 = sand.u32 %s199, 1
        %s673 = smul.addr %s672, 8
        %s674 = scalar_lea.vmem [#allocation14], %s673
        // Predicated region
        $region77: #{right_transformer_block.11} parent=47 // pred_check
          %p675 = pneg %p209
        $region78: #{right_transformer_block.11} parent=47 // pred_check_branch
          %677 = sbr.rel (%p675) target = $region80
        $region79: #{right_transformer_block.11} parent=47 // pred_region
          %s679 = ssub.s32 128, 128
          %680 = vsyncadd %s671, %s679
          %s681 = smul.addr %s29, 128
          %s682 = scalar_lea.hbm %s7, %s681
          %s684 = sshll.u32 %s674, 4
          %s685 = int_to_ptr.vmem [resolvable:$true] %s684
          %687 = dma.vmem_to_hbm [thread:$0]  %s685, 128, %s682, %s671
        $region80: #{right_transformer_block.11} parent=47 // pred_fallthru
          _
      $region48: #{right_transformer_block.11} parent=5 // pred_fallthru
        _
      %p688 = scmp.le.s32.totalorder 2, %s24
      // Predicated region
      $region81: #{right_transformer_block.11} parent=5 // pred_check
        %p689 = pneg %p688
      $region82: #{right_transformer_block.11} parent=5 // pred_check_branch
        %691 = sbr.rel (%p689) target = $region84
      $region83: #{right_transformer_block.11} parent=5 // pred_region
        %s692 = ssub.s32 %s24, 2
        // Predicated region
        $region85: #{right_transformer_block.11} parent=83 // pred_check
          %p693 = pneg %p215
        $region86: #{right_transformer_block.11} parent=83 // pred_check_branch
          %695 = sbr.rel (%p693) target = $region88
        $region87: #{right_transformer_block.11} parent=83 // pred_region
          %s696 = sand.u32 %s200, 1
          %s697 = scalar_lea.sflag [#allocation4], %s696
          %s698 = sand.u32 %s200, 1
          %s699 = smul.addr %s698, 8
          %s700 = scalar_lea.vmem [#allocation14], %s699
          %701 = dma.done %s697, 128
        $region88: #{right_transformer_block.11} parent=83 // pred_fallthru
          _
      $region84: #{right_transformer_block.11} parent=5 // pred_fallthru
        _
    $region6: #{right_transformer_block.11} parent=1 // loop_footer
      %s28 = sadd.s32 1, %s24
    $region7: #{right_transformer_block.11} parent=1 // loop_footer_branch
      %23 = sbr.rel target = $region3
    $region8: #{right_transformer_block.11} parent=1 // loop_exit
      _
    %702 = vsyncpa [#allocation3], 1
    %s703 = scalar_lea.sflag [#allocation3], 1
    %704 = vsyncpa %s703, 1
    %705 = vsyncpa [#allocation6], 1
    %s706 = scalar_lea.sflag [#allocation6], 1
    %707 = vsyncpa %s706, 1
    %708 = vsyncpa [#allocation9], 1
    %709 = vsyncpa [#allocation12], 1
    %710 = vsyncpa [#allocation4], 1
    %s711 = scalar_lea.sflag [#allocation4], 1
    %712 = vsyncpa %s711, 1

// kernel: right_transformer_block.10
$region0: #{right_transformer_block.10}
  #allocation0 [shape = 'u32[]', space=smem, size = 0x4, offset = 0x4, fixed_abs, tag = 'smem constant byte address 0x4 - core index']
  #allocation1 [shape = 'u32[144,128]{1,0:T(1,128)}', space=vmem, size = 0x12000, scoped, tag = 'internal scratch']
  #allocation2 [shape = 'f32[8,4]{1,0:T(8,128)}', space=vmem, size = 0x1000, scoped, tag = 'scratch operand']
  #allocation3 [shape = 'f32[8,4]{1,0:T(8,128)}', space=vmem, size = 0x1000, scoped, tag = 'scratch operand']
  #allocation4 [shape = 'f32[8,32]{1,0:T(8,128)}', space=vmem, size = 0x1000, scoped, tag = 'scratch operand']
  %s0 = inlined_call_operand.hbm [shape: bf16[2,8,32], index: 0, kind: input, shape index: {}]
  %s1 = inlined_call_operand.hbm [shape: bf16[2,8,32], index: 1, kind: input, shape index: {}]
  %s2 = inlined_call_operand.hbm [shape: bf16[2,8,32], index: 2, kind: input, shape index: {}]
  %s3 = inlined_call_operand.hbm [shape: bf16[2,8,8], index: 3, kind: input, shape index: {}]
  %s4 = inlined_call_operand.hbm [shape: bf16[32,32], index: 4, kind: input, shape index: {}]
  %s5 = inlined_call_operand.hbm [shape: f32[1,32], index: 5, kind: input, shape index: {}]
  %s6 = inlined_call_operand.hbm [shape: f32[2,8,32], index: 6, kind: input, shape index: {}]
  %s7 = inlined_call_operand.hbm [shape: f32[2,8,32], index: 7, kind: output, shape index: {}]
  %s8 = sld [smem:[#allocation0]]
  $region97: #{right_transformer_block.10} parent=0
    _
  %s10 = ssub.s32 1, %s8
  %s11 = scalar_select 0, %s10, %s8
  $region1: #{right_transformer_block.10} parent=0
    #allocation5 [shape = 'u8[4096]{0}', space=vmem, size = 0x1000, scoped, tag = 'input window, operand 0']
    #allocation6 [shape = 's32[2]{0}', space=sflag, size = 0x8, scoped, tag = 'scoped memory for right_transformer_block.10']
    #allocation7 [shape = 's32[2]{0}', space=sflag, size = 0x8, scoped, tag = 'scoped memory for right_transformer_block.10']
    #allocation8 [shape = 'u8[4096]{0}', space=vmem, size = 0x1000, scoped, tag = 'input window, operand 1']
    #allocation9 [shape = 's32[2]{0}', space=sflag, size = 0x8, scoped, tag = 'scoped memory for right_transformer_block.10']
    #allocation10 [shape = 'u8[4096]{0}', space=vmem, size = 0x1000, scoped, tag = 'input window, operand 2']
    #allocation11 [shape = 'u8[4096]{0}', space=vmem, size = 0x1000, scoped, tag = 'input window, operand 3']
    #allocation12 [shape = 's32[2]{0}', space=sflag, size = 0x8, scoped, tag = 'scoped memory for right_transformer_block.10']
    #allocation13 [shape = 'u8[8192]{0}', space=vmem, size = 0x2000, scoped, tag = 'input window, operand 4, single buffered']
    #allocation14 [shape = 'u8[512]{0}', space=vmem, size = 0x400, scoped, tag = 'input window, operand 5, single buffered']
    #allocation15 [shape = 's32[1]{0}', space=sflag, size = 0x4, scoped, tag = 'scoped memory for right_transformer_block.10']
    #allocation16 [shape = 'u8[8192]{0}', space=vmem, size = 0x2000, scoped, tag = 'input window, operand 6']
    #allocation17 [shape = 'u8[8192]{0}', space=vmem, size = 0x2000, scoped, tag = 'output window, operand 0']
    %12 = vsyncpa [#allocation6], 0
    %s13 = scalar_lea.sflag [#allocation6], 1
    %14 = vsyncpa %s13, 0
    %15 = vsyncpa [#allocation9], 0
    %s16 = scalar_lea.sflag [#allocation9], 1
    %17 = vsyncpa %s16, 0
    %18 = vsyncpa [#allocation12], 0
    %s19 = scalar_lea.sflag [#allocation12], 1
    %20 = vsyncpa %s19, 0
    %21 = vsyncpa [#allocation15], 0
    %22 = vsyncpa [#allocation7], 0
    %s23 = scalar_lea.sflag [#allocation7], 1
    %24 = vsyncpa %s23, 0
    loop: start=0, step=1, limit=4
    $region2: #{right_transformer_block.10} parent=1 // loop_pre_header
      _
    $region3: #{right_transformer_block.10} parent=1 // loop_header
      %s26 = sphi 0, %s30
      %p27 = scmp.ge.s32.totalorder %s26, 4
      %s33 = sphi 0, %s52
      %s34 = sphi 0, %s48
      %s35 = sphi 0, %s44
      %s36 = sphi 0, %s33
      %s37 = sphi 0, %s34
      %s38 = sphi 0, %s35
      %s39 = sphi 0, %s36
      %s40 = sphi 0, %s37
      %s41 = sphi 0, %s38
      %s57 = sphi 0, %s59
      %s60 = sphi 0, %s57
      %s61 = sphi 0, %s60
      %s77 = sphi 0, %s61
      %s85 = sphi 0, %s87
      %s88 = sphi 0, %s85
      %s89 = sphi 0, %s88
      %s105 = sphi 0, %s89
      %s113 = sphi 0, %s115
      %s116 = sphi 0, %s113
      %s117 = sphi 0, %s116
      %s133 = sphi 0, %s117
      %s143 = sphi 0, %s145
      %s146 = sphi 0, %s143
      %s147 = sphi 0, %s146
      %s163 = sphi 0, %s147
      %s167 = sphi 0, %s167
      %s169 = sphi 0, %s167
      %s170 = sphi 0, %s169
      %s184 = sphi 0, %s170
      %s188 = sphi 0, %s188
      %s190 = sphi 0, %s188
      %s191 = sphi 0, %s190
      %s205 = sphi 0, %s191
      %s213 = sphi 0, %s215
      %s216 = sphi 0, %s213
      %s217 = sphi 0, %s216
      %s233 = sphi 0, %s217
      %s241 = sphi 0, %s243
      %s244 = sphi 0, %s241
      %s245 = sphi 0, %s244
      %s261 = sphi 0, %s245
    $region4: #{right_transformer_block.10} parent=1 // loop_header_branch
      %29 = sbr.rel (%p27) target = $region8
    $region5: #{right_transformer_block.10} parent=1 // loop_body
      %s31 = ssub.s32 %s26, 1
      %s32 = ssub.s32 %s26, 2
      %s42 = sadd.s32 1, %s35
      %p43 = scmp.ge.s32.totalorder %s42, 1
      %s44 = scalar_select %p43, 0, %s42
      %s45 = sadd.s32 1, %s34
      %s46 = scalar_select %p43, %s45, %s34
      %p47 = scmp.ge.s32.totalorder %s46, 1
      %s48 = scalar_select %p47, 0, %s46
      %s49 = sadd.s32 1, %s33
      %s50 = scalar_select %p47, %s49, %s33
      %p51 = scmp.ge.s32.totalorder %s50, 2
      %s52 = scalar_select %p51, 0, %s50
      %s53 = ssub.s32 %s33, %s52
      %s54 = ssub.s32 %s34, %s48
      %s55 = sor.u32 %s53, %s54
      %p56 = scmp.eq.s32.totalorder %s55, 0
      %s58 = sadd.s32 %s57, 1
      %s59 = scalar_select %p56, %s57, %s58
      %p62 = pneg %p56
      %p63 = scmp.eq.s32.totalorder %s26, 1
      %p64 = por %p62, %p63
      %p65 = scmp.ne.s32.totalorder %s57, %s60
      %p66 = scmp.eq.s32.totalorder %s26, 0
      %p67 = por %p65, %p66
      %p68 = scmp.ne.s32.totalorder %s57, %s60
      %p69 = scmp.eq.s32.totalorder %s31, 1
      %p70 = por %p68, %p69
      %p71 = scmp.ne.s32.totalorder %s60, %s61
      %p72 = scmp.eq.s32.totalorder %s31, 0
      %p73 = por %p71, %p72
      %p74 = scmp.ne.s32.totalorder %s60, %s61
      %p75 = scmp.eq.s32.totalorder %s32, 1
      %p76 = por %p74, %p75
      %p78 = scmp.ne.s32.totalorder %s61, %s77
      %p79 = scmp.eq.s32.totalorder %s32, 0
      %p80 = por %p78, %p79
      %s81 = ssub.s32 %s33, %s52
      %s82 = ssub.s32 %s35, %s44
      %s83 = sor.u32 %s81, %s82
      %p84 = scmp.eq.s32.totalorder %s83, 0
      %s86 = sadd.s32 %s85, 1
      %s87 = scalar_select %p84, %s85, %s86
      %p90 = pneg %p84
      %p91 = scmp.eq.s32.totalorder %s26, 1
      %p92 = por %p90, %p91
      %p93 = scmp.ne.s32.totalorder %s85, %s88
      %p94 = scmp.eq.s32.totalorder %s26, 0
      %p95 = por %p93, %p94
      %p96 = scmp.ne.s32.totalorder %s85, %s88
      %p97 = scmp.eq.s32.totalorder %s31, 1
      %p98 = por %p96, %p97
      %p99 = scmp.ne.s32.totalorder %s88, %s89
      %p100 = scmp.eq.s32.totalorder %s31, 0
      %p101 = por %p99, %p100
      %p102 = scmp.ne.s32.totalorder %s88, %s89
      %p103 = scmp.eq.s32.totalorder %s32, 1
      %p104 = por %p102, %p103
      %p106 = scmp.ne.s32.totalorder %s89, %s105
      %p107 = scmp.eq.s32.totalorder %s32, 0
      %p108 = por %p106, %p107
      %s109 = ssub.s32 %s33, %s52
      %s110 = ssub.s32 %s35, %s44
      %s111 = sor.u32 %s109, %s110
      %p112 = scmp.eq.s32.totalorder %s111, 0
      %s114 = sadd.s32 %s113, 1
      %s115 = scalar_select %p112, %s113, %s114
      %p118 = pneg %p112
      %p119 = scmp.eq.s32.totalorder %s26, 1
      %p120 = por %p118, %p119
      %p121 = scmp.ne.s32.totalorder %s113, %s116
      %p122 = scmp.eq.s32.totalorder %s26, 0
      %p123 = por %p121, %p122
      %p124 = scmp.ne.s32.totalorder %s113, %s116
      %p125 = scmp.eq.s32.totalorder %s31, 1
      %p126 = por %p124, %p125
      %p127 = scmp.ne.s32.totalorder %s116, %s117
      %p128 = scmp.eq.s32.totalorder %s31, 0
      %p129 = por %p127, %p128
      %p130 = scmp.ne.s32.totalorder %s116, %s117
      %p131 = scmp.eq.s32.totalorder %s32, 1
      %p132 = por %p130, %p131
      %p134 = scmp.ne.s32.totalorder %s117, %s133
      %p135 = scmp.eq.s32.totalorder %s32, 0
      %p136 = por %p134, %p135
      %s137 = ssub.s32 %s33, %s52
      %s138 = ssub.s32 %s34, %s48
      %s139 = sor.u32 %s137, %s138
      %s140 = ssub.s32 %s35, %s44
      %s141 = sor.u32 %s139, %s140
      %p142 = scmp.eq.s32.totalorder %s141, 0
      %s144 = sadd.s32 %s143, 1
      %s145 = scalar_select %p142, %s143, %s144
      %p148 = pneg %p142
      %p149 = scmp.eq.s32.totalorder %s26, 1
      %p150 = por %p148, %p149
      %p151 = scmp.ne.s32.totalorder %s143, %s146
      %p152 = scmp.eq.s32.totalorder %s26, 0
      %p153 = por %p151, %p152
      %p154 = scmp.ne.s32.totalorder %s143, %s146
      %p155 = scmp.eq.s32.totalorder %s31, 1
      %p156 = por %p154, %p155
      %p157 = scmp.ne.s32.totalorder %s146, %s147
      %p158 = scmp.eq.s32.totalorder %s31, 0
      %p159 = por %p157, %p158
      %p160 = scmp.ne.s32.totalorder %s146, %s147
      %p161 = scmp.eq.s32.totalorder %s32, 1
      %p162 = por %p160, %p161
      %p164 = scmp.ne.s32.totalorder %s147, %s163
      %p165 = scmp.eq.s32.totalorder %s32, 0
      %p166 = por %p164, %p165
      %s168 = sadd.s32 %s167, 1
      %p171 = scmp.eq.s32.totalorder %s26, 1
      %p172 = scmp.ne.s32.totalorder %s167, %s169
      %p173 = scmp.eq.s32.totalorder %s26, 0
      %p174 = por %p172, %p173
      %p175 = scmp.ne.s32.totalorder %s167, %s169
      %p176 = scmp.eq.s32.totalorder %s31, 1
      %p177 = por %p175, %p176
      %p178 = scmp.ne.s32.totalorder %s169, %s170
      %p179 = scmp.eq.s32.totalorder %s31, 0
      %p180 = por %p178, %p179
      %p181 = scmp.ne.s32.totalorder %s169, %s170
      %p182 = scmp.eq.s32.totalorder %s32, 1
      %p183 = por %p181, %p182
      %p185 = scmp.ne.s32.totalorder %s170, %s184
      %p186 = scmp.eq.s32.totalorder %s32, 0
      %p187 = por %p185, %p186
      %s189 = sadd.s32 %s188, 1
      %p192 = scmp.eq.s32.totalorder %s26, 1
      %p193 = scmp.ne.s32.totalorder %s188, %s190
      %p194 = scmp.eq.s32.totalorder %s26, 0
      %p195 = por %p193, %p194
      %p196 = scmp.ne.s32.totalorder %s188, %s190
      %p197 = scmp.eq.s32.totalorder %s31, 1
      %p198 = por %p196, %p197
      %p199 = scmp.ne.s32.totalorder %s190, %s191
      %p200 = scmp.eq.s32.totalorder %s31, 0
      %p201 = por %p199, %p200
      %p202 = scmp.ne.s32.totalorder %s190, %s191
      %p203 = scmp.eq.s32.totalorder %s32, 1
      %p204 = por %p202, %p203
      %p206 = scmp.ne.s32.totalorder %s191, %s205
      %p207 = scmp.eq.s32.totalorder %s32, 0
      %p208 = por %p206, %p207
      %s209 = ssub.s32 %s33, %s52
      %s210 = ssub.s32 %s34, %s48
      %s211 = sor.u32 %s209, %s210
      %p212 = scmp.eq.s32.totalorder %s211, 0
      %s214 = sadd.s32 %s213, 1
      %s215 = scalar_select %p212, %s213, %s214
      %p218 = pneg %p212
      %p219 = scmp.eq.s32.totalorder %s26, 1
      %p220 = por %p218, %p219
      %p221 = scmp.ne.s32.totalorder %s213, %s216
      %p222 = scmp.eq.s32.totalorder %s26, 0
      %p223 = por %p221, %p222
      %p224 = scmp.ne.s32.totalorder %s213, %s216
      %p225 = scmp.eq.s32.totalorder %s31, 1
      %p226 = por %p224, %p225
      %p227 = scmp.ne.s32.totalorder %s216, %s217
      %p228 = scmp.eq.s32.totalorder %s31, 0
      %p229 = por %p227, %p228
      %p230 = scmp.ne.s32.totalorder %s216, %s217
      %p231 = scmp.eq.s32.totalorder %s32, 1
      %p232 = por %p230, %p231
      %p234 = scmp.ne.s32.totalorder %s217, %s233
      %p235 = scmp.eq.s32.totalorder %s32, 0
      %p236 = por %p234, %p235
      %s237 = ssub.s32 %s33, %s52
      %s238 = ssub.s32 %s34, %s48
      %s239 = sor.u32 %s237, %s238
      %p240 = scmp.eq.s32.totalorder %s239, 0
      %s242 = sadd.s32 %s241, 1
      %s243 = scalar_select %p240, %s241, %s242
      %p246 = pneg %p240
      %p247 = scmp.eq.s32.totalorder %s26, 1
      %p248 = por %p246, %p247
      %p249 = scmp.ne.s32.totalorder %s241, %s244
      %p250 = scmp.eq.s32.totalorder %s26, 0
      %p251 = por %p249, %p250
      %p252 = scmp.ne.s32.totalorder %s241, %s244
      %p253 = scmp.eq.s32.totalorder %s31, 1
      %p254 = por %p252, %p253
      %p255 = scmp.ne.s32.totalorder %s244, %s245
      %p256 = scmp.eq.s32.totalorder %s31, 0
      %p257 = por %p255, %p256
      %p258 = scmp.ne.s32.totalorder %s244, %s245
      %p259 = scmp.eq.s32.totalorder %s32, 1
      %p260 = por %p258, %p259
      %p262 = scmp.ne.s32.totalorder %s245, %s261
      %p263 = scmp.eq.s32.totalorder %s32, 0
      %p264 = por %p262, %p263
      %p265 = scmp.le.s32.totalorder 1, %s26
      %p266 = scmp.lt.s32.totalorder %s26, 3
      %p267 = pnand %p265, %p266
      %p268 = pneg %p267
      // Predicated region
      $region9: #{right_transformer_block.10} parent=5 // pred_check
        _
      $region10: #{right_transformer_block.10} parent=5 // pred_check_branch
        %270 = sbr.rel (%p267) target = $region12
      $region11: #{right_transformer_block.10} parent=5 // pred_region
        %s271 = ssub.s32 %s26, 1
        // Predicated region
        $region13: #{right_transformer_block.10} parent=11 // pred_check
          %p272 = pneg %p180
        $region14: #{right_transformer_block.10} parent=11 // pred_check_branch
          %274 = sbr.rel (%p272) target = $region16
        $region15: #{right_transformer_block.10} parent=11 // pred_region
          %s276 = ssub.s32 256, 256
          %277 = vsyncadd [#allocation12], %s276
          %s278 = sshll.u32 [#allocation13], 4
          %s279 = int_to_ptr.vmem [resolvable:$true] %s278
          %284 = dma.hbm_to_vmem [thread:$0]  %s4, 256, %s279, [#allocation12], 64, 64, 4
        $region16: #{right_transformer_block.10} parent=11 // pred_fallthru
          _
        // Predicated region
        $region17: #{right_transformer_block.10} parent=11 // pred_check
          %p285 = pneg %p201
        $region18: #{right_transformer_block.10} parent=11 // pred_check_branch
          %287 = sbr.rel (%p285) target = $region20
        $region19: #{right_transformer_block.10} parent=11 // pred_region
          %s289 = ssub.s32 16, 16
          %290 = vsyncadd [#allocation15], %s289
          %s292 = sshll.u32 [#allocation14], 4
          %s293 = int_to_ptr.vmem [resolvable:$true] %s292
          %295 = dma.hbm_to_vmem [thread:$0]  %s5, 16, %s293, [#allocation15]
        $region20: #{right_transformer_block.10} parent=11 // pred_fallthru
          _
      $region12: #{right_transformer_block.10} parent=5 // pred_fallthru
        _
      %p296 = scmp.lt.s32.totalorder %s26, 2
      // Predicated region
      $region21: #{right_transformer_block.10} parent=5 // pred_check
        %p297 = pneg %p296
      $region22: #{right_transformer_block.10} parent=5 // pred_check_branch
        %299 = sbr.rel (%p297) target = $region24
      $region23: #{right_transformer_block.10} parent=5 // pred_region
        // Predicated region
        $region25: #{right_transformer_block.10} parent=23 // pred_check
          %p300 = pneg %p67
        $region26: #{right_transformer_block.10} parent=23 // pred_check_branch
          %302 = sbr.rel (%p300) target = $region28
        $region27: #{right_transformer_block.10} parent=23 // pred_region
          %s303 = sand.u32 %s26, 1
          %s304 = scalar_lea.sflag [#allocation6], %s303
          %s305 = sand.u32 %s57, 1
          %s306 = smul.addr %s305, 4
          %s307 = scalar_lea.vmem [#allocation5], %s306
          %s309 = ssub.s32 64, 64
          %310 = vsyncadd %s304, %s309
          %s311 = sadd.s32 %s34, %s33
          %s312 = smul.addr %s311, 64
          %s313 = scalar_lea.hbm %s0, %s312
          %s315 = sshll.u32 %s307, 4
          %s316 = int_to_ptr.vmem [resolvable:$true] %s315
          %318 = dma.hbm_to_vmem [thread:$0]  %s313, 64, %s316, %s304
        $region28: #{right_transformer_block.10} parent=23 // pred_fallthru
          _
        // Predicated region
        $region29: #{right_transformer_block.10} parent=23 // pred_check
          %p319 = pneg %p95
        $region30: #{right_transformer_block.10} parent=23 // pred_check_branch
          %321 = sbr.rel (%p319) target = $region32
        $region31: #{right_transformer_block.10} parent=23 // pred_region
          %s322 = sand.u32 %s26, 1
          %s323 = scalar_lea.sflag [#allocation9], %s322
          %s324 = sand.u32 %s85, 1
          %s325 = smul.addr %s324, 4
          %s326 = scalar_lea.vmem [#allocation8], %s325
          %s328 = ssub.s32 64, 64
          %329 = vsyncadd %s323, %s328
          %s330 = sadd.s32 %s35, %s33
          %s331 = smul.addr %s330, 64
          %s332 = scalar_lea.hbm %s1, %s331
          %s334 = sshll.u32 %s326, 4
          %s335 = int_to_ptr.vmem [resolvable:$true] %s334
          %337 = dma.hbm_to_vmem [thread:$0]  %s332, 64, %s335, %s323
        $region32: #{right_transformer_block.10} parent=23 // pred_fallthru
          _
        // Predicated region
        $region33: #{right_transformer_block.10} parent=23 // pred_check
          %p338 = pneg %p123
        $region34: #{right_transformer_block.10} parent=23 // pred_check_branch
          %340 = sbr.rel (%p338) target = $region36
        $region35: #{right_transformer_block.10} parent=23 // pred_region
          %s341 = sand.u32 %s26, 1
          %s342 = scalar_lea.sflag [#allocation9], %s341
          %s343 = sand.u32 %s113, 1
          %s344 = smul.addr %s343, 4
          %s345 = scalar_lea.vmem [#allocation10], %s344
          %s347 = ssub.s32 64, 64
          %348 = vsyncadd %s342, %s347
          %s349 = sadd.s32 %s35, %s33
          %s350 = smul.addr %s349, 64
          %s351 = scalar_lea.hbm %s2, %s350
          %s353 = sshll.u32 %s345, 4
          %s354 = int_to_ptr.vmem [resolvable:$true] %s353
          %356 = dma.hbm_to_vmem [thread:$0]  %s351, 64, %s354, %s342
        $region36: #{right_transformer_block.10} parent=23 // pred_fallthru
          _
        // Predicated region
        $region37: #{right_transformer_block.10} parent=23 // pred_check
          %p357 = pneg %p153
        $region38: #{right_transformer_block.10} parent=23 // pred_check_branch
          %359 = sbr.rel (%p357) target = $region40
        $region39: #{right_transformer_block.10} parent=23 // pred_region
          %s360 = sand.u32 %s26, 1
          %s361 = scalar_lea.sflag [#allocation12], %s360
          %s362 = sand.u32 %s143, 1
          %s363 = smul.addr %s362, 4
          %s364 = scalar_lea.vmem [#allocation11], %s363
          %s366 = ssub.s32 64, 64
          %367 = vsyncadd %s361, %s366
          %s368 = sadd.s32 %s35, %s34
          %s369 = sadd.s32 %s368, %s33
          %s370 = smul.addr %s369, 64
          %s371 = scalar_lea.hbm %s3, %s370
          %s373 = sshll.u32 %s364, 4
          %s374 = int_to_ptr.vmem [resolvable:$true] %s373
          %376 = dma.hbm_to_vmem [thread:$0]  %s371, 64, %s374, %s361
        $region40: #{right_transformer_block.10} parent=23 // pred_fallthru
          _
        // Predicated region
        $region41: #{right_transformer_block.10} parent=23 // pred_check
          %p377 = pneg %p223
        $region42: #{right_transformer_block.10} parent=23 // pred_check_branch
          %379 = sbr.rel (%p377) target = $region44
        $region43: #{right_transformer_block.10} parent=23 // pred_region
          %s380 = sand.u32 %s26, 1
          %s381 = scalar_lea.sflag [#allocation6], %s380
          %s382 = sand.u32 %s213, 1
          %s383 = smul.addr %s382, 8
          %s384 = scalar_lea.vmem [#allocation16], %s383
          %s386 = ssub.s32 128, 128
          %387 = vsyncadd %s381, %s386
          %s388 = sadd.s32 %s34, %s33
          %s389 = smul.addr %s388, 128
          %s390 = scalar_lea.hbm %s6, %s389
          %s392 = sshll.u32 %s384, 4
          %s393 = int_to_ptr.vmem [resolvable:$true] %s392
          %395 = dma.hbm_to_vmem [thread:$0]  %s390, 128, %s393, %s381
        $region44: #{right_transformer_block.10} parent=23 // pred_fallthru
          _
      $region24: #{right_transformer_block.10} parent=5 // pred_fallthru
        _
      %p396 = scmp.le.s32.totalorder 1, %s26
      %p397 = scmp.lt.s32.totalorder %s26, 3
      %p398 = pnand %p396, %p397
      %p399 = pneg %p398
      // Predicated region
      $region45: #{right_transformer_block.10} parent=5 // pred_check
        _
      $region46: #{right_transformer_block.10} parent=5 // pred_check_branch
        %401 = sbr.rel (%p398) target = $region48
      $region47: #{right_transformer_block.10} parent=5 // pred_region
        %s402 = ssub.s32 %s26, 1
        %s403 = sand.u32 %s31, 1
        %s404 = scalar_lea.sflag [#allocation6], %s403
        %s405 = sand.u32 %s60, 1
        %s406 = smul.addr %s405, 4
        %s407 = scalar_lea.vmem [#allocation5], %s406
        // Predicated region
        $region49: #{right_transformer_block.10} parent=47 // pred_check
          %p408 = pneg %p73
        $region50: #{right_transformer_block.10} parent=47 // pred_check_branch
          %410 = sbr.rel (%p408) target = $region52
        $region51: #{right_transformer_block.10} parent=47 // pred_region
          %411 = dma.done %s404, 64
        $region52: #{right_transformer_block.10} parent=47 // pred_fallthru
          _
        %s412 = sand.u32 %s31, 1
        %s413 = scalar_lea.sflag [#allocation9], %s412
        %s414 = sand.u32 %s88, 1
        %s415 = smul.addr %s414, 4
        %s416 = scalar_lea.vmem [#allocation8], %s415
        // Predicated region
        $region53: #{right_transformer_block.10} parent=47 // pred_check
          %p417 = pneg %p101
        $region54: #{right_transformer_block.10} parent=47 // pred_check_branch
          %419 = sbr.rel (%p417) target = $region56
        $region55: #{right_transformer_block.10} parent=47 // pred_region
          %420 = dma.done %s413, 64
        $region56: #{right_transformer_block.10} parent=47 // pred_fallthru
          _
        %s421 = sand.u32 %s31, 1
        %s422 = scalar_lea.sflag [#allocation9], %s421
        %s423 = sand.u32 %s116, 1
        %s424 = smul.addr %s423, 4
        %s425 = scalar_lea.vmem [#allocation10], %s424
        // Predicated region
        $region57: #{right_transformer_block.10} parent=47 // pred_check
          %p426 = pneg %p129
        $region58: #{right_transformer_block.10} parent=47 // pred_check_branch
          %428 = sbr.rel (%p426) target = $region60
        $region59: #{right_transformer_block.10} parent=47 // pred_region
          %429 = dma.done %s422, 64
        $region60: #{right_transformer_block.10} parent=47 // pred_fallthru
          _
        %s430 = sand.u32 %s31, 1
        %s431 = scalar_lea.sflag [#allocation12], %s430
        %s432 = sand.u32 %s146, 1
        %s433 = smul.addr %s432, 4
        %s434 = scalar_lea.vmem [#allocation11], %s433
        // Predicated region
        $region61: #{right_transformer_block.10} parent=47 // pred_check
          %p435 = pneg %p159
        $region62: #{right_transformer_block.10} parent=47 // pred_check_branch
          %437 = sbr.rel (%p435) target = $region64
        $region63: #{right_transformer_block.10} parent=47 // pred_region
          %438 = dma.done %s431, 64
        $region64: #{right_transformer_block.10} parent=47 // pred_fallthru
          _
        // Predicated region
        $region65: #{right_transformer_block.10} parent=47 // pred_check
          %p439 = pneg %p180
        $region66: #{right_transformer_block.10} parent=47 // pred_check_branch
          %441 = sbr.rel (%p439) target = $region68
        $region67: #{right_transformer_block.10} parent=47 // pred_region
          %442 = dma.done [#allocation12], 256
        $region68: #{right_transformer_block.10} parent=47 // pred_fallthru
          _
        // Predicated region
        $region69: #{right_transformer_block.10} parent=47 // pred_check
          %p443 = pneg %p201
        $region70: #{right_transformer_block.10} parent=47 // pred_check_branch
          %445 = sbr.rel (%p443) target = $region72
        $region71: #{right_transformer_block.10} parent=47 // pred_region
          %446 = dma.done [#allocation15], 16
        $region72: #{right_transformer_block.10} parent=47 // pred_fallthru
          _
        %s447 = sand.u32 %s31, 1
        %s448 = scalar_lea.sflag [#allocation6], %s447
        %s449 = sand.u32 %s216, 1
        %s450 = smul.addr %s449, 8
        %s451 = scalar_lea.vmem [#allocation16], %s450
        // Predicated region
        $region73: #{right_transformer_block.10} parent=47 // pred_check
          %p452 = pneg %p229
        $region74: #{right_transformer_block.10} parent=47 // pred_check_branch
          %454 = sbr.rel (%p452) target = $region76
        $region75: #{right_transformer_block.10} parent=47 // pred_region
          %455 = dma.done %s448, 128
        $region76: #{right_transformer_block.10} parent=47 // pred_fallthru
          _
        %s456 = sand.u32 %s31, 1
        %s457 = scalar_lea.sflag [#allocation6], %s456
        %s458 = sand.u32 %s60, 1
        %s459 = smul.addr %s458, 4
        %s460 = scalar_lea.vmem [#allocation5], %s459
        %p461 = pneg %p73
        %p462 = pneg %p70
        %s463 = sand.u32 %s31, 1
        %s464 = scalar_lea.sflag [#allocation9], %s463
        %s465 = sand.u32 %s88, 1
        %s466 = smul.addr %s465, 4
        %s467 = scalar_lea.vmem [#allocation8], %s466
        %p468 = pneg %p101
        %p469 = pneg %p98
        %s470 = sand.u32 %s31, 1
        %s471 = scalar_lea.sflag [#allocation9], %s470
        %s472 = sand.u32 %s116, 1
        %s473 = smul.addr %s472, 4
        %s474 = scalar_lea.vmem [#allocation10], %s473
        %p475 = pneg %p129
        %p476 = pneg %p126
        %s477 = sand.u32 %s31, 1
        %s478 = scalar_lea.sflag [#allocation12], %s477
        %s479 = sand.u32 %s146, 1
        %s480 = smul.addr %s479, 4
        %s481 = scalar_lea.vmem [#allocation11], %s480
        %p482 = pneg %p159
        %p483 = pneg %p156
        %p484 = pneg %p180
        %p485 = pneg %p177
        %p486 = pneg %p201
        %p487 = pneg %p198
        %s488 = sand.u32 %s31, 1
        %s489 = scalar_lea.sflag [#allocation6], %s488
        %s490 = sand.u32 %s216, 1
        %s491 = smul.addr %s490, 8
        %s492 = scalar_lea.vmem [#allocation16], %s491
        %p493 = pneg %p229
        %p494 = pneg %p226
        %p495 = pneg %p257
        %p496 = pneg %p254
        %s497 = sand.u32 %s244, 1
        %s498 = scalar_lea.sflag [#allocation7], %s497
        %s499 = sand.u32 %s244, 1
        %s500 = smul.addr %s499, 8
        %s501 = scalar_lea.vmem [#allocation17], %s500
        %p503 = scmp.eq.s32.totalorder %s38, 0
        // Predicated region
        $region77: #{right_transformer_block.10} parent=47 // pred_check
          %p504 = pneg %p503
        $region78: #{right_transformer_block.10} parent=47 // pred_check_branch
          %506 = sbr.rel (%p504) target = $region80
        $region79: #{right_transformer_block.10} parent=47 // pred_region
          %vm507 = vcmask 31744
          %508 = vst.msk [vmem:[#allocation2] sm:$0xff] %vm507, -1e+30
          %509 = vst.msk [vmem:[#allocation3] sm:$0xff] %vm507, 0.0
          %vm510 = vcmask 261120
          %511 = vst.msk [vmem:[#allocation4] sm:$0xff] %vm510, 0.0
        $region80: #{right_transformer_block.10} parent=47 // pred_fallthru
          _
        %v512 = vld [vmem:[%s407] sm:$0xf]
        %v513 = vunpack.c.l.bf16 %v512
        %v514 = vmul.f32 %v513, 0.35355338
        %v515 = vpack.c.bf16 %v514, %v514
        %v516 = vld [vmem:[%s416] sm:$0xf]
        %v517 = vld [vmem:[%s425] sm:$0xf]
        %v518 = vld [vmem:[%s434] sm:$0xf]
        %v519 = vunpack.c.l.bf16 %v518
        %v520 = vsub.f32 %v519, 1.0
        %v521 = vmul.f32 %v520, 1e+09
        %vm522 = vcmask 64512
        %v524 = vsel %vm522, %v515, 0
        %v527 = vsel %vm522, %v516, 0
        %529 = vmatprep.subr.bf16.mxu0 0
        %530 = vmatpush1.bf16.xpose.msra.mxu0 %v527
        %531 = vmatprep.subr.bf16.mxu0 0
        %532 = vmatpush1.bf16.xpose.msra.mxu0 0
        %533 = vmatprep.subr.bf16.mxu0 0
        %534 = vmatpush1.bf16.xpose.msra.mxu0 0
        %535 = vmatprep.subr.bf16.mxu0 0
        %536 = vmatpush1.bf16.xpose.msra.mxu0 0
        %537 = vmatprep.subr.bf16.mxu0 0
        %538 = vmatpush1.bf16.xpose.msra.mxu0 0
        %539 = vmatprep.subr.bf16.mxu0 0
        %540 = vmatpush1.bf16.xpose.msra.mxu0 0
        %541 = vmatprep.subr.bf16.mxu0 0
        %542 = vmatpush1.bf16.xpose.msra.mxu0 0
        %543 = vmatprep.subr.bf16.mxu0 0
        %544 = vmatpush1.bf16.xpose.msra.mxu0 0
        %545 = vmatprep.subr.bf16.mxu0 0
        %546 = vmatpush1.bf16.xpose.msra.mxu0 0
        %547 = vmatprep.subr.bf16.mxu0 0
        %548 = vmatpush1.bf16.xpose.msra.mxu0 0
        %549 = vmatprep.subr.bf16.mxu0 0
        %550 = vmatpush1.bf16.xpose.msra.mxu0 0
        %551 = vmatprep.subr.bf16.mxu0 0
        %552 = vmatpush1.bf16.xpose.msra.mxu0 0
        %553 = vmatprep.subr.bf16.mxu0 0
        %554 = vmatpush1.bf16.xpose.msra.mxu0 0
        %555 = vmatprep.subr.bf16.mxu0 0
        %556 = vmatpush1.bf16.xpose.msra.mxu0 0
        %557 = vmatprep.subr.bf16.mxu0 0
        %558 = vmatpush1.bf16.xpose.msra.mxu0 0
        %559 = vmatprep.subr.bf16.mxu0 0
        %560 = vmatpush1.bf16.xpose.msra.mxu0 0
        %561 = vmatprep.mubr.bf16.mxu0 0
        %562 = vmatmul.mubr.bf16.gmra.mrb[0].mxu0 %v524
        %v563 = vpop.f32.mrb[0].mxu0
        %v564 = vadd.f32 %v521, %v563
        %v565 = vpop.f32.mrb[0].mxu0
        %v566 = vpop.f32.mrb[0].mxu0
        %v567 = vpop.f32.mrb[0].mxu0
        %568 = vdwg.mxu0
        %v569 = vld [vmem:[#allocation2] sm:$0xff]
        %v570 = vld [vmem:[#allocation3] sm:$0xff]
        %v571 = vsel %vm522, %v564, -inf
        %572 = vmax.xlane.f32.xlu0 %v571
        %v573 = vpop.xlane.xlu0 %572
        %v574 = vmax.f32 %v569, %v573
        %v575 = vsub.f32 %v569, %v574
        %v576 = vmul.f32 %v575, 1.442695
        %v577 = vpow.pop %v576
        %579 = vset.pattern.permute.xlu0 0
        %580 = vperm.xlu0 %579, %v574
        %v581 = vpop.permute.xlu0 %580
        %v583 = vsub.f32 %v564, %v581
        %v584 = vmul.f32 %v583, 1.442695
        %v585 = vpow.pop %v584
        %v586 = vmul.f32 %v577, %v570
        %v587 = vsel %vm522, %v585, 0.0
        %588 = vadd.xlane.f32.xlu0 %v587
        %v589 = vpop.xlane.xlu0 %588
        %v590 = vadd.f32 %v586, %v589
        %v591 = vpack.c.bf16 %v585, %v585
        %v593 = vsel %vm522, %v591, 0
        %vm595 = vcmask 1043456
        %v597 = vsel %vm595, %v517, 0
        %599 = vmatprep.subr.bf16.mxu0 0
        %600 = vmatpush1.bf16.msra.mxu0 %v597
        %601 = vmatprep.subr.bf16.mxu0 0
        %602 = vmatpush1.bf16.msra.mxu0 0
        %603 = vmatprep.subr.bf16.mxu0 0
        %604 = vmatpush1.bf16.msra.mxu0 0
        %605 = vmatprep.subr.bf16.mxu0 0
        %606 = vmatpush1.bf16.msra.mxu0 0
        %607 = vmatprep.subr.bf16.mxu0 0
        %608 = vmatpush1.bf16.msra.mxu0 0
        %609 = vmatprep.subr.bf16.mxu0 0
        %610 = vmatpush1.bf16.msra.mxu0 0
        %611 = vmatprep.subr.bf16.mxu0 0
        %612 = vmatpush1.bf16.msra.mxu0 0
        %613 = vmatprep.subr.bf16.mxu0 0
        %614 = vmatpush1.bf16.msra.mxu0 0
        %615 = vmatprep.subr.bf16.mxu0 0
        %616 = vmatpush1.bf16.msra.mxu0 0
        %617 = vmatprep.subr.bf16.mxu0 0
        %618 = vmatpush1.bf16.msra.mxu0 0
        %619 = vmatprep.subr.bf16.mxu0 0
        %620 = vmatpush1.bf16.msra.mxu0 0
        %621 = vmatprep.subr.bf16.mxu0 0
        %622 = vmatpush1.bf16.msra.mxu0 0
        %623 = vmatprep.subr.bf16.mxu0 0
        %624 = vmatpush1.bf16.msra.mxu0 0
        %625 = vmatprep.subr.bf16.mxu0 0
        %626 = vmatpush1.bf16.msra.mxu0 0
        %627 = vmatprep.subr.bf16.mxu0 0
        %628 = vmatpush1.bf16.msra.mxu0 0
        %629 = vmatprep.subr.bf16.mxu0 0
        %630 = vmatpush1.bf16.msra.mxu0 0
        %631 = vmatprep.mubr.bf16.mxu0 0
        %632 = vmatmul.mubr.bf16.gmra.mrb[0].mxu0 %v593
        %v633 = vpop.f32.mrb[0].mxu0
        %v634 = vadd.f32 0.0, %v633
        %v635 = vpop.f32.mrb[0].mxu0
        %v636 = vpop.f32.mrb[0].mxu0
        %v637 = vpop.f32.mrb[0].mxu0
        %638 = vdwg.mxu0
        %v639 = vld [vmem:[#allocation4] sm:$0xff]
        %641 = vset.pattern.permute.xlu0 0
        %642 = vperm.xlu0 %641, %v577
        %v643 = vpop.permute.xlu0 %642
        %v645 = vmul.f32 %v643, %v639
        %v646 = vadd.f32 %v645, %v634
        %647 = vst.msk [vmem:[#allocation4] sm:$0xff] %vm522, %v646
        %vm648 = vcmask 7168
        %649 = vst.msk [vmem:[#allocation2] sm:$0xff] %vm648, %v574
        %650 = vst.msk [vmem:[#allocation3] sm:$0xff] %vm648, %v590
        %652 = vrot.lane.b32.xlu0 %v515, 120
        %v653 = vpop.permute.xlu0 %652
        %v655 = vunpack.c.l.b16 %v516
        %v656 = vpack.c.b16 %v655, %v655
        %657 = vrot.lane.b32.xlu0 %v656, 120
        %v658 = vpop.permute.xlu0 %657
        %v660 = vsel %vm522, %v653, 0
        %v663 = vsel %vm522, %v658, 0
        %665 = vmatprep.subr.bf16.mxu0 0
        %666 = vmatpush1.bf16.xpose.msra.mxu0 %v663
        %667 = vmatprep.subr.bf16.mxu0 0
        %668 = vmatpush1.bf16.xpose.msra.mxu0 0
        %669 = vmatprep.subr.bf16.mxu0 0
        %670 = vmatpush1.bf16.xpose.msra.mxu0 0
        %671 = vmatprep.subr.bf16.mxu0 0
        %672 = vmatpush1.bf16.xpose.msra.mxu0 0
        %673 = vmatprep.subr.bf16.mxu0 0
        %674 = vmatpush1.bf16.xpose.msra.mxu0 0
        %675 = vmatprep.subr.bf16.mxu0 0
        %676 = vmatpush1.bf16.xpose.msra.mxu0 0
        %677 = vmatprep.subr.bf16.mxu0 0
        %678 = vmatpush1.bf16.xpose.msra.mxu0 0
        %679 = vmatprep.subr.bf16.mxu0 0
        %680 = vmatpush1.bf16.xpose.msra.mxu0 0
        %681 = vmatprep.subr.bf16.mxu0 0
        %682 = vmatpush1.bf16.xpose.msra.mxu0 0
        %683 = vmatprep.subr.bf16.mxu0 0
        %684 = vmatpush1.bf16.xpose.msra.mxu0 0
        %685 = vmatprep.subr.bf16.mxu0 0
        %686 = vmatpush1.bf16.xpose.msra.mxu0 0
        %687 = vmatprep.subr.bf16.mxu0 0
        %688 = vmatpush1.bf16.xpose.msra.mxu0 0
        %689 = vmatprep.subr.bf16.mxu0 0
        %690 = vmatpush1.bf16.xpose.msra.mxu0 0
        %691 = vmatprep.subr.bf16.mxu0 0
        %692 = vmatpush1.bf16.xpose.msra.mxu0 0
        %693 = vmatprep.subr.bf16.mxu0 0
        %694 = vmatpush1.bf16.xpose.msra.mxu0 0
        %695 = vmatprep.subr.bf16.mxu0 0
        %696 = vmatpush1.bf16.xpose.msra.mxu0 0
        %697 = vmatprep.mubr.bf16.mxu0 0
        %698 = vmatmul.mubr.bf16.gmra.mrb[0].mxu0 %v660
        %v699 = vpop.f32.mrb[0].mxu0
        %v700 = vadd.f32 %v521, %v699
        %v701 = vpop.f32.mrb[0].mxu0
        %v702 = vpop.f32.mrb[0].mxu0
        %v703 = vpop.f32.mrb[0].mxu0
        %704 = vdwg.mxu0
        %v705 = vld [vmem:[#allocation2] sm:$0xff]
        %v706 = vld [vmem:[#allocation3] sm:$0xff]
        %v707 = vsel %vm522, %v700, -inf
        %708 = vmax.xlane.f32.xlu0 %v707
        %v709 = vpop.xlane.xlu0 %708
        %v710 = vmax.f32 %v705, %v709
        %v711 = vsub.f32 %v705, %v710
        %v712 = vmul.f32 %v711, 1.442695
        %v713 = vpow.pop %v712
        %715 = vset.pattern.permute.xlu0 1
        %716 = vperm.xlu0 %715, %v710
        %v717 = vpop.permute.xlu0 %716
        %v719 = vsub.f32 %v700, %v717
        %v720 = vmul.f32 %v719, 1.442695
        %v721 = vpow.pop %v720
        %v722 = vmul.f32 %v713, %v706
        %v723 = vsel %vm522, %v721, 0.0
        %724 = vadd.xlane.f32.xlu0 %v723
        %v725 = vpop.xlane.xlu0 %724
        %v726 = vadd.f32 %v722, %v725
        %v727 = vpack.c.bf16 %v721, %v721
        %v729 = vunpack.c.l.b16 %v517
        %v730 = vpack.c.b16 %v729, %v729
        %731 = vrot.lane.b32.xlu0 %v730, 120
        %v732 = vpop.permute.xlu0 %731
        %v734 = vsel %vm522, %v727, 0
        %v737 = vsel %vm595, %v732, 0
        %739 = vmatprep.subr.bf16.mxu0 0
        %740 = vmatpush1.bf16.msra.mxu0 %v737
        %741 = vmatprep.subr.bf16.mxu0 0
        %742 = vmatpush1.bf16.msra.mxu0 0
        %743 = vmatprep.subr.bf16.mxu0 0
        %744 = vmatpush1.bf16.msra.mxu0 0
        %745 = vmatprep.subr.bf16.mxu0 0
        %746 = vmatpush1.bf16.msra.mxu0 0
        %747 = vmatprep.subr.bf16.mxu0 0
        %748 = vmatpush1.bf16.msra.mxu0 0
        %749 = vmatprep.subr.bf16.mxu0 0
        %750 = vmatpush1.bf16.msra.mxu0 0
        %751 = vmatprep.subr.bf16.mxu0 0
        %752 = vmatpush1.bf16.msra.mxu0 0
        %753 = vmatprep.subr.bf16.mxu0 0
        %754 = vmatpush1.bf16.msra.mxu0 0
        %755 = vmatprep.subr.bf16.mxu0 0
        %756 = vmatpush1.bf16.msra.mxu0 0
        %757 = vmatprep.subr.bf16.mxu0 0
        %758 = vmatpush1.bf16.msra.mxu0 0
        %759 = vmatprep.subr.bf16.mxu0 0
        %760 = vmatpush1.bf16.msra.mxu0 0
        %761 = vmatprep.subr.bf16.mxu0 0
        %762 = vmatpush1.bf16.msra.mxu0 0
        %763 = vmatprep.subr.bf16.mxu0 0
        %764 = vmatpush1.bf16.msra.mxu0 0
        %765 = vmatprep.subr.bf16.mxu0 0
        %766 = vmatpush1.bf16.msra.mxu0 0
        %767 = vmatprep.subr.bf16.mxu0 0
        %768 = vmatpush1.bf16.msra.mxu0 0
        %769 = vmatprep.subr.bf16.mxu0 0
        %770 = vmatpush1.bf16.msra.mxu0 0
        %771 = vmatprep.mubr.bf16.mxu0 0
        %772 = vmatmul.mubr.bf16.gmra.mrb[0].mxu0 %v734
        %v773 = vpop.f32.mrb[0].mxu0
        %v774 = vadd.f32 0.0, %v773
        %v775 = vpop.f32.mrb[0].mxu0
        %v776 = vpop.f32.mrb[0].mxu0
        %v777 = vpop.f32.mrb[0].mxu0
        %778 = vdwg.mxu0
        %v779 = vld [vmem:[#allocation4] sm:$0xff]
        %781 = vset.pattern.permute.xlu0 1
        %782 = vperm.xlu0 %781, %v713
        %v783 = vpop.permute.xlu0 %782
        %v785 = vmul.f32 %v783, %v779
        %787 = vrot.lane.b32.xlu0 %v774, 8
        %v788 = vpop.permute.xlu0 %787
        %v790 = vadd.f32 %v785, %v788
        %vm791 = vcmask 130112
        %792 = vst.msk [vmem:[#allocation4] sm:$0xff] %vm791, %v790
        %vm793 = vcmask 15368
        %794 = vst.msk [vmem:[#allocation2] sm:$0xff] %vm793, %v710
        %795 = vst.msk [vmem:[#allocation3] sm:$0xff] %vm793, %v726
        %796 = vrot.lane.b32.xlu0 %v515, 112
        %v797 = vpop.permute.xlu0 %796
        %798 = vrot.lane.b32.xlu0 %v656, 112
        %v799 = vpop.permute.xlu0 %798
        %v801 = vsel %vm522, %v797, 0
        %v804 = vsel %vm522, %v799, 0
        %806 = vmatprep.subr.bf16.mxu0 0
        %807 = vmatpush1.bf16.xpose.msra.mxu0 %v804
        %808 = vmatprep.subr.bf16.mxu0 0
        %809 = vmatpush1.bf16.xpose.msra.mxu0 0
        %810 = vmatprep.subr.bf16.mxu0 0
        %811 = vmatpush1.bf16.xpose.msra.mxu0 0
        %812 = vmatprep.subr.bf16.mxu0 0
        %813 = vmatpush1.bf16.xpose.msra.mxu0 0
        %814 = vmatprep.subr.bf16.mxu0 0
        %815 = vmatpush1.bf16.xpose.msra.mxu0 0
        %816 = vmatprep.subr.bf16.mxu0 0
        %817 = vmatpush1.bf16.xpose.msra.mxu0 0
        %818 = vmatprep.subr.bf16.mxu0 0
        %819 = vmatpush1.bf16.xpose.msra.mxu0 0
        %820 = vmatprep.subr.bf16.mxu0 0
        %821 = vmatpush1.bf16.xpose.msra.mxu0 0
        %822 = vmatprep.subr.bf16.mxu0 0
        %823 = vmatpush1.bf16.xpose.msra.mxu0 0
        %824 = vmatprep.subr.bf16.mxu0 0
        %825 = vmatpush1.bf16.xpose.msra.mxu0 0
        %826 = vmatprep.subr.bf16.mxu0 0
        %827 = vmatpush1.bf16.xpose.msra.mxu0 0
        %828 = vmatprep.subr.bf16.mxu0 0
        %829 = vmatpush1.bf16.xpose.msra.mxu0 0
        %830 = vmatprep.subr.bf16.mxu0 0
        %831 = vmatpush1.bf16.xpose.msra.mxu0 0
        %832 = vmatprep.subr.bf16.mxu0 0
        %833 = vmatpush1.bf16.xpose.msra.mxu0 0
        %834 = vmatprep.subr.bf16.mxu0 0
        %835 = vmatpush1.bf16.xpose.msra.mxu0 0
        %836 = vmatprep.subr.bf16.mxu0 0
        %837 = vmatpush1.bf16.xpose.msra.mxu0 0
        %838 = vmatprep.mubr.bf16.mxu0 0
        %839 = vmatmul.mubr.bf16.gmra.mrb[0].mxu0 %v801
        %v840 = vpop.f32.mrb[0].mxu0
        %v841 = vadd.f32 %v521, %v840
        %v842 = vpop.f32.mrb[0].mxu0
        %v843 = vpop.f32.mrb[0].mxu0
        %v844 = vpop.f32.mrb[0].mxu0
        %845 = vdwg.mxu0
        %v846 = vld [vmem:[#allocation2] sm:$0xff]
        %v847 = vld [vmem:[#allocation3] sm:$0xff]
        %v848 = vsel %vm522, %v841, -inf
        %849 = vmax.xlane.f32.xlu0 %v848
        %v850 = vpop.xlane.xlu0 %849
        %v851 = vmax.f32 %v846, %v850
        %v852 = vsub.f32 %v846, %v851
        %v853 = vmul.f32 %v852, 1.442695
        %v854 = vpow.pop %v853
        %856 = vset.pattern.permute.xlu0 2
        %857 = vperm.xlu0 %856, %v851
        %v858 = vpop.permute.xlu0 %857
        %v860 = vsub.f32 %v841, %v858
        %v861 = vmul.f32 %v860, 1.442695
        %v862 = vpow.pop %v861
        %v863 = vmul.f32 %v854, %v847
        %v864 = vsel %vm522, %v862, 0.0
        %865 = vadd.xlane.f32.xlu0 %v864
        %v866 = vpop.xlane.xlu0 %865
        %v867 = vadd.f32 %v863, %v866
        %v868 = vpack.c.bf16 %v862, %v862
        %869 = vrot.lane.b32.xlu0 %v730, 112
        %v870 = vpop.permute.xlu0 %869
        %v872 = vsel %vm522, %v868, 0
        %v875 = vsel %vm595, %v870, 0
        %877 = vmatprep.subr.bf16.mxu0 0
        %878 = vmatpush1.bf16.msra.mxu0 %v875
        %879 = vmatprep.subr.bf16.mxu0 0
        %880 = vmatpush1.bf16.msra.mxu0 0
        %881 = vmatprep.subr.bf16.mxu0 0
        %882 = vmatpush1.bf16.msra.mxu0 0
        %883 = vmatprep.subr.bf16.mxu0 0
        %884 = vmatpush1.bf16.msra.mxu0 0
        %885 = vmatprep.subr.bf16.mxu0 0
        %886 = vmatpush1.bf16.msra.mxu0 0
        %887 = vmatprep.subr.bf16.mxu0 0
        %888 = vmatpush1.bf16.msra.mxu0 0
        %889 = vmatprep.subr.bf16.mxu0 0
        %890 = vmatpush1.bf16.msra.mxu0 0
        %891 = vmatprep.subr.bf16.mxu0 0
        %892 = vmatpush1.bf16.msra.mxu0 0
        %893 = vmatprep.subr.bf16.mxu0 0
        %894 = vmatpush1.bf16.msra.mxu0 0
        %895 = vmatprep.subr.bf16.mxu0 0
        %896 = vmatpush1.bf16.msra.mxu0 0
        %897 = vmatprep.subr.bf16.mxu0 0
        %898 = vmatpush1.bf16.msra.mxu0 0
        %899 = vmatprep.subr.bf16.mxu0 0
        %900 = vmatpush1.bf16.msra.mxu0 0
        %901 = vmatprep.subr.bf16.mxu0 0
        %902 = vmatpush1.bf16.msra.mxu0 0
        %903 = vmatprep.subr.bf16.mxu0 0
        %904 = vmatpush1.bf16.msra.mxu0 0
        %905 = vmatprep.subr.bf16.mxu0 0
        %906 = vmatpush1.bf16.msra.mxu0 0
        %907 = vmatprep.subr.bf16.mxu0 0
        %908 = vmatpush1.bf16.msra.mxu0 0
        %909 = vmatprep.mubr.bf16.mxu0 0
        %910 = vmatmul.mubr.bf16.gmra.mrb[0].mxu0 %v872
        %v911 = vpop.f32.mrb[0].mxu0
        %v912 = vadd.f32 0.0, %v911
        %v913 = vpop.f32.mrb[0].mxu0
        %v914 = vpop.f32.mrb[0].mxu0
        %v915 = vpop.f32.mrb[0].mxu0
        %916 = vdwg.mxu0
        %v917 = vld [vmem:[#allocation4] sm:$0xff]
        %919 = vset.pattern.permute.xlu0 2
        %920 = vperm.xlu0 %919, %v854
        %v921 = vpop.permute.xlu0 %920
        %v923 = vmul.f32 %v921, %v917
        %925 = vrot.lane.b32.xlu0 %v912, 16
        %v926 = vpop.permute.xlu0 %925
        %v928 = vadd.f32 %v923, %v926
        %vm929 = vcmask 195712
        %930 = vst.msk [vmem:[#allocation4] sm:$0xff] %vm929, %v928
        %vm931 = vcmask 23568
        %932 = vst.msk [vmem:[#allocation2] sm:$0xff] %vm931, %v851
        %933 = vst.msk [vmem:[#allocation3] sm:$0xff] %vm931, %v867
        %934 = vrot.lane.b32.xlu0 %v515, 104
        %v935 = vpop.permute.xlu0 %934
        %936 = vrot.lane.b32.xlu0 %v656, 104
        %v937 = vpop.permute.xlu0 %936
        %v939 = vsel %vm522, %v935, 0
        %v942 = vsel %vm522, %v937, 0
        %944 = vmatprep.subr.bf16.mxu0 0
        %945 = vmatpush1.bf16.xpose.msra.mxu0 %v942
        %946 = vmatprep.subr.bf16.mxu0 0
        %947 = vmatpush1.bf16.xpose.msra.mxu0 0
        %948 = vmatprep.subr.bf16.mxu0 0
        %949 = vmatpush1.bf16.xpose.msra.mxu0 0
        %950 = vmatprep.subr.bf16.mxu0 0
        %951 = vmatpush1.bf16.xpose.msra.mxu0 0
        %952 = vmatprep.subr.bf16.mxu0 0
        %953 = vmatpush1.bf16.xpose.msra.mxu0 0
        %954 = vmatprep.subr.bf16.mxu0 0
        %955 = vmatpush1.bf16.xpose.msra.mxu0 0
        %956 = vmatprep.subr.bf16.mxu0 0
        %957 = vmatpush1.bf16.xpose.msra.mxu0 0
        %958 = vmatprep.subr.bf16.mxu0 0
        %959 = vmatpush1.bf16.xpose.msra.mxu0 0
        %960 = vmatprep.subr.bf16.mxu0 0
        %961 = vmatpush1.bf16.xpose.msra.mxu0 0
        %962 = vmatprep.subr.bf16.mxu0 0
        %963 = vmatpush1.bf16.xpose.msra.mxu0 0
        %964 = vmatprep.subr.bf16.mxu0 0
        %965 = vmatpush1.bf16.xpose.msra.mxu0 0
        %966 = vmatprep.subr.bf16.mxu0 0
        %967 = vmatpush1.bf16.xpose.msra.mxu0 0
        %968 = vmatprep.subr.bf16.mxu0 0
        %969 = vmatpush1.bf16.xpose.msra.mxu0 0
        %970 = vmatprep.subr.bf16.mxu0 0
        %971 = vmatpush1.bf16.xpose.msra.mxu0 0
        %972 = vmatprep.subr.bf16.mxu0 0
        %973 = vmatpush1.bf16.xpose.msra.mxu0 0
        %974 = vmatprep.subr.bf16.mxu0 0
        %975 = vmatpush1.bf16.xpose.msra.mxu0 0
        %976 = vmatprep.mubr.bf16.mxu0 0
        %977 = vmatmul.mubr.bf16.gmra.mrb[0].mxu0 %v939
        %v978 = vpop.f32.mrb[0].mxu0
        %v979 = vadd.f32 %v521, %v978
        %v980 = vpop.f32.mrb[0].mxu0
        %v981 = vpop.f32.mrb[0].mxu0
        %v982 = vpop.f32.mrb[0].mxu0
        %983 = vdwg.mxu0
        %v984 = vld [vmem:[#allocation2] sm:$0xff]
        %v985 = vld [vmem:[#allocation3] sm:$0xff]
        %v986 = vsel %vm522, %v979, -inf
        %987 = vmax.xlane.f32.xlu0 %v986
        %v988 = vpop.xlane.xlu0 %987
        %v989 = vmax.f32 %v984, %v988
        %v990 = vsub.f32 %v984, %v989
        %v991 = vmul.f32 %v990, 1.442695
        %v992 = vpow.pop %v991
        %994 = vset.pattern.permute.xlu0 3
        %995 = vperm.xlu0 %994, %v989
        %v996 = vpop.permute.xlu0 %995
        %v998 = vsub.f32 %v979, %v996
        %v999 = vmul.f32 %v998, 1.442695
        %v1000 = vpow.pop %v999
        %v1001 = vmul.f32 %v992, %v985
        %v1002 = vsel %vm522, %v1000, 0.0
        %1003 = vadd.xlane.f32.xlu0 %v1002
        %v1004 = vpop.xlane.xlu0 %1003
        %v1005 = vadd.f32 %v1001, %v1004
        %v1006 = vpack.c.bf16 %v1000, %v1000
        %1007 = vrot.lane.b32.xlu0 %v730, 104
        %v1008 = vpop.permute.xlu0 %1007
        %v1010 = vsel %vm522, %v1006, 0
        %v1013 = vsel %vm595, %v1008, 0
        %1015 = vmatprep.subr.bf16.mxu0 0
        %1016 = vmatpush1.bf16.msra.mxu0 %v1013
        %1017 = vmatprep.subr.bf16.mxu0 0
        %1018 = vmatpush1.bf16.msra.mxu0 0
        %1019 = vmatprep.subr.bf16.mxu0 0
        %1020 = vmatpush1.bf16.msra.mxu0 0
        %1021 = vmatprep.subr.bf16.mxu0 0
        %1022 = vmatpush1.bf16.msra.mxu0 0
        %1023 = vmatprep.subr.bf16.mxu0 0
        %1024 = vmatpush1.bf16.msra.mxu0 0
        %1025 = vmatprep.subr.bf16.mxu0 0
        %1026 = vmatpush1.bf16.msra.mxu0 0
        %1027 = vmatprep.subr.bf16.mxu0 0
        %1028 = vmatpush1.bf16.msra.mxu0 0
        %1029 = vmatprep.subr.bf16.mxu0 0
        %1030 = vmatpush1.bf16.msra.mxu0 0
        %1031 = vmatprep.subr.bf16.mxu0 0
        %1032 = vmatpush1.bf16.msra.mxu0 0
        %1033 = vmatprep.subr.bf16.mxu0 0
        %1034 = vmatpush1.bf16.msra.mxu0 0
        %1035 = vmatprep.subr.bf16.mxu0 0
        %1036 = vmatpush1.bf16.msra.mxu0 0
        %1037 = vmatprep.subr.bf16.mxu0 0
        %1038 = vmatpush1.bf16.msra.mxu0 0
        %1039 = vmatprep.subr.bf16.mxu0 0
        %1040 = vmatpush1.bf16.msra.mxu0 0
        %1041 = vmatprep.subr.bf16.mxu0 0
        %1042 = vmatpush1.bf16.msra.mxu0 0
        %1043 = vmatprep.subr.bf16.mxu0 0
        %1044 = vmatpush1.bf16.msra.mxu0 0
        %1045 = vmatprep.subr.bf16.mxu0 0
        %1046 = vmatpush1.bf16.msra.mxu0 0
        %1047 = vmatprep.mubr.bf16.mxu0 0
        %1048 = vmatmul.mubr.bf16.gmra.mrb[0].mxu0 %v1010
        %v1049 = vpop.f32.mrb[0].mxu0
        %v1050 = vadd.f32 0.0, %v1049
        %v1051 = vpop.f32.mrb[0].mxu0
        %v1052 = vpop.f32.mrb[0].mxu0
        %v1053 = vpop.f32.mrb[0].mxu0
        %1054 = vdwg.mxu0
        %v1055 = vld [vmem:[#allocation4] sm:$0xff]
        %1057 = vset.pattern.permute.xlu0 3
        %1058 = vperm.xlu0 %1057, %v992
        %v1059 = vpop.permute.xlu0 %1058
        %v1061 = vmul.f32 %v1059, %v1055
        %1063 = vrot.lane.b32.xlu0 %v1050, 24
        %v1064 = vpop.permute.xlu0 %1063
        %v1066 = vadd.f32 %v1061, %v1064
        %vm1067 = vcmask 261312
        %1068 = vst.msk [vmem:[#allocation4] sm:$0xff] %vm1067, %v1066
        %vm1069 = vcmask 31768
        %1070 = vst.msk [vmem:[#allocation2] sm:$0xff] %vm1069, %v989
        %1071 = vst.msk [vmem:[#allocation3] sm:$0xff] %vm1069, %v1005
        // Predicated region
        $region81: #{right_transformer_block.10} parent=47 // pred_check
          %p1072 = pneg %p503
        $region82: #{right_transformer_block.10} parent=47 // pred_check_branch
          %1074 = sbr.rel (%p1072) target = $region84
        $region83: #{right_transformer_block.10} parent=47 // pred_region
          %v1075 = vld [vmem:[#allocation4] sm:$0xff]
          %v1076 = vld [vmem:[#allocation3] sm:$0xff]
          %1078 = vset.pattern.permute.xlu0 0
          %1079 = vperm.xlu0 %1078, %v1076
          %v1080 = vpop.permute.xlu0 %1079
          %v1082 = vrcp.pop %v1080
          %v1083 = vmul.f32 %v1075, %v1082
          %1084 = vst.msk [vmem:[#allocation4] sm:$0xff] %vm522, %v1083
          %v1085 = vld [vmem:[#allocation4] sm:$0xff]
          %v1086 = vld [vmem:[#allocation3] sm:$0xff]
          %1088 = vset.pattern.permute.xlu0 1
          %1089 = vperm.xlu0 %1088, %v1086
          %v1090 = vpop.permute.xlu0 %1089
          %v1092 = vrcp.pop %v1090
          %v1093 = vmul.f32 %v1085, %v1092
          %1094 = vst.msk [vmem:[#allocation4] sm:$0xff] %vm791, %v1093
          %v1095 = vld [vmem:[#allocation4] sm:$0xff]
          %v1096 = vld [vmem:[#allocation3] sm:$0xff]
          %1098 = vset.pattern.permute.xlu0 2
          %1099 = vperm.xlu0 %1098, %v1096
          %v1100 = vpop.permute.xlu0 %1099
          %v1102 = vrcp.pop %v1100
          %v1103 = vmul.f32 %v1095, %v1102
          %1104 = vst.msk [vmem:[#allocation4] sm:$0xff] %vm929, %v1103
          %v1105 = vld [vmem:[#allocation4] sm:$0xff]
          %v1106 = vld [vmem:[#allocation3] sm:$0xff]
          %1108 = vset.pattern.permute.xlu0 3
          %1109 = vperm.xlu0 %1108, %v1106
          %v1110 = vpop.permute.xlu0 %1109
          %v1112 = vrcp.pop %v1110
          %v1113 = vmul.f32 %v1105, %v1112
          %1114 = vst.msk [vmem:[#allocation4] sm:$0xff] %vm1067, %v1113
          %v1115 = vld [vmem:[#allocation4] sm:$0xff]
          %v1116 = vpack.c.bf16 %v1115, %v1115
          %v1117 = vld [vmem:[%s451] sm:$0xff]
          %v1118 = vld [vmem:[#allocation14] sm:$0x1]
          %v1120 = vlaneseq
          %v1121 = vshrl.u32 %v1120, 7
          %v1122 = vsub.s32 0, %v1121
          %v1123 = vrot.slane %v1118, %v1122
          %v1125 = vadd.f32 %v1117, %v1123
          %v1126 = vld [vmem:[#allocation13] sm:$0xf]
          %v1127 = vld [vmem:[#allocation13 + $0x4] sm:$0xf]
          %v1128 = vld [vmem:[#allocation13 + $0x8] sm:$0xf]
          %v1129 = vld [vmem:[#allocation13 + $0xc] sm:$0xf]
          %v1134 = vunpack.c.l.b16 %v1126
          %v1135 = vunpack.c.l.b16 %v1127
          %v1136 = vunpack.c.l.b16 %v1128
          %v1137 = vunpack.c.l.b16 %v1129
          %v1138 = vpack.c.b16 %v1135, %v1134
          %v1139 = vpack.c.b16 %v1137, %v1136
          %vm1142 = vcmask 261120
          %v1144 = vsel %vm1142, %v1116, 0
          %1146 = vmatprep.subr.bf16.mxu0 0
          %1147 = vmatpush1.bf16.msra.mxu0 %v1138
          %1148 = vmatprep.subr.bf16.mxu0 0
          %1149 = vmatpush1.bf16.msra.mxu0 %v1139
          %1150 = vmatprep.subr.bf16.mxu0 0
          %1151 = vmatpush1.bf16.msra.mxu0 0
          %1152 = vmatprep.subr.bf16.mxu0 0
          %1153 = vmatpush1.bf16.msra.mxu0 0
          %1154 = vmatprep.subr.bf16.mxu0 0
          %1155 = vmatpush1.bf16.msra.mxu0 0
          %1156 = vmatprep.subr.bf16.mxu0 0
          %1157 = vmatpush1.bf16.msra.mxu0 0
          %1158 = vmatprep.subr.bf16.mxu0 0
          %1159 = vmatpush1.bf16.msra.mxu0 0
          %1160 = vmatprep.subr.bf16.mxu0 0
          %1161 = vmatpush1.bf16.msra.mxu0 0
          %1162 = vmatprep.subr.bf16.mxu0 0
          %1163 = vmatpush1.bf16.msra.mxu0 0
          %1164 = vmatprep.subr.bf16.mxu0 0
          %1165 = vmatpush1.bf16.msra.mxu0 0
          %1166 = vmatprep.subr.bf16.mxu0 0
          %1167 = vmatpush1.bf16.msra.mxu0 0
          %1168 = vmatprep.subr.bf16.mxu0 0
          %1169 = vmatpush1.bf16.msra.mxu0 0
          %1170 = vmatprep.subr.bf16.mxu0 0
          %1171 = vmatpush1.bf16.msra.mxu0 0
          %1172 = vmatprep.subr.bf16.mxu0 0
          %1173 = vmatpush1.bf16.msra.mxu0 0
          %1174 = vmatprep.subr.bf16.mxu0 0
          %1175 = vmatpush1.bf16.msra.mxu0 0
          %1176 = vmatprep.subr.bf16.mxu0 0
          %1177 = vmatpush1.bf16.msra.mxu0 0
          %1178 = vmatprep.mubr.bf16.mxu0 0
          %1179 = vmatmul.mubr.bf16.gmra.mrb[0].mxu0 %v1144
          %v1180 = vpop.f32.mrb[0].mxu0
          %v1181 = vadd.f32 0.0, %v1180
          %v1182 = vpop.f32.mrb[0].mxu0
          %v1183 = vpop.f32.mrb[0].mxu0
          %v1184 = vpop.f32.mrb[0].mxu0
          %1185 = vdwg.mxu0
          %v1186 = vadd.f32 %v1125, %v1181
          %1187 = vst.msk [vmem:[%s501] sm:$0xff] %vm1142, %v1186
        $region84: #{right_transformer_block.10} parent=47 // pred_fallthru
          _
        %s1188 = sand.u32 %s244, 1
        %s1189 = scalar_lea.sflag [#allocation7], %s1188
        %s1190 = sand.u32 %s244, 1
        %s1191 = smul.addr %s1190, 8
        %s1192 = scalar_lea.vmem [#allocation17], %s1191
        // Predicated region
        $region85: #{right_transformer_block.10} parent=47 // pred_check
          %p1193 = pneg %p254
        $region86: #{right_transformer_block.10} parent=47 // pred_check_branch
          %1195 = sbr.rel (%p1193) target = $region88
        $region87: #{right_transformer_block.10} parent=47 // pred_region
          %s1197 = ssub.s32 128, 128
          %1198 = vsyncadd %s1189, %s1197
          %s1199 = sadd.s32 %s37, %s36
          %s1200 = smul.addr %s1199, 128
          %s1201 = scalar_lea.hbm %s7, %s1200
          %s1203 = sshll.u32 %s1192, 4
          %s1204 = int_to_ptr.vmem [resolvable:$true] %s1203
          %1206 = dma.vmem_to_hbm [thread:$0]  %s1204, 128, %s1201, %s1189
        $region88: #{right_transformer_block.10} parent=47 // pred_fallthru
          _
      $region48: #{right_transformer_block.10} parent=5 // pred_fallthru
        _
      %p1207 = scmp.le.s32.totalorder 2, %s26
      // Predicated region
      $region89: #{right_transformer_block.10} parent=5 // pred_check
        %p1208 = pneg %p1207
      $region90: #{right_transformer_block.10} parent=5 // pred_check_branch
        %1210 = sbr.rel (%p1208) target = $region92
      $region91: #{right_transformer_block.10} parent=5 // pred_region
        %s1211 = ssub.s32 %s26, 2
        // Predicated region
        $region93: #{right_transformer_block.10} parent=91 // pred_check
          %p1212 = pneg %p260
        $region94: #{right_transformer_block.10} parent=91 // pred_check_branch
          %1214 = sbr.rel (%p1212) target = $region96
        $region95: #{right_transformer_block.10} parent=91 // pred_region
          %s1215 = sand.u32 %s245, 1
          %s1216 = scalar_lea.sflag [#allocation7], %s1215
          %s1217 = sand.u32 %s245, 1
          %s1218 = smul.addr %s1217, 8
          %s1219 = scalar_lea.vmem [#allocation17], %s1218
          %1220 = dma.done %s1216, 128
        $region96: #{right_transformer_block.10} parent=91 // pred_fallthru
          _
      $region92: #{right_transformer_block.10} parent=5 // pred_fallthru
        _
    $region6: #{right_transformer_block.10} parent=1 // loop_footer
      %s30 = sadd.s32 1, %s26
    $region7: #{right_transformer_block.10} parent=1 // loop_footer_branch
      %25 = sbr.rel target = $region3
    $region8: #{right_transformer_block.10} parent=1 // loop_exit
      _
    %1221 = vsyncpa [#allocation6], 1
    %s1222 = scalar_lea.sflag [#allocation6], 1
    %1223 = vsyncpa %s1222, 1
    %1224 = vsyncpa [#allocation9], 1
    %s1225 = scalar_lea.sflag [#allocation9], 1
    %1226 = vsyncpa %s1225, 1
    %1227 = vsyncpa [#allocation12], 1
    %s1228 = scalar_lea.sflag [#allocation12], 1
    %1229 = vsyncpa %s1228, 1
    %1230 = vsyncpa [#allocation15], 1
    %1231 = vsyncpa [#allocation7], 1
    %s1232 = scalar_lea.sflag [#allocation7], 1
    %1233 = vsyncpa %s1232, 1

</llo_original>
